<compile_context>
chip_gen: v7x
topology: tpu7x:2x2x1
jax: 0.10.0
libtpu: 0.0.40
codegen_flags: <defaults>
</compile_context>

<pallas_src>
import functools

import jax
import jax.numpy as jnp
import numpy as np
from jax import lax
from jax.experimental import pallas as pl
from jax.experimental.pallas import tpu as pltpu

# Model dimensions from the PyTorch module.
INPUT_SIZE = 30 + 20 + 2      # 52
HIDDEN_SIZE = 64
OUTPUT_SIZE = 20
OUT_PAD = 128                 # lane-dense output width; real data lives in [:, :20]
N_HH_LAYERS = 26              # Linear(hidden, hidden) + ReLU blocks in the Sequential


def gen_mlp_kernel(x_ref, w_in_ref, b_in_ref, w_hh_ref, b_hh_ref,
                   w_out_ref, b_out_ref, a_ch_ref, o_ref):
    """One batch tile: full MLP forward + fused affine rescale (lane-dense output)."""
    xf = x_ref[...]                                              # (TB, 52) f32

    # Input layer + ReLU (bf16 MXU pass, f32 accumulation; biases kept in f32).
    h = jnp.dot(xf.astype(jnp.bfloat16), w_in_ref[...],
                preferred_element_type=jnp.float32) + b_in_ref[...]
    h = jnp.maximum(h, 0.0).astype(jnp.bfloat16)

    # Hidden Linear(64,64)+ReLU stack, fully unrolled with static weight indices.
    # The chain is a strict dependency, so live ranges stay bounded (~1 activation
    # tile) while the scheduler overlaps each layer's weight loads with compute.
    for i in range(N_HH_LAYERS):
        z = jnp.dot(h, w_hh_ref[i], preferred_element_type=jnp.float32) + b_hh_ref[i]
        h = jnp.maximum(z, 0.0).astype(jnp.bfloat16)

    # Output layer (padded to 128 lanes; pad columns/biases are zero) + Tanh.
    y = jnp.tanh(jnp.dot(h, w_out_ref[...],
                         preferred_element_type=jnp.float32) + b_out_ref[...])

    # Per-column affine rescale: out = center + half * tanh_out.
    # Single fused HIGHEST-precision dot against [A_center | A_half] (entries are
    # 0 / +-0.5, so HIGHEST keeps it f32-exact), then a static lane split at 128.
    ch = jnp.dot(xf, a_ch_ref[...], precision=lax.Precision.HIGHEST,
                 preferred_element_type=jnp.float32)             # (TB, 256)
    center = ch[:, :OUT_PAD]
    half = ch[:, OUT_PAD:]
    # All 128 output lanes are written (pad lanes evaluate to exactly 0).
    o_ref[...] = center + half * y


def _round_up(n, m):
    return ((n + m - 1) // m) * m


@functools.lru_cache(maxsize=None)
def _affine_matrix():
    """Constant (52, 256) matrix [A_center | A_half] encoding the PyTorch rescale.

    For output column j (j < 20):
      Column 4i+0: center = half = x[:, -2] / 2
      Column 4i+1: center = half = x[:, -1] / 2
      Column 4i+2: center = (x[30+4i] + x[31+4i])/2, half = (x[31+4i] - x[30+4i])/2
      Column 4i+3: center = (x[32+4i] + x[33+4i])/2, half = (x[33+4i] - x[32+4i])/2
    Columns 20..127 of each half are zero (lane padding).
    """
    a_c = np.zeros((INPUT_SIZE, OUT_PAD), np.float32)
    a_h = np.zeros((INPUT_SIZE, OUT_PAD), np.float32)
    for i in range(5):
        a_c[INPUT_SIZE - 2, 4 * i + 0] = 0.5
        a_h[INPUT_SIZE - 2, 4 * i + 0] = 0.5
        a_c[INPUT_SIZE - 1, 4 * i + 1] = 0.5
        a_h[INPUT_SIZE - 1, 4 * i + 1] = 0.5
        a_c[30 + 4 * i + 0, 4 * i + 2] = 0.5
        a_c[30 + 4 * i + 1, 4 * i + 2] = 0.5
        a_h[30 + 4 * i + 0, 4 * i + 2] = -0.5
        a_h[30 + 4 * i + 1, 4 * i + 2] = 0.5
        a_c[30 + 4 * i + 2, 4 * i + 3] = 0.5
        a_c[30 + 4 * i + 3, 4 * i + 3] = 0.5
        a_h[30 + 4 * i + 2, 4 * i + 3] = -0.5
        a_h[30 + 4 * i + 3, 4 * i + 3] = 0.5
    return np.concatenate([a_c, a_h], axis=1)        # (52, 256)


def gen_mlp_forward(x, params, *, tile_b=None):
    # TODO(synk): for repeated inference steps, keep the weight stack VMEM-resident
    # across calls (cross-call prefetch via semaphore/VMEM-ref outputs, or fold
    # multiple steps into one grid axis) instead of re-DMAing ~230 KiB per call.
    # TODO(synk): on v7x only, w_hh could be stored in fp8 (float8_e4m3) for ~2x MXU
    # rate on the hidden layers; left bf16 here to stay portable across v5e/v6e/v7x.
    w_in, b_in, w_hh, b_hh, w_out, b_out = params
    B = x.shape[0]
    if tile_b is None:
        if B <= 16:
            tile_b = 16
        else:
            # >= 2 batch tiles so the "parallel" axis shards across both TCs on v7x;
            # up to 512 rows/tile to amortize the serial 27-layer 64x64 matmul chain.
            tile_b = min(512, _round_up(pl.cdiv(B, 2), 16))
    B_pad = _round_up(B, tile_b)
    if B_pad != B:
        x = jnp.pad(x, ((0, B_pad - B), (0, 0)))
    n_tiles = B_pad // tile_b

    # Lane-dense padding of the output layer (zeros -> pad lanes produce exact 0).
    w_out_p = jnp.pad(w_out, ((0, 0), (0, OUT_PAD - OUTPUT_SIZE)))
    b_out_p = jnp.pad(b_out, ((0, 0), (0, OUT_PAD - OUTPUT_SIZE)))
    a_ch = jnp.asarray(_affine_matrix())

    # Weight/bias/affine blocks use constant index_maps, so they are DMA'd once and
    # stay VMEM-resident while x/out tiles pipeline.  (Total footprint < 1 MiB, so
    # double-buffering them is harmless; single-buffering left as a future tweak.)
    in_specs = [
        pl.BlockSpec((tile_b, INPUT_SIZE), lambda i: (i, 0)),                        # x tile
        pl.BlockSpec((INPUT_SIZE, HIDDEN_SIZE), lambda i: (0, 0)),                   # w_in
        pl.BlockSpec((1, HIDDEN_SIZE), lambda i: (0, 0)),                            # b_in
        pl.BlockSpec((N_HH_LAYERS, HIDDEN_SIZE, HIDDEN_SIZE), lambda i: (0, 0, 0)),  # w_hh
        pl.BlockSpec((N_HH_LAYERS, 1, HIDDEN_SIZE), lambda i: (0, 0, 0)),            # b_hh
        pl.BlockSpec((HIDDEN_SIZE, OUT_PAD), lambda i: (0, 0)),                      # w_out (padded)
        pl.BlockSpec((1, OUT_PAD), lambda i: (0, 0)),                                # b_out (padded)
        pl.BlockSpec((INPUT_SIZE, 2 * OUT_PAD), lambda i: (0, 0)),                   # [A_c | A_h]
    ]
    out_specs = pl.BlockSpec((tile_b, OUT_PAD), lambda i: (i, 0))

    mm_flops = (INPUT_SIZE * HIDDEN_SIZE
                + N_HH_LAYERS * HIDDEN_SIZE * HIDDEN_SIZE
                + HIDDEN_SIZE * OUT_PAD
                + INPUT_SIZE * 2 * OUT_PAD)
    param_bytes = sum(int(np.prod(p.shape)) * p.dtype.itemsize
                      for p in (w_in, b_in, w_hh, b_hh, w_out_p, b_out_p, a_ch))
    cost = pl.CostEstimate(
        flops=2 * B_pad * mm_flops,
        transcendentals=B_pad * OUT_PAD,
        bytes_accessed=param_bytes + B_pad * INPUT_SIZE * 4 + B_pad * OUT_PAD * 4,
    )

    out = pl.pallas_call(
        gen_mlp_kernel,
        out_shape=jax.ShapeDtypeStruct((B_pad, OUT_PAD), jnp.float32),
        grid=(n_tiles,),
        in_specs=in_specs,
        out_specs=out_specs,
        compiler_params=pltpu.CompilerParams(
            dimension_semantics=("parallel",)),  # v7x: shard batch tiles across both TCs
        cost_estimate=cost,
    )(x, w_in, b_in, w_hh, b_hh, w_out_p, b_out_p, a_ch)
    return out[:B, :OUTPUT_SIZE]


def init_params(key):
    """PyTorch-Linear-style U(-1/sqrt(fan_in), 1/sqrt(fan_in)) init; bf16 weights, f32 biases."""
    n_layers = N_HH_LAYERS + 2
    keys = jax.random.split(key, 2 * n_layers)

    def lin(kw, kb, fan_in, fan_out):
        bound = 1.0 / np.sqrt(fan_in)
        w = jax.random.uniform(kw, (fan_in, fan_out), jnp.float32, -bound, bound)
        b = jax.random.uniform(kb, (1, fan_out), jnp.float32, -bound, bound)
        return w.astype(jnp.bfloat16), b

    w_in, b_in = lin(keys[0], keys[1], INPUT_SIZE, HIDDEN_SIZE)
    whs, bhs = [], []
    for i in range(N_HH_LAYERS):
        w, b = lin(keys[2 + 2 * i], keys[3 + 2 * i], HIDDEN_SIZE, HIDDEN_SIZE)
        whs.append(w)
        bhs.append(b)
    w_hh = jnp.stack(whs)                     # (N_HH, 64, 64) bf16
    b_hh = jnp.stack(bhs)                     # (N_HH, 1, 64) f32
    w_out, b_out = lin(keys[-2], keys[-1], HIDDEN_SIZE, OUTPUT_SIZE)
    return w_in, b_in, w_hh, b_hh, w_out, b_out


def gen_mlp_ref(x, params):
    """Pure-JAX reference mirroring the PyTorch forward (same bf16-weight numerics)."""
    w_in, b_in, w_hh, b_hh, w_out, b_out = params
    h = jnp.maximum(jnp.dot(x.astype(jnp.bfloat16), w_in,
                            preferred_element_type=jnp.float32) + b_in, 0.0)
    for i in range(N_HH_LAYERS):
        h = jnp.maximum(jnp.dot(h.astype(jnp.bfloat16), w_hh[i],
                                preferred_element_type=jnp.float32) + b_hh[i], 0.0)
    y = jnp.tanh(jnp.dot(h.astype(jnp.bfloat16), w_out,
                         preferred_element_type=jnp.float32) + b_out)
    out = jnp.zeros_like(y)
    for i in range(5):
        out = out.at[:, 4 * i + 0].set(x[:, -2] / 2 + x[:, -2] / 2 * y[:, 4 * i + 0])
        out = out.at[:, 4 * i + 1].set(x[:, -1] / 2 + x[:, -1] / 2 * y[:, 4 * i + 1])
        out = out.at[:, 4 * i + 2].set((x[:, 30 + 4 * i + 0] + x[:, 30 + 4 * i + 1]) / 2
                                       + (x[:, 30 + 4 * i + 1] - x[:, 30 + 4 * i + 0]) / 2 * y[:, 4 * i + 2])
        out = out.at[:, 4 * i + 3].set((x[:, 30 + 4 * i + 2] + x[:, 30 + 4 * i + 3]) / 2
                                       + (x[:, 30 + 4 * i + 3] - x[:, 30 + 4 * i + 2]) / 2 * y[:, 4 * i + 3])
    return out


if __name__ == "__main__":
    key = jax.random.PRNGKey(0)
    k_params, k_x = jax.random.split(key)

    batch = 256                                    # auto tile_b=128 -> 2 grid tiles (both TCs on v7x)
    x = jax.random.uniform(k_x, (batch, INPUT_SIZE), jnp.float32, -1.0, 1.0)
    params = init_params(k_params)

    fwd = jax.jit(gen_mlp_forward)
    out = jax.block_until_ready(fwd(x, params))
    assert out.shape == (batch, OUTPUT_SIZE), out.shape

    ref = jax.block_until_ready(gen_mlp_ref(x, params))
    # Tolerance documents the bf16-weight / bf16-MXU-pass numerics (shared by ref & kernel).
    np.testing.assert_allclose(np.asarray(out), np.asarray(ref), rtol=2e-3, atol=2e-3)

    print("KERNEL_OK")
</pallas_src>

<mosaic_0001>
module attributes {stable_mosaic.version = 11 : i64} {
  func.func @gen_mlp_kernel(%arg0: i32, %arg1: memref<128x52xf32, #tpu.memory_space<vmem>>, %arg2: memref<52x64xbf16, #tpu.memory_space<vmem>>, %arg3: memref<1x64xf32, #tpu.memory_space<vmem>>, %arg4: memref<26x64x64xbf16, #tpu.memory_space<vmem>>, %arg5: memref<26x1x64xf32, #tpu.memory_space<vmem>>, %arg6: memref<64x128xbf16, #tpu.memory_space<vmem>>, %arg7: memref<1x128xf32, #tpu.memory_space<vmem>>, %arg8: memref<52x256xf32, #tpu.memory_space<vmem>>, %arg9: memref<128x128xf32, #tpu.memory_space<vmem>>) attributes {dimension_semantics = [#tpu.dimension_semantics<parallel>], iteration_bounds = array<i64: 2>, scalar_prefetch = 0 : i64, scratch_operands = 0 : i64, tpu.core_type = #tpu.core_type<tc>, window_params = [{transform_indices = @transform_0, window_bounds = array<i64: 128, 52>}, {pipeline_mode = #tpu.pipeline_mode<synchronous>, transform_indices = @transform_1, window_bounds = array<i64: 52, 64>}, {pipeline_mode = #tpu.pipeline_mode<synchronous>, transform_indices = @transform_2, window_bounds = array<i64: 1, 64>}, {pipeline_mode = #tpu.pipeline_mode<synchronous>, transform_indices = @transform_3, window_bounds = array<i64: 26, 64, 64>}, {pipeline_mode = #tpu.pipeline_mode<synchronous>, transform_indices = @transform_4, window_bounds = array<i64: 26, 1, 64>}, {pipeline_mode = #tpu.pipeline_mode<synchronous>, transform_indices = @transform_5, window_bounds = array<i64: 64, 128>}, {pipeline_mode = #tpu.pipeline_mode<synchronous>, transform_indices = @transform_6, window_bounds = array<i64: 1, 128>}, {pipeline_mode = #tpu.pipeline_mode<synchronous>, transform_indices = @transform_7, window_bounds = array<i64: 52, 256>}, {transform_indices = @transform_8, window_bounds = array<i64: 128, 128>}]} {
    %c0 = arith.constant 0 : index
    %c0_0 = arith.constant 0 : index
    %0 = vector.load %arg1[%c0, %c0_0] : memref<128x52xf32, #tpu.memory_space<vmem>>, vector<128x52xf32>
    %1 = arith.truncf %0 : vector<128x52xf32> to vector<128x52xbf16>
    %c0_1 = arith.constant 0 : index
    %c0_2 = arith.constant 0 : index
    %2 = vector.load %arg2[%c0_1, %c0_2] : memref<52x64xbf16, #tpu.memory_space<vmem>>, vector<52x64xbf16>
    %cst = arith.constant dense<0.000000e+00> : vector<128x64xf32>
    %3 = tpu.matmul %1, %2, %cst {dimension_numbers = #tpu.dot_dimension_numbers<[1], [0], [0], [1], [0, 0, 1, 1], [], []>} : vector<128x52xbf16>, vector<52x64xbf16>, vector<128x64xf32> -> vector<128x64xf32>
    %c0_3 = arith.constant 0 : index
    %c0_4 = arith.constant 0 : index
    %4 = vector.load %arg3[%c0_3, %c0_4] : memref<1x64xf32, #tpu.memory_space<vmem>>, vector<1x64xf32>
    %5 = vector.broadcast %4 : vector<1x64xf32> to vector<128x64xf32>
    %6 = arith.addf %3, %5 : vector<128x64xf32>
    %cst_5 = arith.constant 0.000000e+00 : f32
    %7 = vector.broadcast %cst_5 : f32 to vector<128x64xf32>
    %8 = arith.maximumf %6, %7 : vector<128x64xf32>
    %9 = arith.truncf %8 : vector<128x64xf32> to vector<128x64xbf16>
    %c0_6 = arith.constant 0 : index
    %c0_7 = arith.constant 0 : index
    %c0_8 = arith.constant 0 : index
    %10 = vector.load %arg4[%c0_6, %c0_7, %c0_8] : memref<26x64x64xbf16, #tpu.memory_space<vmem>>, vector<1x64x64xbf16>
    %11 = vector.shape_cast %10 : vector<1x64x64xbf16> to vector<64x64xbf16>
    %cst_9 = arith.constant dense<0.000000e+00> : vector<128x64xf32>
    %12 = tpu.matmul %9, %11, %cst_9 {dimension_numbers = #tpu.dot_dimension_numbers<[1], [0], [0], [1], [0, 0, 1, 1], [], []>} : vector<128x64xbf16>, vector<64x64xbf16>, vector<128x64xf32> -> vector<128x64xf32>
    %c0_10 = arith.constant 0 : index
    %c0_11 = arith.constant 0 : index
    %c0_12 = arith.constant 0 : index
    %13 = vector.load %arg5[%c0_10, %c0_11, %c0_12] : memref<26x1x64xf32, #tpu.memory_space<vmem>>, vector<1x1x64xf32>
    %14 = vector.shape_cast %13 : vector<1x1x64xf32> to vector<1x64xf32>
    %15 = vector.broadcast %14 : vector<1x64xf32> to vector<128x64xf32>
    %16 = arith.addf %12, %15 : vector<128x64xf32>
    %cst_13 = arith.constant 0.000000e+00 : f32
    %17 = vector.broadcast %cst_13 : f32 to vector<128x64xf32>
    %18 = arith.maximumf %16, %17 : vector<128x64xf32>
    %19 = arith.truncf %18 : vector<128x64xf32> to vector<128x64xbf16>
    %c1 = arith.constant 1 : index
    %c0_14 = arith.constant 0 : index
    %c0_15 = arith.constant 0 : index
    %20 = vector.load %arg4[%c1, %c0_14, %c0_15] : memref<26x64x64xbf16, #tpu.memory_space<vmem>>, vector<1x64x64xbf16>
    %21 = vector.shape_cast %20 : vector<1x64x64xbf16> to vector<64x64xbf16>
    %cst_16 = arith.constant dense<0.000000e+00> : vector<128x64xf32>
    %22 = tpu.matmul %19, %21, %cst_16 {dimension_numbers = #tpu.dot_dimension_numbers<[1], [0], [0], [1], [0, 0, 1, 1], [], []>} : vector<128x64xbf16>, vector<64x64xbf16>, vector<128x64xf32> -> vector<128x64xf32>
    %c1_17 = arith.constant 1 : index
    %c0_18 = arith.constant 0 : index
    %c0_19 = arith.constant 0 : index
    %23 = vector.load %arg5[%c1_17, %c0_18, %c0_19] : memref<26x1x64xf32, #tpu.memory_space<vmem>>, vector<1x1x64xf32>
    %24 = vector.shape_cast %23 : vector<1x1x64xf32> to vector<1x64xf32>
    %25 = vector.broadcast %24 : vector<1x64xf32> to vector<128x64xf32>
    %26 = arith.addf %22, %25 : vector<128x64xf32>
    %cst_20 = arith.constant 0.000000e+00 : f32
    %27 = vector.broadcast %cst_20 : f32 to vector<128x64xf32>
    %28 = arith.maximumf %26, %27 : vector<128x64xf32>
    %29 = arith.truncf %28 : vector<128x64xf32> to vector<128x64xbf16>
    %c2 = arith.constant 2 : index
    %c0_21 = arith.constant 0 : index
    %c0_22 = arith.constant 0 : index
    %30 = vector.load %arg4[%c2, %c0_21, %c0_22] : memref<26x64x64xbf16, #tpu.memory_space<vmem>>, vector<1x64x64xbf16>
    %31 = vector.shape_cast %30 : vector<1x64x64xbf16> to vector<64x64xbf16>
    %cst_23 = arith.constant dense<0.000000e+00> : vector<128x64xf32>
    %32 = tpu.matmul %29, %31, %cst_23 {dimension_numbers = #tpu.dot_dimension_numbers<[1], [0], [0], [1], [0, 0, 1, 1], [], []>} : vector<128x64xbf16>, vector<64x64xbf16>, vector<128x64xf32> -> vector<128x64xf32>
    %c2_24 = arith.constant 2 : index
    %c0_25 = arith.constant 0 : index
    %c0_26 = arith.constant 0 : index
    %33 = vector.load %arg5[%c2_24, %c0_25, %c0_26] : memref<26x1x64xf32, #tpu.memory_space<vmem>>, vector<1x1x64xf32>
    %34 = vector.shape_cast %33 : vector<1x1x64xf32> to vector<1x64xf32>
    %35 = vector.broadcast %34 : vector<1x64xf32> to vector<128x64xf32>
    %36 = arith.addf %32, %35 : vector<128x64xf32>
    %cst_27 = arith.constant 0.000000e+00 : f32
    %37 = vector.broadcast %cst_27 : f32 to vector<128x64xf32>
    %38 = arith.maximumf %36, %37 : vector<128x64xf32>
    %39 = arith.truncf %38 : vector<128x64xf32> to vector<128x64xbf16>
    %c3 = arith.constant 3 : index
    %c0_28 = arith.constant 0 : index
    %c0_29 = arith.constant 0 : index
    %40 = vector.load %arg4[%c3, %c0_28, %c0_29] : memref<26x64x64xbf16, #tpu.memory_space<vmem>>, vector<1x64x64xbf16>
    %41 = vector.shape_cast %40 : vector<1x64x64xbf16> to vector<64x64xbf16>
    %cst_30 = arith.constant dense<0.000000e+00> : vector<128x64xf32>
    %42 = tpu.matmul %39, %41, %cst_30 {dimension_numbers = #tpu.dot_dimension_numbers<[1], [0], [0], [1], [0, 0, 1, 1], [], []>} : vector<128x64xbf16>, vector<64x64xbf16>, vector<128x64xf32> -> vector<128x64xf32>
    %c3_31 = arith.constant 3 : index
    %c0_32 = arith.constant 0 : index
    %c0_33 = arith.constant 0 : index
    %43 = vector.load %arg5[%c3_31, %c0_32, %c0_33] : memref<26x1x64xf32, #tpu.memory_space<vmem>>, vector<1x1x64xf32>
    %44 = vector.shape_cast %43 : vector<1x1x64xf32> to vector<1x64xf32>
    %45 = vector.broadcast %44 : vector<1x64xf32> to vector<128x64xf32>
    %46 = arith.addf %42, %45 : vector<128x64xf32>
    %cst_34 = arith.constant 0.000000e+00 : f32
    %47 = vector.broadcast %cst_34 : f32 to vector<128x64xf32>
    %48 = arith.maximumf %46, %47 : vector<128x64xf32>
    %49 = arith.truncf %48 : vector<128x64xf32> to vector<128x64xbf16>
    %c4 = arith.constant 4 : index
    %c0_35 = arith.constant 0 : index
    %c0_36 = arith.constant 0 : index
    %50 = vector.load %arg4[%c4, %c0_35, %c0_36] : memref<26x64x64xbf16, #tpu.memory_space<vmem>>, vector<1x64x64xbf16>
    %51 = vector.shape_cast %50 : vector<1x64x64xbf16> to vector<64x64xbf16>
    %cst_37 = arith.constant dense<0.000000e+00> : vector<128x64xf32>
    %52 = tpu.matmul %49, %51, %cst_37 {dimension_numbers = #tpu.dot_dimension_numbers<[1], [0], [0], [1], [0, 0, 1, 1], [], []>} : vector<128x64xbf16>, vector<64x64xbf16>, vector<128x64xf32> -> vector<128x64xf32>
    %c4_38 = arith.constant 4 : index
    %c0_39 = arith.constant 0 : index
    %c0_40 = arith.constant 0 : index
    %53 = vector.load %arg5[%c4_38, %c0_39, %c0_40] : memref<26x1x64xf32, #tpu.memory_space<vmem>>, vector<1x1x64xf32>
    %54 = vector.shape_cast %53 : vector<1x1x64xf32> to vector<1x64xf32>
    %55 = vector.broadcast %54 : vector<1x64xf32> to vector<128x64xf32>
    %56 = arith.addf %52, %55 : vector<128x64xf32>
    %cst_41 = arith.constant 0.000000e+00 : f32
    %57 = vector.broadcast %cst_41 : f32 to vector<128x64xf32>
    %58 = arith.maximumf %56, %57 : vector<128x64xf32>
    %59 = arith.truncf %58 : vector<128x64xf32> to vector<128x64xbf16>
    %c5 = arith.constant 5 : index
    %c0_42 = arith.constant 0 : index
    %c0_43 = arith.constant 0 : index
    %60 = vector.load %arg4[%c5, %c0_42, %c0_43] : memref<26x64x64xbf16, #tpu.memory_space<vmem>>, vector<1x64x64xbf16>
    %61 = vector.shape_cast %60 : vector<1x64x64xbf16> to vector<64x64xbf16>
    %cst_44 = arith.constant dense<0.000000e+00> : vector<128x64xf32>
    %62 = tpu.matmul %59, %61, %cst_44 {dimension_numbers = #tpu.dot_dimension_numbers<[1], [0], [0], [1], [0, 0, 1, 1], [], []>} : vector<128x64xbf16>, vector<64x64xbf16>, vector<128x64xf32> -> vector<128x64xf32>
    %c5_45 = arith.constant 5 : index
    %c0_46 = arith.constant 0 : index
    %c0_47 = arith.constant 0 : index
    %63 = vector.load %arg5[%c5_45, %c0_46, %c0_47] : memref<26x1x64xf32, #tpu.memory_space<vmem>>, vector<1x1x64xf32>
    %64 = vector.shape_cast %63 : vector<1x1x64xf32> to vector<1x64xf32>
    %65 = vector.broadcast %64 : vector<1x64xf32> to vector<128x64xf32>
    %66 = arith.addf %62, %65 : vector<128x64xf32>
    %cst_48 = arith.constant 0.000000e+00 : f32
    %67 = vector.broadcast %cst_48 : f32 to vector<128x64xf32>
    %68 = arith.maximumf %66, %67 : vector<128x64xf32>
    %69 = arith.truncf %68 : vector<128x64xf32> to vector<128x64xbf16>
    %c6 = arith.constant 6 : index
    %c0_49 = arith.constant 0 : index
    %c0_50 = arith.constant 0 : index
    %70 = vector.load %arg4[%c6, %c0_49, %c0_50] : memref<26x64x64xbf16, #tpu.memory_space<vmem>>, vector<1x64x64xbf16>
    %71 = vector.shape_cast %70 : vector<1x64x64xbf16> to vector<64x64xbf16>
    %cst_51 = arith.constant dense<0.000000e+00> : vector<128x64xf32>
    %72 = tpu.matmul %69, %71, %cst_51 {dimension_numbers = #tpu.dot_dimension_numbers<[1], [0], [0], [1], [0, 0, 1, 1], [], []>} : vector<128x64xbf16>, vector<64x64xbf16>, vector<128x64xf32> -> vector<128x64xf32>
    %c6_52 = arith.constant 6 : index
    %c0_53 = arith.constant 0 : index
    %c0_54 = arith.constant 0 : index
    %73 = vector.load %arg5[%c6_52, %c0_53, %c0_54] : memref<26x1x64xf32, #tpu.memory_space<vmem>>, vector<1x1x64xf32>
    %74 = vector.shape_cast %73 : vector<1x1x64xf32> to vector<1x64xf32>
    %75 = vector.broadcast %74 : vector<1x64xf32> to vector<128x64xf32>
    %76 = arith.addf %72, %75 : vector<128x64xf32>
    %cst_55 = arith.constant 0.000000e+00 : f32
    %77 = vector.broadcast %cst_55 : f32 to vector<128x64xf32>
    %78 = arith.maximumf %76, %77 : vector<128x64xf32>
    %79 = arith.truncf %78 : vector<128x64xf32> to vector<128x64xbf16>
    %c7 = arith.constant 7 : index
    %c0_56 = arith.constant 0 : index
    %c0_57 = arith.constant 0 : index
    %80 = vector.load %arg4[%c7, %c0_56, %c0_57] : memref<26x64x64xbf16, #tpu.memory_space<vmem>>, vector<1x64x64xbf16>
    %81 = vector.shape_cast %80 : vector<1x64x64xbf16> to vector<64x64xbf16>
    %cst_58 = arith.constant dense<0.000000e+00> : vector<128x64xf32>
    %82 = tpu.matmul %79, %81, %cst_58 {dimension_numbers = #tpu.dot_dimension_numbers<[1], [0], [0], [1], [0, 0, 1, 1], [], []>} : vector<128x64xbf16>, vector<64x64xbf16>, vector<128x64xf32> -> vector<128x64xf32>
    %c7_59 = arith.constant 7 : index
    %c0_60 = arith.constant 0 : index
    %c0_61 = arith.constant 0 : index
    %83 = vector.load %arg5[%c7_59, %c0_60, %c0_61] : memref<26x1x64xf32, #tpu.memory_space<vmem>>, vector<1x1x64xf32>
    %84 = vector.shape_cast %83 : vector<1x1x64xf32> to vector<1x64xf32>
    %85 = vector.broadcast %84 : vector<1x64xf32> to vector<128x64xf32>
    %86 = arith.addf %82, %85 : vector<128x64xf32>
    %cst_62 = arith.constant 0.000000e+00 : f32
    %87 = vector.broadcast %cst_62 : f32 to vector<128x64xf32>
    %88 = arith.maximumf %86, %87 : vector<128x64xf32>
    %89 = arith.truncf %88 : vector<128x64xf32> to vector<128x64xbf16>
    %c8 = arith.constant 8 : index
    %c0_63 = arith.constant 0 : index
    %c0_64 = arith.constant 0 : index
    %90 = vector.load %arg4[%c8, %c0_63, %c0_64] : memref<26x64x64xbf16, #tpu.memory_space<vmem>>, vector<1x64x64xbf16>
    %91 = vector.shape_cast %90 : vector<1x64x64xbf16> to vector<64x64xbf16>
    %cst_65 = arith.constant dense<0.000000e+00> : vector<128x64xf32>
    %92 = tpu.matmul %89, %91, %cst_65 {dimension_numbers = #tpu.dot_dimension_numbers<[1], [0], [0], [1], [0, 0, 1, 1], [], []>} : vector<128x64xbf16>, vector<64x64xbf16>, vector<128x64xf32> -> vector<128x64xf32>
    %c8_66 = arith.constant 8 : index
    %c0_67 = arith.constant 0 : index
    %c0_68 = arith.constant 0 : index
    %93 = vector.load %arg5[%c8_66, %c0_67, %c0_68] : memref<26x1x64xf32, #tpu.memory_space<vmem>>, vector<1x1x64xf32>
    %94 = vector.shape_cast %93 : vector<1x1x64xf32> to vector<1x64xf32>
    %95 = vector.broadcast %94 : vector<1x64xf32> to vector<128x64xf32>
    %96 = arith.addf %92, %95 : vector<128x64xf32>
    %cst_69 = arith.constant 0.000000e+00 : f32
    %97 = vector.broadcast %cst_69 : f32 to vector<128x64xf32>
    %98 = arith.maximumf %96, %97 : vector<128x64xf32>
    %99 = arith.truncf %98 : vector<128x64xf32> to vector<128x64xbf16>
    %c9 = arith.constant 9 : index
    %c0_70 = arith.constant 0 : index
    %c0_71 = arith.constant 0 : index
    %100 = vector.load %arg4[%c9, %c0_70, %c0_71] : memref<26x64x64xbf16, #tpu.memory_space<vmem>>, vector<1x64x64xbf16>
    %101 = vector.shape_cast %100 : vector<1x64x64xbf16> to vector<64x64xbf16>
    %cst_72 = arith.constant dense<0.000000e+00> : vector<128x64xf32>
    %102 = tpu.matmul %99, %101, %cst_72 {dimension_numbers = #tpu.dot_dimension_numbers<[1], [0], [0], [1], [0, 0, 1, 1], [], []>} : vector<128x64xbf16>, vector<64x64xbf16>, vector<128x64xf32> -> vector<128x64xf32>
    %c9_73 = arith.constant 9 : index
    %c0_74 = arith.constant 0 : index
    %c0_75 = arith.constant 0 : index
    %103 = vector.load %arg5[%c9_73, %c0_74, %c0_75] : memref<26x1x64xf32, #tpu.memory_space<vmem>>, vector<1x1x64xf32>
    %104 = vector.shape_cast %103 : vector<1x1x64xf32> to vector<1x64xf32>
    %105 = vector.broadcast %104 : vector<1x64xf32> to vector<128x64xf32>
    %106 = arith.addf %102, %105 : vector<128x64xf32>
    %cst_76 = arith.constant 0.000000e+00 : f32
    %107 = vector.broadcast %cst_76 : f32 to vector<128x64xf32>
    %108 = arith.maximumf %106, %107 : vector<128x64xf32>
    %109 = arith.truncf %108 : vector<128x64xf32> to vector<128x64xbf16>
    %c10 = arith.constant 10 : index
    %c0_77 = arith.constant 0 : index
    %c0_78 = arith.constant 0 : index
    %110 = vector.load %arg4[%c10, %c0_77, %c0_78] : memref<26x64x64xbf16, #tpu.memory_space<vmem>>, vector<1x64x64xbf16>
    %111 = vector.shape_cast %110 : vector<1x64x64xbf16> to vector<64x64xbf16>
    %cst_79 = arith.constant dense<0.000000e+00> : vector<128x64xf32>
    %112 = tpu.matmul %109, %111, %cst_79 {dimension_numbers = #tpu.dot_dimension_numbers<[1], [0], [0], [1], [0, 0, 1, 1], [], []>} : vector<128x64xbf16>, vector<64x64xbf16>, vector<128x64xf32> -> vector<128x64xf32>
    %c10_80 = arith.constant 10 : index
    %c0_81 = arith.constant 0 : index
    %c0_82 = arith.constant 0 : index
    %113 = vector.load %arg5[%c10_80, %c0_81, %c0_82] : memref<26x1x64xf32, #tpu.memory_space<vmem>>, vector<1x1x64xf32>
    %114 = vector.shape_cast %113 : vector<1x1x64xf32> to vector<1x64xf32>
    %115 = vector.broadcast %114 : vector<1x64xf32> to vector<128x64xf32>
    %116 = arith.addf %112, %115 : vector<128x64xf32>
    %cst_83 = arith.constant 0.000000e+00 : f32
    %117 = vector.broadcast %cst_83 : f32 to vector<128x64xf32>
    %118 = arith.maximumf %116, %117 : vector<128x64xf32>
    %119 = arith.truncf %118 : vector<128x64xf32> to vector<128x64xbf16>
    %c11 = arith.constant 11 : index
    %c0_84 = arith.constant 0 : index
    %c0_85 = arith.constant 0 : index
    %120 = vector.load %arg4[%c11, %c0_84, %c0_85] : memref<26x64x64xbf16, #tpu.memory_space<vmem>>, vector<1x64x64xbf16>
    %121 = vector.shape_cast %120 : vector<1x64x64xbf16> to vector<64x64xbf16>
    %cst_86 = arith.constant dense<0.000000e+00> : vector<128x64xf32>
    %122 = tpu.matmul %119, %121, %cst_86 {dimension_numbers = #tpu.dot_dimension_numbers<[1], [0], [0], [1], [0, 0, 1, 1], [], []>} : vector<128x64xbf16>, vector<64x64xbf16>, vector<128x64xf32> -> vector<128x64xf32>
    %c11_87 = arith.constant 11 : index
    %c0_88 = arith.constant 0 : index
    %c0_89 = arith.constant 0 : index
    %123 = vector.load %arg5[%c11_87, %c0_88, %c0_89] : memref<26x1x64xf32, #tpu.memory_space<vmem>>, vector<1x1x64xf32>
    %124 = vector.shape_cast %123 : vector<1x1x64xf32> to vector<1x64xf32>
    %125 = vector.broadcast %124 : vector<1x64xf32> to vector<128x64xf32>
    %126 = arith.addf %122, %125 : vector<128x64xf32>
    %cst_90 = arith.constant 0.000000e+00 : f32
    %127 = vector.broadcast %cst_90 : f32 to vector<128x64xf32>
    %128 = arith.maximumf %126, %127 : vector<128x64xf32>
    %129 = arith.truncf %128 : vector<128x64xf32> to vector<128x64xbf16>
    %c12 = arith.constant 12 : index
    %c0_91 = arith.constant 0 : index
    %c0_92 = arith.constant 0 : index
    %130 = vector.load %arg4[%c12, %c0_91, %c0_92] : memref<26x64x64xbf16, #tpu.memory_space<vmem>>, vector<1x64x64xbf16>
    %131 = vector.shape_cast %130 : vector<1x64x64xbf16> to vector<64x64xbf16>
    %cst_93 = arith.constant dense<0.000000e+00> : vector<128x64xf32>
    %132 = tpu.matmul %129, %131, %cst_93 {dimension_numbers = #tpu.dot_dimension_numbers<[1], [0], [0], [1], [0, 0, 1, 1], [], []>} : vector<128x64xbf16>, vector<64x64xbf16>, vector<128x64xf32> -> vector<128x64xf32>
    %c12_94 = arith.constant 12 : index
    %c0_95 = arith.constant 0 : index
    %c0_96 = arith.constant 0 : index
    %133 = vector.load %arg5[%c12_94, %c0_95, %c0_96] : memref<26x1x64xf32, #tpu.memory_space<vmem>>, vector<1x1x64xf32>
    %134 = vector.shape_cast %133 : vector<1x1x64xf32> to vector<1x64xf32>
    %135 = vector.broadcast %134 : vector<1x64xf32> to vector<128x64xf32>
    %136 = arith.addf %132, %135 : vector<128x64xf32>
    %cst_97 = arith.constant 0.000000e+00 : f32
    %137 = vector.broadcast %cst_97 : f32 to vector<128x64xf32>
    %138 = arith.maximumf %136, %137 : vector<128x64xf32>
    %139 = arith.truncf %138 : vector<128x64xf32> to vector<128x64xbf16>
    %c13 = arith.constant 13 : index
    %c0_98 = arith.constant 0 : index
    %c0_99 = arith.constant 0 : index
    %140 = vector.load %arg4[%c13, %c0_98, %c0_99] : memref<26x64x64xbf16, #tpu.memory_space<vmem>>, vector<1x64x64xbf16>
    %141 = vector.shape_cast %140 : vector<1x64x64xbf16> to vector<64x64xbf16>
    %cst_100 = arith.constant dense<0.000000e+00> : vector<128x64xf32>
    %142 = tpu.matmul %139, %141, %cst_100 {dimension_numbers = #tpu.dot_dimension_numbers<[1], [0], [0], [1], [0, 0, 1, 1], [], []>} : vector<128x64xbf16>, vector<64x64xbf16>, vector<128x64xf32> -> vector<128x64xf32>
    %c13_101 = arith.constant 13 : index
    %c0_102 = arith.constant 0 : index
    %c0_103 = arith.constant 0 : index
    %143 = vector.load %arg5[%c13_101, %c0_102, %c0_103] : memref<26x1x64xf32, #tpu.memory_space<vmem>>, vector<1x1x64xf32>
    %144 = vector.shape_cast %143 : vector<1x1x64xf32> to vector<1x64xf32>
    %145 = vector.broadcast %144 : vector<1x64xf32> to vector<128x64xf32>
    %146 = arith.addf %142, %145 : vector<128x64xf32>
    %cst_104 = arith.constant 0.000000e+00 : f32
    %147 = vector.broadcast %cst_104 : f32 to vector<128x64xf32>
    %148 = arith.maximumf %146, %147 : vector<128x64xf32>
    %149 = arith.truncf %148 : vector<128x64xf32> to vector<128x64xbf16>
    %c14 = arith.constant 14 : index
    %c0_105 = arith.constant 0 : index
    %c0_106 = arith.constant 0 : index
    %150 = vector.load %arg4[%c14, %c0_105, %c0_106] : memref<26x64x64xbf16, #tpu.memory_space<vmem>>, vector<1x64x64xbf16>
    %151 = vector.shape_cast %150 : vector<1x64x64xbf16> to vector<64x64xbf16>
    %cst_107 = arith.constant dense<0.000000e+00> : vector<128x64xf32>
    %152 = tpu.matmul %149, %151, %cst_107 {dimension_numbers = #tpu.dot_dimension_numbers<[1], [0], [0], [1], [0, 0, 1, 1], [], []>} : vector<128x64xbf16>, vector<64x64xbf16>, vector<128x64xf32> -> vector<128x64xf32>
    %c14_108 = arith.constant 14 : index
    %c0_109 = arith.constant 0 : index
    %c0_110 = arith.constant 0 : index
    %153 = vector.load %arg5[%c14_108, %c0_109, %c0_110] : memref<26x1x64xf32, #tpu.memory_space<vmem>>, vector<1x1x64xf32>
    %154 = vector.shape_cast %153 : vector<1x1x64xf32> to vector<1x64xf32>
    %155 = vector.broadcast %154 : vector<1x64xf32> to vector<128x64xf32>
    %156 = arith.addf %152, %155 : vector<128x64xf32>
    %cst_111 = arith.constant 0.000000e+00 : f32
    %157 = vector.broadcast %cst_111 : f32 to vector<128x64xf32>
    %158 = arith.maximumf %156, %157 : vector<128x64xf32>
    %159 = arith.truncf %158 : vector<128x64xf32> to vector<128x64xbf16>
    %c15 = arith.constant 15 : index
    %c0_112 = arith.constant 0 : index
    %c0_113 = arith.constant 0 : index
    %160 = vector.load %arg4[%c15, %c0_112, %c0_113] : memref<26x64x64xbf16, #tpu.memory_space<vmem>>, vector<1x64x64xbf16>
    %161 = vector.shape_cast %160 : vector<1x64x64xbf16> to vector<64x64xbf16>
    %cst_114 = arith.constant dense<0.000000e+00> : vector<128x64xf32>
    %162 = tpu.matmul %159, %161, %cst_114 {dimension_numbers = #tpu.dot_dimension_numbers<[1], [0], [0], [1], [0, 0, 1, 1], [], []>} : vector<128x64xbf16>, vector<64x64xbf16>, vector<128x64xf32> -> vector<128x64xf32>
    %c15_115 = arith.constant 15 : index
    %c0_116 = arith.constant 0 : index
    %c0_117 = arith.constant 0 : index
    %163 = vector.load %arg5[%c15_115, %c0_116, %c0_117] : memref<26x1x64xf32, #tpu.memory_space<vmem>>, vector<1x1x64xf32>
    %164 = vector.shape_cast %163 : vector<1x1x64xf32> to vector<1x64xf32>
    %165 = vector.broadcast %164 : vector<1x64xf32> to vector<128x64xf32>
    %166 = arith.addf %162, %165 : vector<128x64xf32>
    %cst_118 = arith.constant 0.000000e+00 : f32
    %167 = vector.broadcast %cst_118 : f32 to vector<128x64xf32>
    %168 = arith.maximumf %166, %167 : vector<128x64xf32>
    %169 = arith.truncf %168 : vector<128x64xf32> to vector<128x64xbf16>
    %c16 = arith.constant 16 : index
    %c0_119 = arith.constant 0 : index
    %c0_120 = arith.constant 0 : index
    %170 = vector.load %arg4[%c16, %c0_119, %c0_120] : memref<26x64x64xbf16, #tpu.memory_space<vmem>>, vector<1x64x64xbf16>
    %171 = vector.shape_cast %170 : vector<1x64x64xbf16> to vector<64x64xbf16>
    %cst_121 = arith.constant dense<0.000000e+00> : vector<128x64xf32>
    %172 = tpu.matmul %169, %171, %cst_121 {dimension_numbers = #tpu.dot_dimension_numbers<[1], [0], [0], [1], [0, 0, 1, 1], [], []>} : vector<128x64xbf16>, vector<64x64xbf16>, vector<128x64xf32> -> vector<128x64xf32>
    %c16_122 = arith.constant 16 : index
    %c0_123 = arith.constant 0 : index
    %c0_124 = arith.constant 0 : index
    %173 = vector.load %arg5[%c16_122, %c0_123, %c0_124] : memref<26x1x64xf32, #tpu.memory_space<vmem>>, vector<1x1x64xf32>
    %174 = vector.shape_cast %173 : vector<1x1x64xf32> to vector<1x64xf32>
    %175 = vector.broadcast %174 : vector<1x64xf32> to vector<128x64xf32>
    %176 = arith.addf %172, %175 : vector<128x64xf32>
    %cst_125 = arith.constant 0.000000e+00 : f32
    %177 = vector.broadcast %cst_125 : f32 to vector<128x64xf32>
    %178 = arith.maximumf %176, %177 : vector<128x64xf32>
    %179 = arith.truncf %178 : vector<128x64xf32> to vector<128x64xbf16>
    %c17 = arith.constant 17 : index
    %c0_126 = arith.constant 0 : index
    %c0_127 = arith.constant 0 : index
    %180 = vector.load %arg4[%c17, %c0_126, %c0_127] : memref<26x64x64xbf16, #tpu.memory_space<vmem>>, vector<1x64x64xbf16>
    %181 = vector.shape_cast %180 : vector<1x64x64xbf16> to vector<64x64xbf16>
    %cst_128 = arith.constant dense<0.000000e+00> : vector<128x64xf32>
    %182 = tpu.matmul %179, %181, %cst_128 {dimension_numbers = #tpu.dot_dimension_numbers<[1], [0], [0], [1], [0, 0, 1, 1], [], []>} : vector<128x64xbf16>, vector<64x64xbf16>, vector<128x64xf32> -> vector<128x64xf32>
    %c17_129 = arith.constant 17 : index
    %c0_130 = arith.constant 0 : index
    %c0_131 = arith.constant 0 : index
    %183 = vector.load %arg5[%c17_129, %c0_130, %c0_131] : memref<26x1x64xf32, #tpu.memory_space<vmem>>, vector<1x1x64xf32>
    %184 = vector.shape_cast %183 : vector<1x1x64xf32> to vector<1x64xf32>
    %185 = vector.broadcast %184 : vector<1x64xf32> to vector<128x64xf32>
    %186 = arith.addf %182, %185 : vector<128x64xf32>
    %cst_132 = arith.constant 0.000000e+00 : f32
    %187 = vector.broadcast %cst_132 : f32 to vector<128x64xf32>
    %188 = arith.maximumf %186, %187 : vector<128x64xf32>
    %189 = arith.truncf %188 : vector<128x64xf32> to vector<128x64xbf16>
    %c18 = arith.constant 18 : index
    %c0_133 = arith.constant 0 : index
    %c0_134 = arith.constant 0 : index
    %190 = vector.load %arg4[%c18, %c0_133, %c0_134] : memref<26x64x64xbf16, #tpu.memory_space<vmem>>, vector<1x64x64xbf16>
    %191 = vector.shape_cast %190 : vector<1x64x64xbf16> to vector<64x64xbf16>
    %cst_135 = arith.constant dense<0.000000e+00> : vector<128x64xf32>
    %192 = tpu.matmul %189, %191, %cst_135 {dimension_numbers = #tpu.dot_dimension_numbers<[1], [0], [0], [1], [0, 0, 1, 1], [], []>} : vector<128x64xbf16>, vector<64x64xbf16>, vector<128x64xf32> -> vector<128x64xf32>
    %c18_136 = arith.constant 18 : index
    %c0_137 = arith.constant 0 : index
    %c0_138 = arith.constant 0 : index
    %193 = vector.load %arg5[%c18_136, %c0_137, %c0_138] : memref<26x1x64xf32, #tpu.memory_space<vmem>>, vector<1x1x64xf32>
    %194 = vector.shape_cast %193 : vector<1x1x64xf32> to vector<1x64xf32>
    %195 = vector.broadcast %194 : vector<1x64xf32> to vector<128x64xf32>
    %196 = arith.addf %192, %195 : vector<128x64xf32>
    %cst_139 = arith.constant 0.000000e+00 : f32
    %197 = vector.broadcast %cst_139 : f32 to vector<128x64xf32>
    %198 = arith.maximumf %196, %197 : vector<128x64xf32>
    %199 = arith.truncf %198 : vector<128x64xf32> to vector<128x64xbf16>
    %c19 = arith.constant 19 : index
    %c0_140 = arith.constant 0 : index
    %c0_141 = arith.constant 0 : index
    %200 = vector.load %arg4[%c19, %c0_140, %c0_141] : memref<26x64x64xbf16, #tpu.memory_space<vmem>>, vector<1x64x64xbf16>
    %201 = vector.shape_cast %200 : vector<1x64x64xbf16> to vector<64x64xbf16>
    %cst_142 = arith.constant dense<0.000000e+00> : vector<128x64xf32>
    %202 = tpu.matmul %199, %201, %cst_142 {dimension_numbers = #tpu.dot_dimension_numbers<[1], [0], [0], [1], [0, 0, 1, 1], [], []>} : vector<128x64xbf16>, vector<64x64xbf16>, vector<128x64xf32> -> vector<128x64xf32>
    %c19_143 = arith.constant 19 : index
    %c0_144 = arith.constant 0 : index
    %c0_145 = arith.constant 0 : index
    %203 = vector.load %arg5[%c19_143, %c0_144, %c0_145] : memref<26x1x64xf32, #tpu.memory_space<vmem>>, vector<1x1x64xf32>
    %204 = vector.shape_cast %203 : vector<1x1x64xf32> to vector<1x64xf32>
    %205 = vector.broadcast %204 : vector<1x64xf32> to vector<128x64xf32>
    %206 = arith.addf %202, %205 : vector<128x64xf32>
    %cst_146 = arith.constant 0.000000e+00 : f32
    %207 = vector.broadcast %cst_146 : f32 to vector<128x64xf32>
    %208 = arith.maximumf %206, %207 : vector<128x64xf32>
    %209 = arith.truncf %208 : vector<128x64xf32> to vector<128x64xbf16>
    %c20 = arith.constant 20 : index
    %c0_147 = arith.constant 0 : index
    %c0_148 = arith.constant 0 : index
    %210 = vector.load %arg4[%c20, %c0_147, %c0_148] : memref<26x64x64xbf16, #tpu.memory_space<vmem>>, vector<1x64x64xbf16>
    %211 = vector.shape_cast %210 : vector<1x64x64xbf16> to vector<64x64xbf16>
    %cst_149 = arith.constant dense<0.000000e+00> : vector<128x64xf32>
    %212 = tpu.matmul %209, %211, %cst_149 {dimension_numbers = #tpu.dot_dimension_numbers<[1], [0], [0], [1], [0, 0, 1, 1], [], []>} : vector<128x64xbf16>, vector<64x64xbf16>, vector<128x64xf32> -> vector<128x64xf32>
    %c20_150 = arith.constant 20 : index
    %c0_151 = arith.constant 0 : index
    %c0_152 = arith.constant 0 : index
    %213 = vector.load %arg5[%c20_150, %c0_151, %c0_152] : memref<26x1x64xf32, #tpu.memory_space<vmem>>, vector<1x1x64xf32>
    %214 = vector.shape_cast %213 : vector<1x1x64xf32> to vector<1x64xf32>
    %215 = vector.broadcast %214 : vector<1x64xf32> to vector<128x64xf32>
    %216 = arith.addf %212, %215 : vector<128x64xf32>
    %cst_153 = arith.constant 0.000000e+00 : f32
    %217 = vector.broadcast %cst_153 : f32 to vector<128x64xf32>
    %218 = arith.maximumf %216, %217 : vector<128x64xf32>
    %219 = arith.truncf %218 : vector<128x64xf32> to vector<128x64xbf16>
    %c21 = arith.constant 21 : index
    %c0_154 = arith.constant 0 : index
    %c0_155 = arith.constant 0 : index
    %220 = vector.load %arg4[%c21, %c0_154, %c0_155] : memref<26x64x64xbf16, #tpu.memory_space<vmem>>, vector<1x64x64xbf16>
    %221 = vector.shape_cast %220 : vector<1x64x64xbf16> to vector<64x64xbf16>
    %cst_156 = arith.constant dense<0.000000e+00> : vector<128x64xf32>
    %222 = tpu.matmul %219, %221, %cst_156 {dimension_numbers = #tpu.dot_dimension_numbers<[1], [0], [0], [1], [0, 0, 1, 1], [], []>} : vector<128x64xbf16>, vector<64x64xbf16>, vector<128x64xf32> -> vector<128x64xf32>
    %c21_157 = arith.constant 21 : index
    %c0_158 = arith.constant 0 : index
    %c0_159 = arith.constant 0 : index
    %223 = vector.load %arg5[%c21_157, %c0_158, %c0_159] : memref<26x1x64xf32, #tpu.memory_space<vmem>>, vector<1x1x64xf32>
    %224 = vector.shape_cast %223 : vector<1x1x64xf32> to vector<1x64xf32>
    %225 = vector.broadcast %224 : vector<1x64xf32> to vector<128x64xf32>
    %226 = arith.addf %222, %225 : vector<128x64xf32>
    %cst_160 = arith.constant 0.000000e+00 : f32
    %227 = vector.broadcast %cst_160 : f32 to vector<128x64xf32>
    %228 = arith.maximumf %226, %227 : vector<128x64xf32>
    %229 = arith.truncf %228 : vector<128x64xf32> to vector<128x64xbf16>
    %c22 = arith.constant 22 : index
    %c0_161 = arith.constant 0 : index
    %c0_162 = arith.constant 0 : index
    %230 = vector.load %arg4[%c22, %c0_161, %c0_162] : memref<26x64x64xbf16, #tpu.memory_space<vmem>>, vector<1x64x64xbf16>
    %231 = vector.shape_cast %230 : vector<1x64x64xbf16> to vector<64x64xbf16>
    %cst_163 = arith.constant dense<0.000000e+00> : vector<128x64xf32>
    %232 = tpu.matmul %229, %231, %cst_163 {dimension_numbers = #tpu.dot_dimension_numbers<[1], [0], [0], [1], [0, 0, 1, 1], [], []>} : vector<128x64xbf16>, vector<64x64xbf16>, vector<128x64xf32> -> vector<128x64xf32>
    %c22_164 = arith.constant 22 : index
    %c0_165 = arith.constant 0 : index
    %c0_166 = arith.constant 0 : index
    %233 = vector.load %arg5[%c22_164, %c0_165, %c0_166] : memref<26x1x64xf32, #tpu.memory_space<vmem>>, vector<1x1x64xf32>
    %234 = vector.shape_cast %233 : vector<1x1x64xf32> to vector<1x64xf32>
    %235 = vector.broadcast %234 : vector<1x64xf32> to vector<128x64xf32>
    %236 = arith.addf %232, %235 : vector<128x64xf32>
    %cst_167 = arith.constant 0.000000e+00 : f32
    %237 = vector.broadcast %cst_167 : f32 to vector<128x64xf32>
    %238 = arith.maximumf %236, %237 : vector<128x64xf32>
    %239 = arith.truncf %238 : vector<128x64xf32> to vector<128x64xbf16>
    %c23 = arith.constant 23 : index
    %c0_168 = arith.constant 0 : index
    %c0_169 = arith.constant 0 : index
    %240 = vector.load %arg4[%c23, %c0_168, %c0_169] : memref<26x64x64xbf16, #tpu.memory_space<vmem>>, vector<1x64x64xbf16>
    %241 = vector.shape_cast %240 : vector<1x64x64xbf16> to vector<64x64xbf16>
    %cst_170 = arith.constant dense<0.000000e+00> : vector<128x64xf32>
    %242 = tpu.matmul %239, %241, %cst_170 {dimension_numbers = #tpu.dot_dimension_numbers<[1], [0], [0], [1], [0, 0, 1, 1], [], []>} : vector<128x64xbf16>, vector<64x64xbf16>, vector<128x64xf32> -> vector<128x64xf32>
    %c23_171 = arith.constant 23 : index
    %c0_172 = arith.constant 0 : index
    %c0_173 = arith.constant 0 : index
    %243 = vector.load %arg5[%c23_171, %c0_172, %c0_173] : memref<26x1x64xf32, #tpu.memory_space<vmem>>, vector<1x1x64xf32>
    %244 = vector.shape_cast %243 : vector<1x1x64xf32> to vector<1x64xf32>
    %245 = vector.broadcast %244 : vector<1x64xf32> to vector<128x64xf32>
    %246 = arith.addf %242, %245 : vector<128x64xf32>
    %cst_174 = arith.constant 0.000000e+00 : f32
    %247 = vector.broadcast %cst_174 : f32 to vector<128x64xf32>
    %248 = arith.maximumf %246, %247 : vector<128x64xf32>
    %249 = arith.truncf %248 : vector<128x64xf32> to vector<128x64xbf16>
    %c24 = arith.constant 24 : index
    %c0_175 = arith.constant 0 : index
    %c0_176 = arith.constant 0 : index
    %250 = vector.load %arg4[%c24, %c0_175, %c0_176] : memref<26x64x64xbf16, #tpu.memory_space<vmem>>, vector<1x64x64xbf16>
    %251 = vector.shape_cast %250 : vector<1x64x64xbf16> to vector<64x64xbf16>
    %cst_177 = arith.constant dense<0.000000e+00> : vector<128x64xf32>
    %252 = tpu.matmul %249, %251, %cst_177 {dimension_numbers = #tpu.dot_dimension_numbers<[1], [0], [0], [1], [0, 0, 1, 1], [], []>} : vector<128x64xbf16>, vector<64x64xbf16>, vector<128x64xf32> -> vector<128x64xf32>
    %c24_178 = arith.constant 24 : index
    %c0_179 = arith.constant 0 : index
    %c0_180 = arith.constant 0 : index
    %253 = vector.load %arg5[%c24_178, %c0_179, %c0_180] : memref<26x1x64xf32, #tpu.memory_space<vmem>>, vector<1x1x64xf32>
    %254 = vector.shape_cast %253 : vector<1x1x64xf32> to vector<1x64xf32>
    %255 = vector.broadcast %254 : vector<1x64xf32> to vector<128x64xf32>
    %256 = arith.addf %252, %255 : vector<128x64xf32>
    %cst_181 = arith.constant 0.000000e+00 : f32
    %257 = vector.broadcast %cst_181 : f32 to vector<128x64xf32>
    %258 = arith.maximumf %256, %257 : vector<128x64xf32>
    %259 = arith.truncf %258 : vector<128x64xf32> to vector<128x64xbf16>
    %c25 = arith.constant 25 : index
    %c0_182 = arith.constant 0 : index
    %c0_183 = arith.constant 0 : index
    %260 = vector.load %arg4[%c25, %c0_182, %c0_183] : memref<26x64x64xbf16, #tpu.memory_space<vmem>>, vector<1x64x64xbf16>
    %261 = vector.shape_cast %260 : vector<1x64x64xbf16> to vector<64x64xbf16>
    %cst_184 = arith.constant dense<0.000000e+00> : vector<128x64xf32>
    %262 = tpu.matmul %259, %261, %cst_184 {dimension_numbers = #tpu.dot_dimension_numbers<[1], [0], [0], [1], [0, 0, 1, 1], [], []>} : vector<128x64xbf16>, vector<64x64xbf16>, vector<128x64xf32> -> vector<128x64xf32>
    %c25_185 = arith.constant 25 : index
    %c0_186 = arith.constant 0 : index
    %c0_187 = arith.constant 0 : index
    %263 = vector.load %arg5[%c25_185, %c0_186, %c0_187] : memref<26x1x64xf32, #tpu.memory_space<vmem>>, vector<1x1x64xf32>
    %264 = vector.shape_cast %263 : vector<1x1x64xf32> to vector<1x64xf32>
    %265 = vector.broadcast %264 : vector<1x64xf32> to vector<128x64xf32>
    %266 = arith.addf %262, %265 : vector<128x64xf32>
    %cst_188 = arith.constant 0.000000e+00 : f32
    %267 = vector.broadcast %cst_188 : f32 to vector<128x64xf32>
    %268 = arith.maximumf %266, %267 : vector<128x64xf32>
    %269 = arith.truncf %268 : vector<128x64xf32> to vector<128x64xbf16>
    %c0_189 = arith.constant 0 : index
    %c0_190 = arith.constant 0 : index
    %270 = vector.load %arg6[%c0_189, %c0_190] : memref<64x128xbf16, #tpu.memory_space<vmem>>, vector<64x128xbf16>
    %cst_191 = arith.constant dense<0.000000e+00> : vector<128x128xf32>
    %271 = tpu.matmul %269, %270, %cst_191 {dimension_numbers = #tpu.dot_dimension_numbers<[1], [0], [0], [1], [0, 0, 1, 1], [], []>} : vector<128x64xbf16>, vector<64x128xbf16>, vector<128x128xf32> -> vector<128x128xf32>
    %c0_192 = arith.constant 0 : index
    %c0_193 = arith.constant 0 : index
    %272 = vector.load %arg7[%c0_192, %c0_193] : memref<1x128xf32, #tpu.memory_space<vmem>>, vector<1x128xf32>
    %273 = vector.broadcast %272 : vector<1x128xf32> to vector<128x128xf32>
    %274 = arith.addf %271, %273 : vector<128x128xf32>
    %275 = math.tanh %274 : vector<128x128xf32>
    %c0_194 = arith.constant 0 : index
    %c0_195 = arith.constant 0 : index
    %276 = vector.load %arg8[%c0_194, %c0_195] : memref<52x256xf32, #tpu.memory_space<vmem>>, vector<52x256xf32>
    %cst_196 = arith.constant dense<0.000000e+00> : vector<128x256xf32>
    %277 = tpu.matmul %0, %276, %cst_196 {dimension_numbers = #tpu.dot_dimension_numbers<[1], [0], [0], [1], [0, 0, 1, 1], [], []>, precision = #tpu.contract_precision<fp32>} : vector<128x52xf32>, vector<52x256xf32>, vector<128x256xf32> -> vector<128x256xf32>
    %278 = vector.extract_strided_slice %277 {offsets = [0, 0], sizes = [128, 128], strides = [1, 1]} : vector<128x256xf32> to vector<128x128xf32>
    %279 = vector.extract_strided_slice %277 {offsets = [0, 128], sizes = [128, 128], strides = [1, 1]} : vector<128x256xf32> to vector<128x128xf32>
    %280 = arith.mulf %279, %275 : vector<128x128xf32>
    %281 = arith.addf %278, %280 : vector<128x128xf32>
    %c0_197 = arith.constant 0 : index
    %c0_198 = arith.constant 0 : index
    %282 = vector.load %arg9[%c0_197, %c0_198] : memref<128x128xf32, #tpu.memory_space<vmem>>, vector<128x128xf32>
    tpu.vector_store %arg9[%c0_197, %c0_198], %281 {strides = array<i32>} : memref<128x128xf32, #tpu.memory_space<vmem>>, vector<128x128xf32>,
    return
  }
  func.func @transform_0(%arg0: i32) -> (i32, i32) {
    %c0_i32 = arith.constant 0 : i32
    %c0_i32_0 = arith.constant 0 : i32
    return %arg0, %c0_i32 : i32, i32
  }
  func.func @transform_1(%arg0: i32) -> (i32, i32) {
    %c0_i32 = arith.constant 0 : i32
    %c0_i32_0 = arith.constant 0 : i32
    %c0_i32_1 = arith.constant 0 : i32
    return %c0_i32, %c0_i32_0 : i32, i32
  }
  func.func @transform_2(%arg0: i32) -> (i32, i32) {
    %c0_i32 = arith.constant 0 : i32
    %c0_i32_0 = arith.constant 0 : i32
    %c0_i32_1 = arith.constant 0 : i32
    return %c0_i32, %c0_i32_0 : i32, i32
  }
  func.func @transform_3(%arg0: i32) -> (i32, i32, i32) {
    %c0_i32 = arith.constant 0 : i32
    %c0_i32_0 = arith.constant 0 : i32
    %c0_i32_1 = arith.constant 0 : i32
    %c0_i32_2 = arith.constant 0 : i32
    return %c0_i32, %c0_i32_0, %c0_i32_1 : i32, i32, i32
  }
  func.func @transform_4(%arg0: i32) -> (i32, i32, i32) {
    %c0_i32 = arith.constant 0 : i32
    %c0_i32_0 = arith.constant 0 : i32
    %c0_i32_1 = arith.constant 0 : i32
    %c0_i32_2 = arith.constant 0 : i32
    return %c0_i32, %c0_i32_0, %c0_i32_1 : i32, i32, i32
  }
  func.func @transform_5(%arg0: i32) -> (i32, i32) {
    %c0_i32 = arith.constant 0 : i32
    %c0_i32_0 = arith.constant 0 : i32
    %c0_i32_1 = arith.constant 0 : i32
    return %c0_i32, %c0_i32_0 : i32, i32
  }
  func.func @transform_6(%arg0: i32) -> (i32, i32) {
    %c0_i32 = arith.constant 0 : i32
    %c0_i32_0 = arith.constant 0 : i32
    %c0_i32_1 = arith.constant 0 : i32
    return %c0_i32, %c0_i32_0 : i32, i32
  }
  func.func @transform_7(%arg0: i32) -> (i32, i32) {
    %c0_i32 = arith.constant 0 : i32
    %c0_i32_0 = arith.constant 0 : i32
    %c0_i32_1 = arith.constant 0 : i32
    return %c0_i32, %c0_i32_0 : i32, i32
  }
  func.func @transform_8(%arg0: i32) -> (i32, i32) {
    %c0_i32 = arith.constant 0 : i32
    %c0_i32_0 = arith.constant 0 : i32
    return %arg0, %c0_i32 : i32, i32
  }
}

</mosaic_0001>

<llo_original>
// kernel: gen_mlp_forward.1
$region0: #{gen_mlp_forward.1}
  #allocation0 [shape = 'u32[]', space=smem, size = 0x4, offset = 0x4, fixed_abs, tag = 'smem constant byte address 0x4 - core index']
  #allocation1 [shape = 'u32[144,128]{1,0:T(1,128)}', space=vmem, size = 0x12000, scoped, tag = 'internal scratch']
  %s0 = inlined_call_operand.vmem [shape: f32[256,52], index: 0, kind: input, shape index: {}]
  %s1 = inlined_call_operand.vmem [shape: bf16[52,64], index: 1, kind: input, shape index: {}]
  %s2 = inlined_call_operand.vmem [shape: f32[1,64], index: 2, kind: input, shape index: {}]
  %s3 = inlined_call_operand.hbm [shape: bf16[26,64,64], index: 3, kind: input, shape index: {}]
  %s4 = inlined_call_operand.vmem [shape: f32[26,1,64], index: 4, kind: input, shape index: {}]
  %s5 = inlined_call_operand.vmem [shape: bf16[64,128], index: 5, kind: input, shape index: {}]
  %s6 = inlined_call_operand.vmem [shape: f32[1,128], index: 6, kind: input, shape index: {}]
  %s7 = inlined_call_operand.vmem [shape: f32[52,256], index: 7, kind: input, shape index: {}]
  %s8 = inlined_call_operand.vmem [shape: f32[256,128], index: 8, kind: output, shape index: {}]
  %s9 = sld [smem:[#allocation0]]
  $region69: #{gen_mlp_forward.1} parent=0
    _
  %s11 = ssub.s32 1, %s9
  %s12 = scalar_select 0, %s11, %s9
  $region1: #{gen_mlp_forward.1} parent=0
    #allocation2 [shape = 'u8[425984]{0}', space=vmem, size = 0x68000, scoped, tag = 'input window, operand 3, single buffered']
    #allocation3 [shape = 's32[2]{0}', space=sflag, size = 0x8, scoped, tag = 'scoped memory for gen_mlp_forward.1']
    %13 = vsyncpa [#allocation3], 0
    loop: start=0, step=1, limit=4
    $region2: #{gen_mlp_forward.1} parent=1 // loop_pre_header
      _
    $region3: #{gen_mlp_forward.1} parent=1 // loop_header
      %s15 = sphi 0, %s19
      %p16 = scmp.ge.s32.totalorder %s15, 4
      %s25 = sphi 0, %s27
      %s28 = sphi 0, %s25
      %s29 = sphi 0, %s28
      %s45 = sphi 0, %s29
      %s49 = sphi 0, %s49
      %s51 = sphi 0, %s49
      %s52 = sphi 0, %s51
      %s66 = sphi 0, %s52
      %s70 = sphi 0, %s70
      %s72 = sphi 0, %s70
      %s73 = sphi 0, %s72
      %s87 = sphi 0, %s73
      %s91 = sphi 0, %s91
      %s93 = sphi 0, %s91
      %s94 = sphi 0, %s93
      %s108 = sphi 0, %s94
      %s112 = sphi 0, %s112
      %s114 = sphi 0, %s112
      %s115 = sphi 0, %s114
      %s129 = sphi 0, %s115
      %s133 = sphi 0, %s133
      %s135 = sphi 0, %s133
      %s136 = sphi 0, %s135
      %s150 = sphi 0, %s136
      %s154 = sphi 0, %s154
      %s156 = sphi 0, %s154
      %s157 = sphi 0, %s156
      %s171 = sphi 0, %s157
      %s175 = sphi 0, %s175
      %s177 = sphi 0, %s175
      %s178 = sphi 0, %s177
      %s192 = sphi 0, %s178
      %s198 = sphi 0, %s200
      %s201 = sphi 0, %s198
      %s202 = sphi 0, %s201
      %s218 = sphi 0, %s202
    $region4: #{gen_mlp_forward.1} parent=1 // loop_header_branch
      %18 = sbr.rel (%p16) target = $region8
    $region5: #{gen_mlp_forward.1} parent=1 // loop_body
      %s20 = ssub.s32 %s15, 1
      %s21 = ssub.s32 %s15, 2
      %s22 = sadd.s32 %s15, 1
      %s23 = ssub.s32 %s15, %s22
      %p24 = scmp.eq.s32.totalorder %s23, 0
      %s26 = sadd.s32 %s25, 1
      %s27 = scalar_select %p24, %s25, %s26
      %p30 = pneg %p24
      %p31 = scmp.eq.s32.totalorder %s15, 1
      %p32 = por %p30, %p31
      %p33 = scmp.ne.s32.totalorder %s25, %s28
      %p34 = scmp.eq.s32.totalorder %s15, 0
      %p35 = por %p33, %p34
      %p36 = scmp.ne.s32.totalorder %s25, %s28
      %p37 = scmp.eq.s32.totalorder %s20, 1
      %p38 = por %p36, %p37
      %p39 = scmp.ne.s32.totalorder %s28, %s29
      %p40 = scmp.eq.s32.totalorder %s20, 0
      %p41 = por %p39, %p40
      %p42 = scmp.ne.s32.totalorder %s28, %s29
      %p43 = scmp.eq.s32.totalorder %s21, 1
      %p44 = por %p42, %p43
      %p46 = scmp.ne.s32.totalorder %s29, %s45
      %p47 = scmp.eq.s32.totalorder %s21, 0
      %p48 = por %p46, %p47
      %s50 = sadd.s32 %s49, 1
      %p53 = scmp.eq.s32.totalorder %s15, 1
      %p54 = scmp.ne.s32.totalorder %s49, %s51
      %p55 = scmp.eq.s32.totalorder %s15, 0
      %p56 = por %p54, %p55
      %p57 = scmp.ne.s32.totalorder %s49, %s51
      %p58 = scmp.eq.s32.totalorder %s20, 1
      %p59 = por %p57, %p58
      %p60 = scmp.ne.s32.totalorder %s51, %s52
      %p61 = scmp.eq.s32.totalorder %s20, 0
      %p62 = por %p60, %p61
      %p63 = scmp.ne.s32.totalorder %s51, %s52
      %p64 = scmp.eq.s32.totalorder %s21, 1
      %p65 = por %p63, %p64
      %p67 = scmp.ne.s32.totalorder %s52, %s66
      %p68 = scmp.eq.s32.totalorder %s21, 0
      %p69 = por %p67, %p68
      %s71 = sadd.s32 %s70, 1
      %p74 = scmp.eq.s32.totalorder %s15, 1
      %p75 = scmp.ne.s32.totalorder %s70, %s72
      %p76 = scmp.eq.s32.totalorder %s15, 0
      %p77 = por %p75, %p76
      %p78 = scmp.ne.s32.totalorder %s70, %s72
      %p79 = scmp.eq.s32.totalorder %s20, 1
      %p80 = por %p78, %p79
      %p81 = scmp.ne.s32.totalorder %s72, %s73
      %p82 = scmp.eq.s32.totalorder %s20, 0
      %p83 = por %p81, %p82
      %p84 = scmp.ne.s32.totalorder %s72, %s73
      %p85 = scmp.eq.s32.totalorder %s21, 1
      %p86 = por %p84, %p85
      %p88 = scmp.ne.s32.totalorder %s73, %s87
      %p89 = scmp.eq.s32.totalorder %s21, 0
      %p90 = por %p88, %p89
      %s92 = sadd.s32 %s91, 1
      %p95 = scmp.eq.s32.totalorder %s15, 1
      %p96 = scmp.ne.s32.totalorder %s91, %s93
      %p97 = scmp.eq.s32.totalorder %s15, 0
      %p98 = por %p96, %p97
      %p99 = scmp.ne.s32.totalorder %s91, %s93
      %p100 = scmp.eq.s32.totalorder %s20, 1
      %p101 = por %p99, %p100
      %p102 = scmp.ne.s32.totalorder %s93, %s94
      %p103 = scmp.eq.s32.totalorder %s20, 0
      %p104 = por %p102, %p103
      %p105 = scmp.ne.s32.totalorder %s93, %s94
      %p106 = scmp.eq.s32.totalorder %s21, 1
      %p107 = por %p105, %p106
      %p109 = scmp.ne.s32.totalorder %s94, %s108
      %p110 = scmp.eq.s32.totalorder %s21, 0
      %p111 = por %p109, %p110
      %s113 = sadd.s32 %s112, 1
      %p116 = scmp.eq.s32.totalorder %s15, 1
      %p117 = scmp.ne.s32.totalorder %s112, %s114
      %p118 = scmp.eq.s32.totalorder %s15, 0
      %p119 = por %p117, %p118
      %p120 = scmp.ne.s32.totalorder %s112, %s114
      %p121 = scmp.eq.s32.totalorder %s20, 1
      %p122 = por %p120, %p121
      %p123 = scmp.ne.s32.totalorder %s114, %s115
      %p124 = scmp.eq.s32.totalorder %s20, 0
      %p125 = por %p123, %p124
      %p126 = scmp.ne.s32.totalorder %s114, %s115
      %p127 = scmp.eq.s32.totalorder %s21, 1
      %p128 = por %p126, %p127
      %p130 = scmp.ne.s32.totalorder %s115, %s129
      %p131 = scmp.eq.s32.totalorder %s21, 0
      %p132 = por %p130, %p131
      %s134 = sadd.s32 %s133, 1
      %p137 = scmp.eq.s32.totalorder %s15, 1
      %p138 = scmp.ne.s32.totalorder %s133, %s135
      %p139 = scmp.eq.s32.totalorder %s15, 0
      %p140 = por %p138, %p139
      %p141 = scmp.ne.s32.totalorder %s133, %s135
      %p142 = scmp.eq.s32.totalorder %s20, 1
      %p143 = por %p141, %p142
      %p144 = scmp.ne.s32.totalorder %s135, %s136
      %p145 = scmp.eq.s32.totalorder %s20, 0
      %p146 = por %p144, %p145
      %p147 = scmp.ne.s32.totalorder %s135, %s136
      %p148 = scmp.eq.s32.totalorder %s21, 1
      %p149 = por %p147, %p148
      %p151 = scmp.ne.s32.totalorder %s136, %s150
      %p152 = scmp.eq.s32.totalorder %s21, 0
      %p153 = por %p151, %p152
      %s155 = sadd.s32 %s154, 1
      %p158 = scmp.eq.s32.totalorder %s15, 1
      %p159 = scmp.ne.s32.totalorder %s154, %s156
      %p160 = scmp.eq.s32.totalorder %s15, 0
      %p161 = por %p159, %p160
      %p162 = scmp.ne.s32.totalorder %s154, %s156
      %p163 = scmp.eq.s32.totalorder %s20, 1
      %p164 = por %p162, %p163
      %p165 = scmp.ne.s32.totalorder %s156, %s157
      %p166 = scmp.eq.s32.totalorder %s20, 0
      %p167 = por %p165, %p166
      %p168 = scmp.ne.s32.totalorder %s156, %s157
      %p169 = scmp.eq.s32.totalorder %s21, 1
      %p170 = por %p168, %p169
      %p172 = scmp.ne.s32.totalorder %s157, %s171
      %p173 = scmp.eq.s32.totalorder %s21, 0
      %p174 = por %p172, %p173
      %s176 = sadd.s32 %s175, 1
      %p179 = scmp.eq.s32.totalorder %s15, 1
      %p180 = scmp.ne.s32.totalorder %s175, %s177
      %p181 = scmp.eq.s32.totalorder %s15, 0
      %p182 = por %p180, %p181
      %p183 = scmp.ne.s32.totalorder %s175, %s177
      %p184 = scmp.eq.s32.totalorder %s20, 1
      %p185 = por %p183, %p184
      %p186 = scmp.ne.s32.totalorder %s177, %s178
      %p187 = scmp.eq.s32.totalorder %s20, 0
      %p188 = por %p186, %p187
      %p189 = scmp.ne.s32.totalorder %s177, %s178
      %p190 = scmp.eq.s32.totalorder %s21, 1
      %p191 = por %p189, %p190
      %p193 = scmp.ne.s32.totalorder %s178, %s192
      %p194 = scmp.eq.s32.totalorder %s21, 0
      %p195 = por %p193, %p194
      %s196 = ssub.s32 %s15, %s22
      %p197 = scmp.eq.s32.totalorder %s196, 0
      %s199 = sadd.s32 %s198, 1
      %s200 = scalar_select %p197, %s198, %s199
      %p203 = pneg %p197
      %p204 = scmp.eq.s32.totalorder %s15, 1
      %p205 = por %p203, %p204
      %p206 = scmp.ne.s32.totalorder %s198, %s201
      %p207 = scmp.eq.s32.totalorder %s15, 0
      %p208 = por %p206, %p207
      %p209 = scmp.ne.s32.totalorder %s198, %s201
      %p210 = scmp.eq.s32.totalorder %s20, 1
      %p211 = por %p209, %p210
      %p212 = scmp.ne.s32.totalorder %s201, %s202
      %p213 = scmp.eq.s32.totalorder %s20, 0
      %p214 = por %p212, %p213
      %p215 = scmp.ne.s32.totalorder %s201, %s202
      %p216 = scmp.eq.s32.totalorder %s21, 1
      %p217 = por %p215, %p216
      %p219 = scmp.ne.s32.totalorder %s202, %s218
      %p220 = scmp.eq.s32.totalorder %s21, 0
      %p221 = por %p219, %p220
      %p222 = scmp.le.s32.totalorder 1, %s15
      %p223 = scmp.lt.s32.totalorder %s15, 3
      %p224 = pnand %p222, %p223
      %p225 = pneg %p224
      // Predicated region
      $region9: #{gen_mlp_forward.1} parent=5 // pred_check
        _
      $region10: #{gen_mlp_forward.1} parent=5 // pred_check_branch
        %227 = sbr.rel (%p224) target = $region12
      $region11: #{gen_mlp_forward.1} parent=5 // pred_region
        %s228 = ssub.s32 %s15, 1
        // Predicated region
        $region13: #{gen_mlp_forward.1} parent=11 // pred_check
          %p229 = pneg %p62
        $region14: #{gen_mlp_forward.1} parent=11 // pred_check_branch
          %231 = sbr.rel (%p229) target = $region16
        $region15: #{gen_mlp_forward.1} parent=11 // pred_region
          _
        $region16: #{gen_mlp_forward.1} parent=11 // pred_fallthru
          _
        // Predicated region
        $region17: #{gen_mlp_forward.1} parent=11 // pred_check
          %p232 = pneg %p83
        $region18: #{gen_mlp_forward.1} parent=11 // pred_check_branch
          %234 = sbr.rel (%p232) target = $region20
        $region19: #{gen_mlp_forward.1} parent=11 // pred_region
          _
        $region20: #{gen_mlp_forward.1} parent=11 // pred_fallthru
          _
        // Predicated region
        $region21: #{gen_mlp_forward.1} parent=11 // pred_check
          %p235 = pneg %p104
        $region22: #{gen_mlp_forward.1} parent=11 // pred_check_branch
          %237 = sbr.rel (%p235) target = $region24
        $region23: #{gen_mlp_forward.1} parent=11 // pred_region
          %s239 = ssub.s32 13312, 13312
          %240 = vsyncadd [#allocation3], %s239
          %s241 = sshll.u32 [#allocation2], 4
          %s242 = int_to_ptr.vmem [resolvable:$true] %s241
          %247 = dma.hbm_to_vmem [thread:$0]  %s3, 13312, %s242, [#allocation3], 64, 64, 4
        $region24: #{gen_mlp_forward.1} parent=11 // pred_fallthru
          _
        // Predicated region
        $region25: #{gen_mlp_forward.1} parent=11 // pred_check
          %p248 = pneg %p125
        $region26: #{gen_mlp_forward.1} parent=11 // pred_check_branch
          %250 = sbr.rel (%p248) target = $region28
        $region27: #{gen_mlp_forward.1} parent=11 // pred_region
          _
        $region28: #{gen_mlp_forward.1} parent=11 // pred_fallthru
          _
        // Predicated region
        $region29: #{gen_mlp_forward.1} parent=11 // pred_check
          %p251 = pneg %p146
        $region30: #{gen_mlp_forward.1} parent=11 // pred_check_branch
          %253 = sbr.rel (%p251) target = $region32
        $region31: #{gen_mlp_forward.1} parent=11 // pred_region
          _
        $region32: #{gen_mlp_forward.1} parent=11 // pred_fallthru
          _
        // Predicated region
        $region33: #{gen_mlp_forward.1} parent=11 // pred_check
          %p254 = pneg %p167
        $region34: #{gen_mlp_forward.1} parent=11 // pred_check_branch
          %256 = sbr.rel (%p254) target = $region36
        $region35: #{gen_mlp_forward.1} parent=11 // pred_region
          _
        $region36: #{gen_mlp_forward.1} parent=11 // pred_fallthru
          _
        // Predicated region
        $region37: #{gen_mlp_forward.1} parent=11 // pred_check
          %p257 = pneg %p188
        $region38: #{gen_mlp_forward.1} parent=11 // pred_check_branch
          %259 = sbr.rel (%p257) target = $region40
        $region39: #{gen_mlp_forward.1} parent=11 // pred_region
          _
        $region40: #{gen_mlp_forward.1} parent=11 // pred_fallthru
          _
      $region12: #{gen_mlp_forward.1} parent=5 // pred_fallthru
        _
      %p260 = scmp.lt.s32.totalorder %s15, 2
      // Predicated region
      $region41: #{gen_mlp_forward.1} parent=5 // pred_check
        %p261 = pneg %p260
      $region42: #{gen_mlp_forward.1} parent=5 // pred_check_branch
        %263 = sbr.rel (%p261) target = $region44
      $region43: #{gen_mlp_forward.1} parent=5 // pred_region
        // Predicated region
        $region45: #{gen_mlp_forward.1} parent=43 // pred_check
          %p264 = pneg %p35
        $region46: #{gen_mlp_forward.1} parent=43 // pred_check_branch
          %266 = sbr.rel (%p264) target = $region48
        $region47: #{gen_mlp_forward.1} parent=43 // pred_region
          %s267 = smul.u32 16, %s15
          %p268 = scmp.lt.s32.totalorder %s267, 31
          %s269 = scalar_select %p268, %s267, 31
          %s270 = smul.addr %s269, 8
          %s271 = scalar_lea.vmem %s0, %s270
          %s272 = smul.u32 16, %s15
        $region48: #{gen_mlp_forward.1} parent=43 // pred_fallthru
          _
      $region44: #{gen_mlp_forward.1} parent=5 // pred_fallthru
        _
      %p273 = scmp.le.s32.totalorder 1, %s15
      %p274 = scmp.lt.s32.totalorder %s15, 3
      %p275 = pnand %p273, %p274
      %p276 = pneg %p275
      // Predicated region
      $region49: #{gen_mlp_forward.1} parent=5 // pred_check
        _
      $region50: #{gen_mlp_forward.1} parent=5 // pred_check_branch
        %278 = sbr.rel (%p275) target = $region52
      $region51: #{gen_mlp_forward.1} parent=5 // pred_region
        %s279 = ssub.s32 %s15, 1
        // Predicated region
        $region53: #{gen_mlp_forward.1} parent=51 // pred_check
          %p280 = pneg %p104
        $region54: #{gen_mlp_forward.1} parent=51 // pred_check_branch
          %282 = sbr.rel (%p280) target = $region56
        $region55: #{gen_mlp_forward.1} parent=51 // pred_region
          %283 = dma.done [#allocation3], 13312
        $region56: #{gen_mlp_forward.1} parent=51 // pred_fallthru
          _
        %s284 = smul.u32 16, %s20
        %p285 = scmp.lt.s32.totalorder %s284, 31
        %s286 = scalar_select %p285, %s284, 31
        %s287 = smul.addr %s286, 8
        %s288 = scalar_lea.vmem %s0, %s287
        %p289 = pneg %p41
        %p290 = pneg %p38
        %p291 = pneg %p62
        %p292 = pneg %p59
        %p293 = pneg %p83
        %p294 = pneg %p80
        %p295 = pneg %p104
        %p296 = pneg %p101
        %p297 = pneg %p125
        %p298 = pneg %p122
        %p299 = pneg %p146
        %p300 = pneg %p143
        %p301 = pneg %p167
        %p302 = pneg %p164
        %p303 = pneg %p188
        %p304 = pneg %p185
        %p305 = pneg %p214
        %p306 = pneg %p211
        %s307 = smul.u32 16, %s20
        %p308 = scmp.lt.s32.totalorder %s307, 31
        %s309 = scalar_select %p308, %s307, 31
        %s310 = smul.addr %s309, 8
        %s311 = scalar_lea.vmem %s8, %s310
        %s312 = smul.u32 16, %s20
        %p313 = scmp.lt.s32.totalorder %s312, 31
        %s314 = scalar_select %p313, %s312, 31
        %s315 = smul.addr %s314, 8
        %s316 = scalar_lea.vmem %s0, %s315
        %s317 = smul.u32 16, %s20
        %s318 = smul.u32 16, %s20
        %p319 = scmp.lt.s32.totalorder %s318, 31
        %s320 = scalar_select %p319, %s318, 31
        %s321 = smul.addr %s320, 8
        %s322 = scalar_lea.vmem %s8, %s321
        %s323 = smul.u32 16, %s20
        %v325 = vld [vmem:[%s316] sm:$0xff]
        %v326 = vld [vmem:[%s316 + $0x8] sm:$0xff]
        %v327 = vld [vmem:[%s316 + $0x10] sm:$0xff]
        %v328 = vld [vmem:[%s316 + $0x18] sm:$0xff]
        %v329 = vld [vmem:[%s316 + $0x20] sm:$0xff]
        %v330 = vld [vmem:[%s316 + $0x28] sm:$0xff]
        %v331 = vld [vmem:[%s316 + $0x30] sm:$0xff]
        %v332 = vld [vmem:[%s316 + $0x38] sm:$0xff]
        %v333 = vld [vmem:[%s316 + $0x40] sm:$0xff]
        %v334 = vld [vmem:[%s316 + $0x48] sm:$0xff]
        %v335 = vld [vmem:[%s316 + $0x50] sm:$0xff]
        %v336 = vld [vmem:[%s316 + $0x58] sm:$0xff]
        %v337 = vld [vmem:[%s316 + $0x60] sm:$0xff]
        %v338 = vld [vmem:[%s316 + $0x68] sm:$0xff]
        %v339 = vld [vmem:[%s316 + $0x70] sm:$0xff]
        %v340 = vld [vmem:[%s316 + $0x78] sm:$0xff]
        %v341 = vpack.c.bf16 %v326, %v325
        %v342 = vpack.c.bf16 %v328, %v327
        %v343 = vpack.c.bf16 %v330, %v329
        %v344 = vpack.c.bf16 %v332, %v331
        %v345 = vpack.c.bf16 %v334, %v333
        %v346 = vpack.c.bf16 %v336, %v335
        %v347 = vpack.c.bf16 %v338, %v337
        %v348 = vpack.c.bf16 %v340, %v339
        %v349 = vld [vmem:[%s1] sm:$0xf]
        %v350 = vld [vmem:[%s1 + $0x4] sm:$0xf]
        %v351 = vld [vmem:[%s1 + $0x8] sm:$0xf]
        %v352 = vld [vmem:[%s1 + $0xc] sm:$0xf]
        %v353 = vld [vmem:[%s1 + $0x10] sm:$0xf]
        %v354 = vld [vmem:[%s1 + $0x14] sm:$0xf]
        %v355 = vld [vmem:[%s1 + $0x18] sm:$0x3]
        %v356 = vld [vmem:[%s2] sm:$0x1]
        %v358 = vlaneseq
        %v359 = vshrl.u32 %v358, 7
        %v360 = vsub.s32 0, %v359
        %v361 = vrot.slane %v356, %v360
        %v370 = vunpack.c.l.b16 %v349
        %v371 = vunpack.c.l.b16 %v350
        %v372 = vunpack.c.l.b16 %v351
        %v373 = vunpack.c.l.b16 %v352
        %v374 = vunpack.c.l.b16 %v353
        %v375 = vunpack.c.l.b16 %v354
        %v376 = vunpack.c.l.b16 %v355
        %v377 = vpack.c.b16 %v371, %v370
        %v378 = vpack.c.b16 %v373, %v372
        %v379 = vpack.c.b16 %v375, %v374
        %v380 = vpack.c.b16 %v376, %v376
        %vm384 = vcmask 424960
        %v386 = vsel %vm384, %v341, 0
        %v389 = vsel %vm384, %v342, 0
        %v392 = vsel %vm384, %v343, 0
        %v395 = vsel %vm384, %v344, 0
        %v398 = vsel %vm384, %v345, 0
        %v401 = vsel %vm384, %v346, 0
        %v404 = vsel %vm384, %v347, 0
        %v407 = vsel %vm384, %v348, 0
        %vm409 = vcmask 1041408
        %v411 = vsel %vm409, %v380, 0
        %413 = vmatprep.subr.bf16.mxu0 0
        %414 = vmatpush1.bf16.msra.mxu0 %v377
        %415 = vmatprep.subr.bf16.mxu0 0
        %416 = vmatpush1.bf16.msra.mxu0 %v378
        %417 = vmatprep.subr.bf16.mxu0 0
        %418 = vmatpush1.bf16.msra.mxu0 %v379
        %419 = vmatprep.subr.bf16.mxu0 0
        %420 = vmatpush1.bf16.msra.mxu0 %v411
        %421 = vmatprep.subr.bf16.mxu0 0
        %422 = vmatpush1.bf16.msra.mxu0 0
        %423 = vmatprep.subr.bf16.mxu0 0
        %424 = vmatpush1.bf16.msra.mxu0 0
        %425 = vmatprep.subr.bf16.mxu0 0
        %426 = vmatpush1.bf16.msra.mxu0 0
        %427 = vmatprep.subr.bf16.mxu0 0
        %428 = vmatpush1.bf16.msra.mxu0 0
        %429 = vmatprep.subr.bf16.mxu0 0
        %430 = vmatpush1.bf16.msra.mxu0 0
        %431 = vmatprep.subr.bf16.mxu0 0
        %432 = vmatpush1.bf16.msra.mxu0 0
        %433 = vmatprep.subr.bf16.mxu0 0
        %434 = vmatpush1.bf16.msra.mxu0 0
        %435 = vmatprep.subr.bf16.mxu0 0
        %436 = vmatpush1.bf16.msra.mxu0 0
        %437 = vmatprep.subr.bf16.mxu0 0
        %438 = vmatpush1.bf16.msra.mxu0 0
        %439 = vmatprep.subr.bf16.mxu0 0
        %440 = vmatpush1.bf16.msra.mxu0 0
        %441 = vmatprep.subr.bf16.mxu0 0
        %442 = vmatpush1.bf16.msra.mxu0 0
        %443 = vmatprep.subr.bf16.mxu0 0
        %444 = vmatpush1.bf16.msra.mxu0 0
        %445 = vmatprep.mubr.bf16.mxu0 0
        %446 = vmatmul.mubr.bf16.gmra.mrb[0].mxu0 %v386
        %v447 = vpop.f32.mrb[0].mxu0
        %v448 = vadd.f32 %v361, %v447
        %v449 = vpop.f32.mrb[0].mxu0
        %v450 = vpop.f32.mrb[0].mxu0
        %v451 = vadd.f32 %v361, %v450
        %v452 = vpop.f32.mrb[0].mxu0
        %453 = vmatprep.mubr.bf16.mxu0 0
        %454 = vmatmul.mubr.bf16.gmra.mrb[0].mxu0 %v389
        %v455 = vpop.f32.mrb[0].mxu0
        %v456 = vadd.f32 %v361, %v455
        %v457 = vpop.f32.mrb[0].mxu0
        %v458 = vpop.f32.mrb[0].mxu0
        %v459 = vadd.f32 %v361, %v458
        %v460 = vpop.f32.mrb[0].mxu0
        %461 = vmatprep.mubr.bf16.mxu0 0
        %462 = vmatmul.mubr.bf16.gmra.mrb[0].mxu0 %v392
        %v463 = vpop.f32.mrb[0].mxu0
        %v464 = vadd.f32 %v361, %v463
        %v465 = vpop.f32.mrb[0].mxu0
        %v466 = vpop.f32.mrb[0].mxu0
        %v467 = vadd.f32 %v361, %v466
        %v468 = vpop.f32.mrb[0].mxu0
        %469 = vmatprep.mubr.bf16.mxu0 0
        %470 = vmatmul.mubr.bf16.gmra.mrb[0].mxu0 %v395
        %v471 = vpop.f32.mrb[0].mxu0
        %v472 = vadd.f32 %v361, %v471
        %v473 = vpop.f32.mrb[0].mxu0
        %v474 = vpop.f32.mrb[0].mxu0
        %v475 = vadd.f32 %v361, %v474
        %v476 = vpop.f32.mrb[0].mxu0
        %477 = vmatprep.mubr.bf16.mxu0 0
        %478 = vmatmul.mubr.bf16.gmra.mrb[0].mxu0 %v398
        %v479 = vpop.f32.mrb[0].mxu0
        %v480 = vadd.f32 %v361, %v479
        %v481 = vpop.f32.mrb[0].mxu0
        %v482 = vpop.f32.mrb[0].mxu0
        %v483 = vadd.f32 %v361, %v482
        %v484 = vpop.f32.mrb[0].mxu0
        %485 = vmatprep.mubr.bf16.mxu0 0
        %486 = vmatmul.mubr.bf16.gmra.mrb[0].mxu0 %v401
        %v487 = vpop.f32.mrb[0].mxu0
        %v488 = vadd.f32 %v361, %v487
        %v489 = vpop.f32.mrb[0].mxu0
        %v490 = vpop.f32.mrb[0].mxu0
        %v491 = vadd.f32 %v361, %v490
        %v492 = vpop.f32.mrb[0].mxu0
        %493 = vmatprep.mubr.bf16.mxu0 0
        %494 = vmatmul.mubr.bf16.gmra.mrb[0].mxu0 %v404
        %v495 = vpop.f32.mrb[0].mxu0
        %v496 = vadd.f32 %v361, %v495
        %v497 = vpop.f32.mrb[0].mxu0
        %v498 = vpop.f32.mrb[0].mxu0
        %v499 = vadd.f32 %v361, %v498
        %v500 = vpop.f32.mrb[0].mxu0
        %501 = vmatprep.mubr.bf16.mxu0 0
        %502 = vmatmul.mubr.bf16.gmra.mrb[0].mxu0 %v407
        %v503 = vpop.f32.mrb[0].mxu0
        %v504 = vadd.f32 %v361, %v503
        %v505 = vpop.f32.mrb[0].mxu0
        %v506 = vpop.f32.mrb[0].mxu0
        %v507 = vadd.f32 %v361, %v506
        %v508 = vpop.f32.mrb[0].mxu0
        %509 = vdwg.mxu0
        %v510 = vmax.f32 %v448, 0.0
        %v511 = vmax.f32 %v451, 0.0
        %v512 = vmax.f32 %v456, 0.0
        %v513 = vmax.f32 %v459, 0.0
        %v514 = vmax.f32 %v464, 0.0
        %v515 = vmax.f32 %v467, 0.0
        %v516 = vmax.f32 %v472, 0.0
        %v517 = vmax.f32 %v475, 0.0
        %v518 = vmax.f32 %v480, 0.0
        %v519 = vmax.f32 %v483, 0.0
        %v520 = vmax.f32 %v488, 0.0
        %v521 = vmax.f32 %v491, 0.0
        %v522 = vmax.f32 %v496, 0.0
        %v523 = vmax.f32 %v499, 0.0
        %v524 = vmax.f32 %v504, 0.0
        %v525 = vmax.f32 %v507, 0.0
        %v526 = vpack.c.bf16 %v511, %v510
        %v527 = vpack.c.bf16 %v513, %v512
        %v528 = vpack.c.bf16 %v515, %v514
        %v529 = vpack.c.bf16 %v517, %v516
        %v530 = vpack.c.bf16 %v519, %v518
        %v531 = vpack.c.bf16 %v521, %v520
        %v532 = vpack.c.bf16 %v523, %v522
        %v533 = vpack.c.bf16 %v525, %v524
        %v534 = vld [vmem:[#allocation2] sm:$0xf]
        %v535 = vld [vmem:[#allocation2 + $0x4] sm:$0xf]
        %v536 = vld [vmem:[#allocation2 + $0x8] sm:$0xf]
        %v537 = vld [vmem:[#allocation2 + $0xc] sm:$0xf]
        %v538 = vld [vmem:[#allocation2 + $0x10] sm:$0xf]
        %v539 = vld [vmem:[#allocation2 + $0x14] sm:$0xf]
        %v540 = vld [vmem:[#allocation2 + $0x18] sm:$0xf]
        %v541 = vld [vmem:[#allocation2 + $0x1c] sm:$0xf]
        %v542 = vld [vmem:[%s4] sm:$0x1]
        %v544 = vlaneseq
        %v545 = vshrl.u32 %v544, 7
        %v546 = vsub.s32 0, %v545
        %v547 = vrot.slane %v542, %v546
        %v557 = vunpack.c.l.b16 %v534
        %v558 = vunpack.c.l.b16 %v535
        %v559 = vunpack.c.l.b16 %v536
        %v560 = vunpack.c.l.b16 %v537
        %v561 = vunpack.c.l.b16 %v538
        %v562 = vunpack.c.l.b16 %v539
        %v563 = vunpack.c.l.b16 %v540
        %v564 = vunpack.c.l.b16 %v541
        %v565 = vpack.c.b16 %v558, %v557
        %v566 = vpack.c.b16 %v560, %v559
        %v567 = vpack.c.b16 %v562, %v561
        %v568 = vpack.c.b16 %v564, %v563
        %vm573 = vcmask 523264
        %v575 = vsel %vm573, %v526, 0
        %v578 = vsel %vm573, %v527, 0
        %v581 = vsel %vm573, %v528, 0
        %v584 = vsel %vm573, %v529, 0
        %v587 = vsel %vm573, %v530, 0
        %v590 = vsel %vm573, %v531, 0
        %v593 = vsel %vm573, %v532, 0
        %v596 = vsel %vm573, %v533, 0
        %598 = vmatprep.subr.bf16.mxu0 0
        %599 = vmatpush1.bf16.msra.mxu0 %v565
        %600 = vmatprep.subr.bf16.mxu0 0
        %601 = vmatpush1.bf16.msra.mxu0 %v566
        %602 = vmatprep.subr.bf16.mxu0 0
        %603 = vmatpush1.bf16.msra.mxu0 %v567
        %604 = vmatprep.subr.bf16.mxu0 0
        %605 = vmatpush1.bf16.msra.mxu0 %v568
        %606 = vmatprep.subr.bf16.mxu0 0
        %607 = vmatpush1.bf16.msra.mxu0 0
        %608 = vmatprep.subr.bf16.mxu0 0
        %609 = vmatpush1.bf16.msra.mxu0 0
        %610 = vmatprep.subr.bf16.mxu0 0
        %611 = vmatpush1.bf16.msra.mxu0 0
        %612 = vmatprep.subr.bf16.mxu0 0
        %613 = vmatpush1.bf16.msra.mxu0 0
        %614 = vmatprep.subr.bf16.mxu0 0
        %615 = vmatpush1.bf16.msra.mxu0 0
        %616 = vmatprep.subr.bf16.mxu0 0
        %617 = vmatpush1.bf16.msra.mxu0 0
        %618 = vmatprep.subr.bf16.mxu0 0
        %619 = vmatpush1.bf16.msra.mxu0 0
        %620 = vmatprep.subr.bf16.mxu0 0
        %621 = vmatpush1.bf16.msra.mxu0 0
        %622 = vmatprep.subr.bf16.mxu0 0
        %623 = vmatpush1.bf16.msra.mxu0 0
        %624 = vmatprep.subr.bf16.mxu0 0
        %625 = vmatpush1.bf16.msra.mxu0 0
        %626 = vmatprep.subr.bf16.mxu0 0
        %627 = vmatpush1.bf16.msra.mxu0 0
        %628 = vmatprep.subr.bf16.mxu0 0
        %629 = vmatpush1.bf16.msra.mxu0 0
        %630 = vmatprep.mubr.bf16.mxu0 0
        %631 = vmatmul.mubr.bf16.gmra.mrb[0].mxu0 %v575
        %v632 = vpop.f32.mrb[0].mxu0
        %v633 = vadd.f32 %v547, %v632
        %v634 = vpop.f32.mrb[0].mxu0
        %v635 = vpop.f32.mrb[0].mxu0
        %v636 = vadd.f32 %v547, %v635
        %v637 = vpop.f32.mrb[0].mxu0
        %638 = vmatprep.mubr.bf16.mxu0 0
        %639 = vmatmul.mubr.bf16.gmra.mrb[0].mxu0 %v578
        %v640 = vpop.f32.mrb[0].mxu0
        %v641 = vadd.f32 %v547, %v640
        %v642 = vpop.f32.mrb[0].mxu0
        %v643 = vpop.f32.mrb[0].mxu0
        %v644 = vadd.f32 %v547, %v643
        %v645 = vpop.f32.mrb[0].mxu0
        %646 = vmatprep.mubr.bf16.mxu0 0
        %647 = vmatmul.mubr.bf16.gmra.mrb[0].mxu0 %v581
        %v648 = vpop.f32.mrb[0].mxu0
        %v649 = vadd.f32 %v547, %v648
        %v650 = vpop.f32.mrb[0].mxu0
        %v651 = vpop.f32.mrb[0].mxu0
        %v652 = vadd.f32 %v547, %v651
        %v653 = vpop.f32.mrb[0].mxu0
        %654 = vmatprep.mubr.bf16.mxu0 0
        %655 = vmatmul.mubr.bf16.gmra.mrb[0].mxu0 %v584
        %v656 = vpop.f32.mrb[0].mxu0
        %v657 = vadd.f32 %v547, %v656
        %v658 = vpop.f32.mrb[0].mxu0
        %v659 = vpop.f32.mrb[0].mxu0
        %v660 = vadd.f32 %v547, %v659
        %v661 = vpop.f32.mrb[0].mxu0
        %662 = vmatprep.mubr.bf16.mxu0 0
        %663 = vmatmul.mubr.bf16.gmra.mrb[0].mxu0 %v587
        %v664 = vpop.f32.mrb[0].mxu0
        %v665 = vadd.f32 %v547, %v664
        %v666 = vpop.f32.mrb[0].mxu0
        %v667 = vpop.f32.mrb[0].mxu0
        %v668 = vadd.f32 %v547, %v667
        %v669 = vpop.f32.mrb[0].mxu0
        %670 = vmatprep.mubr.bf16.mxu0 0
        %671 = vmatmul.mubr.bf16.gmra.mrb[0].mxu0 %v590
        %v672 = vpop.f32.mrb[0].mxu0
        %v673 = vadd.f32 %v547, %v672
        %v674 = vpop.f32.mrb[0].mxu0
        %v675 = vpop.f32.mrb[0].mxu0
        %v676 = vadd.f32 %v547, %v675
        %v677 = vpop.f32.mrb[0].mxu0
        %678 = vmatprep.mubr.bf16.mxu0 0
        %679 = vmatmul.mubr.bf16.gmra.mrb[0].mxu0 %v593
        %v680 = vpop.f32.mrb[0].mxu0
        %v681 = vadd.f32 %v547, %v680
        %v682 = vpop.f32.mrb[0].mxu0
        %v683 = vpop.f32.mrb[0].mxu0
        %v684 = vadd.f32 %v547, %v683
        %v685 = vpop.f32.mrb[0].mxu0
        %686 = vmatprep.mubr.bf16.mxu0 0
        %687 = vmatmul.mubr.bf16.gmra.mrb[0].mxu0 %v596
        %v688 = vpop.f32.mrb[0].mxu0
        %v689 = vadd.f32 %v547, %v688
        %v690 = vpop.f32.mrb[0].mxu0
        %v691 = vpop.f32.mrb[0].mxu0
        %v692 = vadd.f32 %v547, %v691
        %v693 = vpop.f32.mrb[0].mxu0
        %694 = vdwg.mxu0
        %v695 = vmax.f32 %v633, 0.0
        %v696 = vmax.f32 %v636, 0.0
        %v697 = vmax.f32 %v641, 0.0
        %v698 = vmax.f32 %v644, 0.0
        %v699 = vmax.f32 %v649, 0.0
        %v700 = vmax.f32 %v652, 0.0
        %v701 = vmax.f32 %v657, 0.0
        %v702 = vmax.f32 %v660, 0.0
        %v703 = vmax.f32 %v665, 0.0
        %v704 = vmax.f32 %v668, 0.0
        %v705 = vmax.f32 %v673, 0.0
        %v706 = vmax.f32 %v676, 0.0
        %v707 = vmax.f32 %v681, 0.0
        %v708 = vmax.f32 %v684, 0.0
        %v709 = vmax.f32 %v689, 0.0
        %v710 = vmax.f32 %v692, 0.0
        %v711 = vpack.c.bf16 %v696, %v695
        %v712 = vpack.c.bf16 %v698, %v697
        %v713 = vpack.c.bf16 %v700, %v699
        %v714 = vpack.c.bf16 %v702, %v701
        %v715 = vpack.c.bf16 %v704, %v703
        %v716 = vpack.c.bf16 %v706, %v705
        %v717 = vpack.c.bf16 %v708, %v707
        %v718 = vpack.c.bf16 %v710, %v709
        %s719 = scalar_lea.vmem [#allocation2], 32
        %v720 = vld [vmem:[%s719] sm:$0xf]
        %v721 = vld [vmem:[%s719 + $0x4] sm:$0xf]
        %v722 = vld [vmem:[%s719 + $0x8] sm:$0xf]
        %v723 = vld [vmem:[%s719 + $0xc] sm:$0xf]
        %v724 = vld [vmem:[%s719 + $0x10] sm:$0xf]
        %v725 = vld [vmem:[%s719 + $0x14] sm:$0xf]
        %v726 = vld [vmem:[%s719 + $0x18] sm:$0xf]
        %v727 = vld [vmem:[%s719 + $0x1c] sm:$0xf]
        %s728 = scalar_lea.vmem %s4, 1
        %v729 = vld [vmem:[%s728] sm:$0x1]
        %v731 = vlaneseq
        %v732 = vshrl.u32 %v731, 7
        %v733 = vsub.s32 0, %v732
        %v734 = vrot.slane %v729, %v733
        %v744 = vunpack.c.l.b16 %v720
        %v745 = vunpack.c.l.b16 %v721
        %v746 = vunpack.c.l.b16 %v722
        %v747 = vunpack.c.l.b16 %v723
        %v748 = vunpack.c.l.b16 %v724
        %v749 = vunpack.c.l.b16 %v725
        %v750 = vunpack.c.l.b16 %v726
        %v751 = vunpack.c.l.b16 %v727
        %v752 = vpack.c.b16 %v745, %v744
        %v753 = vpack.c.b16 %v747, %v746
        %v754 = vpack.c.b16 %v749, %v748
        %v755 = vpack.c.b16 %v751, %v750
        %v761 = vsel %vm573, %v711, 0
        %v764 = vsel %vm573, %v712, 0
        %v767 = vsel %vm573, %v713, 0
        %v770 = vsel %vm573, %v714, 0
        %v773 = vsel %vm573, %v715, 0
        %v776 = vsel %vm573, %v716, 0
        %v779 = vsel %vm573, %v717, 0
        %v782 = vsel %vm573, %v718, 0
        %784 = vmatprep.subr.bf16.mxu0 0
        %785 = vmatpush1.bf16.msra.mxu0 %v752
        %786 = vmatprep.subr.bf16.mxu0 0
        %787 = vmatpush1.bf16.msra.mxu0 %v753
        %788 = vmatprep.subr.bf16.mxu0 0
        %789 = vmatpush1.bf16.msra.mxu0 %v754
        %790 = vmatprep.subr.bf16.mxu0 0
        %791 = vmatpush1.bf16.msra.mxu0 %v755
        %792 = vmatprep.subr.bf16.mxu0 0
        %793 = vmatpush1.bf16.msra.mxu0 0
        %794 = vmatprep.subr.bf16.mxu0 0
        %795 = vmatpush1.bf16.msra.mxu0 0
        %796 = vmatprep.subr.bf16.mxu0 0
        %797 = vmatpush1.bf16.msra.mxu0 0
        %798 = vmatprep.subr.bf16.mxu0 0
        %799 = vmatpush1.bf16.msra.mxu0 0
        %800 = vmatprep.subr.bf16.mxu0 0
        %801 = vmatpush1.bf16.msra.mxu0 0
        %802 = vmatprep.subr.bf16.mxu0 0
        %803 = vmatpush1.bf16.msra.mxu0 0
        %804 = vmatprep.subr.bf16.mxu0 0
        %805 = vmatpush1.bf16.msra.mxu0 0
        %806 = vmatprep.subr.bf16.mxu0 0
        %807 = vmatpush1.bf16.msra.mxu0 0
        %808 = vmatprep.subr.bf16.mxu0 0
        %809 = vmatpush1.bf16.msra.mxu0 0
        %810 = vmatprep.subr.bf16.mxu0 0
        %811 = vmatpush1.bf16.msra.mxu0 0
        %812 = vmatprep.subr.bf16.mxu0 0
        %813 = vmatpush1.bf16.msra.mxu0 0
        %814 = vmatprep.subr.bf16.mxu0 0
        %815 = vmatpush1.bf16.msra.mxu0 0
        %816 = vmatprep.mubr.bf16.mxu0 0
        %817 = vmatmul.mubr.bf16.gmra.mrb[0].mxu0 %v761
        %v818 = vpop.f32.mrb[0].mxu0
        %v819 = vadd.f32 %v734, %v818
        %v820 = vpop.f32.mrb[0].mxu0
        %v821 = vpop.f32.mrb[0].mxu0
        %v822 = vadd.f32 %v734, %v821
        %v823 = vpop.f32.mrb[0].mxu0
        %824 = vmatprep.mubr.bf16.mxu0 0
        %825 = vmatmul.mubr.bf16.gmra.mrb[0].mxu0 %v764
        %v826 = vpop.f32.mrb[0].mxu0
        %v827 = vadd.f32 %v734, %v826
        %v828 = vpop.f32.mrb[0].mxu0
        %v829 = vpop.f32.mrb[0].mxu0
        %v830 = vadd.f32 %v734, %v829
        %v831 = vpop.f32.mrb[0].mxu0
        %832 = vmatprep.mubr.bf16.mxu0 0
        %833 = vmatmul.mubr.bf16.gmra.mrb[0].mxu0 %v767
        %v834 = vpop.f32.mrb[0].mxu0
        %v835 = vadd.f32 %v734, %v834
        %v836 = vpop.f32.mrb[0].mxu0
        %v837 = vpop.f32.mrb[0].mxu0
        %v838 = vadd.f32 %v734, %v837
        %v839 = vpop.f32.mrb[0].mxu0
        %840 = vmatprep.mubr.bf16.mxu0 0
        %841 = vmatmul.mubr.bf16.gmra.mrb[0].mxu0 %v770
        %v842 = vpop.f32.mrb[0].mxu0
        %v843 = vadd.f32 %v734, %v842
        %v844 = vpop.f32.mrb[0].mxu0
        %v845 = vpop.f32.mrb[0].mxu0
        %v846 = vadd.f32 %v734, %v845
        %v847 = vpop.f32.mrb[0].mxu0
        %848 = vmatprep.mubr.bf16.mxu0 0
        %849 = vmatmul.mubr.bf16.gmra.mrb[0].mxu0 %v773
        %v850 = vpop.f32.mrb[0].mxu0
        %v851 = vadd.f32 %v734, %v850
        %v852 = vpop.f32.mrb[0].mxu0
        %v853 = vpop.f32.mrb[0].mxu0
        %v854 = vadd.f32 %v734, %v853
        %v855 = vpop.f32.mrb[0].mxu0
        %856 = vmatprep.mubr.bf16.mxu0 0
        %857 = vmatmul.mubr.bf16.gmra.mrb[0].mxu0 %v776
        %v858 = vpop.f32.mrb[0].mxu0
        %v859 = vadd.f32 %v734, %v858
        %v860 = vpop.f32.mrb[0].mxu0
        %v861 = vpop.f32.mrb[0].mxu0
        %v862 = vadd.f32 %v734, %v861
        %v863 = vpop.f32.mrb[0].mxu0
        %864 = vmatprep.mubr.bf16.mxu0 0
        %865 = vmatmul.mubr.bf16.gmra.mrb[0].mxu0 %v779
        %v866 = vpop.f32.mrb[0].mxu0
        %v867 = vadd.f32 %v734, %v866
        %v868 = vpop.f32.mrb[0].mxu0
        %v869 = vpop.f32.mrb[0].mxu0
        %v870 = vadd.f32 %v734, %v869
        %v871 = vpop.f32.mrb[0].mxu0
        %872 = vmatprep.mubr.bf16.mxu0 0
        %873 = vmatmul.mubr.bf16.gmra.mrb[0].mxu0 %v782
        %v874 = vpop.f32.mrb[0].mxu0
        %v875 = vadd.f32 %v734, %v874
        %v876 = vpop.f32.mrb[0].mxu0
        %v877 = vpop.f32.mrb[0].mxu0
        %v878 = vadd.f32 %v734, %v877
        %v879 = vpop.f32.mrb[0].mxu0
        %880 = vdwg.mxu0
        %v881 = vmax.f32 %v819, 0.0
        %v882 = vmax.f32 %v822, 0.0
        %v883 = vmax.f32 %v827, 0.0
        %v884 = vmax.f32 %v830, 0.0
        %v885 = vmax.f32 %v835, 0.0
        %v886 = vmax.f32 %v838, 0.0
        %v887 = vmax.f32 %v843, 0.0
        %v888 = vmax.f32 %v846, 0.0
        %v889 = vmax.f32 %v851, 0.0
        %v890 = vmax.f32 %v854, 0.0
        %v891 = vmax.f32 %v859, 0.0
        %v892 = vmax.f32 %v862, 0.0
        %v893 = vmax.f32 %v867, 0.0
        %v894 = vmax.f32 %v870, 0.0
        %v895 = vmax.f32 %v875, 0.0
        %v896 = vmax.f32 %v878, 0.0
        %v897 = vpack.c.bf16 %v882, %v881
        %v898 = vpack.c.bf16 %v884, %v883
        %v899 = vpack.c.bf16 %v886, %v885
        %v900 = vpack.c.bf16 %v888, %v887
        %v901 = vpack.c.bf16 %v890, %v889
        %v902 = vpack.c.bf16 %v892, %v891
        %v903 = vpack.c.bf16 %v894, %v893
        %v904 = vpack.c.bf16 %v896, %v895
        %s905 = scalar_lea.vmem [#allocation2], 64
        %v906 = vld [vmem:[%s905] sm:$0xf]
        %v907 = vld [vmem:[%s905 + $0x4] sm:$0xf]
        %v908 = vld [vmem:[%s905 + $0x8] sm:$0xf]
        %v909 = vld [vmem:[%s905 + $0xc] sm:$0xf]
        %v910 = vld [vmem:[%s905 + $0x10] sm:$0xf]
        %v911 = vld [vmem:[%s905 + $0x14] sm:$0xf]
        %v912 = vld [vmem:[%s905 + $0x18] sm:$0xf]
        %v913 = vld [vmem:[%s905 + $0x1c] sm:$0xf]
        %s914 = scalar_lea.vmem %s4, 2
        %v915 = vld [vmem:[%s914] sm:$0x1]
        %v917 = vlaneseq
        %v918 = vshrl.u32 %v917, 7
        %v919 = vsub.s32 0, %v918
        %v920 = vrot.slane %v915, %v919
        %v930 = vunpack.c.l.b16 %v906
        %v931 = vunpack.c.l.b16 %v907
        %v932 = vunpack.c.l.b16 %v908
        %v933 = vunpack.c.l.b16 %v909
        %v934 = vunpack.c.l.b16 %v910
        %v935 = vunpack.c.l.b16 %v911
        %v936 = vunpack.c.l.b16 %v912
        %v937 = vunpack.c.l.b16 %v913
        %v938 = vpack.c.b16 %v931, %v930
        %v939 = vpack.c.b16 %v933, %v932
        %v940 = vpack.c.b16 %v935, %v934
        %v941 = vpack.c.b16 %v937, %v936
        %v947 = vsel %vm573, %v897, 0
        %v950 = vsel %vm573, %v898, 0
        %v953 = vsel %vm573, %v899, 0
        %v956 = vsel %vm573, %v900, 0
        %v959 = vsel %vm573, %v901, 0
        %v962 = vsel %vm573, %v902, 0
        %v965 = vsel %vm573, %v903, 0
        %v968 = vsel %vm573, %v904, 0
        %970 = vmatprep.subr.bf16.mxu0 0
        %971 = vmatpush1.bf16.msra.mxu0 %v938
        %972 = vmatprep.subr.bf16.mxu0 0
        %973 = vmatpush1.bf16.msra.mxu0 %v939
        %974 = vmatprep.subr.bf16.mxu0 0
        %975 = vmatpush1.bf16.msra.mxu0 %v940
        %976 = vmatprep.subr.bf16.mxu0 0
        %977 = vmatpush1.bf16.msra.mxu0 %v941
        %978 = vmatprep.subr.bf16.mxu0 0
        %979 = vmatpush1.bf16.msra.mxu0 0
        %980 = vmatprep.subr.bf16.mxu0 0
        %981 = vmatpush1.bf16.msra.mxu0 0
        %982 = vmatprep.subr.bf16.mxu0 0
        %983 = vmatpush1.bf16.msra.mxu0 0
        %984 = vmatprep.subr.bf16.mxu0 0
        %985 = vmatpush1.bf16.msra.mxu0 0
        %986 = vmatprep.subr.bf16.mxu0 0
        %987 = vmatpush1.bf16.msra.mxu0 0
        %988 = vmatprep.subr.bf16.mxu0 0
        %989 = vmatpush1.bf16.msra.mxu0 0
        %990 = vmatprep.subr.bf16.mxu0 0
        %991 = vmatpush1.bf16.msra.mxu0 0
        %992 = vmatprep.subr.bf16.mxu0 0
        %993 = vmatpush1.bf16.msra.mxu0 0
        %994 = vmatprep.subr.bf16.mxu0 0
        %995 = vmatpush1.bf16.msra.mxu0 0
        %996 = vmatprep.subr.bf16.mxu0 0
        %997 = vmatpush1.bf16.msra.mxu0 0
        %998 = vmatprep.subr.bf16.mxu0 0
        %999 = vmatpush1.bf16.msra.mxu0 0
        %1000 = vmatprep.subr.bf16.mxu0 0
        %1001 = vmatpush1.bf16.msra.mxu0 0
        %1002 = vmatprep.mubr.bf16.mxu0 0
        %1003 = vmatmul.mubr.bf16.gmra.mrb[0].mxu0 %v947
        %v1004 = vpop.f32.mrb[0].mxu0
        %v1005 = vadd.f32 %v920, %v1004
        %v1006 = vpop.f32.mrb[0].mxu0
        %v1007 = vpop.f32.mrb[0].mxu0
        %v1008 = vadd.f32 %v920, %v1007
        %v1009 = vpop.f32.mrb[0].mxu0
        %1010 = vmatprep.mubr.bf16.mxu0 0
        %1011 = vmatmul.mubr.bf16.gmra.mrb[0].mxu0 %v950
        %v1012 = vpop.f32.mrb[0].mxu0
        %v1013 = vadd.f32 %v920, %v1012
        %v1014 = vpop.f32.mrb[0].mxu0
        %v1015 = vpop.f32.mrb[0].mxu0
        %v1016 = vadd.f32 %v920, %v1015
        %v1017 = vpop.f32.mrb[0].mxu0
        %1018 = vmatprep.mubr.bf16.mxu0 0
        %1019 = vmatmul.mubr.bf16.gmra.mrb[0].mxu0 %v953
        %v1020 = vpop.f32.mrb[0].mxu0
        %v1021 = vadd.f32 %v920, %v1020
        %v1022 = vpop.f32.mrb[0].mxu0
        %v1023 = vpop.f32.mrb[0].mxu0
        %v1024 = vadd.f32 %v920, %v1023
        %v1025 = vpop.f32.mrb[0].mxu0
        %1026 = vmatprep.mubr.bf16.mxu0 0
        %1027 = vmatmul.mubr.bf16.gmra.mrb[0].mxu0 %v956
        %v1028 = vpop.f32.mrb[0].mxu0
        %v1029 = vadd.f32 %v920, %v1028
        %v1030 = vpop.f32.mrb[0].mxu0
        %v1031 = vpop.f32.mrb[0].mxu0
        %v1032 = vadd.f32 %v920, %v1031
        %v1033 = vpop.f32.mrb[0].mxu0
        %1034 = vmatprep.mubr.bf16.mxu0 0
        %1035 = vmatmul.mubr.bf16.gmra.mrb[0].mxu0 %v959
        %v1036 = vpop.f32.mrb[0].mxu0
        %v1037 = vadd.f32 %v920, %v1036
        %v1038 = vpop.f32.mrb[0].mxu0
        %v1039 = vpop.f32.mrb[0].mxu0
        %v1040 = vadd.f32 %v920, %v1039
        %v1041 = vpop.f32.mrb[0].mxu0
        %1042 = vmatprep.mubr.bf16.mxu0 0
        %1043 = vmatmul.mubr.bf16.gmra.mrb[0].mxu0 %v962
        %v1044 = vpop.f32.mrb[0].mxu0
        %v1045 = vadd.f32 %v920, %v1044
        %v1046 = vpop.f32.mrb[0].mxu0
        %v1047 = vpop.f32.mrb[0].mxu0
        %v1048 = vadd.f32 %v920, %v1047
        %v1049 = vpop.f32.mrb[0].mxu0
        %1050 = vmatprep.mubr.bf16.mxu0 0
        %1051 = vmatmul.mubr.bf16.gmra.mrb[0].mxu0 %v965
        %v1052 = vpop.f32.mrb[0].mxu0
        %v1053 = vadd.f32 %v920, %v1052
        %v1054 = vpop.f32.mrb[0].mxu0
        %v1055 = vpop.f32.mrb[0].mxu0
        %v1056 = vadd.f32 %v920, %v1055
        %v1057 = vpop.f32.mrb[0].mxu0
        %1058 = vmatprep.mubr.bf16.mxu0 0
        %1059 = vmatmul.mubr.bf16.gmra.mrb[0].mxu0 %v968
        %v1060 = vpop.f32.mrb[0].mxu0
        %v1061 = vadd.f32 %v920, %v1060
        %v1062 = vpop.f32.mrb[0].mxu0
        %v1063 = vpop.f32.mrb[0].mxu0
        %v1064 = vadd.f32 %v920, %v1063
        %v1065 = vpop.f32.mrb[0].mxu0
        %1066 = vdwg.mxu0
        %v1067 = vmax.f32 %v1005, 0.0
        %v1068 = vmax.f32 %v1008, 0.0
        %v1069 = vmax.f32 %v1013, 0.0
        %v1070 = vmax.f32 %v1016, 0.0
        %v1071 = vmax.f32 %v1021, 0.0
        %v1072 = vmax.f32 %v1024, 0.0
        %v1073 = vmax.f32 %v1029, 0.0
        %v1074 = vmax.f32 %v1032, 0.0
        %v1075 = vmax.f32 %v1037, 0.0
        %v1076 = vmax.f32 %v1040, 0.0
        %v1077 = vmax.f32 %v1045, 0.0
        %v1078 = vmax.f32 %v1048, 0.0
        %v1079 = vmax.f32 %v1053, 0.0
        %v1080 = vmax.f32 %v1056, 0.0
        %v1081 = vmax.f32 %v1061, 0.0
        %v1082 = vmax.f32 %v1064, 0.0
        %v1083 = vpack.c.bf16 %v1068, %v1067
        %v1084 = vpack.c.bf16 %v1070, %v1069
        %v1085 = vpack.c.bf16 %v1072, %v1071
        %v1086 = vpack.c.bf16 %v1074, %v1073
        %v1087 = vpack.c.bf16 %v1076, %v1075
        %v1088 = vpack.c.bf16 %v1078, %v1077
        %v1089 = vpack.c.bf16 %v1080, %v1079
        %v1090 = vpack.c.bf16 %v1082, %v1081
        %s1091 = scalar_lea.vmem [#allocation2], 96
        %v1092 = vld [vmem:[%s1091] sm:$0xf]
        %v1093 = vld [vmem:[%s1091 + $0x4] sm:$0xf]
        %v1094 = vld [vmem:[%s1091 + $0x8] sm:$0xf]
        %v1095 = vld [vmem:[%s1091 + $0xc] sm:$0xf]
        %v1096 = vld [vmem:[%s1091 + $0x10] sm:$0xf]
        %v1097 = vld [vmem:[%s1091 + $0x14] sm:$0xf]
        %v1098 = vld [vmem:[%s1091 + $0x18] sm:$0xf]
        %v1099 = vld [vmem:[%s1091 + $0x1c] sm:$0xf]
        %s1100 = scalar_lea.vmem %s4, 3
        %v1101 = vld [vmem:[%s1100] sm:$0x1]
        %v1103 = vlaneseq
        %v1104 = vshrl.u32 %v1103, 7
        %v1105 = vsub.s32 0, %v1104
        %v1106 = vrot.slane %v1101, %v1105
        %v1116 = vunpack.c.l.b16 %v1092
        %v1117 = vunpack.c.l.b16 %v1093
        %v1118 = vunpack.c.l.b16 %v1094
        %v1119 = vunpack.c.l.b16 %v1095
        %v1120 = vunpack.c.l.b16 %v1096
        %v1121 = vunpack.c.l.b16 %v1097
        %v1122 = vunpack.c.l.b16 %v1098
        %v1123 = vunpack.c.l.b16 %v1099
        %v1124 = vpack.c.b16 %v1117, %v1116
        %v1125 = vpack.c.b16 %v1119, %v1118
        %v1126 = vpack.c.b16 %v1121, %v1120
        %v1127 = vpack.c.b16 %v1123, %v1122
        %v1133 = vsel %vm573, %v1083, 0
        %v1136 = vsel %vm573, %v1084, 0
        %v1139 = vsel %vm573, %v1085, 0
        %v1142 = vsel %vm573, %v1086, 0
        %v1145 = vsel %vm573, %v1087, 0
        %v1148 = vsel %vm573, %v1088, 0
        %v1151 = vsel %vm573, %v1089, 0
        %v1154 = vsel %vm573, %v1090, 0
        %1156 = vmatprep.subr.bf16.mxu0 0
        %1157 = vmatpush1.bf16.msra.mxu0 %v1124
        %1158 = vmatprep.subr.bf16.mxu0 0
        %1159 = vmatpush1.bf16.msra.mxu0 %v1125
        %1160 = vmatprep.subr.bf16.mxu0 0
        %1161 = vmatpush1.bf16.msra.mxu0 %v1126
        %1162 = vmatprep.subr.bf16.mxu0 0
        %1163 = vmatpush1.bf16.msra.mxu0 %v1127
        %1164 = vmatprep.subr.bf16.mxu0 0
        %1165 = vmatpush1.bf16.msra.mxu0 0
        %1166 = vmatprep.subr.bf16.mxu0 0
        %1167 = vmatpush1.bf16.msra.mxu0 0
        %1168 = vmatprep.subr.bf16.mxu0 0
        %1169 = vmatpush1.bf16.msra.mxu0 0
        %1170 = vmatprep.subr.bf16.mxu0 0
        %1171 = vmatpush1.bf16.msra.mxu0 0
        %1172 = vmatprep.subr.bf16.mxu0 0
        %1173 = vmatpush1.bf16.msra.mxu0 0
        %1174 = vmatprep.subr.bf16.mxu0 0
        %1175 = vmatpush1.bf16.msra.mxu0 0
        %1176 = vmatprep.subr.bf16.mxu0 0
        %1177 = vmatpush1.bf16.msra.mxu0 0
        %1178 = vmatprep.subr.bf16.mxu0 0
        %1179 = vmatpush1.bf16.msra.mxu0 0
        %1180 = vmatprep.subr.bf16.mxu0 0
        %1181 = vmatpush1.bf16.msra.mxu0 0
        %1182 = vmatprep.subr.bf16.mxu0 0
        %1183 = vmatpush1.bf16.msra.mxu0 0
        %1184 = vmatprep.subr.bf16.mxu0 0
        %1185 = vmatpush1.bf16.msra.mxu0 0
        %1186 = vmatprep.subr.bf16.mxu0 0
        %1187 = vmatpush1.bf16.msra.mxu0 0
        %1188 = vmatprep.mubr.bf16.mxu0 0
        %1189 = vmatmul.mubr.bf16.gmra.mrb[0].mxu0 %v1133
        %v1190 = vpop.f32.mrb[0].mxu0
        %v1191 = vadd.f32 %v1106, %v1190
        %v1192 = vpop.f32.mrb[0].mxu0
        %v1193 = vpop.f32.mrb[0].mxu0
        %v1194 = vadd.f32 %v1106, %v1193
        %v1195 = vpop.f32.mrb[0].mxu0
        %1196 = vmatprep.mubr.bf16.mxu0 0
        %1197 = vmatmul.mubr.bf16.gmra.mrb[0].mxu0 %v1136
        %v1198 = vpop.f32.mrb[0].mxu0
        %v1199 = vadd.f32 %v1106, %v1198
        %v1200 = vpop.f32.mrb[0].mxu0
        %v1201 = vpop.f32.mrb[0].mxu0
        %v1202 = vadd.f32 %v1106, %v1201
        %v1203 = vpop.f32.mrb[0].mxu0
        %1204 = vmatprep.mubr.bf16.mxu0 0
        %1205 = vmatmul.mubr.bf16.gmra.mrb[0].mxu0 %v1139
        %v1206 = vpop.f32.mrb[0].mxu0
        %v1207 = vadd.f32 %v1106, %v1206
        %v1208 = vpop.f32.mrb[0].mxu0
        %v1209 = vpop.f32.mrb[0].mxu0
        %v1210 = vadd.f32 %v1106, %v1209
        %v1211 = vpop.f32.mrb[0].mxu0
        %1212 = vmatprep.mubr.bf16.mxu0 0
        %1213 = vmatmul.mubr.bf16.gmra.mrb[0].mxu0 %v1142
        %v1214 = vpop.f32.mrb[0].mxu0
        %v1215 = vadd.f32 %v1106, %v1214
        %v1216 = vpop.f32.mrb[0].mxu0
        %v1217 = vpop.f32.mrb[0].mxu0
        %v1218 = vadd.f32 %v1106, %v1217
        %v1219 = vpop.f32.mrb[0].mxu0
        %1220 = vmatprep.mubr.bf16.mxu0 0
        %1221 = vmatmul.mubr.bf16.gmra.mrb[0].mxu0 %v1145
        %v1222 = vpop.f32.mrb[0].mxu0
        %v1223 = vadd.f32 %v1106, %v1222
        %v1224 = vpop.f32.mrb[0].mxu0
        %v1225 = vpop.f32.mrb[0].mxu0
        %v1226 = vadd.f32 %v1106, %v1225
        %v1227 = vpop.f32.mrb[0].mxu0
        %1228 = vmatprep.mubr.bf16.mxu0 0
        %1229 = vmatmul.mubr.bf16.gmra.mrb[0].mxu0 %v1148
        %v1230 = vpop.f32.mrb[0].mxu0
        %v1231 = vadd.f32 %v1106, %v1230
        %v1232 = vpop.f32.mrb[0].mxu0
        %v1233 = vpop.f32.mrb[0].mxu0
        %v1234 = vadd.f32 %v1106, %v1233
        %v1235 = vpop.f32.mrb[0].mxu0
        %1236 = vmatprep.mubr.bf16.mxu0 0
        %1237 = vmatmul.mubr.bf16.gmra.mrb[0].mxu0 %v1151
        %v1238 = vpop.f32.mrb[0].mxu0
        %v1239 = vadd.f32 %v1106, %v1238
        %v1240 = vpop.f32.mrb[0].mxu0
        %v1241 = vpop.f32.mrb[0].mxu0
        %v1242 = vadd.f32 %v1106, %v1241
        %v1243 = vpop.f32.mrb[0].mxu0
        %1244 = vmatprep.mubr.bf16.mxu0 0
        %1245 = vmatmul.mubr.bf16.gmra.mrb[0].mxu0 %v1154
        %v1246 = vpop.f32.mrb[0].mxu0
        %v1247 = vadd.f32 %v1106, %v1246
        %v1248 = vpop.f32.mrb[0].mxu0
        %v1249 = vpop.f32.mrb[0].mxu0
        %v1250 = vadd.f32 %v1106, %v1249
        %v1251 = vpop.f32.mrb[0].mxu0
        %1252 = vdwg.mxu0
        %v1253 = vmax.f32 %v1191, 0.0
        %v1254 = vmax.f32 %v1194, 0.0
        %v1255 = vmax.f32 %v1199, 0.0
        %v1256 = vmax.f32 %v1202, 0.0
        %v1257 = vmax.f32 %v1207, 0.0
        %v1258 = vmax.f32 %v1210, 0.0
        %v1259 = vmax.f32 %v1215, 0.0
        %v1260 = vmax.f32 %v1218, 0.0
        %v1261 = vmax.f32 %v1223, 0.0
        %v1262 = vmax.f32 %v1226, 0.0
        %v1263 = vmax.f32 %v1231, 0.0
        %v1264 = vmax.f32 %v1234, 0.0
        %v1265 = vmax.f32 %v1239, 0.0
        %v1266 = vmax.f32 %v1242, 0.0
        %v1267 = vmax.f32 %v1247, 0.0
        %v1268 = vmax.f32 %v1250, 0.0
        %v1269 = vpack.c.bf16 %v1254, %v1253
        %v1270 = vpack.c.bf16 %v1256, %v1255
        %v1271 = vpack.c.bf16 %v1258, %v1257
        %v1272 = vpack.c.bf16 %v1260, %v1259
        %v1273 = vpack.c.bf16 %v1262, %v1261
        %v1274 = vpack.c.bf16 %v1264, %v1263
        %v1275 = vpack.c.bf16 %v1266, %v1265
        %v1276 = vpack.c.bf16 %v1268, %v1267
        %s1277 = scalar_lea.vmem [#allocation2], 128
        %v1278 = vld [vmem:[%s1277] sm:$0xf]
        %v1279 = vld [vmem:[%s1277 + $0x4] sm:$0xf]
        %v1280 = vld [vmem:[%s1277 + $0x8] sm:$0xf]
        %v1281 = vld [vmem:[%s1277 + $0xc] sm:$0xf]
        %v1282 = vld [vmem:[%s1277 + $0x10] sm:$0xf]
        %v1283 = vld [vmem:[%s1277 + $0x14] sm:$0xf]
        %v1284 = vld [vmem:[%s1277 + $0x18] sm:$0xf]
        %v1285 = vld [vmem:[%s1277 + $0x1c] sm:$0xf]
        %s1286 = scalar_lea.vmem %s4, 4
        %v1287 = vld [vmem:[%s1286] sm:$0x1]
        %v1289 = vlaneseq
        %v1290 = vshrl.u32 %v1289, 7
        %v1291 = vsub.s32 0, %v1290
        %v1292 = vrot.slane %v1287, %v1291
        %v1302 = vunpack.c.l.b16 %v1278
        %v1303 = vunpack.c.l.b16 %v1279
        %v1304 = vunpack.c.l.b16 %v1280
        %v1305 = vunpack.c.l.b16 %v1281
        %v1306 = vunpack.c.l.b16 %v1282
        %v1307 = vunpack.c.l.b16 %v1283
        %v1308 = vunpack.c.l.b16 %v1284
        %v1309 = vunpack.c.l.b16 %v1285
        %v1310 = vpack.c.b16 %v1303, %v1302
        %v1311 = vpack.c.b16 %v1305, %v1304
        %v1312 = vpack.c.b16 %v1307, %v1306
        %v1313 = vpack.c.b16 %v1309, %v1308
        %v1319 = vsel %vm573, %v1269, 0
        %v1322 = vsel %vm573, %v1270, 0
        %v1325 = vsel %vm573, %v1271, 0
        %v1328 = vsel %vm573, %v1272, 0
        %v1331 = vsel %vm573, %v1273, 0
        %v1334 = vsel %vm573, %v1274, 0
        %v1337 = vsel %vm573, %v1275, 0
        %v1340 = vsel %vm573, %v1276, 0
        %1342 = vmatprep.subr.bf16.mxu0 0
        %1343 = vmatpush1.bf16.msra.mxu0 %v1310
        %1344 = vmatprep.subr.bf16.mxu0 0
        %1345 = vmatpush1.bf16.msra.mxu0 %v1311
        %1346 = vmatprep.subr.bf16.mxu0 0
        %1347 = vmatpush1.bf16.msra.mxu0 %v1312
        %1348 = vmatprep.subr.bf16.mxu0 0
        %1349 = vmatpush1.bf16.msra.mxu0 %v1313
        %1350 = vmatprep.subr.bf16.mxu0 0
        %1351 = vmatpush1.bf16.msra.mxu0 0
        %1352 = vmatprep.subr.bf16.mxu0 0
        %1353 = vmatpush1.bf16.msra.mxu0 0
        %1354 = vmatprep.subr.bf16.mxu0 0
        %1355 = vmatpush1.bf16.msra.mxu0 0
        %1356 = vmatprep.subr.bf16.mxu0 0
        %1357 = vmatpush1.bf16.msra.mxu0 0
        %1358 = vmatprep.subr.bf16.mxu0 0
        %1359 = vmatpush1.bf16.msra.mxu0 0
        %1360 = vmatprep.subr.bf16.mxu0 0
        %1361 = vmatpush1.bf16.msra.mxu0 0
        %1362 = vmatprep.subr.bf16.mxu0 0
        %1363 = vmatpush1.bf16.msra.mxu0 0
        %1364 = vmatprep.subr.bf16.mxu0 0
        %1365 = vmatpush1.bf16.msra.mxu0 0
        %1366 = vmatprep.subr.bf16.mxu0 0
        %1367 = vmatpush1.bf16.msra.mxu0 0
        %1368 = vmatprep.subr.bf16.mxu0 0
        %1369 = vmatpush1.bf16.msra.mxu0 0
        %1370 = vmatprep.subr.bf16.mxu0 0
        %1371 = vmatpush1.bf16.msra.mxu0 0
        %1372 = vmatprep.subr.bf16.mxu0 0
        %1373 = vmatpush1.bf16.msra.mxu0 0
        %1374 = vmatprep.mubr.bf16.mxu0 0
        %1375 = vmatmul.mubr.bf16.gmra.mrb[0].mxu0 %v1319
        %v1376 = vpop.f32.mrb[0].mxu0
        %v1377 = vadd.f32 %v1292, %v1376
        %v1378 = vpop.f32.mrb[0].mxu0
        %v1379 = vpop.f32.mrb[0].mxu0
        %v1380 = vadd.f32 %v1292, %v1379
        %v1381 = vpop.f32.mrb[0].mxu0
        %1382 = vmatprep.mubr.bf16.mxu0 0
        %1383 = vmatmul.mubr.bf16.gmra.mrb[0].mxu0 %v1322
        %v1384 = vpop.f32.mrb[0].mxu0
        %v1385 = vadd.f32 %v1292, %v1384
        %v1386 = vpop.f32.mrb[0].mxu0
        %v1387 = vpop.f32.mrb[0].mxu0
        %v1388 = vadd.f32 %v1292, %v1387
        %v1389 = vpop.f32.mrb[0].mxu0
        %1390 = vmatprep.mubr.bf16.mxu0 0
        %1391 = vmatmul.mubr.bf16.gmra.mrb[0].mxu0 %v1325
        %v1392 = vpop.f32.mrb[0].mxu0
        %v1393 = vadd.f32 %v1292, %v1392
        %v1394 = vpop.f32.mrb[0].mxu0
        %v1395 = vpop.f32.mrb[0].mxu0
        %v1396 = vadd.f32 %v1292, %v1395
        %v1397 = vpop.f32.mrb[0].mxu0
        %1398 = vmatprep.mubr.bf16.mxu0 0
        %1399 = vmatmul.mubr.bf16.gmra.mrb[0].mxu0 %v1328
        %v1400 = vpop.f32.mrb[0].mxu0
        %v1401 = vadd.f32 %v1292, %v1400
        %v1402 = vpop.f32.mrb[0].mxu0
        %v1403 = vpop.f32.mrb[0].mxu0
        %v1404 = vadd.f32 %v1292, %v1403
        %v1405 = vpop.f32.mrb[0].mxu0
        %1406 = vmatprep.mubr.bf16.mxu0 0
        %1407 = vmatmul.mubr.bf16.gmra.mrb[0].mxu0 %v1331
        %v1408 = vpop.f32.mrb[0].mxu0
        %v1409 = vadd.f32 %v1292, %v1408
        %v1410 = vpop.f32.mrb[0].mxu0
        %v1411 = vpop.f32.mrb[0].mxu0
        %v1412 = vadd.f32 %v1292, %v1411
        %v1413 = vpop.f32.mrb[0].mxu0
        %1414 = vmatprep.mubr.bf16.mxu0 0
        %1415 = vmatmul.mubr.bf16.gmra.mrb[0].mxu0 %v1334
        %v1416 = vpop.f32.mrb[0].mxu0
        %v1417 = vadd.f32 %v1292, %v1416
        %v1418 = vpop.f32.mrb[0].mxu0
        %v1419 = vpop.f32.mrb[0].mxu0
        %v1420 = vadd.f32 %v1292, %v1419
        %v1421 = vpop.f32.mrb[0].mxu0
        %1422 = vmatprep.mubr.bf16.mxu0 0
        %1423 = vmatmul.mubr.bf16.gmra.mrb[0].mxu0 %v1337
        %v1424 = vpop.f32.mrb[0].mxu0
        %v1425 = vadd.f32 %v1292, %v1424
        %v1426 = vpop.f32.mrb[0].mxu0
        %v1427 = vpop.f32.mrb[0].mxu0
        %v1428 = vadd.f32 %v1292, %v1427
        %v1429 = vpop.f32.mrb[0].mxu0
        %1430 = vmatprep.mubr.bf16.mxu0 0
        %1431 = vmatmul.mubr.bf16.gmra.mrb[0].mxu0 %v1340
        %v1432 = vpop.f32.mrb[0].mxu0
        %v1433 = vadd.f32 %v1292, %v1432
        %v1434 = vpop.f32.mrb[0].mxu0
        %v1435 = vpop.f32.mrb[0].mxu0
        %v1436 = vadd.f32 %v1292, %v1435
        %v1437 = vpop.f32.mrb[0].mxu0
        %1438 = vdwg.mxu0
        %v1439 = vmax.f32 %v1377, 0.0
        %v1440 = vmax.f32 %v1380, 0.0
        %v1441 = vmax.f32 %v1385, 0.0
        %v1442 = vmax.f32 %v1388, 0.0
        %v1443 = vmax.f32 %v1393, 0.0
        %v1444 = vmax.f32 %v1396, 0.0
        %v1445 = vmax.f32 %v1401, 0.0
        %v1446 = vmax.f32 %v1404, 0.0
        %v1447 = vmax.f32 %v1409, 0.0
        %v1448 = vmax.f32 %v1412, 0.0
        %v1449 = vmax.f32 %v1417, 0.0
        %v1450 = vmax.f32 %v1420, 0.0
        %v1451 = vmax.f32 %v1425, 0.0
        %v1452 = vmax.f32 %v1428, 0.0
        %v1453 = vmax.f32 %v1433, 0.0
        %v1454 = vmax.f32 %v1436, 0.0
        %v1455 = vpack.c.bf16 %v1440, %v1439
        %v1456 = vpack.c.bf16 %v1442, %v1441
        %v1457 = vpack.c.bf16 %v1444, %v1443
        %v1458 = vpack.c.bf16 %v1446, %v1445
        %v1459 = vpack.c.bf16 %v1448, %v1447
        %v1460 = vpack.c.bf16 %v1450, %v1449
        %v1461 = vpack.c.bf16 %v1452, %v1451
        %v1462 = vpack.c.bf16 %v1454, %v1453
        %s1463 = scalar_lea.vmem [#allocation2], 160
        %v1464 = vld [vmem:[%s1463] sm:$0xf]
        %v1465 = vld [vmem:[%s1463 + $0x4] sm:$0xf]
        %v1466 = vld [vmem:[%s1463 + $0x8] sm:$0xf]
        %v1467 = vld [vmem:[%s1463 + $0xc] sm:$0xf]
        %v1468 = vld [vmem:[%s1463 + $0x10] sm:$0xf]
        %v1469 = vld [vmem:[%s1463 + $0x14] sm:$0xf]
        %v1470 = vld [vmem:[%s1463 + $0x18] sm:$0xf]
        %v1471 = vld [vmem:[%s1463 + $0x1c] sm:$0xf]
        %s1472 = scalar_lea.vmem %s4, 5
        %v1473 = vld [vmem:[%s1472] sm:$0x1]
        %v1475 = vlaneseq
        %v1476 = vshrl.u32 %v1475, 7
        %v1477 = vsub.s32 0, %v1476
        %v1478 = vrot.slane %v1473, %v1477
        %v1488 = vunpack.c.l.b16 %v1464
        %v1489 = vunpack.c.l.b16 %v1465
        %v1490 = vunpack.c.l.b16 %v1466
        %v1491 = vunpack.c.l.b16 %v1467
        %v1492 = vunpack.c.l.b16 %v1468
        %v1493 = vunpack.c.l.b16 %v1469
        %v1494 = vunpack.c.l.b16 %v1470
        %v1495 = vunpack.c.l.b16 %v1471
        %v1496 = vpack.c.b16 %v1489, %v1488
        %v1497 = vpack.c.b16 %v1491, %v1490
        %v1498 = vpack.c.b16 %v1493, %v1492
        %v1499 = vpack.c.b16 %v1495, %v1494
        %v1505 = vsel %vm573, %v1455, 0
        %v1508 = vsel %vm573, %v1456, 0
        %v1511 = vsel %vm573, %v1457, 0
        %v1514 = vsel %vm573, %v1458, 0
        %v1517 = vsel %vm573, %v1459, 0
        %v1520 = vsel %vm573, %v1460, 0
        %v1523 = vsel %vm573, %v1461, 0
        %v1526 = vsel %vm573, %v1462, 0
        %1528 = vmatprep.subr.bf16.mxu0 0
        %1529 = vmatpush1.bf16.msra.mxu0 %v1496
        %1530 = vmatprep.subr.bf16.mxu0 0
        %1531 = vmatpush1.bf16.msra.mxu0 %v1497
        %1532 = vmatprep.subr.bf16.mxu0 0
        %1533 = vmatpush1.bf16.msra.mxu0 %v1498
        %1534 = vmatprep.subr.bf16.mxu0 0
        %1535 = vmatpush1.bf16.msra.mxu0 %v1499
        %1536 = vmatprep.subr.bf16.mxu0 0
        %1537 = vmatpush1.bf16.msra.mxu0 0
        %1538 = vmatprep.subr.bf16.mxu0 0
        %1539 = vmatpush1.bf16.msra.mxu0 0
        %1540 = vmatprep.subr.bf16.mxu0 0
        %1541 = vmatpush1.bf16.msra.mxu0 0
        %1542 = vmatprep.subr.bf16.mxu0 0
        %1543 = vmatpush1.bf16.msra.mxu0 0
        %1544 = vmatprep.subr.bf16.mxu0 0
        %1545 = vmatpush1.bf16.msra.mxu0 0
        %1546 = vmatprep.subr.bf16.mxu0 0
        %1547 = vmatpush1.bf16.msra.mxu0 0
        %1548 = vmatprep.subr.bf16.mxu0 0
        %1549 = vmatpush1.bf16.msra.mxu0 0
        %1550 = vmatprep.subr.bf16.mxu0 0
        %1551 = vmatpush1.bf16.msra.mxu0 0
        %1552 = vmatprep.subr.bf16.mxu0 0
        %1553 = vmatpush1.bf16.msra.mxu0 0
        %1554 = vmatprep.subr.bf16.mxu0 0
        %1555 = vmatpush1.bf16.msra.mxu0 0
        %1556 = vmatprep.subr.bf16.mxu0 0
        %1557 = vmatpush1.bf16.msra.mxu0 0
        %1558 = vmatprep.subr.bf16.mxu0 0
        %1559 = vmatpush1.bf16.msra.mxu0 0
        %1560 = vmatprep.mubr.bf16.mxu0 0
        %1561 = vmatmul.mubr.bf16.gmra.mrb[0].mxu0 %v1505
        %v1562 = vpop.f32.mrb[0].mxu0
        %v1563 = vadd.f32 %v1478, %v1562
        %v1564 = vpop.f32.mrb[0].mxu0
        %v1565 = vpop.f32.mrb[0].mxu0
        %v1566 = vadd.f32 %v1478, %v1565
        %v1567 = vpop.f32.mrb[0].mxu0
        %1568 = vmatprep.mubr.bf16.mxu0 0
        %1569 = vmatmul.mubr.bf16.gmra.mrb[0].mxu0 %v1508
        %v1570 = vpop.f32.mrb[0].mxu0
        %v1571 = vadd.f32 %v1478, %v1570
        %v1572 = vpop.f32.mrb[0].mxu0
        %v1573 = vpop.f32.mrb[0].mxu0
        %v1574 = vadd.f32 %v1478, %v1573
        %v1575 = vpop.f32.mrb[0].mxu0
        %1576 = vmatprep.mubr.bf16.mxu0 0
        %1577 = vmatmul.mubr.bf16.gmra.mrb[0].mxu0 %v1511
        %v1578 = vpop.f32.mrb[0].mxu0
        %v1579 = vadd.f32 %v1478, %v1578
        %v1580 = vpop.f32.mrb[0].mxu0
        %v1581 = vpop.f32.mrb[0].mxu0
        %v1582 = vadd.f32 %v1478, %v1581
        %v1583 = vpop.f32.mrb[0].mxu0
        %1584 = vmatprep.mubr.bf16.mxu0 0
        %1585 = vmatmul.mubr.bf16.gmra.mrb[0].mxu0 %v1514
        %v1586 = vpop.f32.mrb[0].mxu0
        %v1587 = vadd.f32 %v1478, %v1586
        %v1588 = vpop.f32.mrb[0].mxu0
        %v1589 = vpop.f32.mrb[0].mxu0
        %v1590 = vadd.f32 %v1478, %v1589
        %v1591 = vpop.f32.mrb[0].mxu0
        %1592 = vmatprep.mubr.bf16.mxu0 0
        %1593 = vmatmul.mubr.bf16.gmra.mrb[0].mxu0 %v1517
        %v1594 = vpop.f32.mrb[0].mxu0
        %v1595 = vadd.f32 %v1478, %v1594
        %v1596 = vpop.f32.mrb[0].mxu0
        %v1597 = vpop.f32.mrb[0].mxu0
        %v1598 = vadd.f32 %v1478, %v1597
        %v1599 = vpop.f32.mrb[0].mxu0
        %1600 = vmatprep.mubr.bf16.mxu0 0
        %1601 = vmatmul.mubr.bf16.gmra.mrb[0].mxu0 %v1520
        %v1602 = vpop.f32.mrb[0].mxu0
        %v1603 = vadd.f32 %v1478, %v1602
        %v1604 = vpop.f32.mrb[0].mxu0
        %v1605 = vpop.f32.mrb[0].mxu0
        %v1606 = vadd.f32 %v1478, %v1605
        %v1607 = vpop.f32.mrb[0].mxu0
        %1608 = vmatprep.mubr.bf16.mxu0 0
        %1609 = vmatmul.mubr.bf16.gmra.mrb[0].mxu0 %v1523
        %v1610 = vpop.f32.mrb[0].mxu0
        %v1611 = vadd.f32 %v1478, %v1610
        %v1612 = vpop.f32.mrb[0].mxu0
        %v1613 = vpop.f32.mrb[0].mxu0
        %v1614 = vadd.f32 %v1478, %v1613
        %v1615 = vpop.f32.mrb[0].mxu0
        %1616 = vmatprep.mubr.bf16.mxu0 0
        %1617 = vmatmul.mubr.bf16.gmra.mrb[0].mxu0 %v1526
        %v1618 = vpop.f32.mrb[0].mxu0
        %v1619 = vadd.f32 %v1478, %v1618
        %v1620 = vpop.f32.mrb[0].mxu0
        %v1621 = vpop.f32.mrb[0].mxu0
        %v1622 = vadd.f32 %v1478, %v1621
        %v1623 = vpop.f32.mrb[0].mxu0
        %1624 = vdwg.mxu0
        %v1625 = vmax.f32 %v1563, 0.0
        %v1626 = vmax.f32 %v1566, 0.0
        %v1627 = vmax.f32 %v1571, 0.0
        %v1628 = vmax.f32 %v1574, 0.0
        %v1629 = vmax.f32 %v1579, 0.0
        %v1630 = vmax.f32 %v1582, 0.0
        %v1631 = vmax.f32 %v1587, 0.0
        %v1632 = vmax.f32 %v1590, 0.0
        %v1633 = vmax.f32 %v1595, 0.0
        %v1634 = vmax.f32 %v1598, 0.0
        %v1635 = vmax.f32 %v1603, 0.0
        %v1636 = vmax.f32 %v1606, 0.0
        %v1637 = vmax.f32 %v1611, 0.0
        %v1638 = vmax.f32 %v1614, 0.0
        %v1639 = vmax.f32 %v1619, 0.0
        %v1640 = vmax.f32 %v1622, 0.0
        %v1641 = vpack.c.bf16 %v1626, %v1625
        %v1642 = vpack.c.bf16 %v1628, %v1627
        %v1643 = vpack.c.bf16 %v1630, %v1629
        %v1644 = vpack.c.bf16 %v1632, %v1631
        %v1645 = vpack.c.bf16 %v1634, %v1633
        %v1646 = vpack.c.bf16 %v1636, %v1635
        %v1647 = vpack.c.bf16 %v1638, %v1637
        %v1648 = vpack.c.bf16 %v1640, %v1639
        %s1649 = scalar_lea.vmem [#allocation2], 192
        %v1650 = vld [vmem:[%s1649] sm:$0xf]
        %v1651 = vld [vmem:[%s1649 + $0x4] sm:$0xf]
        %v1652 = vld [vmem:[%s1649 + $0x8] sm:$0xf]
        %v1653 = vld [vmem:[%s1649 + $0xc] sm:$0xf]
        %v1654 = vld [vmem:[%s1649 + $0x10] sm:$0xf]
        %v1655 = vld [vmem:[%s1649 + $0x14] sm:$0xf]
        %v1656 = vld [vmem:[%s1649 + $0x18] sm:$0xf]
        %v1657 = vld [vmem:[%s1649 + $0x1c] sm:$0xf]
        %s1658 = scalar_lea.vmem %s4, 6
        %v1659 = vld [vmem:[%s1658] sm:$0x1]
        %v1661 = vlaneseq
        %v1662 = vshrl.u32 %v1661, 7
        %v1663 = vsub.s32 0, %v1662
        %v1664 = vrot.slane %v1659, %v1663
        %v1674 = vunpack.c.l.b16 %v1650
        %v1675 = vunpack.c.l.b16 %v1651
        %v1676 = vunpack.c.l.b16 %v1652
        %v1677 = vunpack.c.l.b16 %v1653
        %v1678 = vunpack.c.l.b16 %v1654
        %v1679 = vunpack.c.l.b16 %v1655
        %v1680 = vunpack.c.l.b16 %v1656
        %v1681 = vunpack.c.l.b16 %v1657
        %v1682 = vpack.c.b16 %v1675, %v1674
        %v1683 = vpack.c.b16 %v1677, %v1676
        %v1684 = vpack.c.b16 %v1679, %v1678
        %v1685 = vpack.c.b16 %v1681, %v1680
        %v1691 = vsel %vm573, %v1641, 0
        %v1694 = vsel %vm573, %v1642, 0
        %v1697 = vsel %vm573, %v1643, 0
        %v1700 = vsel %vm573, %v1644, 0
        %v1703 = vsel %vm573, %v1645, 0
        %v1706 = vsel %vm573, %v1646, 0
        %v1709 = vsel %vm573, %v1647, 0
        %v1712 = vsel %vm573, %v1648, 0
        %1714 = vmatprep.subr.bf16.mxu0 0
        %1715 = vmatpush1.bf16.msra.mxu0 %v1682
        %1716 = vmatprep.subr.bf16.mxu0 0
        %1717 = vmatpush1.bf16.msra.mxu0 %v1683
        %1718 = vmatprep.subr.bf16.mxu0 0
        %1719 = vmatpush1.bf16.msra.mxu0 %v1684
        %1720 = vmatprep.subr.bf16.mxu0 0
        %1721 = vmatpush1.bf16.msra.mxu0 %v1685
        %1722 = vmatprep.subr.bf16.mxu0 0
        %1723 = vmatpush1.bf16.msra.mxu0 0
        %1724 = vmatprep.subr.bf16.mxu0 0
        %1725 = vmatpush1.bf16.msra.mxu0 0
        %1726 = vmatprep.subr.bf16.mxu0 0
        %1727 = vmatpush1.bf16.msra.mxu0 0
        %1728 = vmatprep.subr.bf16.mxu0 0
        %1729 = vmatpush1.bf16.msra.mxu0 0
        %1730 = vmatprep.subr.bf16.mxu0 0
        %1731 = vmatpush1.bf16.msra.mxu0 0
        %1732 = vmatprep.subr.bf16.mxu0 0
        %1733 = vmatpush1.bf16.msra.mxu0 0
        %1734 = vmatprep.subr.bf16.mxu0 0
        %1735 = vmatpush1.bf16.msra.mxu0 0
        %1736 = vmatprep.subr.bf16.mxu0 0
        %1737 = vmatpush1.bf16.msra.mxu0 0
        %1738 = vmatprep.subr.bf16.mxu0 0
        %1739 = vmatpush1.bf16.msra.mxu0 0
        %1740 = vmatprep.subr.bf16.mxu0 0
        %1741 = vmatpush1.bf16.msra.mxu0 0
        %1742 = vmatprep.subr.bf16.mxu0 0
        %1743 = vmatpush1.bf16.msra.mxu0 0
        %1744 = vmatprep.subr.bf16.mxu0 0
        %1745 = vmatpush1.bf16.msra.mxu0 0
        %1746 = vmatprep.mubr.bf16.mxu0 0
        %1747 = vmatmul.mubr.bf16.gmra.mrb[0].mxu0 %v1691
        %v1748 = vpop.f32.mrb[0].mxu0
        %v1749 = vadd.f32 %v1664, %v1748
        %v1750 = vpop.f32.mrb[0].mxu0
        %v1751 = vpop.f32.mrb[0].mxu0
        %v1752 = vadd.f32 %v1664, %v1751
        %v1753 = vpop.f32.mrb[0].mxu0
        %1754 = vmatprep.mubr.bf16.mxu0 0
        %1755 = vmatmul.mubr.bf16.gmra.mrb[0].mxu0 %v1694
        %v1756 = vpop.f32.mrb[0].mxu0
        %v1757 = vadd.f32 %v1664, %v1756
        %v1758 = vpop.f32.mrb[0].mxu0
        %v1759 = vpop.f32.mrb[0].mxu0
        %v1760 = vadd.f32 %v1664, %v1759
        %v1761 = vpop.f32.mrb[0].mxu0
        %1762 = vmatprep.mubr.bf16.mxu0 0
        %1763 = vmatmul.mubr.bf16.gmra.mrb[0].mxu0 %v1697
        %v1764 = vpop.f32.mrb[0].mxu0
        %v1765 = vadd.f32 %v1664, %v1764
        %v1766 = vpop.f32.mrb[0].mxu0
        %v1767 = vpop.f32.mrb[0].mxu0
        %v1768 = vadd.f32 %v1664, %v1767
        %v1769 = vpop.f32.mrb[0].mxu0
        %1770 = vmatprep.mubr.bf16.mxu0 0
        %1771 = vmatmul.mubr.bf16.gmra.mrb[0].mxu0 %v1700
        %v1772 = vpop.f32.mrb[0].mxu0
        %v1773 = vadd.f32 %v1664, %v1772
        %v1774 = vpop.f32.mrb[0].mxu0
        %v1775 = vpop.f32.mrb[0].mxu0
        %v1776 = vadd.f32 %v1664, %v1775
        %v1777 = vpop.f32.mrb[0].mxu0
        %1778 = vmatprep.mubr.bf16.mxu0 0
        %1779 = vmatmul.mubr.bf16.gmra.mrb[0].mxu0 %v1703
        %v1780 = vpop.f32.mrb[0].mxu0
        %v1781 = vadd.f32 %v1664, %v1780
        %v1782 = vpop.f32.mrb[0].mxu0
        %v1783 = vpop.f32.mrb[0].mxu0
        %v1784 = vadd.f32 %v1664, %v1783
        %v1785 = vpop.f32.mrb[0].mxu0
        %1786 = vmatprep.mubr.bf16.mxu0 0
        %1787 = vmatmul.mubr.bf16.gmra.mrb[0].mxu0 %v1706
        %v1788 = vpop.f32.mrb[0].mxu0
        %v1789 = vadd.f32 %v1664, %v1788
        %v1790 = vpop.f32.mrb[0].mxu0
        %v1791 = vpop.f32.mrb[0].mxu0
        %v1792 = vadd.f32 %v1664, %v1791
        %v1793 = vpop.f32.mrb[0].mxu0
        %1794 = vmatprep.mubr.bf16.mxu0 0
        %1795 = vmatmul.mubr.bf16.gmra.mrb[0].mxu0 %v1709
        %v1796 = vpop.f32.mrb[0].mxu0
        %v1797 = vadd.f32 %v1664, %v1796
        %v1798 = vpop.f32.mrb[0].mxu0
        %v1799 = vpop.f32.mrb[0].mxu0
        %v1800 = vadd.f32 %v1664, %v1799
        %v1801 = vpop.f32.mrb[0].mxu0
        %1802 = vmatprep.mubr.bf16.mxu0 0
        %1803 = vmatmul.mubr.bf16.gmra.mrb[0].mxu0 %v1712
        %v1804 = vpop.f32.mrb[0].mxu0
        %v1805 = vadd.f32 %v1664, %v1804
        %v1806 = vpop.f32.mrb[0].mxu0
        %v1807 = vpop.f32.mrb[0].mxu0
        %v1808 = vadd.f32 %v1664, %v1807
        %v1809 = vpop.f32.mrb[0].mxu0
        %1810 = vdwg.mxu0
        %v1811 = vmax.f32 %v1749, 0.0
        %v1812 = vmax.f32 %v1752, 0.0
        %v1813 = vmax.f32 %v1757, 0.0
        %v1814 = vmax.f32 %v1760, 0.0
        %v1815 = vmax.f32 %v1765, 0.0
        %v1816 = vmax.f32 %v1768, 0.0
        %v1817 = vmax.f32 %v1773, 0.0
        %v1818 = vmax.f32 %v1776, 0.0
        %v1819 = vmax.f32 %v1781, 0.0
        %v1820 = vmax.f32 %v1784, 0.0
        %v1821 = vmax.f32 %v1789, 0.0
        %v1822 = vmax.f32 %v1792, 0.0
        %v1823 = vmax.f32 %v1797, 0.0
        %v1824 = vmax.f32 %v1800, 0.0
        %v1825 = vmax.f32 %v1805, 0.0
        %v1826 = vmax.f32 %v1808, 0.0
        %v1827 = vpack.c.bf16 %v1812, %v1811
        %v1828 = vpack.c.bf16 %v1814, %v1813
        %v1829 = vpack.c.bf16 %v1816, %v1815
        %v1830 = vpack.c.bf16 %v1818, %v1817
        %v1831 = vpack.c.bf16 %v1820, %v1819
        %v1832 = vpack.c.bf16 %v1822, %v1821
        %v1833 = vpack.c.bf16 %v1824, %v1823
        %v1834 = vpack.c.bf16 %v1826, %v1825
        %s1835 = scalar_lea.vmem [#allocation2], 224
        %v1836 = vld [vmem:[%s1835] sm:$0xf]
        %v1837 = vld [vmem:[%s1835 + $0x4] sm:$0xf]
        %v1838 = vld [vmem:[%s1835 + $0x8] sm:$0xf]
        %v1839 = vld [vmem:[%s1835 + $0xc] sm:$0xf]
        %v1840 = vld [vmem:[%s1835 + $0x10] sm:$0xf]
        %v1841 = vld [vmem:[%s1835 + $0x14] sm:$0xf]
        %v1842 = vld [vmem:[%s1835 + $0x18] sm:$0xf]
        %v1843 = vld [vmem:[%s1835 + $0x1c] sm:$0xf]
        %s1844 = scalar_lea.vmem %s4, 7
        %v1845 = vld [vmem:[%s1844] sm:$0x1]
        %v1847 = vlaneseq
        %v1848 = vshrl.u32 %v1847, 7
        %v1849 = vsub.s32 0, %v1848
        %v1850 = vrot.slane %v1845, %v1849
        %v1860 = vunpack.c.l.b16 %v1836
        %v1861 = vunpack.c.l.b16 %v1837
        %v1862 = vunpack.c.l.b16 %v1838
        %v1863 = vunpack.c.l.b16 %v1839
        %v1864 = vunpack.c.l.b16 %v1840
        %v1865 = vunpack.c.l.b16 %v1841
        %v1866 = vunpack.c.l.b16 %v1842
        %v1867 = vunpack.c.l.b16 %v1843
        %v1868 = vpack.c.b16 %v1861, %v1860
        %v1869 = vpack.c.b16 %v1863, %v1862
        %v1870 = vpack.c.b16 %v1865, %v1864
        %v1871 = vpack.c.b16 %v1867, %v1866
        %v1877 = vsel %vm573, %v1827, 0
        %v1880 = vsel %vm573, %v1828, 0
        %v1883 = vsel %vm573, %v1829, 0
        %v1886 = vsel %vm573, %v1830, 0
        %v1889 = vsel %vm573, %v1831, 0
        %v1892 = vsel %vm573, %v1832, 0
        %v1895 = vsel %vm573, %v1833, 0
        %v1898 = vsel %vm573, %v1834, 0
        %1900 = vmatprep.subr.bf16.mxu0 0
        %1901 = vmatpush1.bf16.msra.mxu0 %v1868
        %1902 = vmatprep.subr.bf16.mxu0 0
        %1903 = vmatpush1.bf16.msra.mxu0 %v1869
        %1904 = vmatprep.subr.bf16.mxu0 0
        %1905 = vmatpush1.bf16.msra.mxu0 %v1870
        %1906 = vmatprep.subr.bf16.mxu0 0
        %1907 = vmatpush1.bf16.msra.mxu0 %v1871
        %1908 = vmatprep.subr.bf16.mxu0 0
        %1909 = vmatpush1.bf16.msra.mxu0 0
        %1910 = vmatprep.subr.bf16.mxu0 0
        %1911 = vmatpush1.bf16.msra.mxu0 0
        %1912 = vmatprep.subr.bf16.mxu0 0
        %1913 = vmatpush1.bf16.msra.mxu0 0
        %1914 = vmatprep.subr.bf16.mxu0 0
        %1915 = vmatpush1.bf16.msra.mxu0 0
        %1916 = vmatprep.subr.bf16.mxu0 0
        %1917 = vmatpush1.bf16.msra.mxu0 0
        %1918 = vmatprep.subr.bf16.mxu0 0
        %1919 = vmatpush1.bf16.msra.mxu0 0
        %1920 = vmatprep.subr.bf16.mxu0 0
        %1921 = vmatpush1.bf16.msra.mxu0 0
        %1922 = vmatprep.subr.bf16.mxu0 0
        %1923 = vmatpush1.bf16.msra.mxu0 0
        %1924 = vmatprep.subr.bf16.mxu0 0
        %1925 = vmatpush1.bf16.msra.mxu0 0
        %1926 = vmatprep.subr.bf16.mxu0 0
        %1927 = vmatpush1.bf16.msra.mxu0 0
        %1928 = vmatprep.subr.bf16.mxu0 0
        %1929 = vmatpush1.bf16.msra.mxu0 0
        %1930 = vmatprep.subr.bf16.mxu0 0
        %1931 = vmatpush1.bf16.msra.mxu0 0
        %1932 = vmatprep.mubr.bf16.mxu0 0
        %1933 = vmatmul.mubr.bf16.gmra.mrb[0].mxu0 %v1877
        %v1934 = vpop.f32.mrb[0].mxu0
        %v1935 = vadd.f32 %v1850, %v1934
        %v1936 = vpop.f32.mrb[0].mxu0
        %v1937 = vpop.f32.mrb[0].mxu0
        %v1938 = vadd.f32 %v1850, %v1937
        %v1939 = vpop.f32.mrb[0].mxu0
        %1940 = vmatprep.mubr.bf16.mxu0 0
        %1941 = vmatmul.mubr.bf16.gmra.mrb[0].mxu0 %v1880
        %v1942 = vpop.f32.mrb[0].mxu0
        %v1943 = vadd.f32 %v1850, %v1942
        %v1944 = vpop.f32.mrb[0].mxu0
        %v1945 = vpop.f32.mrb[0].mxu0
        %v1946 = vadd.f32 %v1850, %v1945
        %v1947 = vpop.f32.mrb[0].mxu0
        %1948 = vmatprep.mubr.bf16.mxu0 0
        %1949 = vmatmul.mubr.bf16.gmra.mrb[0].mxu0 %v1883
        %v1950 = vpop.f32.mrb[0].mxu0
        %v1951 = vadd.f32 %v1850, %v1950
        %v1952 = vpop.f32.mrb[0].mxu0
        %v1953 = vpop.f32.mrb[0].mxu0
        %v1954 = vadd.f32 %v1850, %v1953
        %v1955 = vpop.f32.mrb[0].mxu0
        %1956 = vmatprep.mubr.bf16.mxu0 0
        %1957 = vmatmul.mubr.bf16.gmra.mrb[0].mxu0 %v1886
        %v1958 = vpop.f32.mrb[0].mxu0
        %v1959 = vadd.f32 %v1850, %v1958
        %v1960 = vpop.f32.mrb[0].mxu0
        %v1961 = vpop.f32.mrb[0].mxu0
        %v1962 = vadd.f32 %v1850, %v1961
        %v1963 = vpop.f32.mrb[0].mxu0
        %1964 = vmatprep.mubr.bf16.mxu0 0
        %1965 = vmatmul.mubr.bf16.gmra.mrb[0].mxu0 %v1889
        %v1966 = vpop.f32.mrb[0].mxu0
        %v1967 = vadd.f32 %v1850, %v1966
        %v1968 = vpop.f32.mrb[0].mxu0
        %v1969 = vpop.f32.mrb[0].mxu0
        %v1970 = vadd.f32 %v1850, %v1969
        %v1971 = vpop.f32.mrb[0].mxu0
        %1972 = vmatprep.mubr.bf16.mxu0 0
        %1973 = vmatmul.mubr.bf16.gmra.mrb[0].mxu0 %v1892
        %v1974 = vpop.f32.mrb[0].mxu0
        %v1975 = vadd.f32 %v1850, %v1974
        %v1976 = vpop.f32.mrb[0].mxu0
        %v1977 = vpop.f32.mrb[0].mxu0
        %v1978 = vadd.f32 %v1850, %v1977
        %v1979 = vpop.f32.mrb[0].mxu0
        %1980 = vmatprep.mubr.bf16.mxu0 0
        %1981 = vmatmul.mubr.bf16.gmra.mrb[0].mxu0 %v1895
        %v1982 = vpop.f32.mrb[0].mxu0
        %v1983 = vadd.f32 %v1850, %v1982
        %v1984 = vpop.f32.mrb[0].mxu0
        %v1985 = vpop.f32.mrb[0].mxu0
        %v1986 = vadd.f32 %v1850, %v1985
        %v1987 = vpop.f32.mrb[0].mxu0
        %1988 = vmatprep.mubr.bf16.mxu0 0
        %1989 = vmatmul.mubr.bf16.gmra.mrb[0].mxu0 %v1898
        %v1990 = vpop.f32.mrb[0].mxu0
        %v1991 = vadd.f32 %v1850, %v1990
        %v1992 = vpop.f32.mrb[0].mxu0
        %v1993 = vpop.f32.mrb[0].mxu0
        %v1994 = vadd.f32 %v1850, %v1993
        %v1995 = vpop.f32.mrb[0].mxu0
        %1996 = vdwg.mxu0
        %v1997 = vmax.f32 %v1935, 0.0
        %v1998 = vmax.f32 %v1938, 0.0
        %v1999 = vmax.f32 %v1943, 0.0
        %v2000 = vmax.f32 %v1946, 0.0
        %v2001 = vmax.f32 %v1951, 0.0
        %v2002 = vmax.f32 %v1954, 0.0
        %v2003 = vmax.f32 %v1959, 0.0
        %v2004 = vmax.f32 %v1962, 0.0
        %v2005 = vmax.f32 %v1967, 0.0
        %v2006 = vmax.f32 %v1970, 0.0
        %v2007 = vmax.f32 %v1975, 0.0
        %v2008 = vmax.f32 %v1978, 0.0
        %v2009 = vmax.f32 %v1983, 0.0
        %v2010 = vmax.f32 %v1986, 0.0
        %v2011 = vmax.f32 %v1991, 0.0
        %v2012 = vmax.f32 %v1994, 0.0
        %v2013 = vpack.c.bf16 %v1998, %v1997
        %v2014 = vpack.c.bf16 %v2000, %v1999
        %v2015 = vpack.c.bf16 %v2002, %v2001
        %v2016 = vpack.c.bf16 %v2004, %v2003
        %v2017 = vpack.c.bf16 %v2006, %v2005
        %v2018 = vpack.c.bf16 %v2008, %v2007
        %v2019 = vpack.c.bf16 %v2010, %v2009
        %v2020 = vpack.c.bf16 %v2012, %v2011
        %s2021 = scalar_lea.vmem [#allocation2], 256
        %v2022 = vld [vmem:[%s2021] sm:$0xf]
        %v2023 = vld [vmem:[%s2021 + $0x4] sm:$0xf]
        %v2024 = vld [vmem:[%s2021 + $0x8] sm:$0xf]
        %v2025 = vld [vmem:[%s2021 + $0xc] sm:$0xf]
        %v2026 = vld [vmem:[%s2021 + $0x10] sm:$0xf]
        %v2027 = vld [vmem:[%s2021 + $0x14] sm:$0xf]
        %v2028 = vld [vmem:[%s2021 + $0x18] sm:$0xf]
        %v2029 = vld [vmem:[%s2021 + $0x1c] sm:$0xf]
        %s2030 = scalar_lea.vmem %s4, 8
        %v2031 = vld [vmem:[%s2030] sm:$0x1]
        %v2033 = vlaneseq
        %v2034 = vshrl.u32 %v2033, 7
        %v2035 = vsub.s32 0, %v2034
        %v2036 = vrot.slane %v2031, %v2035
        %v2046 = vunpack.c.l.b16 %v2022
        %v2047 = vunpack.c.l.b16 %v2023
        %v2048 = vunpack.c.l.b16 %v2024
        %v2049 = vunpack.c.l.b16 %v2025
        %v2050 = vunpack.c.l.b16 %v2026
        %v2051 = vunpack.c.l.b16 %v2027
        %v2052 = vunpack.c.l.b16 %v2028
        %v2053 = vunpack.c.l.b16 %v2029
        %v2054 = vpack.c.b16 %v2047, %v2046
        %v2055 = vpack.c.b16 %v2049, %v2048
        %v2056 = vpack.c.b16 %v2051, %v2050
        %v2057 = vpack.c.b16 %v2053, %v2052
        %v2063 = vsel %vm573, %v2013, 0
        %v2066 = vsel %vm573, %v2014, 0
        %v2069 = vsel %vm573, %v2015, 0
        %v2072 = vsel %vm573, %v2016, 0
        %v2075 = vsel %vm573, %v2017, 0
        %v2078 = vsel %vm573, %v2018, 0
        %v2081 = vsel %vm573, %v2019, 0
        %v2084 = vsel %vm573, %v2020, 0
        %2086 = vmatprep.subr.bf16.mxu0 0
        %2087 = vmatpush1.bf16.msra.mxu0 %v2054
        %2088 = vmatprep.subr.bf16.mxu0 0
        %2089 = vmatpush1.bf16.msra.mxu0 %v2055
        %2090 = vmatprep.subr.bf16.mxu0 0
        %2091 = vmatpush1.bf16.msra.mxu0 %v2056
        %2092 = vmatprep.subr.bf16.mxu0 0
        %2093 = vmatpush1.bf16.msra.mxu0 %v2057
        %2094 = vmatprep.subr.bf16.mxu0 0
        %2095 = vmatpush1.bf16.msra.mxu0 0
        %2096 = vmatprep.subr.bf16.mxu0 0
        %2097 = vmatpush1.bf16.msra.mxu0 0
        %2098 = vmatprep.subr.bf16.mxu0 0
        %2099 = vmatpush1.bf16.msra.mxu0 0
        %2100 = vmatprep.subr.bf16.mxu0 0
        %2101 = vmatpush1.bf16.msra.mxu0 0
        %2102 = vmatprep.subr.bf16.mxu0 0
        %2103 = vmatpush1.bf16.msra.mxu0 0
        %2104 = vmatprep.subr.bf16.mxu0 0
        %2105 = vmatpush1.bf16.msra.mxu0 0
        %2106 = vmatprep.subr.bf16.mxu0 0
        %2107 = vmatpush1.bf16.msra.mxu0 0
        %2108 = vmatprep.subr.bf16.mxu0 0
        %2109 = vmatpush1.bf16.msra.mxu0 0
        %2110 = vmatprep.subr.bf16.mxu0 0
        %2111 = vmatpush1.bf16.msra.mxu0 0
        %2112 = vmatprep.subr.bf16.mxu0 0
        %2113 = vmatpush1.bf16.msra.mxu0 0
        %2114 = vmatprep.subr.bf16.mxu0 0
        %2115 = vmatpush1.bf16.msra.mxu0 0
        %2116 = vmatprep.subr.bf16.mxu0 0
        %2117 = vmatpush1.bf16.msra.mxu0 0
        %2118 = vmatprep.mubr.bf16.mxu0 0
        %2119 = vmatmul.mubr.bf16.gmra.mrb[0].mxu0 %v2063
        %v2120 = vpop.f32.mrb[0].mxu0
        %v2121 = vadd.f32 %v2036, %v2120
        %v2122 = vpop.f32.mrb[0].mxu0
        %v2123 = vpop.f32.mrb[0].mxu0
        %v2124 = vadd.f32 %v2036, %v2123
        %v2125 = vpop.f32.mrb[0].mxu0
        %2126 = vmatprep.mubr.bf16.mxu0 0
        %2127 = vmatmul.mubr.bf16.gmra.mrb[0].mxu0 %v2066
        %v2128 = vpop.f32.mrb[0].mxu0
        %v2129 = vadd.f32 %v2036, %v2128
        %v2130 = vpop.f32.mrb[0].mxu0
        %v2131 = vpop.f32.mrb[0].mxu0
        %v2132 = vadd.f32 %v2036, %v2131
        %v2133 = vpop.f32.mrb[0].mxu0
        %2134 = vmatprep.mubr.bf16.mxu0 0
        %2135 = vmatmul.mubr.bf16.gmra.mrb[0].mxu0 %v2069
        %v2136 = vpop.f32.mrb[0].mxu0
        %v2137 = vadd.f32 %v2036, %v2136
        %v2138 = vpop.f32.mrb[0].mxu0
        %v2139 = vpop.f32.mrb[0].mxu0
        %v2140 = vadd.f32 %v2036, %v2139
        %v2141 = vpop.f32.mrb[0].mxu0
        %2142 = vmatprep.mubr.bf16.mxu0 0
        %2143 = vmatmul.mubr.bf16.gmra.mrb[0].mxu0 %v2072
        %v2144 = vpop.f32.mrb[0].mxu0
        %v2145 = vadd.f32 %v2036, %v2144
        %v2146 = vpop.f32.mrb[0].mxu0
        %v2147 = vpop.f32.mrb[0].mxu0
        %v2148 = vadd.f32 %v2036, %v2147
        %v2149 = vpop.f32.mrb[0].mxu0
        %2150 = vmatprep.mubr.bf16.mxu0 0
        %2151 = vmatmul.mubr.bf16.gmra.mrb[0].mxu0 %v2075
        %v2152 = vpop.f32.mrb[0].mxu0
        %v2153 = vadd.f32 %v2036, %v2152
        %v2154 = vpop.f32.mrb[0].mxu0
        %v2155 = vpop.f32.mrb[0].mxu0
        %v2156 = vadd.f32 %v2036, %v2155
        %v2157 = vpop.f32.mrb[0].mxu0
        %2158 = vmatprep.mubr.bf16.mxu0 0
        %2159 = vmatmul.mubr.bf16.gmra.mrb[0].mxu0 %v2078
        %v2160 = vpop.f32.mrb[0].mxu0
        %v2161 = vadd.f32 %v2036, %v2160
        %v2162 = vpop.f32.mrb[0].mxu0
        %v2163 = vpop.f32.mrb[0].mxu0
        %v2164 = vadd.f32 %v2036, %v2163
        %v2165 = vpop.f32.mrb[0].mxu0
        %2166 = vmatprep.mubr.bf16.mxu0 0
        %2167 = vmatmul.mubr.bf16.gmra.mrb[0].mxu0 %v2081
        %v2168 = vpop.f32.mrb[0].mxu0
        %v2169 = vadd.f32 %v2036, %v2168
        %v2170 = vpop.f32.mrb[0].mxu0
        %v2171 = vpop.f32.mrb[0].mxu0
        %v2172 = vadd.f32 %v2036, %v2171
        %v2173 = vpop.f32.mrb[0].mxu0
        %2174 = vmatprep.mubr.bf16.mxu0 0
        %2175 = vmatmul.mubr.bf16.gmra.mrb[0].mxu0 %v2084
        %v2176 = vpop.f32.mrb[0].mxu0
        %v2177 = vadd.f32 %v2036, %v2176
        %v2178 = vpop.f32.mrb[0].mxu0
        %v2179 = vpop.f32.mrb[0].mxu0
        %v2180 = vadd.f32 %v2036, %v2179
        %v2181 = vpop.f32.mrb[0].mxu0
        %2182 = vdwg.mxu0
        %v2183 = vmax.f32 %v2121, 0.0
        %v2184 = vmax.f32 %v2124, 0.0
        %v2185 = vmax.f32 %v2129, 0.0
        %v2186 = vmax.f32 %v2132, 0.0
        %v2187 = vmax.f32 %v2137, 0.0
        %v2188 = vmax.f32 %v2140, 0.0
        %v2189 = vmax.f32 %v2145, 0.0
        %v2190 = vmax.f32 %v2148, 0.0
        %v2191 = vmax.f32 %v2153, 0.0
        %v2192 = vmax.f32 %v2156, 0.0
        %v2193 = vmax.f32 %v2161, 0.0
        %v2194 = vmax.f32 %v2164, 0.0
        %v2195 = vmax.f32 %v2169, 0.0
        %v2196 = vmax.f32 %v2172, 0.0
        %v2197 = vmax.f32 %v2177, 0.0
        %v2198 = vmax.f32 %v2180, 0.0
        %v2199 = vpack.c.bf16 %v2184, %v2183
        %v2200 = vpack.c.bf16 %v2186, %v2185
        %v2201 = vpack.c.bf16 %v2188, %v2187
        %v2202 = vpack.c.bf16 %v2190, %v2189
        %v2203 = vpack.c.bf16 %v2192, %v2191
        %v2204 = vpack.c.bf16 %v2194, %v2193
        %v2205 = vpack.c.bf16 %v2196, %v2195
        %v2206 = vpack.c.bf16 %v2198, %v2197
        %s2207 = scalar_lea.vmem [#allocation2], 288
        %v2208 = vld [vmem:[%s2207] sm:$0xf]
        %v2209 = vld [vmem:[%s2207 + $0x4] sm:$0xf]
        %v2210 = vld [vmem:[%s2207 + $0x8] sm:$0xf]
        %v2211 = vld [vmem:[%s2207 + $0xc] sm:$0xf]
        %v2212 = vld [vmem:[%s2207 + $0x10] sm:$0xf]
        %v2213 = vld [vmem:[%s2207 + $0x14] sm:$0xf]
        %v2214 = vld [vmem:[%s2207 + $0x18] sm:$0xf]
        %v2215 = vld [vmem:[%s2207 + $0x1c] sm:$0xf]
        %s2216 = scalar_lea.vmem %s4, 9
        %v2217 = vld [vmem:[%s2216] sm:$0x1]
        %v2219 = vlaneseq
        %v2220 = vshrl.u32 %v2219, 7
        %v2221 = vsub.s32 0, %v2220
        %v2222 = vrot.slane %v2217, %v2221
        %v2232 = vunpack.c.l.b16 %v2208
        %v2233 = vunpack.c.l.b16 %v2209
        %v2234 = vunpack.c.l.b16 %v2210
        %v2235 = vunpack.c.l.b16 %v2211
        %v2236 = vunpack.c.l.b16 %v2212
        %v2237 = vunpack.c.l.b16 %v2213
        %v2238 = vunpack.c.l.b16 %v2214
        %v2239 = vunpack.c.l.b16 %v2215
        %v2240 = vpack.c.b16 %v2233, %v2232
        %v2241 = vpack.c.b16 %v2235, %v2234
        %v2242 = vpack.c.b16 %v2237, %v2236
        %v2243 = vpack.c.b16 %v2239, %v2238
        %v2249 = vsel %vm573, %v2199, 0
        %v2252 = vsel %vm573, %v2200, 0
        %v2255 = vsel %vm573, %v2201, 0
        %v2258 = vsel %vm573, %v2202, 0
        %v2261 = vsel %vm573, %v2203, 0
        %v2264 = vsel %vm573, %v2204, 0
        %v2267 = vsel %vm573, %v2205, 0
        %v2270 = vsel %vm573, %v2206, 0
        %2272 = vmatprep.subr.bf16.mxu0 0
        %2273 = vmatpush1.bf16.msra.mxu0 %v2240
        %2274 = vmatprep.subr.bf16.mxu0 0
        %2275 = vmatpush1.bf16.msra.mxu0 %v2241
        %2276 = vmatprep.subr.bf16.mxu0 0
        %2277 = vmatpush1.bf16.msra.mxu0 %v2242
        %2278 = vmatprep.subr.bf16.mxu0 0
        %2279 = vmatpush1.bf16.msra.mxu0 %v2243
        %2280 = vmatprep.subr.bf16.mxu0 0
        %2281 = vmatpush1.bf16.msra.mxu0 0
        %2282 = vmatprep.subr.bf16.mxu0 0
        %2283 = vmatpush1.bf16.msra.mxu0 0
        %2284 = vmatprep.subr.bf16.mxu0 0
        %2285 = vmatpush1.bf16.msra.mxu0 0
        %2286 = vmatprep.subr.bf16.mxu0 0
        %2287 = vmatpush1.bf16.msra.mxu0 0
        %2288 = vmatprep.subr.bf16.mxu0 0
        %2289 = vmatpush1.bf16.msra.mxu0 0
        %2290 = vmatprep.subr.bf16.mxu0 0
        %2291 = vmatpush1.bf16.msra.mxu0 0
        %2292 = vmatprep.subr.bf16.mxu0 0
        %2293 = vmatpush1.bf16.msra.mxu0 0
        %2294 = vmatprep.subr.bf16.mxu0 0
        %2295 = vmatpush1.bf16.msra.mxu0 0
        %2296 = vmatprep.subr.bf16.mxu0 0
        %2297 = vmatpush1.bf16.msra.mxu0 0
        %2298 = vmatprep.subr.bf16.mxu0 0
        %2299 = vmatpush1.bf16.msra.mxu0 0
        %2300 = vmatprep.subr.bf16.mxu0 0
        %2301 = vmatpush1.bf16.msra.mxu0 0
        %2302 = vmatprep.subr.bf16.mxu0 0
        %2303 = vmatpush1.bf16.msra.mxu0 0
        %2304 = vmatprep.mubr.bf16.mxu0 0
        %2305 = vmatmul.mubr.bf16.gmra.mrb[0].mxu0 %v2249
        %v2306 = vpop.f32.mrb[0].mxu0
        %v2307 = vadd.f32 %v2222, %v2306
        %v2308 = vpop.f32.mrb[0].mxu0
        %v2309 = vpop.f32.mrb[0].mxu0
        %v2310 = vadd.f32 %v2222, %v2309
        %v2311 = vpop.f32.mrb[0].mxu0
        %2312 = vmatprep.mubr.bf16.mxu0 0
        %2313 = vmatmul.mubr.bf16.gmra.mrb[0].mxu0 %v2252
        %v2314 = vpop.f32.mrb[0].mxu0
        %v2315 = vadd.f32 %v2222, %v2314
        %v2316 = vpop.f32.mrb[0].mxu0
        %v2317 = vpop.f32.mrb[0].mxu0
        %v2318 = vadd.f32 %v2222, %v2317
        %v2319 = vpop.f32.mrb[0].mxu0
        %2320 = vmatprep.mubr.bf16.mxu0 0
        %2321 = vmatmul.mubr.bf16.gmra.mrb[0].mxu0 %v2255
        %v2322 = vpop.f32.mrb[0].mxu0
        %v2323 = vadd.f32 %v2222, %v2322
        %v2324 = vpop.f32.mrb[0].mxu0
        %v2325 = vpop.f32.mrb[0].mxu0
        %v2326 = vadd.f32 %v2222, %v2325
        %v2327 = vpop.f32.mrb[0].mxu0
        %2328 = vmatprep.mubr.bf16.mxu0 0
        %2329 = vmatmul.mubr.bf16.gmra.mrb[0].mxu0 %v2258
        %v2330 = vpop.f32.mrb[0].mxu0
        %v2331 = vadd.f32 %v2222, %v2330
        %v2332 = vpop.f32.mrb[0].mxu0
        %v2333 = vpop.f32.mrb[0].mxu0
        %v2334 = vadd.f32 %v2222, %v2333
        %v2335 = vpop.f32.mrb[0].mxu0
        %2336 = vmatprep.mubr.bf16.mxu0 0
        %2337 = vmatmul.mubr.bf16.gmra.mrb[0].mxu0 %v2261
        %v2338 = vpop.f32.mrb[0].mxu0
        %v2339 = vadd.f32 %v2222, %v2338
        %v2340 = vpop.f32.mrb[0].mxu0
        %v2341 = vpop.f32.mrb[0].mxu0
        %v2342 = vadd.f32 %v2222, %v2341
        %v2343 = vpop.f32.mrb[0].mxu0
        %2344 = vmatprep.mubr.bf16.mxu0 0
        %2345 = vmatmul.mubr.bf16.gmra.mrb[0].mxu0 %v2264
        %v2346 = vpop.f32.mrb[0].mxu0
        %v2347 = vadd.f32 %v2222, %v2346
        %v2348 = vpop.f32.mrb[0].mxu0
        %v2349 = vpop.f32.mrb[0].mxu0
        %v2350 = vadd.f32 %v2222, %v2349
        %v2351 = vpop.f32.mrb[0].mxu0
        %2352 = vmatprep.mubr.bf16.mxu0 0
        %2353 = vmatmul.mubr.bf16.gmra.mrb[0].mxu0 %v2267
        %v2354 = vpop.f32.mrb[0].mxu0
        %v2355 = vadd.f32 %v2222, %v2354
        %v2356 = vpop.f32.mrb[0].mxu0
        %v2357 = vpop.f32.mrb[0].mxu0
        %v2358 = vadd.f32 %v2222, %v2357
        %v2359 = vpop.f32.mrb[0].mxu0
        %2360 = vmatprep.mubr.bf16.mxu0 0
        %2361 = vmatmul.mubr.bf16.gmra.mrb[0].mxu0 %v2270
        %v2362 = vpop.f32.mrb[0].mxu0
        %v2363 = vadd.f32 %v2222, %v2362
        %v2364 = vpop.f32.mrb[0].mxu0
        %v2365 = vpop.f32.mrb[0].mxu0
        %v2366 = vadd.f32 %v2222, %v2365
        %v2367 = vpop.f32.mrb[0].mxu0
        %2368 = vdwg.mxu0
        %v2369 = vmax.f32 %v2307, 0.0
        %v2370 = vmax.f32 %v2310, 0.0
        %v2371 = vmax.f32 %v2315, 0.0
        %v2372 = vmax.f32 %v2318, 0.0
        %v2373 = vmax.f32 %v2323, 0.0
        %v2374 = vmax.f32 %v2326, 0.0
        %v2375 = vmax.f32 %v2331, 0.0
        %v2376 = vmax.f32 %v2334, 0.0
        %v2377 = vmax.f32 %v2339, 0.0
        %v2378 = vmax.f32 %v2342, 0.0
        %v2379 = vmax.f32 %v2347, 0.0
        %v2380 = vmax.f32 %v2350, 0.0
        %v2381 = vmax.f32 %v2355, 0.0
        %v2382 = vmax.f32 %v2358, 0.0
        %v2383 = vmax.f32 %v2363, 0.0
        %v2384 = vmax.f32 %v2366, 0.0
        %v2385 = vpack.c.bf16 %v2370, %v2369
        %v2386 = vpack.c.bf16 %v2372, %v2371
        %v2387 = vpack.c.bf16 %v2374, %v2373
        %v2388 = vpack.c.bf16 %v2376, %v2375
        %v2389 = vpack.c.bf16 %v2378, %v2377
        %v2390 = vpack.c.bf16 %v2380, %v2379
        %v2391 = vpack.c.bf16 %v2382, %v2381
        %v2392 = vpack.c.bf16 %v2384, %v2383
        %s2393 = scalar_lea.vmem [#allocation2], 320
        %v2394 = vld [vmem:[%s2393] sm:$0xf]
        %v2395 = vld [vmem:[%s2393 + $0x4] sm:$0xf]
        %v2396 = vld [vmem:[%s2393 + $0x8] sm:$0xf]
        %v2397 = vld [vmem:[%s2393 + $0xc] sm:$0xf]
        %v2398 = vld [vmem:[%s2393 + $0x10] sm:$0xf]
        %v2399 = vld [vmem:[%s2393 + $0x14] sm:$0xf]
        %v2400 = vld [vmem:[%s2393 + $0x18] sm:$0xf]
        %v2401 = vld [vmem:[%s2393 + $0x1c] sm:$0xf]
        %s2402 = scalar_lea.vmem %s4, 10
        %v2403 = vld [vmem:[%s2402] sm:$0x1]
        %v2405 = vlaneseq
        %v2406 = vshrl.u32 %v2405, 7
        %v2407 = vsub.s32 0, %v2406
        %v2408 = vrot.slane %v2403, %v2407
        %v2418 = vunpack.c.l.b16 %v2394
        %v2419 = vunpack.c.l.b16 %v2395
        %v2420 = vunpack.c.l.b16 %v2396
        %v2421 = vunpack.c.l.b16 %v2397
        %v2422 = vunpack.c.l.b16 %v2398
        %v2423 = vunpack.c.l.b16 %v2399
        %v2424 = vunpack.c.l.b16 %v2400
        %v2425 = vunpack.c.l.b16 %v2401
        %v2426 = vpack.c.b16 %v2419, %v2418
        %v2427 = vpack.c.b16 %v2421, %v2420
        %v2428 = vpack.c.b16 %v2423, %v2422
        %v2429 = vpack.c.b16 %v2425, %v2424
        %v2435 = vsel %vm573, %v2385, 0
        %v2438 = vsel %vm573, %v2386, 0
        %v2441 = vsel %vm573, %v2387, 0
        %v2444 = vsel %vm573, %v2388, 0
        %v2447 = vsel %vm573, %v2389, 0
        %v2450 = vsel %vm573, %v2390, 0
        %v2453 = vsel %vm573, %v2391, 0
        %v2456 = vsel %vm573, %v2392, 0
        %2458 = vmatprep.subr.bf16.mxu0 0
        %2459 = vmatpush1.bf16.msra.mxu0 %v2426
        %2460 = vmatprep.subr.bf16.mxu0 0
        %2461 = vmatpush1.bf16.msra.mxu0 %v2427
        %2462 = vmatprep.subr.bf16.mxu0 0
        %2463 = vmatpush1.bf16.msra.mxu0 %v2428
        %2464 = vmatprep.subr.bf16.mxu0 0
        %2465 = vmatpush1.bf16.msra.mxu0 %v2429
        %2466 = vmatprep.subr.bf16.mxu0 0
        %2467 = vmatpush1.bf16.msra.mxu0 0
        %2468 = vmatprep.subr.bf16.mxu0 0
        %2469 = vmatpush1.bf16.msra.mxu0 0
        %2470 = vmatprep.subr.bf16.mxu0 0
        %2471 = vmatpush1.bf16.msra.mxu0 0
        %2472 = vmatprep.subr.bf16.mxu0 0
        %2473 = vmatpush1.bf16.msra.mxu0 0
        %2474 = vmatprep.subr.bf16.mxu0 0
        %2475 = vmatpush1.bf16.msra.mxu0 0
        %2476 = vmatprep.subr.bf16.mxu0 0
        %2477 = vmatpush1.bf16.msra.mxu0 0
        %2478 = vmatprep.subr.bf16.mxu0 0
        %2479 = vmatpush1.bf16.msra.mxu0 0
        %2480 = vmatprep.subr.bf16.mxu0 0
        %2481 = vmatpush1.bf16.msra.mxu0 0
        %2482 = vmatprep.subr.bf16.mxu0 0
        %2483 = vmatpush1.bf16.msra.mxu0 0
        %2484 = vmatprep.subr.bf16.mxu0 0
        %2485 = vmatpush1.bf16.msra.mxu0 0
        %2486 = vmatprep.subr.bf16.mxu0 0
        %2487 = vmatpush1.bf16.msra.mxu0 0
        %2488 = vmatprep.subr.bf16.mxu0 0
        %2489 = vmatpush1.bf16.msra.mxu0 0
        %2490 = vmatprep.mubr.bf16.mxu0 0
        %2491 = vmatmul.mubr.bf16.gmra.mrb[0].mxu0 %v2435
        %v2492 = vpop.f32.mrb[0].mxu0
        %v2493 = vadd.f32 %v2408, %v2492
        %v2494 = vpop.f32.mrb[0].mxu0
        %v2495 = vpop.f32.mrb[0].mxu0
        %v2496 = vadd.f32 %v2408, %v2495
        %v2497 = vpop.f32.mrb[0].mxu0
        %2498 = vmatprep.mubr.bf16.mxu0 0
        %2499 = vmatmul.mubr.bf16.gmra.mrb[0].mxu0 %v2438
        %v2500 = vpop.f32.mrb[0].mxu0
        %v2501 = vadd.f32 %v2408, %v2500
        %v2502 = vpop.f32.mrb[0].mxu0
        %v2503 = vpop.f32.mrb[0].mxu0
        %v2504 = vadd.f32 %v2408, %v2503
        %v2505 = vpop.f32.mrb[0].mxu0
        %2506 = vmatprep.mubr.bf16.mxu0 0
        %2507 = vmatmul.mubr.bf16.gmra.mrb[0].mxu0 %v2441
        %v2508 = vpop.f32.mrb[0].mxu0
        %v2509 = vadd.f32 %v2408, %v2508
        %v2510 = vpop.f32.mrb[0].mxu0
        %v2511 = vpop.f32.mrb[0].mxu0
        %v2512 = vadd.f32 %v2408, %v2511
        %v2513 = vpop.f32.mrb[0].mxu0
        %2514 = vmatprep.mubr.bf16.mxu0 0
        %2515 = vmatmul.mubr.bf16.gmra.mrb[0].mxu0 %v2444
        %v2516 = vpop.f32.mrb[0].mxu0
        %v2517 = vadd.f32 %v2408, %v2516
        %v2518 = vpop.f32.mrb[0].mxu0
        %v2519 = vpop.f32.mrb[0].mxu0
        %v2520 = vadd.f32 %v2408, %v2519
        %v2521 = vpop.f32.mrb[0].mxu0
        %2522 = vmatprep.mubr.bf16.mxu0 0
        %2523 = vmatmul.mubr.bf16.gmra.mrb[0].mxu0 %v2447
        %v2524 = vpop.f32.mrb[0].mxu0
        %v2525 = vadd.f32 %v2408, %v2524
        %v2526 = vpop.f32.mrb[0].mxu0
        %v2527 = vpop.f32.mrb[0].mxu0
        %v2528 = vadd.f32 %v2408, %v2527
        %v2529 = vpop.f32.mrb[0].mxu0
        %2530 = vmatprep.mubr.bf16.mxu0 0
        %2531 = vmatmul.mubr.bf16.gmra.mrb[0].mxu0 %v2450
        %v2532 = vpop.f32.mrb[0].mxu0
        %v2533 = vadd.f32 %v2408, %v2532
        %v2534 = vpop.f32.mrb[0].mxu0
        %v2535 = vpop.f32.mrb[0].mxu0
        %v2536 = vadd.f32 %v2408, %v2535
        %v2537 = vpop.f32.mrb[0].mxu0
        %2538 = vmatprep.mubr.bf16.mxu0 0
        %2539 = vmatmul.mubr.bf16.gmra.mrb[0].mxu0 %v2453
        %v2540 = vpop.f32.mrb[0].mxu0
        %v2541 = vadd.f32 %v2408, %v2540
        %v2542 = vpop.f32.mrb[0].mxu0
        %v2543 = vpop.f32.mrb[0].mxu0
        %v2544 = vadd.f32 %v2408, %v2543
        %v2545 = vpop.f32.mrb[0].mxu0
        %2546 = vmatprep.mubr.bf16.mxu0 0
        %2547 = vmatmul.mubr.bf16.gmra.mrb[0].mxu0 %v2456
        %v2548 = vpop.f32.mrb[0].mxu0
        %v2549 = vadd.f32 %v2408, %v2548
        %v2550 = vpop.f32.mrb[0].mxu0
        %v2551 = vpop.f32.mrb[0].mxu0
        %v2552 = vadd.f32 %v2408, %v2551
        %v2553 = vpop.f32.mrb[0].mxu0
        %2554 = vdwg.mxu0
        %v2555 = vmax.f32 %v2493, 0.0
        %v2556 = vmax.f32 %v2496, 0.0
        %v2557 = vmax.f32 %v2501, 0.0
        %v2558 = vmax.f32 %v2504, 0.0
        %v2559 = vmax.f32 %v2509, 0.0
        %v2560 = vmax.f32 %v2512, 0.0
        %v2561 = vmax.f32 %v2517, 0.0
        %v2562 = vmax.f32 %v2520, 0.0
        %v2563 = vmax.f32 %v2525, 0.0
        %v2564 = vmax.f32 %v2528, 0.0
        %v2565 = vmax.f32 %v2533, 0.0
        %v2566 = vmax.f32 %v2536, 0.0
        %v2567 = vmax.f32 %v2541, 0.0
        %v2568 = vmax.f32 %v2544, 0.0
        %v2569 = vmax.f32 %v2549, 0.0
        %v2570 = vmax.f32 %v2552, 0.0
        %v2571 = vpack.c.bf16 %v2556, %v2555
        %v2572 = vpack.c.bf16 %v2558, %v2557
        %v2573 = vpack.c.bf16 %v2560, %v2559
        %v2574 = vpack.c.bf16 %v2562, %v2561
        %v2575 = vpack.c.bf16 %v2564, %v2563
        %v2576 = vpack.c.bf16 %v2566, %v2565
        %v2577 = vpack.c.bf16 %v2568, %v2567
        %v2578 = vpack.c.bf16 %v2570, %v2569
        %s2579 = scalar_lea.vmem [#allocation2], 352
        %v2580 = vld [vmem:[%s2579] sm:$0xf]
        %v2581 = vld [vmem:[%s2579 + $0x4] sm:$0xf]
        %v2582 = vld [vmem:[%s2579 + $0x8] sm:$0xf]
        %v2583 = vld [vmem:[%s2579 + $0xc] sm:$0xf]
        %v2584 = vld [vmem:[%s2579 + $0x10] sm:$0xf]
        %v2585 = vld [vmem:[%s2579 + $0x14] sm:$0xf]
        %v2586 = vld [vmem:[%s2579 + $0x18] sm:$0xf]
        %v2587 = vld [vmem:[%s2579 + $0x1c] sm:$0xf]
        %s2588 = scalar_lea.vmem %s4, 11
        %v2589 = vld [vmem:[%s2588] sm:$0x1]
        %v2591 = vlaneseq
        %v2592 = vshrl.u32 %v2591, 7
        %v2593 = vsub.s32 0, %v2592
        %v2594 = vrot.slane %v2589, %v2593
        %v2604 = vunpack.c.l.b16 %v2580
        %v2605 = vunpack.c.l.b16 %v2581
        %v2606 = vunpack.c.l.b16 %v2582
        %v2607 = vunpack.c.l.b16 %v2583
        %v2608 = vunpack.c.l.b16 %v2584
        %v2609 = vunpack.c.l.b16 %v2585
        %v2610 = vunpack.c.l.b16 %v2586
        %v2611 = vunpack.c.l.b16 %v2587
        %v2612 = vpack.c.b16 %v2605, %v2604
        %v2613 = vpack.c.b16 %v2607, %v2606
        %v2614 = vpack.c.b16 %v2609, %v2608
        %v2615 = vpack.c.b16 %v2611, %v2610
        %v2621 = vsel %vm573, %v2571, 0
        %v2624 = vsel %vm573, %v2572, 0
        %v2627 = vsel %vm573, %v2573, 0
        %v2630 = vsel %vm573, %v2574, 0
        %v2633 = vsel %vm573, %v2575, 0
        %v2636 = vsel %vm573, %v2576, 0
        %v2639 = vsel %vm573, %v2577, 0
        %v2642 = vsel %vm573, %v2578, 0
        %2644 = vmatprep.subr.bf16.mxu0 0
        %2645 = vmatpush1.bf16.msra.mxu0 %v2612
        %2646 = vmatprep.subr.bf16.mxu0 0
        %2647 = vmatpush1.bf16.msra.mxu0 %v2613
        %2648 = vmatprep.subr.bf16.mxu0 0
        %2649 = vmatpush1.bf16.msra.mxu0 %v2614
        %2650 = vmatprep.subr.bf16.mxu0 0
        %2651 = vmatpush1.bf16.msra.mxu0 %v2615
        %2652 = vmatprep.subr.bf16.mxu0 0
        %2653 = vmatpush1.bf16.msra.mxu0 0
        %2654 = vmatprep.subr.bf16.mxu0 0
        %2655 = vmatpush1.bf16.msra.mxu0 0
        %2656 = vmatprep.subr.bf16.mxu0 0
        %2657 = vmatpush1.bf16.msra.mxu0 0
        %2658 = vmatprep.subr.bf16.mxu0 0
        %2659 = vmatpush1.bf16.msra.mxu0 0
        %2660 = vmatprep.subr.bf16.mxu0 0
        %2661 = vmatpush1.bf16.msra.mxu0 0
        %2662 = vmatprep.subr.bf16.mxu0 0
        %2663 = vmatpush1.bf16.msra.mxu0 0
        %2664 = vmatprep.subr.bf16.mxu0 0
        %2665 = vmatpush1.bf16.msra.mxu0 0
        %2666 = vmatprep.subr.bf16.mxu0 0
        %2667 = vmatpush1.bf16.msra.mxu0 0
        %2668 = vmatprep.subr.bf16.mxu0 0
        %2669 = vmatpush1.bf16.msra.mxu0 0
        %2670 = vmatprep.subr.bf16.mxu0 0
        %2671 = vmatpush1.bf16.msra.mxu0 0
        %2672 = vmatprep.subr.bf16.mxu0 0
        %2673 = vmatpush1.bf16.msra.mxu0 0
        %2674 = vmatprep.subr.bf16.mxu0 0
        %2675 = vmatpush1.bf16.msra.mxu0 0
        %2676 = vmatprep.mubr.bf16.mxu0 0
        %2677 = vmatmul.mubr.bf16.gmra.mrb[0].mxu0 %v2621
        %v2678 = vpop.f32.mrb[0].mxu0
        %v2679 = vadd.f32 %v2594, %v2678
        %v2680 = vpop.f32.mrb[0].mxu0
        %v2681 = vpop.f32.mrb[0].mxu0
        %v2682 = vadd.f32 %v2594, %v2681
        %v2683 = vpop.f32.mrb[0].mxu0
        %2684 = vmatprep.mubr.bf16.mxu0 0
        %2685 = vmatmul.mubr.bf16.gmra.mrb[0].mxu0 %v2624
        %v2686 = vpop.f32.mrb[0].mxu0
        %v2687 = vadd.f32 %v2594, %v2686
        %v2688 = vpop.f32.mrb[0].mxu0
        %v2689 = vpop.f32.mrb[0].mxu0
        %v2690 = vadd.f32 %v2594, %v2689
        %v2691 = vpop.f32.mrb[0].mxu0
        %2692 = vmatprep.mubr.bf16.mxu0 0
        %2693 = vmatmul.mubr.bf16.gmra.mrb[0].mxu0 %v2627
        %v2694 = vpop.f32.mrb[0].mxu0
        %v2695 = vadd.f32 %v2594, %v2694
        %v2696 = vpop.f32.mrb[0].mxu0
        %v2697 = vpop.f32.mrb[0].mxu0
        %v2698 = vadd.f32 %v2594, %v2697
        %v2699 = vpop.f32.mrb[0].mxu0
        %2700 = vmatprep.mubr.bf16.mxu0 0
        %2701 = vmatmul.mubr.bf16.gmra.mrb[0].mxu0 %v2630
        %v2702 = vpop.f32.mrb[0].mxu0
        %v2703 = vadd.f32 %v2594, %v2702
        %v2704 = vpop.f32.mrb[0].mxu0
        %v2705 = vpop.f32.mrb[0].mxu0
        %v2706 = vadd.f32 %v2594, %v2705
        %v2707 = vpop.f32.mrb[0].mxu0
        %2708 = vmatprep.mubr.bf16.mxu0 0
        %2709 = vmatmul.mubr.bf16.gmra.mrb[0].mxu0 %v2633
        %v2710 = vpop.f32.mrb[0].mxu0
        %v2711 = vadd.f32 %v2594, %v2710
        %v2712 = vpop.f32.mrb[0].mxu0
        %v2713 = vpop.f32.mrb[0].mxu0
        %v2714 = vadd.f32 %v2594, %v2713
        %v2715 = vpop.f32.mrb[0].mxu0
        %2716 = vmatprep.mubr.bf16.mxu0 0
        %2717 = vmatmul.mubr.bf16.gmra.mrb[0].mxu0 %v2636
        %v2718 = vpop.f32.mrb[0].mxu0
        %v2719 = vadd.f32 %v2594, %v2718
        %v2720 = vpop.f32.mrb[0].mxu0
        %v2721 = vpop.f32.mrb[0].mxu0
        %v2722 = vadd.f32 %v2594, %v2721
        %v2723 = vpop.f32.mrb[0].mxu0
        %2724 = vmatprep.mubr.bf16.mxu0 0
        %2725 = vmatmul.mubr.bf16.gmra.mrb[0].mxu0 %v2639
        %v2726 = vpop.f32.mrb[0].mxu0
        %v2727 = vadd.f32 %v2594, %v2726
        %v2728 = vpop.f32.mrb[0].mxu0
        %v2729 = vpop.f32.mrb[0].mxu0
        %v2730 = vadd.f32 %v2594, %v2729
        %v2731 = vpop.f32.mrb[0].mxu0
        %2732 = vmatprep.mubr.bf16.mxu0 0
        %2733 = vmatmul.mubr.bf16.gmra.mrb[0].mxu0 %v2642
        %v2734 = vpop.f32.mrb[0].mxu0
        %v2735 = vadd.f32 %v2594, %v2734
        %v2736 = vpop.f32.mrb[0].mxu0
        %v2737 = vpop.f32.mrb[0].mxu0
        %v2738 = vadd.f32 %v2594, %v2737
        %v2739 = vpop.f32.mrb[0].mxu0
        %2740 = vdwg.mxu0
        %v2741 = vmax.f32 %v2679, 0.0
        %v2742 = vmax.f32 %v2682, 0.0
        %v2743 = vmax.f32 %v2687, 0.0
        %v2744 = vmax.f32 %v2690, 0.0
        %v2745 = vmax.f32 %v2695, 0.0
        %v2746 = vmax.f32 %v2698, 0.0
        %v2747 = vmax.f32 %v2703, 0.0
        %v2748 = vmax.f32 %v2706, 0.0
        %v2749 = vmax.f32 %v2711, 0.0
        %v2750 = vmax.f32 %v2714, 0.0
        %v2751 = vmax.f32 %v2719, 0.0
        %v2752 = vmax.f32 %v2722, 0.0
        %v2753 = vmax.f32 %v2727, 0.0
        %v2754 = vmax.f32 %v2730, 0.0
        %v2755 = vmax.f32 %v2735, 0.0
        %v2756 = vmax.f32 %v2738, 0.0
        %v2757 = vpack.c.bf16 %v2742, %v2741
        %v2758 = vpack.c.bf16 %v2744, %v2743
        %v2759 = vpack.c.bf16 %v2746, %v2745
        %v2760 = vpack.c.bf16 %v2748, %v2747
        %v2761 = vpack.c.bf16 %v2750, %v2749
        %v2762 = vpack.c.bf16 %v2752, %v2751
        %v2763 = vpack.c.bf16 %v2754, %v2753
        %v2764 = vpack.c.bf16 %v2756, %v2755
        %s2765 = scalar_lea.vmem [#allocation2], 384
        %v2766 = vld [vmem:[%s2765] sm:$0xf]
        %v2767 = vld [vmem:[%s2765 + $0x4] sm:$0xf]
        %v2768 = vld [vmem:[%s2765 + $0x8] sm:$0xf]
        %v2769 = vld [vmem:[%s2765 + $0xc] sm:$0xf]
        %v2770 = vld [vmem:[%s2765 + $0x10] sm:$0xf]
        %v2771 = vld [vmem:[%s2765 + $0x14] sm:$0xf]
        %v2772 = vld [vmem:[%s2765 + $0x18] sm:$0xf]
        %v2773 = vld [vmem:[%s2765 + $0x1c] sm:$0xf]
        %s2774 = scalar_lea.vmem %s4, 12
        %v2775 = vld [vmem:[%s2774] sm:$0x1]
        %v2777 = vlaneseq
        %v2778 = vshrl.u32 %v2777, 7
        %v2779 = vsub.s32 0, %v2778
        %v2780 = vrot.slane %v2775, %v2779
        %v2790 = vunpack.c.l.b16 %v2766
        %v2791 = vunpack.c.l.b16 %v2767
        %v2792 = vunpack.c.l.b16 %v2768
        %v2793 = vunpack.c.l.b16 %v2769
        %v2794 = vunpack.c.l.b16 %v2770
        %v2795 = vunpack.c.l.b16 %v2771
        %v2796 = vunpack.c.l.b16 %v2772
        %v2797 = vunpack.c.l.b16 %v2773
        %v2798 = vpack.c.b16 %v2791, %v2790
        %v2799 = vpack.c.b16 %v2793, %v2792
        %v2800 = vpack.c.b16 %v2795, %v2794
        %v2801 = vpack.c.b16 %v2797, %v2796
        %v2807 = vsel %vm573, %v2757, 0
        %v2810 = vsel %vm573, %v2758, 0
        %v2813 = vsel %vm573, %v2759, 0
        %v2816 = vsel %vm573, %v2760, 0
        %v2819 = vsel %vm573, %v2761, 0
        %v2822 = vsel %vm573, %v2762, 0
        %v2825 = vsel %vm573, %v2763, 0
        %v2828 = vsel %vm573, %v2764, 0
        %2830 = vmatprep.subr.bf16.mxu0 0
        %2831 = vmatpush1.bf16.msra.mxu0 %v2798
        %2832 = vmatprep.subr.bf16.mxu0 0
        %2833 = vmatpush1.bf16.msra.mxu0 %v2799
        %2834 = vmatprep.subr.bf16.mxu0 0
        %2835 = vmatpush1.bf16.msra.mxu0 %v2800
        %2836 = vmatprep.subr.bf16.mxu0 0
        %2837 = vmatpush1.bf16.msra.mxu0 %v2801
        %2838 = vmatprep.subr.bf16.mxu0 0
        %2839 = vmatpush1.bf16.msra.mxu0 0
        %2840 = vmatprep.subr.bf16.mxu0 0
        %2841 = vmatpush1.bf16.msra.mxu0 0
        %2842 = vmatprep.subr.bf16.mxu0 0
        %2843 = vmatpush1.bf16.msra.mxu0 0
        %2844 = vmatprep.subr.bf16.mxu0 0
        %2845 = vmatpush1.bf16.msra.mxu0 0
        %2846 = vmatprep.subr.bf16.mxu0 0
        %2847 = vmatpush1.bf16.msra.mxu0 0
        %2848 = vmatprep.subr.bf16.mxu0 0
        %2849 = vmatpush1.bf16.msra.mxu0 0
        %2850 = vmatprep.subr.bf16.mxu0 0
        %2851 = vmatpush1.bf16.msra.mxu0 0
        %2852 = vmatprep.subr.bf16.mxu0 0
        %2853 = vmatpush1.bf16.msra.mxu0 0
        %2854 = vmatprep.subr.bf16.mxu0 0
        %2855 = vmatpush1.bf16.msra.mxu0 0
        %2856 = vmatprep.subr.bf16.mxu0 0
        %2857 = vmatpush1.bf16.msra.mxu0 0
        %2858 = vmatprep.subr.bf16.mxu0 0
        %2859 = vmatpush1.bf16.msra.mxu0 0
        %2860 = vmatprep.subr.bf16.mxu0 0
        %2861 = vmatpush1.bf16.msra.mxu0 0
        %2862 = vmatprep.mubr.bf16.mxu0 0
        %2863 = vmatmul.mubr.bf16.gmra.mrb[0].mxu0 %v2807
        %v2864 = vpop.f32.mrb[0].mxu0
        %v2865 = vadd.f32 %v2780, %v2864
        %v2866 = vpop.f32.mrb[0].mxu0
        %v2867 = vpop.f32.mrb[0].mxu0
        %v2868 = vadd.f32 %v2780, %v2867
        %v2869 = vpop.f32.mrb[0].mxu0
        %2870 = vmatprep.mubr.bf16.mxu0 0
        %2871 = vmatmul.mubr.bf16.gmra.mrb[0].mxu0 %v2810
        %v2872 = vpop.f32.mrb[0].mxu0
        %v2873 = vadd.f32 %v2780, %v2872
        %v2874 = vpop.f32.mrb[0].mxu0
        %v2875 = vpop.f32.mrb[0].mxu0
        %v2876 = vadd.f32 %v2780, %v2875
        %v2877 = vpop.f32.mrb[0].mxu0
        %2878 = vmatprep.mubr.bf16.mxu0 0
        %2879 = vmatmul.mubr.bf16.gmra.mrb[0].mxu0 %v2813
        %v2880 = vpop.f32.mrb[0].mxu0
        %v2881 = vadd.f32 %v2780, %v2880
        %v2882 = vpop.f32.mrb[0].mxu0
        %v2883 = vpop.f32.mrb[0].mxu0
        %v2884 = vadd.f32 %v2780, %v2883
        %v2885 = vpop.f32.mrb[0].mxu0
        %2886 = vmatprep.mubr.bf16.mxu0 0
        %2887 = vmatmul.mubr.bf16.gmra.mrb[0].mxu0 %v2816
        %v2888 = vpop.f32.mrb[0].mxu0
        %v2889 = vadd.f32 %v2780, %v2888
        %v2890 = vpop.f32.mrb[0].mxu0
        %v2891 = vpop.f32.mrb[0].mxu0
        %v2892 = vadd.f32 %v2780, %v2891
        %v2893 = vpop.f32.mrb[0].mxu0
        %2894 = vmatprep.mubr.bf16.mxu0 0
        %2895 = vmatmul.mubr.bf16.gmra.mrb[0].mxu0 %v2819
        %v2896 = vpop.f32.mrb[0].mxu0
        %v2897 = vadd.f32 %v2780, %v2896
        %v2898 = vpop.f32.mrb[0].mxu0
        %v2899 = vpop.f32.mrb[0].mxu0
        %v2900 = vadd.f32 %v2780, %v2899
        %v2901 = vpop.f32.mrb[0].mxu0
        %2902 = vmatprep.mubr.bf16.mxu0 0
        %2903 = vmatmul.mubr.bf16.gmra.mrb[0].mxu0 %v2822
        %v2904 = vpop.f32.mrb[0].mxu0
        %v2905 = vadd.f32 %v2780, %v2904
        %v2906 = vpop.f32.mrb[0].mxu0
        %v2907 = vpop.f32.mrb[0].mxu0
        %v2908 = vadd.f32 %v2780, %v2907
        %v2909 = vpop.f32.mrb[0].mxu0
        %2910 = vmatprep.mubr.bf16.mxu0 0
        %2911 = vmatmul.mubr.bf16.gmra.mrb[0].mxu0 %v2825
        %v2912 = vpop.f32.mrb[0].mxu0
        %v2913 = vadd.f32 %v2780, %v2912
        %v2914 = vpop.f32.mrb[0].mxu0
        %v2915 = vpop.f32.mrb[0].mxu0
        %v2916 = vadd.f32 %v2780, %v2915
        %v2917 = vpop.f32.mrb[0].mxu0
        %2918 = vmatprep.mubr.bf16.mxu0 0
        %2919 = vmatmul.mubr.bf16.gmra.mrb[0].mxu0 %v2828
        %v2920 = vpop.f32.mrb[0].mxu0
        %v2921 = vadd.f32 %v2780, %v2920
        %v2922 = vpop.f32.mrb[0].mxu0
        %v2923 = vpop.f32.mrb[0].mxu0
        %v2924 = vadd.f32 %v2780, %v2923
        %v2925 = vpop.f32.mrb[0].mxu0
        %2926 = vdwg.mxu0
        %v2927 = vmax.f32 %v2865, 0.0
        %v2928 = vmax.f32 %v2868, 0.0
        %v2929 = vmax.f32 %v2873, 0.0
        %v2930 = vmax.f32 %v2876, 0.0
        %v2931 = vmax.f32 %v2881, 0.0
        %v2932 = vmax.f32 %v2884, 0.0
        %v2933 = vmax.f32 %v2889, 0.0
        %v2934 = vmax.f32 %v2892, 0.0
        %v2935 = vmax.f32 %v2897, 0.0
        %v2936 = vmax.f32 %v2900, 0.0
        %v2937 = vmax.f32 %v2905, 0.0
        %v2938 = vmax.f32 %v2908, 0.0
        %v2939 = vmax.f32 %v2913, 0.0
        %v2940 = vmax.f32 %v2916, 0.0
        %v2941 = vmax.f32 %v2921, 0.0
        %v2942 = vmax.f32 %v2924, 0.0
        %v2943 = vpack.c.bf16 %v2928, %v2927
        %v2944 = vpack.c.bf16 %v2930, %v2929
        %v2945 = vpack.c.bf16 %v2932, %v2931
        %v2946 = vpack.c.bf16 %v2934, %v2933
        %v2947 = vpack.c.bf16 %v2936, %v2935
        %v2948 = vpack.c.bf16 %v2938, %v2937
        %v2949 = vpack.c.bf16 %v2940, %v2939
        %v2950 = vpack.c.bf16 %v2942, %v2941
        %s2951 = scalar_lea.vmem [#allocation2], 416
        %v2952 = vld [vmem:[%s2951] sm:$0xf]
        %v2953 = vld [vmem:[%s2951 + $0x4] sm:$0xf]
        %v2954 = vld [vmem:[%s2951 + $0x8] sm:$0xf]
        %v2955 = vld [vmem:[%s2951 + $0xc] sm:$0xf]
        %v2956 = vld [vmem:[%s2951 + $0x10] sm:$0xf]
        %v2957 = vld [vmem:[%s2951 + $0x14] sm:$0xf]
        %v2958 = vld [vmem:[%s2951 + $0x18] sm:$0xf]
        %v2959 = vld [vmem:[%s2951 + $0x1c] sm:$0xf]
        %s2960 = scalar_lea.vmem %s4, 13
        %v2961 = vld [vmem:[%s2960] sm:$0x1]
        %v2963 = vlaneseq
        %v2964 = vshrl.u32 %v2963, 7
        %v2965 = vsub.s32 0, %v2964
        %v2966 = vrot.slane %v2961, %v2965
        %v2976 = vunpack.c.l.b16 %v2952
        %v2977 = vunpack.c.l.b16 %v2953
        %v2978 = vunpack.c.l.b16 %v2954
        %v2979 = vunpack.c.l.b16 %v2955
        %v2980 = vunpack.c.l.b16 %v2956
        %v2981 = vunpack.c.l.b16 %v2957
        %v2982 = vunpack.c.l.b16 %v2958
        %v2983 = vunpack.c.l.b16 %v2959
        %v2984 = vpack.c.b16 %v2977, %v2976
        %v2985 = vpack.c.b16 %v2979, %v2978
        %v2986 = vpack.c.b16 %v2981, %v2980
        %v2987 = vpack.c.b16 %v2983, %v2982
        %v2993 = vsel %vm573, %v2943, 0
        %v2996 = vsel %vm573, %v2944, 0
        %v2999 = vsel %vm573, %v2945, 0
        %v3002 = vsel %vm573, %v2946, 0
        %v3005 = vsel %vm573, %v2947, 0
        %v3008 = vsel %vm573, %v2948, 0
        %v3011 = vsel %vm573, %v2949, 0
        %v3014 = vsel %vm573, %v2950, 0
        %3016 = vmatprep.subr.bf16.mxu0 0
        %3017 = vmatpush1.bf16.msra.mxu0 %v2984
        %3018 = vmatprep.subr.bf16.mxu0 0
        %3019 = vmatpush1.bf16.msra.mxu0 %v2985
        %3020 = vmatprep.subr.bf16.mxu0 0
        %3021 = vmatpush1.bf16.msra.mxu0 %v2986
        %3022 = vmatprep.subr.bf16.mxu0 0
        %3023 = vmatpush1.bf16.msra.mxu0 %v2987
        %3024 = vmatprep.subr.bf16.mxu0 0
        %3025 = vmatpush1.bf16.msra.mxu0 0
        %3026 = vmatprep.subr.bf16.mxu0 0
        %3027 = vmatpush1.bf16.msra.mxu0 0
        %3028 = vmatprep.subr.bf16.mxu0 0
        %3029 = vmatpush1.bf16.msra.mxu0 0
        %3030 = vmatprep.subr.bf16.mxu0 0
        %3031 = vmatpush1.bf16.msra.mxu0 0
        %3032 = vmatprep.subr.bf16.mxu0 0
        %3033 = vmatpush1.bf16.msra.mxu0 0
        %3034 = vmatprep.subr.bf16.mxu0 0
        %3035 = vmatpush1.bf16.msra.mxu0 0
        %3036 = vmatprep.subr.bf16.mxu0 0
        %3037 = vmatpush1.bf16.msra.mxu0 0
        %3038 = vmatprep.subr.bf16.mxu0 0
        %3039 = vmatpush1.bf16.msra.mxu0 0
        %3040 = vmatprep.subr.bf16.mxu0 0
        %3041 = vmatpush1.bf16.msra.mxu0 0
        %3042 = vmatprep.subr.bf16.mxu0 0
        %3043 = vmatpush1.bf16.msra.mxu0 0
        %3044 = vmatprep.subr.bf16.mxu0 0
        %3045 = vmatpush1.bf16.msra.mxu0 0
        %3046 = vmatprep.subr.bf16.mxu0 0
        %3047 = vmatpush1.bf16.msra.mxu0 0
        %3048 = vmatprep.mubr.bf16.mxu0 0
        %3049 = vmatmul.mubr.bf16.gmra.mrb[0].mxu0 %v2993
        %v3050 = vpop.f32.mrb[0].mxu0
        %v3051 = vadd.f32 %v2966, %v3050
        %v3052 = vpop.f32.mrb[0].mxu0
        %v3053 = vpop.f32.mrb[0].mxu0
        %v3054 = vadd.f32 %v2966, %v3053
        %v3055 = vpop.f32.mrb[0].mxu0
        %3056 = vmatprep.mubr.bf16.mxu0 0
        %3057 = vmatmul.mubr.bf16.gmra.mrb[0].mxu0 %v2996
        %v3058 = vpop.f32.mrb[0].mxu0
        %v3059 = vadd.f32 %v2966, %v3058
        %v3060 = vpop.f32.mrb[0].mxu0
        %v3061 = vpop.f32.mrb[0].mxu0
        %v3062 = vadd.f32 %v2966, %v3061
        %v3063 = vpop.f32.mrb[0].mxu0
        %3064 = vmatprep.mubr.bf16.mxu0 0
        %3065 = vmatmul.mubr.bf16.gmra.mrb[0].mxu0 %v2999
        %v3066 = vpop.f32.mrb[0].mxu0
        %v3067 = vadd.f32 %v2966, %v3066
        %v3068 = vpop.f32.mrb[0].mxu0
        %v3069 = vpop.f32.mrb[0].mxu0
        %v3070 = vadd.f32 %v2966, %v3069
        %v3071 = vpop.f32.mrb[0].mxu0
        %3072 = vmatprep.mubr.bf16.mxu0 0
        %3073 = vmatmul.mubr.bf16.gmra.mrb[0].mxu0 %v3002
        %v3074 = vpop.f32.mrb[0].mxu0
        %v3075 = vadd.f32 %v2966, %v3074
        %v3076 = vpop.f32.mrb[0].mxu0
        %v3077 = vpop.f32.mrb[0].mxu0
        %v3078 = vadd.f32 %v2966, %v3077
        %v3079 = vpop.f32.mrb[0].mxu0
        %3080 = vmatprep.mubr.bf16.mxu0 0
        %3081 = vmatmul.mubr.bf16.gmra.mrb[0].mxu0 %v3005
        %v3082 = vpop.f32.mrb[0].mxu0
        %v3083 = vadd.f32 %v2966, %v3082
        %v3084 = vpop.f32.mrb[0].mxu0
        %v3085 = vpop.f32.mrb[0].mxu0
        %v3086 = vadd.f32 %v2966, %v3085
        %v3087 = vpop.f32.mrb[0].mxu0
        %3088 = vmatprep.mubr.bf16.mxu0 0
        %3089 = vmatmul.mubr.bf16.gmra.mrb[0].mxu0 %v3008
        %v3090 = vpop.f32.mrb[0].mxu0
        %v3091 = vadd.f32 %v2966, %v3090
        %v3092 = vpop.f32.mrb[0].mxu0
        %v3093 = vpop.f32.mrb[0].mxu0
        %v3094 = vadd.f32 %v2966, %v3093
        %v3095 = vpop.f32.mrb[0].mxu0
        %3096 = vmatprep.mubr.bf16.mxu0 0
        %3097 = vmatmul.mubr.bf16.gmra.mrb[0].mxu0 %v3011
        %v3098 = vpop.f32.mrb[0].mxu0
        %v3099 = vadd.f32 %v2966, %v3098
        %v3100 = vpop.f32.mrb[0].mxu0
        %v3101 = vpop.f32.mrb[0].mxu0
        %v3102 = vadd.f32 %v2966, %v3101
        %v3103 = vpop.f32.mrb[0].mxu0
        %3104 = vmatprep.mubr.bf16.mxu0 0
        %3105 = vmatmul.mubr.bf16.gmra.mrb[0].mxu0 %v3014
        %v3106 = vpop.f32.mrb[0].mxu0
        %v3107 = vadd.f32 %v2966, %v3106
        %v3108 = vpop.f32.mrb[0].mxu0
        %v3109 = vpop.f32.mrb[0].mxu0
        %v3110 = vadd.f32 %v2966, %v3109
        %v3111 = vpop.f32.mrb[0].mxu0
        %3112 = vdwg.mxu0
        %v3113 = vmax.f32 %v3051, 0.0
        %v3114 = vmax.f32 %v3054, 0.0
        %v3115 = vmax.f32 %v3059, 0.0
        %v3116 = vmax.f32 %v3062, 0.0
        %v3117 = vmax.f32 %v3067, 0.0
        %v3118 = vmax.f32 %v3070, 0.0
        %v3119 = vmax.f32 %v3075, 0.0
        %v3120 = vmax.f32 %v3078, 0.0
        %v3121 = vmax.f32 %v3083, 0.0
        %v3122 = vmax.f32 %v3086, 0.0
        %v3123 = vmax.f32 %v3091, 0.0
        %v3124 = vmax.f32 %v3094, 0.0
        %v3125 = vmax.f32 %v3099, 0.0
        %v3126 = vmax.f32 %v3102, 0.0
        %v3127 = vmax.f32 %v3107, 0.0
        %v3128 = vmax.f32 %v3110, 0.0
        %v3129 = vpack.c.bf16 %v3114, %v3113
        %v3130 = vpack.c.bf16 %v3116, %v3115
        %v3131 = vpack.c.bf16 %v3118, %v3117
        %v3132 = vpack.c.bf16 %v3120, %v3119
        %v3133 = vpack.c.bf16 %v3122, %v3121
        %v3134 = vpack.c.bf16 %v3124, %v3123
        %v3135 = vpack.c.bf16 %v3126, %v3125
        %v3136 = vpack.c.bf16 %v3128, %v3127
        %s3137 = scalar_lea.vmem [#allocation2], 448
        %v3138 = vld [vmem:[%s3137] sm:$0xf]
        %v3139 = vld [vmem:[%s3137 + $0x4] sm:$0xf]
        %v3140 = vld [vmem:[%s3137 + $0x8] sm:$0xf]
        %v3141 = vld [vmem:[%s3137 + $0xc] sm:$0xf]
        %v3142 = vld [vmem:[%s3137 + $0x10] sm:$0xf]
        %v3143 = vld [vmem:[%s3137 + $0x14] sm:$0xf]
        %v3144 = vld [vmem:[%s3137 + $0x18] sm:$0xf]
        %v3145 = vld [vmem:[%s3137 + $0x1c] sm:$0xf]
        %s3146 = scalar_lea.vmem %s4, 14
        %v3147 = vld [vmem:[%s3146] sm:$0x1]
        %v3149 = vlaneseq
        %v3150 = vshrl.u32 %v3149, 7
        %v3151 = vsub.s32 0, %v3150
        %v3152 = vrot.slane %v3147, %v3151
        %v3162 = vunpack.c.l.b16 %v3138
        %v3163 = vunpack.c.l.b16 %v3139
        %v3164 = vunpack.c.l.b16 %v3140
        %v3165 = vunpack.c.l.b16 %v3141
        %v3166 = vunpack.c.l.b16 %v3142
        %v3167 = vunpack.c.l.b16 %v3143
        %v3168 = vunpack.c.l.b16 %v3144
        %v3169 = vunpack.c.l.b16 %v3145
        %v3170 = vpack.c.b16 %v3163, %v3162
        %v3171 = vpack.c.b16 %v3165, %v3164
        %v3172 = vpack.c.b16 %v3167, %v3166
        %v3173 = vpack.c.b16 %v3169, %v3168
        %v3179 = vsel %vm573, %v3129, 0
        %v3182 = vsel %vm573, %v3130, 0
        %v3185 = vsel %vm573, %v3131, 0
        %v3188 = vsel %vm573, %v3132, 0
        %v3191 = vsel %vm573, %v3133, 0
        %v3194 = vsel %vm573, %v3134, 0
        %v3197 = vsel %vm573, %v3135, 0
        %v3200 = vsel %vm573, %v3136, 0
        %3202 = vmatprep.subr.bf16.mxu0 0
        %3203 = vmatpush1.bf16.msra.mxu0 %v3170
        %3204 = vmatprep.subr.bf16.mxu0 0
        %3205 = vmatpush1.bf16.msra.mxu0 %v3171
        %3206 = vmatprep.subr.bf16.mxu0 0
        %3207 = vmatpush1.bf16.msra.mxu0 %v3172
        %3208 = vmatprep.subr.bf16.mxu0 0
        %3209 = vmatpush1.bf16.msra.mxu0 %v3173
        %3210 = vmatprep.subr.bf16.mxu0 0
        %3211 = vmatpush1.bf16.msra.mxu0 0
        %3212 = vmatprep.subr.bf16.mxu0 0
        %3213 = vmatpush1.bf16.msra.mxu0 0
        %3214 = vmatprep.subr.bf16.mxu0 0
        %3215 = vmatpush1.bf16.msra.mxu0 0
        %3216 = vmatprep.subr.bf16.mxu0 0
        %3217 = vmatpush1.bf16.msra.mxu0 0
        %3218 = vmatprep.subr.bf16.mxu0 0
        %3219 = vmatpush1.bf16.msra.mxu0 0
        %3220 = vmatprep.subr.bf16.mxu0 0
        %3221 = vmatpush1.bf16.msra.mxu0 0
        %3222 = vmatprep.subr.bf16.mxu0 0
        %3223 = vmatpush1.bf16.msra.mxu0 0
        %3224 = vmatprep.subr.bf16.mxu0 0
        %3225 = vmatpush1.bf16.msra.mxu0 0
        %3226 = vmatprep.subr.bf16.mxu0 0
        %3227 = vmatpush1.bf16.msra.mxu0 0
        %3228 = vmatprep.subr.bf16.mxu0 0
        %3229 = vmatpush1.bf16.msra.mxu0 0
        %3230 = vmatprep.subr.bf16.mxu0 0
        %3231 = vmatpush1.bf16.msra.mxu0 0
        %3232 = vmatprep.subr.bf16.mxu0 0
        %3233 = vmatpush1.bf16.msra.mxu0 0
        %3234 = vmatprep.mubr.bf16.mxu0 0
        %3235 = vmatmul.mubr.bf16.gmra.mrb[0].mxu0 %v3179
        %v3236 = vpop.f32.mrb[0].mxu0
        %v3237 = vadd.f32 %v3152, %v3236
        %v3238 = vpop.f32.mrb[0].mxu0
        %v3239 = vpop.f32.mrb[0].mxu0
        %v3240 = vadd.f32 %v3152, %v3239
        %v3241 = vpop.f32.mrb[0].mxu0
        %3242 = vmatprep.mubr.bf16.mxu0 0
        %3243 = vmatmul.mubr.bf16.gmra.mrb[0].mxu0 %v3182
        %v3244 = vpop.f32.mrb[0].mxu0
        %v3245 = vadd.f32 %v3152, %v3244
        %v3246 = vpop.f32.mrb[0].mxu0
        %v3247 = vpop.f32.mrb[0].mxu0
        %v3248 = vadd.f32 %v3152, %v3247
        %v3249 = vpop.f32.mrb[0].mxu0
        %3250 = vmatprep.mubr.bf16.mxu0 0
        %3251 = vmatmul.mubr.bf16.gmra.mrb[0].mxu0 %v3185
        %v3252 = vpop.f32.mrb[0].mxu0
        %v3253 = vadd.f32 %v3152, %v3252
        %v3254 = vpop.f32.mrb[0].mxu0
        %v3255 = vpop.f32.mrb[0].mxu0
        %v3256 = vadd.f32 %v3152, %v3255
        %v3257 = vpop.f32.mrb[0].mxu0
        %3258 = vmatprep.mubr.bf16.mxu0 0
        %3259 = vmatmul.mubr.bf16.gmra.mrb[0].mxu0 %v3188
        %v3260 = vpop.f32.mrb[0].mxu0
        %v3261 = vadd.f32 %v3152, %v3260
        %v3262 = vpop.f32.mrb[0].mxu0
        %v3263 = vpop.f32.mrb[0].mxu0
        %v3264 = vadd.f32 %v3152, %v3263
        %v3265 = vpop.f32.mrb[0].mxu0
        %3266 = vmatprep.mubr.bf16.mxu0 0
        %3267 = vmatmul.mubr.bf16.gmra.mrb[0].mxu0 %v3191
        %v3268 = vpop.f32.mrb[0].mxu0
        %v3269 = vadd.f32 %v3152, %v3268
        %v3270 = vpop.f32.mrb[0].mxu0
        %v3271 = vpop.f32.mrb[0].mxu0
        %v3272 = vadd.f32 %v3152, %v3271
        %v3273 = vpop.f32.mrb[0].mxu0
        %3274 = vmatprep.mubr.bf16.mxu0 0
        %3275 = vmatmul.mubr.bf16.gmra.mrb[0].mxu0 %v3194
        %v3276 = vpop.f32.mrb[0].mxu0
        %v3277 = vadd.f32 %v3152, %v3276
        %v3278 = vpop.f32.mrb[0].mxu0
        %v3279 = vpop.f32.mrb[0].mxu0
        %v3280 = vadd.f32 %v3152, %v3279
        %v3281 = vpop.f32.mrb[0].mxu0
        %3282 = vmatprep.mubr.bf16.mxu0 0
        %3283 = vmatmul.mubr.bf16.gmra.mrb[0].mxu0 %v3197
        %v3284 = vpop.f32.mrb[0].mxu0
        %v3285 = vadd.f32 %v3152, %v3284
        %v3286 = vpop.f32.mrb[0].mxu0
        %v3287 = vpop.f32.mrb[0].mxu0
        %v3288 = vadd.f32 %v3152, %v3287
        %v3289 = vpop.f32.mrb[0].mxu0
        %3290 = vmatprep.mubr.bf16.mxu0 0
        %3291 = vmatmul.mubr.bf16.gmra.mrb[0].mxu0 %v3200
        %v3292 = vpop.f32.mrb[0].mxu0
        %v3293 = vadd.f32 %v3152, %v3292
        %v3294 = vpop.f32.mrb[0].mxu0
        %v3295 = vpop.f32.mrb[0].mxu0
        %v3296 = vadd.f32 %v3152, %v3295
        %v3297 = vpop.f32.mrb[0].mxu0
        %3298 = vdwg.mxu0
        %v3299 = vmax.f32 %v3237, 0.0
        %v3300 = vmax.f32 %v3240, 0.0
        %v3301 = vmax.f32 %v3245, 0.0
        %v3302 = vmax.f32 %v3248, 0.0
        %v3303 = vmax.f32 %v3253, 0.0
        %v3304 = vmax.f32 %v3256, 0.0
        %v3305 = vmax.f32 %v3261, 0.0
        %v3306 = vmax.f32 %v3264, 0.0
        %v3307 = vmax.f32 %v3269, 0.0
        %v3308 = vmax.f32 %v3272, 0.0
        %v3309 = vmax.f32 %v3277, 0.0
        %v3310 = vmax.f32 %v3280, 0.0
        %v3311 = vmax.f32 %v3285, 0.0
        %v3312 = vmax.f32 %v3288, 0.0
        %v3313 = vmax.f32 %v3293, 0.0
        %v3314 = vmax.f32 %v3296, 0.0
        %v3315 = vpack.c.bf16 %v3300, %v3299
        %v3316 = vpack.c.bf16 %v3302, %v3301
        %v3317 = vpack.c.bf16 %v3304, %v3303
        %v3318 = vpack.c.bf16 %v3306, %v3305
        %v3319 = vpack.c.bf16 %v3308, %v3307
        %v3320 = vpack.c.bf16 %v3310, %v3309
        %v3321 = vpack.c.bf16 %v3312, %v3311
        %v3322 = vpack.c.bf16 %v3314, %v3313
        %s3323 = scalar_lea.vmem [#allocation2], 480
        %v3324 = vld [vmem:[%s3323] sm:$0xf]
        %v3325 = vld [vmem:[%s3323 + $0x4] sm:$0xf]
        %v3326 = vld [vmem:[%s3323 + $0x8] sm:$0xf]
        %v3327 = vld [vmem:[%s3323 + $0xc] sm:$0xf]
        %v3328 = vld [vmem:[%s3323 + $0x10] sm:$0xf]
        %v3329 = vld [vmem:[%s3323 + $0x14] sm:$0xf]
        %v3330 = vld [vmem:[%s3323 + $0x18] sm:$0xf]
        %v3331 = vld [vmem:[%s3323 + $0x1c] sm:$0xf]
        %s3332 = scalar_lea.vmem %s4, 15
        %v3333 = vld [vmem:[%s3332] sm:$0x1]
        %v3335 = vlaneseq
        %v3336 = vshrl.u32 %v3335, 7
        %v3337 = vsub.s32 0, %v3336
        %v3338 = vrot.slane %v3333, %v3337
        %v3348 = vunpack.c.l.b16 %v3324
        %v3349 = vunpack.c.l.b16 %v3325
        %v3350 = vunpack.c.l.b16 %v3326
        %v3351 = vunpack.c.l.b16 %v3327
        %v3352 = vunpack.c.l.b16 %v3328
        %v3353 = vunpack.c.l.b16 %v3329
        %v3354 = vunpack.c.l.b16 %v3330
        %v3355 = vunpack.c.l.b16 %v3331
        %v3356 = vpack.c.b16 %v3349, %v3348
        %v3357 = vpack.c.b16 %v3351, %v3350
        %v3358 = vpack.c.b16 %v3353, %v3352
        %v3359 = vpack.c.b16 %v3355, %v3354
        %v3365 = vsel %vm573, %v3315, 0
        %v3368 = vsel %vm573, %v3316, 0
        %v3371 = vsel %vm573, %v3317, 0
        %v3374 = vsel %vm573, %v3318, 0
        %v3377 = vsel %vm573, %v3319, 0
        %v3380 = vsel %vm573, %v3320, 0
        %v3383 = vsel %vm573, %v3321, 0
        %v3386 = vsel %vm573, %v3322, 0
        %3388 = vmatprep.subr.bf16.mxu0 0
        %3389 = vmatpush1.bf16.msra.mxu0 %v3356
        %3390 = vmatprep.subr.bf16.mxu0 0
        %3391 = vmatpush1.bf16.msra.mxu0 %v3357
        %3392 = vmatprep.subr.bf16.mxu0 0
        %3393 = vmatpush1.bf16.msra.mxu0 %v3358
        %3394 = vmatprep.subr.bf16.mxu0 0
        %3395 = vmatpush1.bf16.msra.mxu0 %v3359
        %3396 = vmatprep.subr.bf16.mxu0 0
        %3397 = vmatpush1.bf16.msra.mxu0 0
        %3398 = vmatprep.subr.bf16.mxu0 0
        %3399 = vmatpush1.bf16.msra.mxu0 0
        %3400 = vmatprep.subr.bf16.mxu0 0
        %3401 = vmatpush1.bf16.msra.mxu0 0
        %3402 = vmatprep.subr.bf16.mxu0 0
        %3403 = vmatpush1.bf16.msra.mxu0 0
        %3404 = vmatprep.subr.bf16.mxu0 0
        %3405 = vmatpush1.bf16.msra.mxu0 0
        %3406 = vmatprep.subr.bf16.mxu0 0
        %3407 = vmatpush1.bf16.msra.mxu0 0
        %3408 = vmatprep.subr.bf16.mxu0 0
        %3409 = vmatpush1.bf16.msra.mxu0 0
        %3410 = vmatprep.subr.bf16.mxu0 0
        %3411 = vmatpush1.bf16.msra.mxu0 0
        %3412 = vmatprep.subr.bf16.mxu0 0
        %3413 = vmatpush1.bf16.msra.mxu0 0
        %3414 = vmatprep.subr.bf16.mxu0 0
        %3415 = vmatpush1.bf16.msra.mxu0 0
        %3416 = vmatprep.subr.bf16.mxu0 0
        %3417 = vmatpush1.bf16.msra.mxu0 0
        %3418 = vmatprep.subr.bf16.mxu0 0
        %3419 = vmatpush1.bf16.msra.mxu0 0
        %3420 = vmatprep.mubr.bf16.mxu0 0
        %3421 = vmatmul.mubr.bf16.gmra.mrb[0].mxu0 %v3365
        %v3422 = vpop.f32.mrb[0].mxu0
        %v3423 = vadd.f32 %v3338, %v3422
        %v3424 = vpop.f32.mrb[0].mxu0
        %v3425 = vpop.f32.mrb[0].mxu0
        %v3426 = vadd.f32 %v3338, %v3425
        %v3427 = vpop.f32.mrb[0].mxu0
        %3428 = vmatprep.mubr.bf16.mxu0 0
        %3429 = vmatmul.mubr.bf16.gmra.mrb[0].mxu0 %v3368
        %v3430 = vpop.f32.mrb[0].mxu0
        %v3431 = vadd.f32 %v3338, %v3430
        %v3432 = vpop.f32.mrb[0].mxu0
        %v3433 = vpop.f32.mrb[0].mxu0
        %v3434 = vadd.f32 %v3338, %v3433
        %v3435 = vpop.f32.mrb[0].mxu0
        %3436 = vmatprep.mubr.bf16.mxu0 0
        %3437 = vmatmul.mubr.bf16.gmra.mrb[0].mxu0 %v3371
        %v3438 = vpop.f32.mrb[0].mxu0
        %v3439 = vadd.f32 %v3338, %v3438
        %v3440 = vpop.f32.mrb[0].mxu0
        %v3441 = vpop.f32.mrb[0].mxu0
        %v3442 = vadd.f32 %v3338, %v3441
        %v3443 = vpop.f32.mrb[0].mxu0
        %3444 = vmatprep.mubr.bf16.mxu0 0
        %3445 = vmatmul.mubr.bf16.gmra.mrb[0].mxu0 %v3374
        %v3446 = vpop.f32.mrb[0].mxu0
        %v3447 = vadd.f32 %v3338, %v3446
        %v3448 = vpop.f32.mrb[0].mxu0
        %v3449 = vpop.f32.mrb[0].mxu0
        %v3450 = vadd.f32 %v3338, %v3449
        %v3451 = vpop.f32.mrb[0].mxu0
        %3452 = vmatprep.mubr.bf16.mxu0 0
        %3453 = vmatmul.mubr.bf16.gmra.mrb[0].mxu0 %v3377
        %v3454 = vpop.f32.mrb[0].mxu0
        %v3455 = vadd.f32 %v3338, %v3454
        %v3456 = vpop.f32.mrb[0].mxu0
        %v3457 = vpop.f32.mrb[0].mxu0
        %v3458 = vadd.f32 %v3338, %v3457
        %v3459 = vpop.f32.mrb[0].mxu0
        %3460 = vmatprep.mubr.bf16.mxu0 0
        %3461 = vmatmul.mubr.bf16.gmra.mrb[0].mxu0 %v3380
        %v3462 = vpop.f32.mrb[0].mxu0
        %v3463 = vadd.f32 %v3338, %v3462
        %v3464 = vpop.f32.mrb[0].mxu0
        %v3465 = vpop.f32.mrb[0].mxu0
        %v3466 = vadd.f32 %v3338, %v3465
        %v3467 = vpop.f32.mrb[0].mxu0
        %3468 = vmatprep.mubr.bf16.mxu0 0
        %3469 = vmatmul.mubr.bf16.gmra.mrb[0].mxu0 %v3383
        %v3470 = vpop.f32.mrb[0].mxu0
        %v3471 = vadd.f32 %v3338, %v3470
        %v3472 = vpop.f32.mrb[0].mxu0
        %v3473 = vpop.f32.mrb[0].mxu0
        %v3474 = vadd.f32 %v3338, %v3473
        %v3475 = vpop.f32.mrb[0].mxu0
        %3476 = vmatprep.mubr.bf16.mxu0 0
        %3477 = vmatmul.mubr.bf16.gmra.mrb[0].mxu0 %v3386
        %v3478 = vpop.f32.mrb[0].mxu0
        %v3479 = vadd.f32 %v3338, %v3478
        %v3480 = vpop.f32.mrb[0].mxu0
        %v3481 = vpop.f32.mrb[0].mxu0
        %v3482 = vadd.f32 %v3338, %v3481
        %v3483 = vpop.f32.mrb[0].mxu0
        %3484 = vdwg.mxu0
        %v3485 = vmax.f32 %v3423, 0.0
        %v3486 = vmax.f32 %v3426, 0.0
        %v3487 = vmax.f32 %v3431, 0.0
        %v3488 = vmax.f32 %v3434, 0.0
        %v3489 = vmax.f32 %v3439, 0.0
        %v3490 = vmax.f32 %v3442, 0.0
        %v3491 = vmax.f32 %v3447, 0.0
        %v3492 = vmax.f32 %v3450, 0.0
        %v3493 = vmax.f32 %v3455, 0.0
        %v3494 = vmax.f32 %v3458, 0.0
        %v3495 = vmax.f32 %v3463, 0.0
        %v3496 = vmax.f32 %v3466, 0.0
        %v3497 = vmax.f32 %v3471, 0.0
        %v3498 = vmax.f32 %v3474, 0.0
        %v3499 = vmax.f32 %v3479, 0.0
        %v3500 = vmax.f32 %v3482, 0.0
        %v3501 = vpack.c.bf16 %v3486, %v3485
        %v3502 = vpack.c.bf16 %v3488, %v3487
        %v3503 = vpack.c.bf16 %v3490, %v3489
        %v3504 = vpack.c.bf16 %v3492, %v3491
        %v3505 = vpack.c.bf16 %v3494, %v3493
        %v3506 = vpack.c.bf16 %v3496, %v3495
        %v3507 = vpack.c.bf16 %v3498, %v3497
        %v3508 = vpack.c.bf16 %v3500, %v3499
        %s3509 = scalar_lea.vmem [#allocation2], 512
        %v3510 = vld [vmem:[%s3509] sm:$0xf]
        %v3511 = vld [vmem:[%s3509 + $0x4] sm:$0xf]
        %v3512 = vld [vmem:[%s3509 + $0x8] sm:$0xf]
        %v3513 = vld [vmem:[%s3509 + $0xc] sm:$0xf]
        %v3514 = vld [vmem:[%s3509 + $0x10] sm:$0xf]
        %v3515 = vld [vmem:[%s3509 + $0x14] sm:$0xf]
        %v3516 = vld [vmem:[%s3509 + $0x18] sm:$0xf]
        %v3517 = vld [vmem:[%s3509 + $0x1c] sm:$0xf]
        %s3518 = scalar_lea.vmem %s4, 16
        %v3519 = vld [vmem:[%s3518] sm:$0x1]
        %v3521 = vlaneseq
        %v3522 = vshrl.u32 %v3521, 7
        %v3523 = vsub.s32 0, %v3522
        %v3524 = vrot.slane %v3519, %v3523
        %v3534 = vunpack.c.l.b16 %v3510
        %v3535 = vunpack.c.l.b16 %v3511
        %v3536 = vunpack.c.l.b16 %v3512
        %v3537 = vunpack.c.l.b16 %v3513
        %v3538 = vunpack.c.l.b16 %v3514
        %v3539 = vunpack.c.l.b16 %v3515
        %v3540 = vunpack.c.l.b16 %v3516
        %v3541 = vunpack.c.l.b16 %v3517
        %v3542 = vpack.c.b16 %v3535, %v3534
        %v3543 = vpack.c.b16 %v3537, %v3536
        %v3544 = vpack.c.b16 %v3539, %v3538
        %v3545 = vpack.c.b16 %v3541, %v3540
        %v3551 = vsel %vm573, %v3501, 0
        %v3554 = vsel %vm573, %v3502, 0
        %v3557 = vsel %vm573, %v3503, 0
        %v3560 = vsel %vm573, %v3504, 0
        %v3563 = vsel %vm573, %v3505, 0
        %v3566 = vsel %vm573, %v3506, 0
        %v3569 = vsel %vm573, %v3507, 0
        %v3572 = vsel %vm573, %v3508, 0
        %3574 = vmatprep.subr.bf16.mxu0 0
        %3575 = vmatpush1.bf16.msra.mxu0 %v3542
        %3576 = vmatprep.subr.bf16.mxu0 0
        %3577 = vmatpush1.bf16.msra.mxu0 %v3543
        %3578 = vmatprep.subr.bf16.mxu0 0
        %3579 = vmatpush1.bf16.msra.mxu0 %v3544
        %3580 = vmatprep.subr.bf16.mxu0 0
        %3581 = vmatpush1.bf16.msra.mxu0 %v3545
        %3582 = vmatprep.subr.bf16.mxu0 0
        %3583 = vmatpush1.bf16.msra.mxu0 0
        %3584 = vmatprep.subr.bf16.mxu0 0
        %3585 = vmatpush1.bf16.msra.mxu0 0
        %3586 = vmatprep.subr.bf16.mxu0 0
        %3587 = vmatpush1.bf16.msra.mxu0 0
        %3588 = vmatprep.subr.bf16.mxu0 0
        %3589 = vmatpush1.bf16.msra.mxu0 0
        %3590 = vmatprep.subr.bf16.mxu0 0
        %3591 = vmatpush1.bf16.msra.mxu0 0
        %3592 = vmatprep.subr.bf16.mxu0 0
        %3593 = vmatpush1.bf16.msra.mxu0 0
        %3594 = vmatprep.subr.bf16.mxu0 0
        %3595 = vmatpush1.bf16.msra.mxu0 0
        %3596 = vmatprep.subr.bf16.mxu0 0
        %3597 = vmatpush1.bf16.msra.mxu0 0
        %3598 = vmatprep.subr.bf16.mxu0 0
        %3599 = vmatpush1.bf16.msra.mxu0 0
        %3600 = vmatprep.subr.bf16.mxu0 0
        %3601 = vmatpush1.bf16.msra.mxu0 0
        %3602 = vmatprep.subr.bf16.mxu0 0
        %3603 = vmatpush1.bf16.msra.mxu0 0
        %3604 = vmatprep.subr.bf16.mxu0 0
        %3605 = vmatpush1.bf16.msra.mxu0 0
        %3606 = vmatprep.mubr.bf16.mxu0 0
        %3607 = vmatmul.mubr.bf16.gmra.mrb[0].mxu0 %v3551
        %v3608 = vpop.f32.mrb[0].mxu0
        %v3609 = vadd.f32 %v3524, %v3608
        %v3610 = vpop.f32.mrb[0].mxu0
        %v3611 = vpop.f32.mrb[0].mxu0
        %v3612 = vadd.f32 %v3524, %v3611
        %v3613 = vpop.f32.mrb[0].mxu0
        %3614 = vmatprep.mubr.bf16.mxu0 0
        %3615 = vmatmul.mubr.bf16.gmra.mrb[0].mxu0 %v3554
        %v3616 = vpop.f32.mrb[0].mxu0
        %v3617 = vadd.f32 %v3524, %v3616
        %v3618 = vpop.f32.mrb[0].mxu0
        %v3619 = vpop.f32.mrb[0].mxu0
        %v3620 = vadd.f32 %v3524, %v3619
        %v3621 = vpop.f32.mrb[0].mxu0
        %3622 = vmatprep.mubr.bf16.mxu0 0
        %3623 = vmatmul.mubr.bf16.gmra.mrb[0].mxu0 %v3557
        %v3624 = vpop.f32.mrb[0].mxu0
        %v3625 = vadd.f32 %v3524, %v3624
        %v3626 = vpop.f32.mrb[0].mxu0
        %v3627 = vpop.f32.mrb[0].mxu0
        %v3628 = vadd.f32 %v3524, %v3627
        %v3629 = vpop.f32.mrb[0].mxu0
        %3630 = vmatprep.mubr.bf16.mxu0 0
        %3631 = vmatmul.mubr.bf16.gmra.mrb[0].mxu0 %v3560
        %v3632 = vpop.f32.mrb[0].mxu0
        %v3633 = vadd.f32 %v3524, %v3632
        %v3634 = vpop.f32.mrb[0].mxu0
        %v3635 = vpop.f32.mrb[0].mxu0
        %v3636 = vadd.f32 %v3524, %v3635
        %v3637 = vpop.f32.mrb[0].mxu0
        %3638 = vmatprep.mubr.bf16.mxu0 0
        %3639 = vmatmul.mubr.bf16.gmra.mrb[0].mxu0 %v3563
        %v3640 = vpop.f32.mrb[0].mxu0
        %v3641 = vadd.f32 %v3524, %v3640
        %v3642 = vpop.f32.mrb[0].mxu0
        %v3643 = vpop.f32.mrb[0].mxu0
        %v3644 = vadd.f32 %v3524, %v3643
        %v3645 = vpop.f32.mrb[0].mxu0
        %3646 = vmatprep.mubr.bf16.mxu0 0
        %3647 = vmatmul.mubr.bf16.gmra.mrb[0].mxu0 %v3566
        %v3648 = vpop.f32.mrb[0].mxu0
        %v3649 = vadd.f32 %v3524, %v3648
        %v3650 = vpop.f32.mrb[0].mxu0
        %v3651 = vpop.f32.mrb[0].mxu0
        %v3652 = vadd.f32 %v3524, %v3651
        %v3653 = vpop.f32.mrb[0].mxu0
        %3654 = vmatprep.mubr.bf16.mxu0 0
        %3655 = vmatmul.mubr.bf16.gmra.mrb[0].mxu0 %v3569
        %v3656 = vpop.f32.mrb[0].mxu0
        %v3657 = vadd.f32 %v3524, %v3656
        %v3658 = vpop.f32.mrb[0].mxu0
        %v3659 = vpop.f32.mrb[0].mxu0
        %v3660 = vadd.f32 %v3524, %v3659
        %v3661 = vpop.f32.mrb[0].mxu0
        %3662 = vmatprep.mubr.bf16.mxu0 0
        %3663 = vmatmul.mubr.bf16.gmra.mrb[0].mxu0 %v3572
        %v3664 = vpop.f32.mrb[0].mxu0
        %v3665 = vadd.f32 %v3524, %v3664
        %v3666 = vpop.f32.mrb[0].mxu0
        %v3667 = vpop.f32.mrb[0].mxu0
        %v3668 = vadd.f32 %v3524, %v3667
        %v3669 = vpop.f32.mrb[0].mxu0
        %3670 = vdwg.mxu0
        %v3671 = vmax.f32 %v3609, 0.0
        %v3672 = vmax.f32 %v3612, 0.0
        %v3673 = vmax.f32 %v3617, 0.0
        %v3674 = vmax.f32 %v3620, 0.0
        %v3675 = vmax.f32 %v3625, 0.0
        %v3676 = vmax.f32 %v3628, 0.0
        %v3677 = vmax.f32 %v3633, 0.0
        %v3678 = vmax.f32 %v3636, 0.0
        %v3679 = vmax.f32 %v3641, 0.0
        %v3680 = vmax.f32 %v3644, 0.0
        %v3681 = vmax.f32 %v3649, 0.0
        %v3682 = vmax.f32 %v3652, 0.0
        %v3683 = vmax.f32 %v3657, 0.0
        %v3684 = vmax.f32 %v3660, 0.0
        %v3685 = vmax.f32 %v3665, 0.0
        %v3686 = vmax.f32 %v3668, 0.0
        %v3687 = vpack.c.bf16 %v3672, %v3671
        %v3688 = vpack.c.bf16 %v3674, %v3673
        %v3689 = vpack.c.bf16 %v3676, %v3675
        %v3690 = vpack.c.bf16 %v3678, %v3677
        %v3691 = vpack.c.bf16 %v3680, %v3679
        %v3692 = vpack.c.bf16 %v3682, %v3681
        %v3693 = vpack.c.bf16 %v3684, %v3683
        %v3694 = vpack.c.bf16 %v3686, %v3685
        %s3695 = scalar_lea.vmem [#allocation2], 544
        %v3696 = vld [vmem:[%s3695] sm:$0xf]
        %v3697 = vld [vmem:[%s3695 + $0x4] sm:$0xf]
        %v3698 = vld [vmem:[%s3695 + $0x8] sm:$0xf]
        %v3699 = vld [vmem:[%s3695 + $0xc] sm:$0xf]
        %v3700 = vld [vmem:[%s3695 + $0x10] sm:$0xf]
        %v3701 = vld [vmem:[%s3695 + $0x14] sm:$0xf]
        %v3702 = vld [vmem:[%s3695 + $0x18] sm:$0xf]
        %v3703 = vld [vmem:[%s3695 + $0x1c] sm:$0xf]
        %s3704 = scalar_lea.vmem %s4, 17
        %v3705 = vld [vmem:[%s3704] sm:$0x1]
        %v3707 = vlaneseq
        %v3708 = vshrl.u32 %v3707, 7
        %v3709 = vsub.s32 0, %v3708
        %v3710 = vrot.slane %v3705, %v3709
        %v3720 = vunpack.c.l.b16 %v3696
        %v3721 = vunpack.c.l.b16 %v3697
        %v3722 = vunpack.c.l.b16 %v3698
        %v3723 = vunpack.c.l.b16 %v3699
        %v3724 = vunpack.c.l.b16 %v3700
        %v3725 = vunpack.c.l.b16 %v3701
        %v3726 = vunpack.c.l.b16 %v3702
        %v3727 = vunpack.c.l.b16 %v3703
        %v3728 = vpack.c.b16 %v3721, %v3720
        %v3729 = vpack.c.b16 %v3723, %v3722
        %v3730 = vpack.c.b16 %v3725, %v3724
        %v3731 = vpack.c.b16 %v3727, %v3726
        %v3737 = vsel %vm573, %v3687, 0
        %v3740 = vsel %vm573, %v3688, 0
        %v3743 = vsel %vm573, %v3689, 0
        %v3746 = vsel %vm573, %v3690, 0
        %v3749 = vsel %vm573, %v3691, 0
        %v3752 = vsel %vm573, %v3692, 0
        %v3755 = vsel %vm573, %v3693, 0
        %v3758 = vsel %vm573, %v3694, 0
        %3760 = vmatprep.subr.bf16.mxu0 0
        %3761 = vmatpush1.bf16.msra.mxu0 %v3728
        %3762 = vmatprep.subr.bf16.mxu0 0
        %3763 = vmatpush1.bf16.msra.mxu0 %v3729
        %3764 = vmatprep.subr.bf16.mxu0 0
        %3765 = vmatpush1.bf16.msra.mxu0 %v3730
        %3766 = vmatprep.subr.bf16.mxu0 0
        %3767 = vmatpush1.bf16.msra.mxu0 %v3731
        %3768 = vmatprep.subr.bf16.mxu0 0
        %3769 = vmatpush1.bf16.msra.mxu0 0
        %3770 = vmatprep.subr.bf16.mxu0 0
        %3771 = vmatpush1.bf16.msra.mxu0 0
        %3772 = vmatprep.subr.bf16.mxu0 0
        %3773 = vmatpush1.bf16.msra.mxu0 0
        %3774 = vmatprep.subr.bf16.mxu0 0
        %3775 = vmatpush1.bf16.msra.mxu0 0
        %3776 = vmatprep.subr.bf16.mxu0 0
        %3777 = vmatpush1.bf16.msra.mxu0 0
        %3778 = vmatprep.subr.bf16.mxu0 0
        %3779 = vmatpush1.bf16.msra.mxu0 0
        %3780 = vmatprep.subr.bf16.mxu0 0
        %3781 = vmatpush1.bf16.msra.mxu0 0
        %3782 = vmatprep.subr.bf16.mxu0 0
        %3783 = vmatpush1.bf16.msra.mxu0 0
        %3784 = vmatprep.subr.bf16.mxu0 0
        %3785 = vmatpush1.bf16.msra.mxu0 0
        %3786 = vmatprep.subr.bf16.mxu0 0
        %3787 = vmatpush1.bf16.msra.mxu0 0
        %3788 = vmatprep.subr.bf16.mxu0 0
        %3789 = vmatpush1.bf16.msra.mxu0 0
        %3790 = vmatprep.subr.bf16.mxu0 0
        %3791 = vmatpush1.bf16.msra.mxu0 0
        %3792 = vmatprep.mubr.bf16.mxu0 0
        %3793 = vmatmul.mubr.bf16.gmra.mrb[0].mxu0 %v3737
        %v3794 = vpop.f32.mrb[0].mxu0
        %v3795 = vadd.f32 %v3710, %v3794
        %v3796 = vpop.f32.mrb[0].mxu0
        %v3797 = vpop.f32.mrb[0].mxu0
        %v3798 = vadd.f32 %v3710, %v3797
        %v3799 = vpop.f32.mrb[0].mxu0
        %3800 = vmatprep.mubr.bf16.mxu0 0
        %3801 = vmatmul.mubr.bf16.gmra.mrb[0].mxu0 %v3740
        %v3802 = vpop.f32.mrb[0].mxu0
        %v3803 = vadd.f32 %v3710, %v3802
        %v3804 = vpop.f32.mrb[0].mxu0
        %v3805 = vpop.f32.mrb[0].mxu0
        %v3806 = vadd.f32 %v3710, %v3805
        %v3807 = vpop.f32.mrb[0].mxu0
        %3808 = vmatprep.mubr.bf16.mxu0 0
        %3809 = vmatmul.mubr.bf16.gmra.mrb[0].mxu0 %v3743
        %v3810 = vpop.f32.mrb[0].mxu0
        %v3811 = vadd.f32 %v3710, %v3810
        %v3812 = vpop.f32.mrb[0].mxu0
        %v3813 = vpop.f32.mrb[0].mxu0
        %v3814 = vadd.f32 %v3710, %v3813
        %v3815 = vpop.f32.mrb[0].mxu0
        %3816 = vmatprep.mubr.bf16.mxu0 0
        %3817 = vmatmul.mubr.bf16.gmra.mrb[0].mxu0 %v3746
        %v3818 = vpop.f32.mrb[0].mxu0
        %v3819 = vadd.f32 %v3710, %v3818
        %v3820 = vpop.f32.mrb[0].mxu0
        %v3821 = vpop.f32.mrb[0].mxu0
        %v3822 = vadd.f32 %v3710, %v3821
        %v3823 = vpop.f32.mrb[0].mxu0
        %3824 = vmatprep.mubr.bf16.mxu0 0
        %3825 = vmatmul.mubr.bf16.gmra.mrb[0].mxu0 %v3749
        %v3826 = vpop.f32.mrb[0].mxu0
        %v3827 = vadd.f32 %v3710, %v3826
        %v3828 = vpop.f32.mrb[0].mxu0
        %v3829 = vpop.f32.mrb[0].mxu0
        %v3830 = vadd.f32 %v3710, %v3829
        %v3831 = vpop.f32.mrb[0].mxu0
        %3832 = vmatprep.mubr.bf16.mxu0 0
        %3833 = vmatmul.mubr.bf16.gmra.mrb[0].mxu0 %v3752
        %v3834 = vpop.f32.mrb[0].mxu0
        %v3835 = vadd.f32 %v3710, %v3834
        %v3836 = vpop.f32.mrb[0].mxu0
        %v3837 = vpop.f32.mrb[0].mxu0
        %v3838 = vadd.f32 %v3710, %v3837
        %v3839 = vpop.f32.mrb[0].mxu0
        %3840 = vmatprep.mubr.bf16.mxu0 0
        %3841 = vmatmul.mubr.bf16.gmra.mrb[0].mxu0 %v3755
        %v3842 = vpop.f32.mrb[0].mxu0
        %v3843 = vadd.f32 %v3710, %v3842
        %v3844 = vpop.f32.mrb[0].mxu0
        %v3845 = vpop.f32.mrb[0].mxu0
        %v3846 = vadd.f32 %v3710, %v3845
        %v3847 = vpop.f32.mrb[0].mxu0
        %3848 = vmatprep.mubr.bf16.mxu0 0
        %3849 = vmatmul.mubr.bf16.gmra.mrb[0].mxu0 %v3758
        %v3850 = vpop.f32.mrb[0].mxu0
        %v3851 = vadd.f32 %v3710, %v3850
        %v3852 = vpop.f32.mrb[0].mxu0
        %v3853 = vpop.f32.mrb[0].mxu0
        %v3854 = vadd.f32 %v3710, %v3853
        %v3855 = vpop.f32.mrb[0].mxu0
        %3856 = vdwg.mxu0
        %v3857 = vmax.f32 %v3795, 0.0
        %v3858 = vmax.f32 %v3798, 0.0
        %v3859 = vmax.f32 %v3803, 0.0
        %v3860 = vmax.f32 %v3806, 0.0
        %v3861 = vmax.f32 %v3811, 0.0
        %v3862 = vmax.f32 %v3814, 0.0
        %v3863 = vmax.f32 %v3819, 0.0
        %v3864 = vmax.f32 %v3822, 0.0
        %v3865 = vmax.f32 %v3827, 0.0
        %v3866 = vmax.f32 %v3830, 0.0
        %v3867 = vmax.f32 %v3835, 0.0
        %v3868 = vmax.f32 %v3838, 0.0
        %v3869 = vmax.f32 %v3843, 0.0
        %v3870 = vmax.f32 %v3846, 0.0
        %v3871 = vmax.f32 %v3851, 0.0
        %v3872 = vmax.f32 %v3854, 0.0
        %v3873 = vpack.c.bf16 %v3858, %v3857
        %v3874 = vpack.c.bf16 %v3860, %v3859
        %v3875 = vpack.c.bf16 %v3862, %v3861
        %v3876 = vpack.c.bf16 %v3864, %v3863
        %v3877 = vpack.c.bf16 %v3866, %v3865
        %v3878 = vpack.c.bf16 %v3868, %v3867
        %v3879 = vpack.c.bf16 %v3870, %v3869
        %v3880 = vpack.c.bf16 %v3872, %v3871
        %s3881 = scalar_lea.vmem [#allocation2], 576
        %v3882 = vld [vmem:[%s3881] sm:$0xf]
        %v3883 = vld [vmem:[%s3881 + $0x4] sm:$0xf]
        %v3884 = vld [vmem:[%s3881 + $0x8] sm:$0xf]
        %v3885 = vld [vmem:[%s3881 + $0xc] sm:$0xf]
        %v3886 = vld [vmem:[%s3881 + $0x10] sm:$0xf]
        %v3887 = vld [vmem:[%s3881 + $0x14] sm:$0xf]
        %v3888 = vld [vmem:[%s3881 + $0x18] sm:$0xf]
        %v3889 = vld [vmem:[%s3881 + $0x1c] sm:$0xf]
        %s3890 = scalar_lea.vmem %s4, 18
        %v3891 = vld [vmem:[%s3890] sm:$0x1]
        %v3893 = vlaneseq
        %v3894 = vshrl.u32 %v3893, 7
        %v3895 = vsub.s32 0, %v3894
        %v3896 = vrot.slane %v3891, %v3895
        %v3906 = vunpack.c.l.b16 %v3882
        %v3907 = vunpack.c.l.b16 %v3883
        %v3908 = vunpack.c.l.b16 %v3884
        %v3909 = vunpack.c.l.b16 %v3885
        %v3910 = vunpack.c.l.b16 %v3886
        %v3911 = vunpack.c.l.b16 %v3887
        %v3912 = vunpack.c.l.b16 %v3888
        %v3913 = vunpack.c.l.b16 %v3889
        %v3914 = vpack.c.b16 %v3907, %v3906
        %v3915 = vpack.c.b16 %v3909, %v3908
        %v3916 = vpack.c.b16 %v3911, %v3910
        %v3917 = vpack.c.b16 %v3913, %v3912
        %v3923 = vsel %vm573, %v3873, 0
        %v3926 = vsel %vm573, %v3874, 0
        %v3929 = vsel %vm573, %v3875, 0
        %v3932 = vsel %vm573, %v3876, 0
        %v3935 = vsel %vm573, %v3877, 0
        %v3938 = vsel %vm573, %v3878, 0
        %v3941 = vsel %vm573, %v3879, 0
        %v3944 = vsel %vm573, %v3880, 0
        %3946 = vmatprep.subr.bf16.mxu0 0
        %3947 = vmatpush1.bf16.msra.mxu0 %v3914
        %3948 = vmatprep.subr.bf16.mxu0 0
        %3949 = vmatpush1.bf16.msra.mxu0 %v3915
        %3950 = vmatprep.subr.bf16.mxu0 0
        %3951 = vmatpush1.bf16.msra.mxu0 %v3916
        %3952 = vmatprep.subr.bf16.mxu0 0
        %3953 = vmatpush1.bf16.msra.mxu0 %v3917
        %3954 = vmatprep.subr.bf16.mxu0 0
        %3955 = vmatpush1.bf16.msra.mxu0 0
        %3956 = vmatprep.subr.bf16.mxu0 0
        %3957 = vmatpush1.bf16.msra.mxu0 0
        %3958 = vmatprep.subr.bf16.mxu0 0
        %3959 = vmatpush1.bf16.msra.mxu0 0
        %3960 = vmatprep.subr.bf16.mxu0 0
        %3961 = vmatpush1.bf16.msra.mxu0 0
        %3962 = vmatprep.subr.bf16.mxu0 0
        %3963 = vmatpush1.bf16.msra.mxu0 0
        %3964 = vmatprep.subr.bf16.mxu0 0
        %3965 = vmatpush1.bf16.msra.mxu0 0
        %3966 = vmatprep.subr.bf16.mxu0 0
        %3967 = vmatpush1.bf16.msra.mxu0 0
        %3968 = vmatprep.subr.bf16.mxu0 0
        %3969 = vmatpush1.bf16.msra.mxu0 0
        %3970 = vmatprep.subr.bf16.mxu0 0
        %3971 = vmatpush1.bf16.msra.mxu0 0
        %3972 = vmatprep.subr.bf16.mxu0 0
        %3973 = vmatpush1.bf16.msra.mxu0 0
        %3974 = vmatprep.subr.bf16.mxu0 0
        %3975 = vmatpush1.bf16.msra.mxu0 0
        %3976 = vmatprep.subr.bf16.mxu0 0
        %3977 = vmatpush1.bf16.msra.mxu0 0
        %3978 = vmatprep.mubr.bf16.mxu0 0
        %3979 = vmatmul.mubr.bf16.gmra.mrb[0].mxu0 %v3923
        %v3980 = vpop.f32.mrb[0].mxu0
        %v3981 = vadd.f32 %v3896, %v3980
        %v3982 = vpop.f32.mrb[0].mxu0
        %v3983 = vpop.f32.mrb[0].mxu0
        %v3984 = vadd.f32 %v3896, %v3983
        %v3985 = vpop.f32.mrb[0].mxu0
        %3986 = vmatprep.mubr.bf16.mxu0 0
        %3987 = vmatmul.mubr.bf16.gmra.mrb[0].mxu0 %v3926
        %v3988 = vpop.f32.mrb[0].mxu0
        %v3989 = vadd.f32 %v3896, %v3988
        %v3990 = vpop.f32.mrb[0].mxu0
        %v3991 = vpop.f32.mrb[0].mxu0
        %v3992 = vadd.f32 %v3896, %v3991
        %v3993 = vpop.f32.mrb[0].mxu0
        %3994 = vmatprep.mubr.bf16.mxu0 0
        %3995 = vmatmul.mubr.bf16.gmra.mrb[0].mxu0 %v3929
        %v3996 = vpop.f32.mrb[0].mxu0
        %v3997 = vadd.f32 %v3896, %v3996
        %v3998 = vpop.f32.mrb[0].mxu0
        %v3999 = vpop.f32.mrb[0].mxu0
        %v4000 = vadd.f32 %v3896, %v3999
        %v4001 = vpop.f32.mrb[0].mxu0
        %4002 = vmatprep.mubr.bf16.mxu0 0
        %4003 = vmatmul.mubr.bf16.gmra.mrb[0].mxu0 %v3932
        %v4004 = vpop.f32.mrb[0].mxu0
        %v4005 = vadd.f32 %v3896, %v4004
        %v4006 = vpop.f32.mrb[0].mxu0
        %v4007 = vpop.f32.mrb[0].mxu0
        %v4008 = vadd.f32 %v3896, %v4007
        %v4009 = vpop.f32.mrb[0].mxu0
        %4010 = vmatprep.mubr.bf16.mxu0 0
        %4011 = vmatmul.mubr.bf16.gmra.mrb[0].mxu0 %v3935
        %v4012 = vpop.f32.mrb[0].mxu0
        %v4013 = vadd.f32 %v3896, %v4012
        %v4014 = vpop.f32.mrb[0].mxu0
        %v4015 = vpop.f32.mrb[0].mxu0
        %v4016 = vadd.f32 %v3896, %v4015
        %v4017 = vpop.f32.mrb[0].mxu0
        %4018 = vmatprep.mubr.bf16.mxu0 0
        %4019 = vmatmul.mubr.bf16.gmra.mrb[0].mxu0 %v3938
        %v4020 = vpop.f32.mrb[0].mxu0
        %v4021 = vadd.f32 %v3896, %v4020
        %v4022 = vpop.f32.mrb[0].mxu0
        %v4023 = vpop.f32.mrb[0].mxu0
        %v4024 = vadd.f32 %v3896, %v4023
        %v4025 = vpop.f32.mrb[0].mxu0
        %4026 = vmatprep.mubr.bf16.mxu0 0
        %4027 = vmatmul.mubr.bf16.gmra.mrb[0].mxu0 %v3941
        %v4028 = vpop.f32.mrb[0].mxu0
        %v4029 = vadd.f32 %v3896, %v4028
        %v4030 = vpop.f32.mrb[0].mxu0
        %v4031 = vpop.f32.mrb[0].mxu0
        %v4032 = vadd.f32 %v3896, %v4031
        %v4033 = vpop.f32.mrb[0].mxu0
        %4034 = vmatprep.mubr.bf16.mxu0 0
        %4035 = vmatmul.mubr.bf16.gmra.mrb[0].mxu0 %v3944
        %v4036 = vpop.f32.mrb[0].mxu0
        %v4037 = vadd.f32 %v3896, %v4036
        %v4038 = vpop.f32.mrb[0].mxu0
        %v4039 = vpop.f32.mrb[0].mxu0
        %v4040 = vadd.f32 %v3896, %v4039
        %v4041 = vpop.f32.mrb[0].mxu0
        %4042 = vdwg.mxu0
        %v4043 = vmax.f32 %v3981, 0.0
        %v4044 = vmax.f32 %v3984, 0.0
        %v4045 = vmax.f32 %v3989, 0.0
        %v4046 = vmax.f32 %v3992, 0.0
        %v4047 = vmax.f32 %v3997, 0.0
        %v4048 = vmax.f32 %v4000, 0.0
        %v4049 = vmax.f32 %v4005, 0.0
        %v4050 = vmax.f32 %v4008, 0.0
        %v4051 = vmax.f32 %v4013, 0.0
        %v4052 = vmax.f32 %v4016, 0.0
        %v4053 = vmax.f32 %v4021, 0.0
        %v4054 = vmax.f32 %v4024, 0.0
        %v4055 = vmax.f32 %v4029, 0.0
        %v4056 = vmax.f32 %v4032, 0.0
        %v4057 = vmax.f32 %v4037, 0.0
        %v4058 = vmax.f32 %v4040, 0.0
        %v4059 = vpack.c.bf16 %v4044, %v4043
        %v4060 = vpack.c.bf16 %v4046, %v4045
        %v4061 = vpack.c.bf16 %v4048, %v4047
        %v4062 = vpack.c.bf16 %v4050, %v4049
        %v4063 = vpack.c.bf16 %v4052, %v4051
        %v4064 = vpack.c.bf16 %v4054, %v4053
        %v4065 = vpack.c.bf16 %v4056, %v4055
        %v4066 = vpack.c.bf16 %v4058, %v4057
        %s4067 = scalar_lea.vmem [#allocation2], 608
        %v4068 = vld [vmem:[%s4067] sm:$0xf]
        %v4069 = vld [vmem:[%s4067 + $0x4] sm:$0xf]
        %v4070 = vld [vmem:[%s4067 + $0x8] sm:$0xf]
        %v4071 = vld [vmem:[%s4067 + $0xc] sm:$0xf]
        %v4072 = vld [vmem:[%s4067 + $0x10] sm:$0xf]
        %v4073 = vld [vmem:[%s4067 + $0x14] sm:$0xf]
        %v4074 = vld [vmem:[%s4067 + $0x18] sm:$0xf]
        %v4075 = vld [vmem:[%s4067 + $0x1c] sm:$0xf]
        %s4076 = scalar_lea.vmem %s4, 19
        %v4077 = vld [vmem:[%s4076] sm:$0x1]
        %v4079 = vlaneseq
        %v4080 = vshrl.u32 %v4079, 7
        %v4081 = vsub.s32 0, %v4080
        %v4082 = vrot.slane %v4077, %v4081
        %v4092 = vunpack.c.l.b16 %v4068
        %v4093 = vunpack.c.l.b16 %v4069
        %v4094 = vunpack.c.l.b16 %v4070
        %v4095 = vunpack.c.l.b16 %v4071
        %v4096 = vunpack.c.l.b16 %v4072
        %v4097 = vunpack.c.l.b16 %v4073
        %v4098 = vunpack.c.l.b16 %v4074
        %v4099 = vunpack.c.l.b16 %v4075
        %v4100 = vpack.c.b16 %v4093, %v4092
        %v4101 = vpack.c.b16 %v4095, %v4094
        %v4102 = vpack.c.b16 %v4097, %v4096
        %v4103 = vpack.c.b16 %v4099, %v4098
        %v4109 = vsel %vm573, %v4059, 0
        %v4112 = vsel %vm573, %v4060, 0
        %v4115 = vsel %vm573, %v4061, 0
        %v4118 = vsel %vm573, %v4062, 0
        %v4121 = vsel %vm573, %v4063, 0
        %v4124 = vsel %vm573, %v4064, 0
        %v4127 = vsel %vm573, %v4065, 0
        %v4130 = vsel %vm573, %v4066, 0
        %4132 = vmatprep.subr.bf16.mxu0 0
        %4133 = vmatpush1.bf16.msra.mxu0 %v4100
        %4134 = vmatprep.subr.bf16.mxu0 0
        %4135 = vmatpush1.bf16.msra.mxu0 %v4101
        %4136 = vmatprep.subr.bf16.mxu0 0
        %4137 = vmatpush1.bf16.msra.mxu0 %v4102
        %4138 = vmatprep.subr.bf16.mxu0 0
        %4139 = vmatpush1.bf16.msra.mxu0 %v4103
        %4140 = vmatprep.subr.bf16.mxu0 0
        %4141 = vmatpush1.bf16.msra.mxu0 0
        %4142 = vmatprep.subr.bf16.mxu0 0
        %4143 = vmatpush1.bf16.msra.mxu0 0
        %4144 = vmatprep.subr.bf16.mxu0 0
        %4145 = vmatpush1.bf16.msra.mxu0 0
        %4146 = vmatprep.subr.bf16.mxu0 0
        %4147 = vmatpush1.bf16.msra.mxu0 0
        %4148 = vmatprep.subr.bf16.mxu0 0
        %4149 = vmatpush1.bf16.msra.mxu0 0
        %4150 = vmatprep.subr.bf16.mxu0 0
        %4151 = vmatpush1.bf16.msra.mxu0 0
        %4152 = vmatprep.subr.bf16.mxu0 0
        %4153 = vmatpush1.bf16.msra.mxu0 0
        %4154 = vmatprep.subr.bf16.mxu0 0
        %4155 = vmatpush1.bf16.msra.mxu0 0
        %4156 = vmatprep.subr.bf16.mxu0 0
        %4157 = vmatpush1.bf16.msra.mxu0 0
        %4158 = vmatprep.subr.bf16.mxu0 0
        %4159 = vmatpush1.bf16.msra.mxu0 0
        %4160 = vmatprep.subr.bf16.mxu0 0
        %4161 = vmatpush1.bf16.msra.mxu0 0
        %4162 = vmatprep.subr.bf16.mxu0 0
        %4163 = vmatpush1.bf16.msra.mxu0 0
        %4164 = vmatprep.mubr.bf16.mxu0 0
        %4165 = vmatmul.mubr.bf16.gmra.mrb[0].mxu0 %v4109
        %v4166 = vpop.f32.mrb[0].mxu0
        %v4167 = vadd.f32 %v4082, %v4166
        %v4168 = vpop.f32.mrb[0].mxu0
        %v4169 = vpop.f32.mrb[0].mxu0
        %v4170 = vadd.f32 %v4082, %v4169
        %v4171 = vpop.f32.mrb[0].mxu0
        %4172 = vmatprep.mubr.bf16.mxu0 0
        %4173 = vmatmul.mubr.bf16.gmra.mrb[0].mxu0 %v4112
        %v4174 = vpop.f32.mrb[0].mxu0
        %v4175 = vadd.f32 %v4082, %v4174
        %v4176 = vpop.f32.mrb[0].mxu0
        %v4177 = vpop.f32.mrb[0].mxu0
        %v4178 = vadd.f32 %v4082, %v4177
        %v4179 = vpop.f32.mrb[0].mxu0
        %4180 = vmatprep.mubr.bf16.mxu0 0
        %4181 = vmatmul.mubr.bf16.gmra.mrb[0].mxu0 %v4115
        %v4182 = vpop.f32.mrb[0].mxu0
        %v4183 = vadd.f32 %v4082, %v4182
        %v4184 = vpop.f32.mrb[0].mxu0
        %v4185 = vpop.f32.mrb[0].mxu0
        %v4186 = vadd.f32 %v4082, %v4185
        %v4187 = vpop.f32.mrb[0].mxu0
        %4188 = vmatprep.mubr.bf16.mxu0 0
        %4189 = vmatmul.mubr.bf16.gmra.mrb[0].mxu0 %v4118
        %v4190 = vpop.f32.mrb[0].mxu0
        %v4191 = vadd.f32 %v4082, %v4190
        %v4192 = vpop.f32.mrb[0].mxu0
        %v4193 = vpop.f32.mrb[0].mxu0
        %v4194 = vadd.f32 %v4082, %v4193
        %v4195 = vpop.f32.mrb[0].mxu0
        %4196 = vmatprep.mubr.bf16.mxu0 0
        %4197 = vmatmul.mubr.bf16.gmra.mrb[0].mxu0 %v4121
        %v4198 = vpop.f32.mrb[0].mxu0
        %v4199 = vadd.f32 %v4082, %v4198
        %v4200 = vpop.f32.mrb[0].mxu0
        %v4201 = vpop.f32.mrb[0].mxu0
        %v4202 = vadd.f32 %v4082, %v4201
        %v4203 = vpop.f32.mrb[0].mxu0
        %4204 = vmatprep.mubr.bf16.mxu0 0
        %4205 = vmatmul.mubr.bf16.gmra.mrb[0].mxu0 %v4124
        %v4206 = vpop.f32.mrb[0].mxu0
        %v4207 = vadd.f32 %v4082, %v4206
        %v4208 = vpop.f32.mrb[0].mxu0
        %v4209 = vpop.f32.mrb[0].mxu0
        %v4210 = vadd.f32 %v4082, %v4209
        %v4211 = vpop.f32.mrb[0].mxu0
        %4212 = vmatprep.mubr.bf16.mxu0 0
        %4213 = vmatmul.mubr.bf16.gmra.mrb[0].mxu0 %v4127
        %v4214 = vpop.f32.mrb[0].mxu0
        %v4215 = vadd.f32 %v4082, %v4214
        %v4216 = vpop.f32.mrb[0].mxu0
        %v4217 = vpop.f32.mrb[0].mxu0
        %v4218 = vadd.f32 %v4082, %v4217
        %v4219 = vpop.f32.mrb[0].mxu0
        %4220 = vmatprep.mubr.bf16.mxu0 0
        %4221 = vmatmul.mubr.bf16.gmra.mrb[0].mxu0 %v4130
        %v4222 = vpop.f32.mrb[0].mxu0
        %v4223 = vadd.f32 %v4082, %v4222
        %v4224 = vpop.f32.mrb[0].mxu0
        %v4225 = vpop.f32.mrb[0].mxu0
        %v4226 = vadd.f32 %v4082, %v4225
        %v4227 = vpop.f32.mrb[0].mxu0
        %4228 = vdwg.mxu0
        %v4229 = vmax.f32 %v4167, 0.0
        %v4230 = vmax.f32 %v4170, 0.0
        %v4231 = vmax.f32 %v4175, 0.0
        %v4232 = vmax.f32 %v4178, 0.0
        %v4233 = vmax.f32 %v4183, 0.0
        %v4234 = vmax.f32 %v4186, 0.0
        %v4235 = vmax.f32 %v4191, 0.0
        %v4236 = vmax.f32 %v4194, 0.0
        %v4237 = vmax.f32 %v4199, 0.0
        %v4238 = vmax.f32 %v4202, 0.0
        %v4239 = vmax.f32 %v4207, 0.0
        %v4240 = vmax.f32 %v4210, 0.0
        %v4241 = vmax.f32 %v4215, 0.0
        %v4242 = vmax.f32 %v4218, 0.0
        %v4243 = vmax.f32 %v4223, 0.0
        %v4244 = vmax.f32 %v4226, 0.0
        %v4245 = vpack.c.bf16 %v4230, %v4229
        %v4246 = vpack.c.bf16 %v4232, %v4231
        %v4247 = vpack.c.bf16 %v4234, %v4233
        %v4248 = vpack.c.bf16 %v4236, %v4235
        %v4249 = vpack.c.bf16 %v4238, %v4237
        %v4250 = vpack.c.bf16 %v4240, %v4239
        %v4251 = vpack.c.bf16 %v4242, %v4241
        %v4252 = vpack.c.bf16 %v4244, %v4243
        %s4253 = scalar_lea.vmem [#allocation2], 640
        %v4254 = vld [vmem:[%s4253] sm:$0xf]
        %v4255 = vld [vmem:[%s4253 + $0x4] sm:$0xf]
        %v4256 = vld [vmem:[%s4253 + $0x8] sm:$0xf]
        %v4257 = vld [vmem:[%s4253 + $0xc] sm:$0xf]
        %v4258 = vld [vmem:[%s4253 + $0x10] sm:$0xf]
        %v4259 = vld [vmem:[%s4253 + $0x14] sm:$0xf]
        %v4260 = vld [vmem:[%s4253 + $0x18] sm:$0xf]
        %v4261 = vld [vmem:[%s4253 + $0x1c] sm:$0xf]
        %s4262 = scalar_lea.vmem %s4, 20
        %v4263 = vld [vmem:[%s4262] sm:$0x1]
        %v4265 = vlaneseq
        %v4266 = vshrl.u32 %v4265, 7
        %v4267 = vsub.s32 0, %v4266
        %v4268 = vrot.slane %v4263, %v4267
        %v4278 = vunpack.c.l.b16 %v4254
        %v4279 = vunpack.c.l.b16 %v4255
        %v4280 = vunpack.c.l.b16 %v4256
        %v4281 = vunpack.c.l.b16 %v4257
        %v4282 = vunpack.c.l.b16 %v4258
        %v4283 = vunpack.c.l.b16 %v4259
        %v4284 = vunpack.c.l.b16 %v4260
        %v4285 = vunpack.c.l.b16 %v4261
        %v4286 = vpack.c.b16 %v4279, %v4278
        %v4287 = vpack.c.b16 %v4281, %v4280
        %v4288 = vpack.c.b16 %v4283, %v4282
        %v4289 = vpack.c.b16 %v4285, %v4284
        %v4295 = vsel %vm573, %v4245, 0
        %v4298 = vsel %vm573, %v4246, 0
        %v4301 = vsel %vm573, %v4247, 0
        %v4304 = vsel %vm573, %v4248, 0
        %v4307 = vsel %vm573, %v4249, 0
        %v4310 = vsel %vm573, %v4250, 0
        %v4313 = vsel %vm573, %v4251, 0
        %v4316 = vsel %vm573, %v4252, 0
        %4318 = vmatprep.subr.bf16.mxu0 0
        %4319 = vmatpush1.bf16.msra.mxu0 %v4286
        %4320 = vmatprep.subr.bf16.mxu0 0
        %4321 = vmatpush1.bf16.msra.mxu0 %v4287
        %4322 = vmatprep.subr.bf16.mxu0 0
        %4323 = vmatpush1.bf16.msra.mxu0 %v4288
        %4324 = vmatprep.subr.bf16.mxu0 0
        %4325 = vmatpush1.bf16.msra.mxu0 %v4289
        %4326 = vmatprep.subr.bf16.mxu0 0
        %4327 = vmatpush1.bf16.msra.mxu0 0
        %4328 = vmatprep.subr.bf16.mxu0 0
        %4329 = vmatpush1.bf16.msra.mxu0 0
        %4330 = vmatprep.subr.bf16.mxu0 0
        %4331 = vmatpush1.bf16.msra.mxu0 0
        %4332 = vmatprep.subr.bf16.mxu0 0
        %4333 = vmatpush1.bf16.msra.mxu0 0
        %4334 = vmatprep.subr.bf16.mxu0 0
        %4335 = vmatpush1.bf16.msra.mxu0 0
        %4336 = vmatprep.subr.bf16.mxu0 0
        %4337 = vmatpush1.bf16.msra.mxu0 0
        %4338 = vmatprep.subr.bf16.mxu0 0
        %4339 = vmatpush1.bf16.msra.mxu0 0
        %4340 = vmatprep.subr.bf16.mxu0 0
        %4341 = vmatpush1.bf16.msra.mxu0 0
        %4342 = vmatprep.subr.bf16.mxu0 0
        %4343 = vmatpush1.bf16.msra.mxu0 0
        %4344 = vmatprep.subr.bf16.mxu0 0
        %4345 = vmatpush1.bf16.msra.mxu0 0
        %4346 = vmatprep.subr.bf16.mxu0 0
        %4347 = vmatpush1.bf16.msra.mxu0 0
        %4348 = vmatprep.subr.bf16.mxu0 0
        %4349 = vmatpush1.bf16.msra.mxu0 0
        %4350 = vmatprep.mubr.bf16.mxu0 0
        %4351 = vmatmul.mubr.bf16.gmra.mrb[0].mxu0 %v4295
        %v4352 = vpop.f32.mrb[0].mxu0
        %v4353 = vadd.f32 %v4268, %v4352
        %v4354 = vpop.f32.mrb[0].mxu0
        %v4355 = vpop.f32.mrb[0].mxu0
        %v4356 = vadd.f32 %v4268, %v4355
        %v4357 = vpop.f32.mrb[0].mxu0
        %4358 = vmatprep.mubr.bf16.mxu0 0
        %4359 = vmatmul.mubr.bf16.gmra.mrb[0].mxu0 %v4298
        %v4360 = vpop.f32.mrb[0].mxu0
        %v4361 = vadd.f32 %v4268, %v4360
        %v4362 = vpop.f32.mrb[0].mxu0
        %v4363 = vpop.f32.mrb[0].mxu0
        %v4364 = vadd.f32 %v4268, %v4363
        %v4365 = vpop.f32.mrb[0].mxu0
        %4366 = vmatprep.mubr.bf16.mxu0 0
        %4367 = vmatmul.mubr.bf16.gmra.mrb[0].mxu0 %v4301
        %v4368 = vpop.f32.mrb[0].mxu0
        %v4369 = vadd.f32 %v4268, %v4368
        %v4370 = vpop.f32.mrb[0].mxu0
        %v4371 = vpop.f32.mrb[0].mxu0
        %v4372 = vadd.f32 %v4268, %v4371
        %v4373 = vpop.f32.mrb[0].mxu0
        %4374 = vmatprep.mubr.bf16.mxu0 0
        %4375 = vmatmul.mubr.bf16.gmra.mrb[0].mxu0 %v4304
        %v4376 = vpop.f32.mrb[0].mxu0
        %v4377 = vadd.f32 %v4268, %v4376
        %v4378 = vpop.f32.mrb[0].mxu0
        %v4379 = vpop.f32.mrb[0].mxu0
        %v4380 = vadd.f32 %v4268, %v4379
        %v4381 = vpop.f32.mrb[0].mxu0
        %4382 = vmatprep.mubr.bf16.mxu0 0
        %4383 = vmatmul.mubr.bf16.gmra.mrb[0].mxu0 %v4307
        %v4384 = vpop.f32.mrb[0].mxu0
        %v4385 = vadd.f32 %v4268, %v4384
        %v4386 = vpop.f32.mrb[0].mxu0
        %v4387 = vpop.f32.mrb[0].mxu0
        %v4388 = vadd.f32 %v4268, %v4387
        %v4389 = vpop.f32.mrb[0].mxu0
        %4390 = vmatprep.mubr.bf16.mxu0 0
        %4391 = vmatmul.mubr.bf16.gmra.mrb[0].mxu0 %v4310
        %v4392 = vpop.f32.mrb[0].mxu0
        %v4393 = vadd.f32 %v4268, %v4392
        %v4394 = vpop.f32.mrb[0].mxu0
        %v4395 = vpop.f32.mrb[0].mxu0
        %v4396 = vadd.f32 %v4268, %v4395
        %v4397 = vpop.f32.mrb[0].mxu0
        %4398 = vmatprep.mubr.bf16.mxu0 0
        %4399 = vmatmul.mubr.bf16.gmra.mrb[0].mxu0 %v4313
        %v4400 = vpop.f32.mrb[0].mxu0
        %v4401 = vadd.f32 %v4268, %v4400
        %v4402 = vpop.f32.mrb[0].mxu0
        %v4403 = vpop.f32.mrb[0].mxu0
        %v4404 = vadd.f32 %v4268, %v4403
        %v4405 = vpop.f32.mrb[0].mxu0
        %4406 = vmatprep.mubr.bf16.mxu0 0
        %4407 = vmatmul.mubr.bf16.gmra.mrb[0].mxu0 %v4316
        %v4408 = vpop.f32.mrb[0].mxu0
        %v4409 = vadd.f32 %v4268, %v4408
        %v4410 = vpop.f32.mrb[0].mxu0
        %v4411 = vpop.f32.mrb[0].mxu0
        %v4412 = vadd.f32 %v4268, %v4411
        %v4413 = vpop.f32.mrb[0].mxu0
        %4414 = vdwg.mxu0
        %v4415 = vmax.f32 %v4353, 0.0
        %v4416 = vmax.f32 %v4356, 0.0
        %v4417 = vmax.f32 %v4361, 0.0
        %v4418 = vmax.f32 %v4364, 0.0
        %v4419 = vmax.f32 %v4369, 0.0
        %v4420 = vmax.f32 %v4372, 0.0
        %v4421 = vmax.f32 %v4377, 0.0
        %v4422 = vmax.f32 %v4380, 0.0
        %v4423 = vmax.f32 %v4385, 0.0
        %v4424 = vmax.f32 %v4388, 0.0
        %v4425 = vmax.f32 %v4393, 0.0
        %v4426 = vmax.f32 %v4396, 0.0
        %v4427 = vmax.f32 %v4401, 0.0
        %v4428 = vmax.f32 %v4404, 0.0
        %v4429 = vmax.f32 %v4409, 0.0
        %v4430 = vmax.f32 %v4412, 0.0
        %v4431 = vpack.c.bf16 %v4416, %v4415
        %v4432 = vpack.c.bf16 %v4418, %v4417
        %v4433 = vpack.c.bf16 %v4420, %v4419
        %v4434 = vpack.c.bf16 %v4422, %v4421
        %v4435 = vpack.c.bf16 %v4424, %v4423
        %v4436 = vpack.c.bf16 %v4426, %v4425
        %v4437 = vpack.c.bf16 %v4428, %v4427
        %v4438 = vpack.c.bf16 %v4430, %v4429
        %s4439 = scalar_lea.vmem [#allocation2], 672
        %v4440 = vld [vmem:[%s4439] sm:$0xf]
        %v4441 = vld [vmem:[%s4439 + $0x4] sm:$0xf]
        %v4442 = vld [vmem:[%s4439 + $0x8] sm:$0xf]
        %v4443 = vld [vmem:[%s4439 + $0xc] sm:$0xf]
        %v4444 = vld [vmem:[%s4439 + $0x10] sm:$0xf]
        %v4445 = vld [vmem:[%s4439 + $0x14] sm:$0xf]
        %v4446 = vld [vmem:[%s4439 + $0x18] sm:$0xf]
        %v4447 = vld [vmem:[%s4439 + $0x1c] sm:$0xf]
        %s4448 = scalar_lea.vmem %s4, 21
        %v4449 = vld [vmem:[%s4448] sm:$0x1]
        %v4451 = vlaneseq
        %v4452 = vshrl.u32 %v4451, 7
        %v4453 = vsub.s32 0, %v4452
        %v4454 = vrot.slane %v4449, %v4453
        %v4464 = vunpack.c.l.b16 %v4440
        %v4465 = vunpack.c.l.b16 %v4441
        %v4466 = vunpack.c.l.b16 %v4442
        %v4467 = vunpack.c.l.b16 %v4443
        %v4468 = vunpack.c.l.b16 %v4444
        %v4469 = vunpack.c.l.b16 %v4445
        %v4470 = vunpack.c.l.b16 %v4446
        %v4471 = vunpack.c.l.b16 %v4447
        %v4472 = vpack.c.b16 %v4465, %v4464
        %v4473 = vpack.c.b16 %v4467, %v4466
        %v4474 = vpack.c.b16 %v4469, %v4468
        %v4475 = vpack.c.b16 %v4471, %v4470
        %v4481 = vsel %vm573, %v4431, 0
        %v4484 = vsel %vm573, %v4432, 0
        %v4487 = vsel %vm573, %v4433, 0
        %v4490 = vsel %vm573, %v4434, 0
        %v4493 = vsel %vm573, %v4435, 0
        %v4496 = vsel %vm573, %v4436, 0
        %v4499 = vsel %vm573, %v4437, 0
        %v4502 = vsel %vm573, %v4438, 0
        %4504 = vmatprep.subr.bf16.mxu0 0
        %4505 = vmatpush1.bf16.msra.mxu0 %v4472
        %4506 = vmatprep.subr.bf16.mxu0 0
        %4507 = vmatpush1.bf16.msra.mxu0 %v4473
        %4508 = vmatprep.subr.bf16.mxu0 0
        %4509 = vmatpush1.bf16.msra.mxu0 %v4474
        %4510 = vmatprep.subr.bf16.mxu0 0
        %4511 = vmatpush1.bf16.msra.mxu0 %v4475
        %4512 = vmatprep.subr.bf16.mxu0 0
        %4513 = vmatpush1.bf16.msra.mxu0 0
        %4514 = vmatprep.subr.bf16.mxu0 0
        %4515 = vmatpush1.bf16.msra.mxu0 0
        %4516 = vmatprep.subr.bf16.mxu0 0
        %4517 = vmatpush1.bf16.msra.mxu0 0
        %4518 = vmatprep.subr.bf16.mxu0 0
        %4519 = vmatpush1.bf16.msra.mxu0 0
        %4520 = vmatprep.subr.bf16.mxu0 0
        %4521 = vmatpush1.bf16.msra.mxu0 0
        %4522 = vmatprep.subr.bf16.mxu0 0
        %4523 = vmatpush1.bf16.msra.mxu0 0
        %4524 = vmatprep.subr.bf16.mxu0 0
        %4525 = vmatpush1.bf16.msra.mxu0 0
        %4526 = vmatprep.subr.bf16.mxu0 0
        %4527 = vmatpush1.bf16.msra.mxu0 0
        %4528 = vmatprep.subr.bf16.mxu0 0
        %4529 = vmatpush1.bf16.msra.mxu0 0
        %4530 = vmatprep.subr.bf16.mxu0 0
        %4531 = vmatpush1.bf16.msra.mxu0 0
        %4532 = vmatprep.subr.bf16.mxu0 0
        %4533 = vmatpush1.bf16.msra.mxu0 0
        %4534 = vmatprep.subr.bf16.mxu0 0
        %4535 = vmatpush1.bf16.msra.mxu0 0
        %4536 = vmatprep.mubr.bf16.mxu0 0
        %4537 = vmatmul.mubr.bf16.gmra.mrb[0].mxu0 %v4481
        %v4538 = vpop.f32.mrb[0].mxu0
        %v4539 = vadd.f32 %v4454, %v4538
        %v4540 = vpop.f32.mrb[0].mxu0
        %v4541 = vpop.f32.mrb[0].mxu0
        %v4542 = vadd.f32 %v4454, %v4541
        %v4543 = vpop.f32.mrb[0].mxu0
        %4544 = vmatprep.mubr.bf16.mxu0 0
        %4545 = vmatmul.mubr.bf16.gmra.mrb[0].mxu0 %v4484
        %v4546 = vpop.f32.mrb[0].mxu0
        %v4547 = vadd.f32 %v4454, %v4546
        %v4548 = vpop.f32.mrb[0].mxu0
        %v4549 = vpop.f32.mrb[0].mxu0
        %v4550 = vadd.f32 %v4454, %v4549
        %v4551 = vpop.f32.mrb[0].mxu0
        %4552 = vmatprep.mubr.bf16.mxu0 0
        %4553 = vmatmul.mubr.bf16.gmra.mrb[0].mxu0 %v4487
        %v4554 = vpop.f32.mrb[0].mxu0
        %v4555 = vadd.f32 %v4454, %v4554
        %v4556 = vpop.f32.mrb[0].mxu0
        %v4557 = vpop.f32.mrb[0].mxu0
        %v4558 = vadd.f32 %v4454, %v4557
        %v4559 = vpop.f32.mrb[0].mxu0
        %4560 = vmatprep.mubr.bf16.mxu0 0
        %4561 = vmatmul.mubr.bf16.gmra.mrb[0].mxu0 %v4490
        %v4562 = vpop.f32.mrb[0].mxu0
        %v4563 = vadd.f32 %v4454, %v4562
        %v4564 = vpop.f32.mrb[0].mxu0
        %v4565 = vpop.f32.mrb[0].mxu0
        %v4566 = vadd.f32 %v4454, %v4565
        %v4567 = vpop.f32.mrb[0].mxu0
        %4568 = vmatprep.mubr.bf16.mxu0 0
        %4569 = vmatmul.mubr.bf16.gmra.mrb[0].mxu0 %v4493
        %v4570 = vpop.f32.mrb[0].mxu0
        %v4571 = vadd.f32 %v4454, %v4570
        %v4572 = vpop.f32.mrb[0].mxu0
        %v4573 = vpop.f32.mrb[0].mxu0
        %v4574 = vadd.f32 %v4454, %v4573
        %v4575 = vpop.f32.mrb[0].mxu0
        %4576 = vmatprep.mubr.bf16.mxu0 0
        %4577 = vmatmul.mubr.bf16.gmra.mrb[0].mxu0 %v4496
        %v4578 = vpop.f32.mrb[0].mxu0
        %v4579 = vadd.f32 %v4454, %v4578
        %v4580 = vpop.f32.mrb[0].mxu0
        %v4581 = vpop.f32.mrb[0].mxu0
        %v4582 = vadd.f32 %v4454, %v4581
        %v4583 = vpop.f32.mrb[0].mxu0
        %4584 = vmatprep.mubr.bf16.mxu0 0
        %4585 = vmatmul.mubr.bf16.gmra.mrb[0].mxu0 %v4499
        %v4586 = vpop.f32.mrb[0].mxu0
        %v4587 = vadd.f32 %v4454, %v4586
        %v4588 = vpop.f32.mrb[0].mxu0
        %v4589 = vpop.f32.mrb[0].mxu0
        %v4590 = vadd.f32 %v4454, %v4589
        %v4591 = vpop.f32.mrb[0].mxu0
        %4592 = vmatprep.mubr.bf16.mxu0 0
        %4593 = vmatmul.mubr.bf16.gmra.mrb[0].mxu0 %v4502
        %v4594 = vpop.f32.mrb[0].mxu0
        %v4595 = vadd.f32 %v4454, %v4594
        %v4596 = vpop.f32.mrb[0].mxu0
        %v4597 = vpop.f32.mrb[0].mxu0
        %v4598 = vadd.f32 %v4454, %v4597
        %v4599 = vpop.f32.mrb[0].mxu0
        %4600 = vdwg.mxu0
        %v4601 = vmax.f32 %v4539, 0.0
        %v4602 = vmax.f32 %v4542, 0.0
        %v4603 = vmax.f32 %v4547, 0.0
        %v4604 = vmax.f32 %v4550, 0.0
        %v4605 = vmax.f32 %v4555, 0.0
        %v4606 = vmax.f32 %v4558, 0.0
        %v4607 = vmax.f32 %v4563, 0.0
        %v4608 = vmax.f32 %v4566, 0.0
        %v4609 = vmax.f32 %v4571, 0.0
        %v4610 = vmax.f32 %v4574, 0.0
        %v4611 = vmax.f32 %v4579, 0.0
        %v4612 = vmax.f32 %v4582, 0.0
        %v4613 = vmax.f32 %v4587, 0.0
        %v4614 = vmax.f32 %v4590, 0.0
        %v4615 = vmax.f32 %v4595, 0.0
        %v4616 = vmax.f32 %v4598, 0.0
        %v4617 = vpack.c.bf16 %v4602, %v4601
        %v4618 = vpack.c.bf16 %v4604, %v4603
        %v4619 = vpack.c.bf16 %v4606, %v4605
        %v4620 = vpack.c.bf16 %v4608, %v4607
        %v4621 = vpack.c.bf16 %v4610, %v4609
        %v4622 = vpack.c.bf16 %v4612, %v4611
        %v4623 = vpack.c.bf16 %v4614, %v4613
        %v4624 = vpack.c.bf16 %v4616, %v4615
        %s4625 = scalar_lea.vmem [#allocation2], 704
        %v4626 = vld [vmem:[%s4625] sm:$0xf]
        %v4627 = vld [vmem:[%s4625 + $0x4] sm:$0xf]
        %v4628 = vld [vmem:[%s4625 + $0x8] sm:$0xf]
        %v4629 = vld [vmem:[%s4625 + $0xc] sm:$0xf]
        %v4630 = vld [vmem:[%s4625 + $0x10] sm:$0xf]
        %v4631 = vld [vmem:[%s4625 + $0x14] sm:$0xf]
        %v4632 = vld [vmem:[%s4625 + $0x18] sm:$0xf]
        %v4633 = vld [vmem:[%s4625 + $0x1c] sm:$0xf]
        %s4634 = scalar_lea.vmem %s4, 22
        %v4635 = vld [vmem:[%s4634] sm:$0x1]
        %v4637 = vlaneseq
        %v4638 = vshrl.u32 %v4637, 7
        %v4639 = vsub.s32 0, %v4638
        %v4640 = vrot.slane %v4635, %v4639
        %v4650 = vunpack.c.l.b16 %v4626
        %v4651 = vunpack.c.l.b16 %v4627
        %v4652 = vunpack.c.l.b16 %v4628
        %v4653 = vunpack.c.l.b16 %v4629
        %v4654 = vunpack.c.l.b16 %v4630
        %v4655 = vunpack.c.l.b16 %v4631
        %v4656 = vunpack.c.l.b16 %v4632
        %v4657 = vunpack.c.l.b16 %v4633
        %v4658 = vpack.c.b16 %v4651, %v4650
        %v4659 = vpack.c.b16 %v4653, %v4652
        %v4660 = vpack.c.b16 %v4655, %v4654
        %v4661 = vpack.c.b16 %v4657, %v4656
        %v4667 = vsel %vm573, %v4617, 0
        %v4670 = vsel %vm573, %v4618, 0
        %v4673 = vsel %vm573, %v4619, 0
        %v4676 = vsel %vm573, %v4620, 0
        %v4679 = vsel %vm573, %v4621, 0
        %v4682 = vsel %vm573, %v4622, 0
        %v4685 = vsel %vm573, %v4623, 0
        %v4688 = vsel %vm573, %v4624, 0
        %4690 = vmatprep.subr.bf16.mxu0 0
        %4691 = vmatpush1.bf16.msra.mxu0 %v4658
        %4692 = vmatprep.subr.bf16.mxu0 0
        %4693 = vmatpush1.bf16.msra.mxu0 %v4659
        %4694 = vmatprep.subr.bf16.mxu0 0
        %4695 = vmatpush1.bf16.msra.mxu0 %v4660
        %4696 = vmatprep.subr.bf16.mxu0 0
        %4697 = vmatpush1.bf16.msra.mxu0 %v4661
        %4698 = vmatprep.subr.bf16.mxu0 0
        %4699 = vmatpush1.bf16.msra.mxu0 0
        %4700 = vmatprep.subr.bf16.mxu0 0
        %4701 = vmatpush1.bf16.msra.mxu0 0
        %4702 = vmatprep.subr.bf16.mxu0 0
        %4703 = vmatpush1.bf16.msra.mxu0 0
        %4704 = vmatprep.subr.bf16.mxu0 0
        %4705 = vmatpush1.bf16.msra.mxu0 0
        %4706 = vmatprep.subr.bf16.mxu0 0
        %4707 = vmatpush1.bf16.msra.mxu0 0
        %4708 = vmatprep.subr.bf16.mxu0 0
        %4709 = vmatpush1.bf16.msra.mxu0 0
        %4710 = vmatprep.subr.bf16.mxu0 0
        %4711 = vmatpush1.bf16.msra.mxu0 0
        %4712 = vmatprep.subr.bf16.mxu0 0
        %4713 = vmatpush1.bf16.msra.mxu0 0
        %4714 = vmatprep.subr.bf16.mxu0 0
        %4715 = vmatpush1.bf16.msra.mxu0 0
        %4716 = vmatprep.subr.bf16.mxu0 0
        %4717 = vmatpush1.bf16.msra.mxu0 0
        %4718 = vmatprep.subr.bf16.mxu0 0
        %4719 = vmatpush1.bf16.msra.mxu0 0
        %4720 = vmatprep.subr.bf16.mxu0 0
        %4721 = vmatpush1.bf16.msra.mxu0 0
        %4722 = vmatprep.mubr.bf16.mxu0 0
        %4723 = vmatmul.mubr.bf16.gmra.mrb[0].mxu0 %v4667
        %v4724 = vpop.f32.mrb[0].mxu0
        %v4725 = vadd.f32 %v4640, %v4724
        %v4726 = vpop.f32.mrb[0].mxu0
        %v4727 = vpop.f32.mrb[0].mxu0
        %v4728 = vadd.f32 %v4640, %v4727
        %v4729 = vpop.f32.mrb[0].mxu0
        %4730 = vmatprep.mubr.bf16.mxu0 0
        %4731 = vmatmul.mubr.bf16.gmra.mrb[0].mxu0 %v4670
        %v4732 = vpop.f32.mrb[0].mxu0
        %v4733 = vadd.f32 %v4640, %v4732
        %v4734 = vpop.f32.mrb[0].mxu0
        %v4735 = vpop.f32.mrb[0].mxu0
        %v4736 = vadd.f32 %v4640, %v4735
        %v4737 = vpop.f32.mrb[0].mxu0
        %4738 = vmatprep.mubr.bf16.mxu0 0
        %4739 = vmatmul.mubr.bf16.gmra.mrb[0].mxu0 %v4673
        %v4740 = vpop.f32.mrb[0].mxu0
        %v4741 = vadd.f32 %v4640, %v4740
        %v4742 = vpop.f32.mrb[0].mxu0
        %v4743 = vpop.f32.mrb[0].mxu0
        %v4744 = vadd.f32 %v4640, %v4743
        %v4745 = vpop.f32.mrb[0].mxu0
        %4746 = vmatprep.mubr.bf16.mxu0 0
        %4747 = vmatmul.mubr.bf16.gmra.mrb[0].mxu0 %v4676
        %v4748 = vpop.f32.mrb[0].mxu0
        %v4749 = vadd.f32 %v4640, %v4748
        %v4750 = vpop.f32.mrb[0].mxu0
        %v4751 = vpop.f32.mrb[0].mxu0
        %v4752 = vadd.f32 %v4640, %v4751
        %v4753 = vpop.f32.mrb[0].mxu0
        %4754 = vmatprep.mubr.bf16.mxu0 0
        %4755 = vmatmul.mubr.bf16.gmra.mrb[0].mxu0 %v4679
        %v4756 = vpop.f32.mrb[0].mxu0
        %v4757 = vadd.f32 %v4640, %v4756
        %v4758 = vpop.f32.mrb[0].mxu0
        %v4759 = vpop.f32.mrb[0].mxu0
        %v4760 = vadd.f32 %v4640, %v4759
        %v4761 = vpop.f32.mrb[0].mxu0
        %4762 = vmatprep.mubr.bf16.mxu0 0
        %4763 = vmatmul.mubr.bf16.gmra.mrb[0].mxu0 %v4682
        %v4764 = vpop.f32.mrb[0].mxu0
        %v4765 = vadd.f32 %v4640, %v4764
        %v4766 = vpop.f32.mrb[0].mxu0
        %v4767 = vpop.f32.mrb[0].mxu0
        %v4768 = vadd.f32 %v4640, %v4767
        %v4769 = vpop.f32.mrb[0].mxu0
        %4770 = vmatprep.mubr.bf16.mxu0 0
        %4771 = vmatmul.mubr.bf16.gmra.mrb[0].mxu0 %v4685
        %v4772 = vpop.f32.mrb[0].mxu0
        %v4773 = vadd.f32 %v4640, %v4772
        %v4774 = vpop.f32.mrb[0].mxu0
        %v4775 = vpop.f32.mrb[0].mxu0
        %v4776 = vadd.f32 %v4640, %v4775
        %v4777 = vpop.f32.mrb[0].mxu0
        %4778 = vmatprep.mubr.bf16.mxu0 0
        %4779 = vmatmul.mubr.bf16.gmra.mrb[0].mxu0 %v4688
        %v4780 = vpop.f32.mrb[0].mxu0
        %v4781 = vadd.f32 %v4640, %v4780
        %v4782 = vpop.f32.mrb[0].mxu0
        %v4783 = vpop.f32.mrb[0].mxu0
        %v4784 = vadd.f32 %v4640, %v4783
        %v4785 = vpop.f32.mrb[0].mxu0
        %4786 = vdwg.mxu0
        %v4787 = vmax.f32 %v4725, 0.0
        %v4788 = vmax.f32 %v4728, 0.0
        %v4789 = vmax.f32 %v4733, 0.0
        %v4790 = vmax.f32 %v4736, 0.0
        %v4791 = vmax.f32 %v4741, 0.0
        %v4792 = vmax.f32 %v4744, 0.0
        %v4793 = vmax.f32 %v4749, 0.0
        %v4794 = vmax.f32 %v4752, 0.0
        %v4795 = vmax.f32 %v4757, 0.0
        %v4796 = vmax.f32 %v4760, 0.0
        %v4797 = vmax.f32 %v4765, 0.0
        %v4798 = vmax.f32 %v4768, 0.0
        %v4799 = vmax.f32 %v4773, 0.0
        %v4800 = vmax.f32 %v4776, 0.0
        %v4801 = vmax.f32 %v4781, 0.0
        %v4802 = vmax.f32 %v4784, 0.0
        %v4803 = vpack.c.bf16 %v4788, %v4787
        %v4804 = vpack.c.bf16 %v4790, %v4789
        %v4805 = vpack.c.bf16 %v4792, %v4791
        %v4806 = vpack.c.bf16 %v4794, %v4793
        %v4807 = vpack.c.bf16 %v4796, %v4795
        %v4808 = vpack.c.bf16 %v4798, %v4797
        %v4809 = vpack.c.bf16 %v4800, %v4799
        %v4810 = vpack.c.bf16 %v4802, %v4801
        %s4811 = scalar_lea.vmem [#allocation2], 736
        %v4812 = vld [vmem:[%s4811] sm:$0xf]
        %v4813 = vld [vmem:[%s4811 + $0x4] sm:$0xf]
        %v4814 = vld [vmem:[%s4811 + $0x8] sm:$0xf]
        %v4815 = vld [vmem:[%s4811 + $0xc] sm:$0xf]
        %v4816 = vld [vmem:[%s4811 + $0x10] sm:$0xf]
        %v4817 = vld [vmem:[%s4811 + $0x14] sm:$0xf]
        %v4818 = vld [vmem:[%s4811 + $0x18] sm:$0xf]
        %v4819 = vld [vmem:[%s4811 + $0x1c] sm:$0xf]
        %s4820 = scalar_lea.vmem %s4, 23
        %v4821 = vld [vmem:[%s4820] sm:$0x1]
        %v4823 = vlaneseq
        %v4824 = vshrl.u32 %v4823, 7
        %v4825 = vsub.s32 0, %v4824
        %v4826 = vrot.slane %v4821, %v4825
        %v4836 = vunpack.c.l.b16 %v4812
        %v4837 = vunpack.c.l.b16 %v4813
        %v4838 = vunpack.c.l.b16 %v4814
        %v4839 = vunpack.c.l.b16 %v4815
        %v4840 = vunpack.c.l.b16 %v4816
        %v4841 = vunpack.c.l.b16 %v4817
        %v4842 = vunpack.c.l.b16 %v4818
        %v4843 = vunpack.c.l.b16 %v4819
        %v4844 = vpack.c.b16 %v4837, %v4836
        %v4845 = vpack.c.b16 %v4839, %v4838
        %v4846 = vpack.c.b16 %v4841, %v4840
        %v4847 = vpack.c.b16 %v4843, %v4842
        %v4853 = vsel %vm573, %v4803, 0
        %v4856 = vsel %vm573, %v4804, 0
        %v4859 = vsel %vm573, %v4805, 0
        %v4862 = vsel %vm573, %v4806, 0
        %v4865 = vsel %vm573, %v4807, 0
        %v4868 = vsel %vm573, %v4808, 0
        %v4871 = vsel %vm573, %v4809, 0
        %v4874 = vsel %vm573, %v4810, 0
        %4876 = vmatprep.subr.bf16.mxu0 0
        %4877 = vmatpush1.bf16.msra.mxu0 %v4844
        %4878 = vmatprep.subr.bf16.mxu0 0
        %4879 = vmatpush1.bf16.msra.mxu0 %v4845
        %4880 = vmatprep.subr.bf16.mxu0 0
        %4881 = vmatpush1.bf16.msra.mxu0 %v4846
        %4882 = vmatprep.subr.bf16.mxu0 0
        %4883 = vmatpush1.bf16.msra.mxu0 %v4847
        %4884 = vmatprep.subr.bf16.mxu0 0
        %4885 = vmatpush1.bf16.msra.mxu0 0
        %4886 = vmatprep.subr.bf16.mxu0 0
        %4887 = vmatpush1.bf16.msra.mxu0 0
        %4888 = vmatprep.subr.bf16.mxu0 0
        %4889 = vmatpush1.bf16.msra.mxu0 0
        %4890 = vmatprep.subr.bf16.mxu0 0
        %4891 = vmatpush1.bf16.msra.mxu0 0
        %4892 = vmatprep.subr.bf16.mxu0 0
        %4893 = vmatpush1.bf16.msra.mxu0 0
        %4894 = vmatprep.subr.bf16.mxu0 0
        %4895 = vmatpush1.bf16.msra.mxu0 0
        %4896 = vmatprep.subr.bf16.mxu0 0
        %4897 = vmatpush1.bf16.msra.mxu0 0
        %4898 = vmatprep.subr.bf16.mxu0 0
        %4899 = vmatpush1.bf16.msra.mxu0 0
        %4900 = vmatprep.subr.bf16.mxu0 0
        %4901 = vmatpush1.bf16.msra.mxu0 0
        %4902 = vmatprep.subr.bf16.mxu0 0
        %4903 = vmatpush1.bf16.msra.mxu0 0
        %4904 = vmatprep.subr.bf16.mxu0 0
        %4905 = vmatpush1.bf16.msra.mxu0 0
        %4906 = vmatprep.subr.bf16.mxu0 0
        %4907 = vmatpush1.bf16.msra.mxu0 0
        %4908 = vmatprep.mubr.bf16.mxu0 0
        %4909 = vmatmul.mubr.bf16.gmra.mrb[0].mxu0 %v4853
        %v4910 = vpop.f32.mrb[0].mxu0
        %v4911 = vadd.f32 %v4826, %v4910
        %v4912 = vpop.f32.mrb[0].mxu0
        %v4913 = vpop.f32.mrb[0].mxu0
        %v4914 = vadd.f32 %v4826, %v4913
        %v4915 = vpop.f32.mrb[0].mxu0
        %4916 = vmatprep.mubr.bf16.mxu0 0
        %4917 = vmatmul.mubr.bf16.gmra.mrb[0].mxu0 %v4856
        %v4918 = vpop.f32.mrb[0].mxu0
        %v4919 = vadd.f32 %v4826, %v4918
        %v4920 = vpop.f32.mrb[0].mxu0
        %v4921 = vpop.f32.mrb[0].mxu0
        %v4922 = vadd.f32 %v4826, %v4921
        %v4923 = vpop.f32.mrb[0].mxu0
        %4924 = vmatprep.mubr.bf16.mxu0 0
        %4925 = vmatmul.mubr.bf16.gmra.mrb[0].mxu0 %v4859
        %v4926 = vpop.f32.mrb[0].mxu0
        %v4927 = vadd.f32 %v4826, %v4926
        %v4928 = vpop.f32.mrb[0].mxu0
        %v4929 = vpop.f32.mrb[0].mxu0
        %v4930 = vadd.f32 %v4826, %v4929
        %v4931 = vpop.f32.mrb[0].mxu0
        %4932 = vmatprep.mubr.bf16.mxu0 0
        %4933 = vmatmul.mubr.bf16.gmra.mrb[0].mxu0 %v4862
        %v4934 = vpop.f32.mrb[0].mxu0
        %v4935 = vadd.f32 %v4826, %v4934
        %v4936 = vpop.f32.mrb[0].mxu0
        %v4937 = vpop.f32.mrb[0].mxu0
        %v4938 = vadd.f32 %v4826, %v4937
        %v4939 = vpop.f32.mrb[0].mxu0
        %4940 = vmatprep.mubr.bf16.mxu0 0
        %4941 = vmatmul.mubr.bf16.gmra.mrb[0].mxu0 %v4865
        %v4942 = vpop.f32.mrb[0].mxu0
        %v4943 = vadd.f32 %v4826, %v4942
        %v4944 = vpop.f32.mrb[0].mxu0
        %v4945 = vpop.f32.mrb[0].mxu0
        %v4946 = vadd.f32 %v4826, %v4945
        %v4947 = vpop.f32.mrb[0].mxu0
        %4948 = vmatprep.mubr.bf16.mxu0 0
        %4949 = vmatmul.mubr.bf16.gmra.mrb[0].mxu0 %v4868
        %v4950 = vpop.f32.mrb[0].mxu0
        %v4951 = vadd.f32 %v4826, %v4950
        %v4952 = vpop.f32.mrb[0].mxu0
        %v4953 = vpop.f32.mrb[0].mxu0
        %v4954 = vadd.f32 %v4826, %v4953
        %v4955 = vpop.f32.mrb[0].mxu0
        %4956 = vmatprep.mubr.bf16.mxu0 0
        %4957 = vmatmul.mubr.bf16.gmra.mrb[0].mxu0 %v4871
        %v4958 = vpop.f32.mrb[0].mxu0
        %v4959 = vadd.f32 %v4826, %v4958
        %v4960 = vpop.f32.mrb[0].mxu0
        %v4961 = vpop.f32.mrb[0].mxu0
        %v4962 = vadd.f32 %v4826, %v4961
        %v4963 = vpop.f32.mrb[0].mxu0
        %4964 = vmatprep.mubr.bf16.mxu0 0
        %4965 = vmatmul.mubr.bf16.gmra.mrb[0].mxu0 %v4874
        %v4966 = vpop.f32.mrb[0].mxu0
        %v4967 = vadd.f32 %v4826, %v4966
        %v4968 = vpop.f32.mrb[0].mxu0
        %v4969 = vpop.f32.mrb[0].mxu0
        %v4970 = vadd.f32 %v4826, %v4969
        %v4971 = vpop.f32.mrb[0].mxu0
        %4972 = vdwg.mxu0
        %v4973 = vmax.f32 %v4911, 0.0
        %v4974 = vmax.f32 %v4914, 0.0
        %v4975 = vmax.f32 %v4919, 0.0
        %v4976 = vmax.f32 %v4922, 0.0
        %v4977 = vmax.f32 %v4927, 0.0
        %v4978 = vmax.f32 %v4930, 0.0
        %v4979 = vmax.f32 %v4935, 0.0
        %v4980 = vmax.f32 %v4938, 0.0
        %v4981 = vmax.f32 %v4943, 0.0
        %v4982 = vmax.f32 %v4946, 0.0
        %v4983 = vmax.f32 %v4951, 0.0
        %v4984 = vmax.f32 %v4954, 0.0
        %v4985 = vmax.f32 %v4959, 0.0
        %v4986 = vmax.f32 %v4962, 0.0
        %v4987 = vmax.f32 %v4967, 0.0
        %v4988 = vmax.f32 %v4970, 0.0
        %v4989 = vpack.c.bf16 %v4974, %v4973
        %v4990 = vpack.c.bf16 %v4976, %v4975
        %v4991 = vpack.c.bf16 %v4978, %v4977
        %v4992 = vpack.c.bf16 %v4980, %v4979
        %v4993 = vpack.c.bf16 %v4982, %v4981
        %v4994 = vpack.c.bf16 %v4984, %v4983
        %v4995 = vpack.c.bf16 %v4986, %v4985
        %v4996 = vpack.c.bf16 %v4988, %v4987
        %s4997 = scalar_lea.vmem [#allocation2], 768
        %v4998 = vld [vmem:[%s4997] sm:$0xf]
        %v4999 = vld [vmem:[%s4997 + $0x4] sm:$0xf]
        %v5000 = vld [vmem:[%s4997 + $0x8] sm:$0xf]
        %v5001 = vld [vmem:[%s4997 + $0xc] sm:$0xf]
        %v5002 = vld [vmem:[%s4997 + $0x10] sm:$0xf]
        %v5003 = vld [vmem:[%s4997 + $0x14] sm:$0xf]
        %v5004 = vld [vmem:[%s4997 + $0x18] sm:$0xf]
        %v5005 = vld [vmem:[%s4997 + $0x1c] sm:$0xf]
        %s5006 = scalar_lea.vmem %s4, 24
        %v5007 = vld [vmem:[%s5006] sm:$0x1]
        %v5009 = vlaneseq
        %v5010 = vshrl.u32 %v5009, 7
        %v5011 = vsub.s32 0, %v5010
        %v5012 = vrot.slane %v5007, %v5011
        %v5022 = vunpack.c.l.b16 %v4998
        %v5023 = vunpack.c.l.b16 %v4999
        %v5024 = vunpack.c.l.b16 %v5000
        %v5025 = vunpack.c.l.b16 %v5001
        %v5026 = vunpack.c.l.b16 %v5002
        %v5027 = vunpack.c.l.b16 %v5003
        %v5028 = vunpack.c.l.b16 %v5004
        %v5029 = vunpack.c.l.b16 %v5005
        %v5030 = vpack.c.b16 %v5023, %v5022
        %v5031 = vpack.c.b16 %v5025, %v5024
        %v5032 = vpack.c.b16 %v5027, %v5026
        %v5033 = vpack.c.b16 %v5029, %v5028
        %v5039 = vsel %vm573, %v4989, 0
        %v5042 = vsel %vm573, %v4990, 0
        %v5045 = vsel %vm573, %v4991, 0
        %v5048 = vsel %vm573, %v4992, 0
        %v5051 = vsel %vm573, %v4993, 0
        %v5054 = vsel %vm573, %v4994, 0
        %v5057 = vsel %vm573, %v4995, 0
        %v5060 = vsel %vm573, %v4996, 0
        %5062 = vmatprep.subr.bf16.mxu0 0
        %5063 = vmatpush1.bf16.msra.mxu0 %v5030
        %5064 = vmatprep.subr.bf16.mxu0 0
        %5065 = vmatpush1.bf16.msra.mxu0 %v5031
        %5066 = vmatprep.subr.bf16.mxu0 0
        %5067 = vmatpush1.bf16.msra.mxu0 %v5032
        %5068 = vmatprep.subr.bf16.mxu0 0
        %5069 = vmatpush1.bf16.msra.mxu0 %v5033
        %5070 = vmatprep.subr.bf16.mxu0 0
        %5071 = vmatpush1.bf16.msra.mxu0 0
        %5072 = vmatprep.subr.bf16.mxu0 0
        %5073 = vmatpush1.bf16.msra.mxu0 0
        %5074 = vmatprep.subr.bf16.mxu0 0
        %5075 = vmatpush1.bf16.msra.mxu0 0
        %5076 = vmatprep.subr.bf16.mxu0 0
        %5077 = vmatpush1.bf16.msra.mxu0 0
        %5078 = vmatprep.subr.bf16.mxu0 0
        %5079 = vmatpush1.bf16.msra.mxu0 0
        %5080 = vmatprep.subr.bf16.mxu0 0
        %5081 = vmatpush1.bf16.msra.mxu0 0
        %5082 = vmatprep.subr.bf16.mxu0 0
        %5083 = vmatpush1.bf16.msra.mxu0 0
        %5084 = vmatprep.subr.bf16.mxu0 0
        %5085 = vmatpush1.bf16.msra.mxu0 0
        %5086 = vmatprep.subr.bf16.mxu0 0
        %5087 = vmatpush1.bf16.msra.mxu0 0
        %5088 = vmatprep.subr.bf16.mxu0 0
        %5089 = vmatpush1.bf16.msra.mxu0 0
        %5090 = vmatprep.subr.bf16.mxu0 0
        %5091 = vmatpush1.bf16.msra.mxu0 0
        %5092 = vmatprep.subr.bf16.mxu0 0
        %5093 = vmatpush1.bf16.msra.mxu0 0
        %5094 = vmatprep.mubr.bf16.mxu0 0
        %5095 = vmatmul.mubr.bf16.gmra.mrb[0].mxu0 %v5039
        %v5096 = vpop.f32.mrb[0].mxu0
        %v5097 = vadd.f32 %v5012, %v5096
        %v5098 = vpop.f32.mrb[0].mxu0
        %v5099 = vpop.f32.mrb[0].mxu0
        %v5100 = vadd.f32 %v5012, %v5099
        %v5101 = vpop.f32.mrb[0].mxu0
        %5102 = vmatprep.mubr.bf16.mxu0 0
        %5103 = vmatmul.mubr.bf16.gmra.mrb[0].mxu0 %v5042
        %v5104 = vpop.f32.mrb[0].mxu0
        %v5105 = vadd.f32 %v5012, %v5104
        %v5106 = vpop.f32.mrb[0].mxu0
        %v5107 = vpop.f32.mrb[0].mxu0
        %v5108 = vadd.f32 %v5012, %v5107
        %v5109 = vpop.f32.mrb[0].mxu0
        %5110 = vmatprep.mubr.bf16.mxu0 0
        %5111 = vmatmul.mubr.bf16.gmra.mrb[0].mxu0 %v5045
        %v5112 = vpop.f32.mrb[0].mxu0
        %v5113 = vadd.f32 %v5012, %v5112
        %v5114 = vpop.f32.mrb[0].mxu0
        %v5115 = vpop.f32.mrb[0].mxu0
        %v5116 = vadd.f32 %v5012, %v5115
        %v5117 = vpop.f32.mrb[0].mxu0
        %5118 = vmatprep.mubr.bf16.mxu0 0
        %5119 = vmatmul.mubr.bf16.gmra.mrb[0].mxu0 %v5048
        %v5120 = vpop.f32.mrb[0].mxu0
        %v5121 = vadd.f32 %v5012, %v5120
        %v5122 = vpop.f32.mrb[0].mxu0
        %v5123 = vpop.f32.mrb[0].mxu0
        %v5124 = vadd.f32 %v5012, %v5123
        %v5125 = vpop.f32.mrb[0].mxu0
        %5126 = vmatprep.mubr.bf16.mxu0 0
        %5127 = vmatmul.mubr.bf16.gmra.mrb[0].mxu0 %v5051
        %v5128 = vpop.f32.mrb[0].mxu0
        %v5129 = vadd.f32 %v5012, %v5128
        %v5130 = vpop.f32.mrb[0].mxu0
        %v5131 = vpop.f32.mrb[0].mxu0
        %v5132 = vadd.f32 %v5012, %v5131
        %v5133 = vpop.f32.mrb[0].mxu0
        %5134 = vmatprep.mubr.bf16.mxu0 0
        %5135 = vmatmul.mubr.bf16.gmra.mrb[0].mxu0 %v5054
        %v5136 = vpop.f32.mrb[0].mxu0
        %v5137 = vadd.f32 %v5012, %v5136
        %v5138 = vpop.f32.mrb[0].mxu0
        %v5139 = vpop.f32.mrb[0].mxu0
        %v5140 = vadd.f32 %v5012, %v5139
        %v5141 = vpop.f32.mrb[0].mxu0
        %5142 = vmatprep.mubr.bf16.mxu0 0
        %5143 = vmatmul.mubr.bf16.gmra.mrb[0].mxu0 %v5057
        %v5144 = vpop.f32.mrb[0].mxu0
        %v5145 = vadd.f32 %v5012, %v5144
        %v5146 = vpop.f32.mrb[0].mxu0
        %v5147 = vpop.f32.mrb[0].mxu0
        %v5148 = vadd.f32 %v5012, %v5147
        %v5149 = vpop.f32.mrb[0].mxu0
        %5150 = vmatprep.mubr.bf16.mxu0 0
        %5151 = vmatmul.mubr.bf16.gmra.mrb[0].mxu0 %v5060
        %v5152 = vpop.f32.mrb[0].mxu0
        %v5153 = vadd.f32 %v5012, %v5152
        %v5154 = vpop.f32.mrb[0].mxu0
        %v5155 = vpop.f32.mrb[0].mxu0
        %v5156 = vadd.f32 %v5012, %v5155
        %v5157 = vpop.f32.mrb[0].mxu0
        %5158 = vdwg.mxu0
        %v5159 = vmax.f32 %v5097, 0.0
        %v5160 = vmax.f32 %v5100, 0.0
        %v5161 = vmax.f32 %v5105, 0.0
        %v5162 = vmax.f32 %v5108, 0.0
        %v5163 = vmax.f32 %v5113, 0.0
        %v5164 = vmax.f32 %v5116, 0.0
        %v5165 = vmax.f32 %v5121, 0.0
        %v5166 = vmax.f32 %v5124, 0.0
        %v5167 = vmax.f32 %v5129, 0.0
        %v5168 = vmax.f32 %v5132, 0.0
        %v5169 = vmax.f32 %v5137, 0.0
        %v5170 = vmax.f32 %v5140, 0.0
        %v5171 = vmax.f32 %v5145, 0.0
        %v5172 = vmax.f32 %v5148, 0.0
        %v5173 = vmax.f32 %v5153, 0.0
        %v5174 = vmax.f32 %v5156, 0.0
        %v5175 = vpack.c.bf16 %v5160, %v5159
        %v5176 = vpack.c.bf16 %v5162, %v5161
        %v5177 = vpack.c.bf16 %v5164, %v5163
        %v5178 = vpack.c.bf16 %v5166, %v5165
        %v5179 = vpack.c.bf16 %v5168, %v5167
        %v5180 = vpack.c.bf16 %v5170, %v5169
        %v5181 = vpack.c.bf16 %v5172, %v5171
        %v5182 = vpack.c.bf16 %v5174, %v5173
        %s5183 = scalar_lea.vmem [#allocation2], 800
        %v5184 = vld [vmem:[%s5183] sm:$0xf]
        %v5185 = vld [vmem:[%s5183 + $0x4] sm:$0xf]
        %v5186 = vld [vmem:[%s5183 + $0x8] sm:$0xf]
        %v5187 = vld [vmem:[%s5183 + $0xc] sm:$0xf]
        %v5188 = vld [vmem:[%s5183 + $0x10] sm:$0xf]
        %v5189 = vld [vmem:[%s5183 + $0x14] sm:$0xf]
        %v5190 = vld [vmem:[%s5183 + $0x18] sm:$0xf]
        %v5191 = vld [vmem:[%s5183 + $0x1c] sm:$0xf]
        %s5192 = scalar_lea.vmem %s4, 25
        %v5193 = vld [vmem:[%s5192] sm:$0x1]
        %v5195 = vlaneseq
        %v5196 = vshrl.u32 %v5195, 7
        %v5197 = vsub.s32 0, %v5196
        %v5198 = vrot.slane %v5193, %v5197
        %v5208 = vunpack.c.l.b16 %v5184
        %v5209 = vunpack.c.l.b16 %v5185
        %v5210 = vunpack.c.l.b16 %v5186
        %v5211 = vunpack.c.l.b16 %v5187
        %v5212 = vunpack.c.l.b16 %v5188
        %v5213 = vunpack.c.l.b16 %v5189
        %v5214 = vunpack.c.l.b16 %v5190
        %v5215 = vunpack.c.l.b16 %v5191
        %v5216 = vpack.c.b16 %v5209, %v5208
        %v5217 = vpack.c.b16 %v5211, %v5210
        %v5218 = vpack.c.b16 %v5213, %v5212
        %v5219 = vpack.c.b16 %v5215, %v5214
        %v5225 = vsel %vm573, %v5175, 0
        %v5228 = vsel %vm573, %v5176, 0
        %v5231 = vsel %vm573, %v5177, 0
        %v5234 = vsel %vm573, %v5178, 0
        %v5237 = vsel %vm573, %v5179, 0
        %v5240 = vsel %vm573, %v5180, 0
        %v5243 = vsel %vm573, %v5181, 0
        %v5246 = vsel %vm573, %v5182, 0
        %5248 = vmatprep.subr.bf16.mxu0 0
        %5249 = vmatpush1.bf16.msra.mxu0 %v5216
        %5250 = vmatprep.subr.bf16.mxu0 0
        %5251 = vmatpush1.bf16.msra.mxu0 %v5217
        %5252 = vmatprep.subr.bf16.mxu0 0
        %5253 = vmatpush1.bf16.msra.mxu0 %v5218
        %5254 = vmatprep.subr.bf16.mxu0 0
        %5255 = vmatpush1.bf16.msra.mxu0 %v5219
        %5256 = vmatprep.subr.bf16.mxu0 0
        %5257 = vmatpush1.bf16.msra.mxu0 0
        %5258 = vmatprep.subr.bf16.mxu0 0
        %5259 = vmatpush1.bf16.msra.mxu0 0
        %5260 = vmatprep.subr.bf16.mxu0 0
        %5261 = vmatpush1.bf16.msra.mxu0 0
        %5262 = vmatprep.subr.bf16.mxu0 0
        %5263 = vmatpush1.bf16.msra.mxu0 0
        %5264 = vmatprep.subr.bf16.mxu0 0
        %5265 = vmatpush1.bf16.msra.mxu0 0
        %5266 = vmatprep.subr.bf16.mxu0 0
        %5267 = vmatpush1.bf16.msra.mxu0 0
        %5268 = vmatprep.subr.bf16.mxu0 0
        %5269 = vmatpush1.bf16.msra.mxu0 0
        %5270 = vmatprep.subr.bf16.mxu0 0
        %5271 = vmatpush1.bf16.msra.mxu0 0
        %5272 = vmatprep.subr.bf16.mxu0 0
        %5273 = vmatpush1.bf16.msra.mxu0 0
        %5274 = vmatprep.subr.bf16.mxu0 0
        %5275 = vmatpush1.bf16.msra.mxu0 0
        %5276 = vmatprep.subr.bf16.mxu0 0
        %5277 = vmatpush1.bf16.msra.mxu0 0
        %5278 = vmatprep.subr.bf16.mxu0 0
        %5279 = vmatpush1.bf16.msra.mxu0 0
        %5280 = vmatprep.mubr.bf16.mxu0 0
        %5281 = vmatmul.mubr.bf16.gmra.mrb[0].mxu0 %v5225
        %v5282 = vpop.f32.mrb[0].mxu0
        %v5283 = vadd.f32 %v5198, %v5282
        %v5284 = vpop.f32.mrb[0].mxu0
        %v5285 = vpop.f32.mrb[0].mxu0
        %v5286 = vadd.f32 %v5198, %v5285
        %v5287 = vpop.f32.mrb[0].mxu0
        %5288 = vmatprep.mubr.bf16.mxu0 0
        %5289 = vmatmul.mubr.bf16.gmra.mrb[0].mxu0 %v5228
        %v5290 = vpop.f32.mrb[0].mxu0
        %v5291 = vadd.f32 %v5198, %v5290
        %v5292 = vpop.f32.mrb[0].mxu0
        %v5293 = vpop.f32.mrb[0].mxu0
        %v5294 = vadd.f32 %v5198, %v5293
        %v5295 = vpop.f32.mrb[0].mxu0
        %5296 = vmatprep.mubr.bf16.mxu0 0
        %5297 = vmatmul.mubr.bf16.gmra.mrb[0].mxu0 %v5231
        %v5298 = vpop.f32.mrb[0].mxu0
        %v5299 = vadd.f32 %v5198, %v5298
        %v5300 = vpop.f32.mrb[0].mxu0
        %v5301 = vpop.f32.mrb[0].mxu0
        %v5302 = vadd.f32 %v5198, %v5301
        %v5303 = vpop.f32.mrb[0].mxu0
        %5304 = vmatprep.mubr.bf16.mxu0 0
        %5305 = vmatmul.mubr.bf16.gmra.mrb[0].mxu0 %v5234
        %v5306 = vpop.f32.mrb[0].mxu0
        %v5307 = vadd.f32 %v5198, %v5306
        %v5308 = vpop.f32.mrb[0].mxu0
        %v5309 = vpop.f32.mrb[0].mxu0
        %v5310 = vadd.f32 %v5198, %v5309
        %v5311 = vpop.f32.mrb[0].mxu0
        %5312 = vmatprep.mubr.bf16.mxu0 0
        %5313 = vmatmul.mubr.bf16.gmra.mrb[0].mxu0 %v5237
        %v5314 = vpop.f32.mrb[0].mxu0
        %v5315 = vadd.f32 %v5198, %v5314
        %v5316 = vpop.f32.mrb[0].mxu0
        %v5317 = vpop.f32.mrb[0].mxu0
        %v5318 = vadd.f32 %v5198, %v5317
        %v5319 = vpop.f32.mrb[0].mxu0
        %5320 = vmatprep.mubr.bf16.mxu0 0
        %5321 = vmatmul.mubr.bf16.gmra.mrb[0].mxu0 %v5240
        %v5322 = vpop.f32.mrb[0].mxu0
        %v5323 = vadd.f32 %v5198, %v5322
        %v5324 = vpop.f32.mrb[0].mxu0
        %v5325 = vpop.f32.mrb[0].mxu0
        %v5326 = vadd.f32 %v5198, %v5325
        %v5327 = vpop.f32.mrb[0].mxu0
        %5328 = vmatprep.mubr.bf16.mxu0 0
        %5329 = vmatmul.mubr.bf16.gmra.mrb[0].mxu0 %v5243
        %v5330 = vpop.f32.mrb[0].mxu0
        %v5331 = vadd.f32 %v5198, %v5330
        %v5332 = vpop.f32.mrb[0].mxu0
        %v5333 = vpop.f32.mrb[0].mxu0
        %v5334 = vadd.f32 %v5198, %v5333
        %v5335 = vpop.f32.mrb[0].mxu0
        %5336 = vmatprep.mubr.bf16.mxu0 0
        %5337 = vmatmul.mubr.bf16.gmra.mrb[0].mxu0 %v5246
        %v5338 = vpop.f32.mrb[0].mxu0
        %v5339 = vadd.f32 %v5198, %v5338
        %v5340 = vpop.f32.mrb[0].mxu0
        %v5341 = vpop.f32.mrb[0].mxu0
        %v5342 = vadd.f32 %v5198, %v5341
        %v5343 = vpop.f32.mrb[0].mxu0
        %5344 = vdwg.mxu0
        %v5345 = vmax.f32 %v5283, 0.0
        %v5346 = vmax.f32 %v5286, 0.0
        %v5347 = vmax.f32 %v5291, 0.0
        %v5348 = vmax.f32 %v5294, 0.0
        %v5349 = vmax.f32 %v5299, 0.0
        %v5350 = vmax.f32 %v5302, 0.0
        %v5351 = vmax.f32 %v5307, 0.0
        %v5352 = vmax.f32 %v5310, 0.0
        %v5353 = vmax.f32 %v5315, 0.0
        %v5354 = vmax.f32 %v5318, 0.0
        %v5355 = vmax.f32 %v5323, 0.0
        %v5356 = vmax.f32 %v5326, 0.0
        %v5357 = vmax.f32 %v5331, 0.0
        %v5358 = vmax.f32 %v5334, 0.0
        %v5359 = vmax.f32 %v5339, 0.0
        %v5360 = vmax.f32 %v5342, 0.0
        %v5361 = vpack.c.bf16 %v5346, %v5345
        %v5362 = vpack.c.bf16 %v5348, %v5347
        %v5363 = vpack.c.bf16 %v5350, %v5349
        %v5364 = vpack.c.bf16 %v5352, %v5351
        %v5365 = vpack.c.bf16 %v5354, %v5353
        %v5366 = vpack.c.bf16 %v5356, %v5355
        %v5367 = vpack.c.bf16 %v5358, %v5357
        %v5368 = vpack.c.bf16 %v5360, %v5359
        %v5369 = vld [vmem:[%s5] sm:$0xf]
        %v5370 = vld [vmem:[%s5 + $0x4] sm:$0xf]
        %v5371 = vld [vmem:[%s5 + $0x8] sm:$0xf]
        %v5372 = vld [vmem:[%s5 + $0xc] sm:$0xf]
        %v5373 = vld [vmem:[%s5 + $0x10] sm:$0xf]
        %v5374 = vld [vmem:[%s5 + $0x14] sm:$0xf]
        %v5375 = vld [vmem:[%s5 + $0x18] sm:$0xf]
        %v5376 = vld [vmem:[%s5 + $0x1c] sm:$0xf]
        %v5377 = vld [vmem:[%s6] sm:$0x1]
        %v5379 = vlaneseq
        %v5380 = vshrl.u32 %v5379, 7
        %v5381 = vsub.s32 0, %v5380
        %v5382 = vrot.slane %v5377, %v5381
        %v5392 = vunpack.c.l.b16 %v5369
        %v5393 = vunpack.c.l.b16 %v5370
        %v5394 = vunpack.c.l.b16 %v5371
        %v5395 = vunpack.c.l.b16 %v5372
        %v5396 = vunpack.c.l.b16 %v5373
        %v5397 = vunpack.c.l.b16 %v5374
        %v5398 = vunpack.c.l.b16 %v5375
        %v5399 = vunpack.c.l.b16 %v5376
        %v5400 = vpack.c.b16 %v5393, %v5392
        %v5401 = vpack.c.b16 %v5395, %v5394
        %v5402 = vpack.c.b16 %v5397, %v5396
        %v5403 = vpack.c.b16 %v5399, %v5398
        %v5409 = vsel %vm573, %v5361, 0
        %v5412 = vsel %vm573, %v5362, 0
        %v5415 = vsel %vm573, %v5363, 0
        %v5418 = vsel %vm573, %v5364, 0
        %v5421 = vsel %vm573, %v5365, 0
        %v5424 = vsel %vm573, %v5366, 0
        %v5427 = vsel %vm573, %v5367, 0
        %v5430 = vsel %vm573, %v5368, 0
        %5432 = vmatprep.subr.bf16.mxu0 0
        %5433 = vmatpush1.bf16.msra.mxu0 %v5400
        %5434 = vmatprep.subr.bf16.mxu0 0
        %5435 = vmatpush1.bf16.msra.mxu0 %v5401
        %5436 = vmatprep.subr.bf16.mxu0 0
        %5437 = vmatpush1.bf16.msra.mxu0 %v5402
        %5438 = vmatprep.subr.bf16.mxu0 0
        %5439 = vmatpush1.bf16.msra.mxu0 %v5403
        %5440 = vmatprep.subr.bf16.mxu0 0
        %5441 = vmatpush1.bf16.msra.mxu0 0
        %5442 = vmatprep.subr.bf16.mxu0 0
        %5443 = vmatpush1.bf16.msra.mxu0 0
        %5444 = vmatprep.subr.bf16.mxu0 0
        %5445 = vmatpush1.bf16.msra.mxu0 0
        %5446 = vmatprep.subr.bf16.mxu0 0
        %5447 = vmatpush1.bf16.msra.mxu0 0
        %5448 = vmatprep.subr.bf16.mxu0 0
        %5449 = vmatpush1.bf16.msra.mxu0 0
        %5450 = vmatprep.subr.bf16.mxu0 0
        %5451 = vmatpush1.bf16.msra.mxu0 0
        %5452 = vmatprep.subr.bf16.mxu0 0
        %5453 = vmatpush1.bf16.msra.mxu0 0
        %5454 = vmatprep.subr.bf16.mxu0 0
        %5455 = vmatpush1.bf16.msra.mxu0 0
        %5456 = vmatprep.subr.bf16.mxu0 0
        %5457 = vmatpush1.bf16.msra.mxu0 0
        %5458 = vmatprep.subr.bf16.mxu0 0
        %5459 = vmatpush1.bf16.msra.mxu0 0
        %5460 = vmatprep.subr.bf16.mxu0 0
        %5461 = vmatpush1.bf16.msra.mxu0 0
        %5462 = vmatprep.subr.bf16.mxu0 0
        %5463 = vmatpush1.bf16.msra.mxu0 0
        %5464 = vmatprep.mubr.bf16.mxu0 0
        %5465 = vmatmul.mubr.bf16.gmra.mrb[0].mxu0 %v5409
        %v5466 = vpop.f32.mrb[0].mxu0
        %v5467 = vadd.f32 %v5382, %v5466
        %v5468 = vpop.f32.mrb[0].mxu0
        %v5469 = vpop.f32.mrb[0].mxu0
        %v5470 = vadd.f32 %v5382, %v5469
        %v5471 = vpop.f32.mrb[0].mxu0
        %5472 = vmatprep.mubr.bf16.mxu0 0
        %5473 = vmatmul.mubr.bf16.gmra.mrb[0].mxu0 %v5412
        %v5474 = vpop.f32.mrb[0].mxu0
        %v5475 = vadd.f32 %v5382, %v5474
        %v5476 = vpop.f32.mrb[0].mxu0
        %v5477 = vpop.f32.mrb[0].mxu0
        %v5478 = vadd.f32 %v5382, %v5477
        %v5479 = vpop.f32.mrb[0].mxu0
        %5480 = vmatprep.mubr.bf16.mxu0 0
        %5481 = vmatmul.mubr.bf16.gmra.mrb[0].mxu0 %v5415
        %v5482 = vpop.f32.mrb[0].mxu0
        %v5483 = vadd.f32 %v5382, %v5482
        %v5484 = vpop.f32.mrb[0].mxu0
        %v5485 = vpop.f32.mrb[0].mxu0
        %v5486 = vadd.f32 %v5382, %v5485
        %v5487 = vpop.f32.mrb[0].mxu0
        %5488 = vmatprep.mubr.bf16.mxu0 0
        %5489 = vmatmul.mubr.bf16.gmra.mrb[0].mxu0 %v5418
        %v5490 = vpop.f32.mrb[0].mxu0
        %v5491 = vadd.f32 %v5382, %v5490
        %v5492 = vpop.f32.mrb[0].mxu0
        %v5493 = vpop.f32.mrb[0].mxu0
        %v5494 = vadd.f32 %v5382, %v5493
        %v5495 = vpop.f32.mrb[0].mxu0
        %5496 = vmatprep.mubr.bf16.mxu0 0
        %5497 = vmatmul.mubr.bf16.gmra.mrb[0].mxu0 %v5421
        %v5498 = vpop.f32.mrb[0].mxu0
        %v5499 = vadd.f32 %v5382, %v5498
        %v5500 = vpop.f32.mrb[0].mxu0
        %v5501 = vpop.f32.mrb[0].mxu0
        %v5502 = vadd.f32 %v5382, %v5501
        %v5503 = vpop.f32.mrb[0].mxu0
        %5504 = vmatprep.mubr.bf16.mxu0 0
        %5505 = vmatmul.mubr.bf16.gmra.mrb[0].mxu0 %v5424
        %v5506 = vpop.f32.mrb[0].mxu0
        %v5507 = vadd.f32 %v5382, %v5506
        %v5508 = vpop.f32.mrb[0].mxu0
        %v5509 = vpop.f32.mrb[0].mxu0
        %v5510 = vadd.f32 %v5382, %v5509
        %v5511 = vpop.f32.mrb[0].mxu0
        %5512 = vmatprep.mubr.bf16.mxu0 0
        %5513 = vmatmul.mubr.bf16.gmra.mrb[0].mxu0 %v5427
        %v5514 = vpop.f32.mrb[0].mxu0
        %v5515 = vadd.f32 %v5382, %v5514
        %v5516 = vpop.f32.mrb[0].mxu0
        %v5517 = vpop.f32.mrb[0].mxu0
        %v5518 = vadd.f32 %v5382, %v5517
        %v5519 = vpop.f32.mrb[0].mxu0
        %5520 = vmatprep.mubr.bf16.mxu0 0
        %5521 = vmatmul.mubr.bf16.gmra.mrb[0].mxu0 %v5430
        %v5522 = vpop.f32.mrb[0].mxu0
        %v5523 = vadd.f32 %v5382, %v5522
        %v5524 = vpop.f32.mrb[0].mxu0
        %v5525 = vpop.f32.mrb[0].mxu0
        %v5526 = vadd.f32 %v5382, %v5525
        %v5527 = vpop.f32.mrb[0].mxu0
        %5528 = vdwg.mxu0
        %v5529 = vtanh.pop %v5467
        %v5530 = vtanh.pop %v5470
        %v5531 = vtanh.pop %v5475
        %v5532 = vtanh.pop %v5478
        %v5533 = vtanh.pop %v5483
        %v5534 = vtanh.pop %v5486
        %v5535 = vtanh.pop %v5491
        %v5536 = vtanh.pop %v5494
        %v5537 = vtanh.pop %v5499
        %v5538 = vtanh.pop %v5502
        %v5539 = vtanh.pop %v5507
        %v5540 = vtanh.pop %v5510
        %v5541 = vtanh.pop %v5515
        %v5542 = vtanh.pop %v5518
        %v5543 = vtanh.pop %v5523
        %v5544 = vtanh.pop %v5526
        %v5545 = vld [vmem:[%s7] sm:$0xff]
        %v5546 = vld [vmem:[%s7 + $0x8] sm:$0xff]
        %v5547 = vld [vmem:[%s7 + $0x10] sm:$0xff]
        %v5548 = vld [vmem:[%s7 + $0x18] sm:$0xff]
        %v5549 = vld [vmem:[%s7 + $0x20] sm:$0xff]
        %v5550 = vld [vmem:[%s7 + $0x28] sm:$0xff]
        %v5551 = vld [vmem:[%s7 + $0x30] sm:$0xff]
        %v5552 = vld [vmem:[%s7 + $0x38] sm:$0xff]
        %v5553 = vld [vmem:[%s7 + $0x40] sm:$0xff]
        %v5554 = vld [vmem:[%s7 + $0x48] sm:$0xff]
        %v5555 = vld [vmem:[%s7 + $0x50] sm:$0xff]
        %v5556 = vld [vmem:[%s7 + $0x58] sm:$0xff]
        %v5557 = vld [vmem:[%s7 + $0x60] sm:$0xf]
        %v5558 = vld [vmem:[%s7 + $0x68] sm:$0xf]
        %v5560 = vsel %vm384, %v325, 0
        %v5563 = vsel %vm384, %v326, 0
        %v5566 = vsel %vm384, %v327, 0
        %v5569 = vsel %vm384, %v328, 0
        %v5572 = vsel %vm384, %v329, 0
        %v5575 = vsel %vm384, %v330, 0
        %v5578 = vsel %vm384, %v331, 0
        %v5581 = vsel %vm384, %v332, 0
        %v5584 = vsel %vm384, %v333, 0
        %v5587 = vsel %vm384, %v334, 0
        %v5590 = vsel %vm384, %v335, 0
        %v5593 = vsel %vm384, %v336, 0
        %v5596 = vsel %vm384, %v337, 0
        %v5599 = vsel %vm384, %v338, 0
        %v5602 = vsel %vm384, %v339, 0
        %v5605 = vsel %vm384, %v340, 0
        %vm5607 = vcmask 1043456
        %v5609 = vsel %vm5607, %v5557, 0
        %v5612 = vsel %vm5607, %v5558, 0
        %v5614 = vand.u32 %v5546, 4294901760
        %5615 = vmatprep.subr.mxu0 %v5614
        %v5616 = vand.u32 %v5545, 4294901760
        %5617 = vmatpush1.msra.mxu0 %v5616
        %v5618 = vand.u32 %v5548, 4294901760
        %5619 = vmatprep.subr.mxu0 %v5618
        %v5620 = vand.u32 %v5547, 4294901760
        %5621 = vmatpush1.msra.mxu0 %v5620
        %v5622 = vand.u32 %v5550, 4294901760
        %5623 = vmatprep.subr.mxu0 %v5622
        %v5624 = vand.u32 %v5549, 4294901760
        %5625 = vmatpush1.msra.mxu0 %v5624
        %v5626 = vand.u32 %v5552, 4294901760
        %5627 = vmatprep.subr.mxu0 %v5626
        %v5628 = vand.u32 %v5551, 4294901760
        %5629 = vmatpush1.msra.mxu0 %v5628
        %v5630 = vand.u32 %v5554, 4294901760
        %5631 = vmatprep.subr.mxu0 %v5630
        %v5632 = vand.u32 %v5553, 4294901760
        %5633 = vmatpush1.msra.mxu0 %v5632
        %v5634 = vand.u32 %v5556, 4294901760
        %5635 = vmatprep.subr.mxu0 %v5634
        %v5636 = vand.u32 %v5555, 4294901760
        %5637 = vmatpush1.msra.mxu0 %v5636
        %v5638 = vand.u32 %v5612, 4294901760
        %5639 = vmatprep.subr.mxu0 %v5638
        %v5640 = vand.u32 %v5609, 4294901760
        %5641 = vmatpush1.msra.mxu0 %v5640
        %5642 = vmatprep.subr.mxu0 0.0
        %5643 = vmatpush1.msra.mxu0 0.0
        %5644 = vmatprep.subr.mxu0 0.0
        %5645 = vmatpush1.msra.mxu0 0.0
        %5646 = vmatprep.subr.mxu0 0.0
        %5647 = vmatpush1.msra.mxu0 0.0
        %5648 = vmatprep.subr.mxu0 0.0
        %5649 = vmatpush1.msra.mxu0 0.0
        %5650 = vmatprep.subr.mxu0 0.0
        %5651 = vmatpush1.msra.mxu0 0.0
        %5652 = vmatprep.subr.mxu0 0.0
        %5653 = vmatpush1.msra.mxu0 0.0
        %5654 = vmatprep.subr.mxu0 0.0
        %5655 = vmatpush1.msra.mxu0 0.0
        %5656 = vmatprep.subr.mxu0 0.0
        %5657 = vmatpush1.msra.mxu0 0.0
        %5658 = vmatprep.subr.mxu0 0.0
        %5659 = vmatpush1.msra.mxu0 0.0
        %5660 = vmatprep.subr.mxu0 0.0
        %5661 = vmatpush1.msra.mxu0 0.0
        %5662 = vmatprep.subr.mxu0 0.0
        %5663 = vmatpush1.msra.mxu0 0.0
        %5664 = vmatprep.subr.mxu0 0.0
        %5665 = vmatpush1.msra.mxu0 0.0
        %5666 = vmatprep.subr.mxu0 0.0
        %5667 = vmatpush1.msra.mxu0 0.0
        %5668 = vmatprep.subr.mxu0 0.0
        %5669 = vmatpush1.msra.mxu0 0.0
        %5670 = vmatprep.subr.mxu0 0.0
        %5671 = vmatpush1.msra.mxu0 0.0
        %5672 = vmatprep.subr.mxu0 0.0
        %5673 = vmatpush1.msra.mxu0 0.0
        %5674 = vmatprep.subr.mxu0 0.0
        %5675 = vmatpush1.msra.mxu0 0.0
        %5676 = vmatprep.subr.mxu0 0.0
        %5677 = vmatpush1.msra.mxu0 0.0
        %5678 = vmatprep.subr.mxu0 0.0
        %5679 = vmatpush1.msra.mxu0 0.0
        %5680 = vmatprep.subr.mxu0 0.0
        %5681 = vmatpush1.msra.mxu0 0.0
        %5682 = vmatprep.subr.mxu0 0.0
        %5683 = vmatpush1.msra.mxu0 0.0
        %5684 = vmatprep.subr.mxu0 0.0
        %5685 = vmatpush1.msra.mxu0 0.0
        %5686 = vmatprep.subr.mxu0 0.0
        %5687 = vmatpush1.msra.mxu0 0.0
        %5688 = vmatprep.subr.mxu0 0.0
        %5689 = vmatpush1.msra.mxu0 0.0
        %5690 = vmatprep.subr.mxu0 0.0
        %5691 = vmatpush1.msra.mxu0 0.0
        %5692 = vmatprep.mubr.f32.mxu0 0.0
        %v5693 = vand.u32 %v5560, 4294901760
        %v5694 = vsub.f32 %v5560, %v5693
        %v5695 = vand.u32 %v5694, 4294901760
        %v5696 = vsub.f32 %v5694, %v5695
        %v5697 = vand.u32 %v5696, 4294901760
        %5698 = vmatmul.mubr.f32.gmra.mrb[0].mxu0 %v5697
        %v5699 = vpop.f32.mrb[0].mxu0
        %v5700 = vadd.f32 0.0, %v5699
        %v5701 = vpop.f32.mrb[0].mxu0
        %v5702 = vadd.f32 0.0, %v5701
        %5703 = vmatprep.mubr.f32.mxu0 0.0
        %v5704 = vand.u32 %v5563, 4294901760
        %v5705 = vsub.f32 %v5563, %v5704
        %v5706 = vand.u32 %v5705, 4294901760
        %v5707 = vsub.f32 %v5705, %v5706
        %v5708 = vand.u32 %v5707, 4294901760
        %5709 = vmatmul.mubr.f32.gmra.mrb[0].mxu0 %v5708
        %v5710 = vpop.f32.mrb[0].mxu0
        %v5711 = vadd.f32 0.0, %v5710
        %v5712 = vpop.f32.mrb[0].mxu0
        %v5713 = vadd.f32 0.0, %v5712
        %5714 = vmatprep.mubr.f32.mxu0 0.0
        %v5715 = vand.u32 %v5566, 4294901760
        %v5716 = vsub.f32 %v5566, %v5715
        %v5717 = vand.u32 %v5716, 4294901760
        %v5718 = vsub.f32 %v5716, %v5717
        %v5719 = vand.u32 %v5718, 4294901760
        %5720 = vmatmul.mubr.f32.gmra.mrb[0].mxu0 %v5719
        %v5721 = vpop.f32.mrb[0].mxu0
        %v5722 = vadd.f32 0.0, %v5721
        %v5723 = vpop.f32.mrb[0].mxu0
        %v5724 = vadd.f32 0.0, %v5723
        %5725 = vmatprep.mubr.f32.mxu0 0.0
        %v5726 = vand.u32 %v5569, 4294901760
        %v5727 = vsub.f32 %v5569, %v5726
        %v5728 = vand.u32 %v5727, 4294901760
        %v5729 = vsub.f32 %v5727, %v5728
        %v5730 = vand.u32 %v5729, 4294901760
        %5731 = vmatmul.mubr.f32.gmra.mrb[0].mxu0 %v5730
        %v5732 = vpop.f32.mrb[0].mxu0
        %v5733 = vadd.f32 0.0, %v5732
        %v5734 = vpop.f32.mrb[0].mxu0
        %v5735 = vadd.f32 0.0, %v5734
        %5736 = vmatprep.mubr.f32.mxu0 0.0
        %v5737 = vand.u32 %v5572, 4294901760
        %v5738 = vsub.f32 %v5572, %v5737
        %v5739 = vand.u32 %v5738, 4294901760
        %v5740 = vsub.f32 %v5738, %v5739
        %v5741 = vand.u32 %v5740, 4294901760
        %5742 = vmatmul.mubr.f32.gmra.mrb[0].mxu0 %v5741
        %v5743 = vpop.f32.mrb[0].mxu0
        %v5744 = vadd.f32 0.0, %v5743
        %v5745 = vpop.f32.mrb[0].mxu0
        %v5746 = vadd.f32 0.0, %v5745
        %5747 = vmatprep.mubr.f32.mxu0 0.0
        %v5748 = vand.u32 %v5575, 4294901760
        %v5749 = vsub.f32 %v5575, %v5748
        %v5750 = vand.u32 %v5749, 4294901760
        %v5751 = vsub.f32 %v5749, %v5750
        %v5752 = vand.u32 %v5751, 4294901760
        %5753 = vmatmul.mubr.f32.gmra.mrb[0].mxu0 %v5752
        %v5754 = vpop.f32.mrb[0].mxu0
        %v5755 = vadd.f32 0.0, %v5754
        %v5756 = vpop.f32.mrb[0].mxu0
        %v5757 = vadd.f32 0.0, %v5756
        %5758 = vmatprep.mubr.f32.mxu0 0.0
        %v5759 = vand.u32 %v5578, 4294901760
        %v5760 = vsub.f32 %v5578, %v5759
        %v5761 = vand.u32 %v5760, 4294901760
        %v5762 = vsub.f32 %v5760, %v5761
        %v5763 = vand.u32 %v5762, 4294901760
        %5764 = vmatmul.mubr.f32.gmra.mrb[0].mxu0 %v5763
        %v5765 = vpop.f32.mrb[0].mxu0
        %v5766 = vadd.f32 0.0, %v5765
        %v5767 = vpop.f32.mrb[0].mxu0
        %v5768 = vadd.f32 0.0, %v5767
        %5769 = vmatprep.mubr.f32.mxu0 0.0
        %v5770 = vand.u32 %v5581, 4294901760
        %v5771 = vsub.f32 %v5581, %v5770
        %v5772 = vand.u32 %v5771, 4294901760
        %v5773 = vsub.f32 %v5771, %v5772
        %v5774 = vand.u32 %v5773, 4294901760
        %5775 = vmatmul.mubr.f32.gmra.mrb[0].mxu0 %v5774
        %v5776 = vpop.f32.mrb[0].mxu0
        %v5777 = vadd.f32 0.0, %v5776
        %v5778 = vpop.f32.mrb[0].mxu0
        %v5779 = vadd.f32 0.0, %v5778
        %5780 = vmatprep.mubr.f32.mxu0 0.0
        %v5781 = vand.u32 %v5584, 4294901760
        %v5782 = vsub.f32 %v5584, %v5781
        %v5783 = vand.u32 %v5782, 4294901760
        %v5784 = vsub.f32 %v5782, %v5783
        %v5785 = vand.u32 %v5784, 4294901760
        %5786 = vmatmul.mubr.f32.gmra.mrb[0].mxu0 %v5785
        %v5787 = vpop.f32.mrb[0].mxu0
        %v5788 = vadd.f32 0.0, %v5787
        %v5789 = vpop.f32.mrb[0].mxu0
        %v5790 = vadd.f32 0.0, %v5789
        %5791 = vmatprep.mubr.f32.mxu0 0.0
        %v5792 = vand.u32 %v5587, 4294901760
        %v5793 = vsub.f32 %v5587, %v5792
        %v5794 = vand.u32 %v5793, 4294901760
        %v5795 = vsub.f32 %v5793, %v5794
        %v5796 = vand.u32 %v5795, 4294901760
        %5797 = vmatmul.mubr.f32.gmra.mrb[0].mxu0 %v5796
        %v5798 = vpop.f32.mrb[0].mxu0
        %v5799 = vadd.f32 0.0, %v5798
        %v5800 = vpop.f32.mrb[0].mxu0
        %v5801 = vadd.f32 0.0, %v5800
        %5802 = vmatprep.mubr.f32.mxu0 0.0
        %v5803 = vand.u32 %v5590, 4294901760
        %v5804 = vsub.f32 %v5590, %v5803
        %v5805 = vand.u32 %v5804, 4294901760
        %v5806 = vsub.f32 %v5804, %v5805
        %v5807 = vand.u32 %v5806, 4294901760
        %5808 = vmatmul.mubr.f32.gmra.mrb[0].mxu0 %v5807
        %v5809 = vpop.f32.mrb[0].mxu0
        %v5810 = vadd.f32 0.0, %v5809
        %v5811 = vpop.f32.mrb[0].mxu0
        %v5812 = vadd.f32 0.0, %v5811
        %5813 = vmatprep.mubr.f32.mxu0 0.0
        %v5814 = vand.u32 %v5593, 4294901760
        %v5815 = vsub.f32 %v5593, %v5814
        %v5816 = vand.u32 %v5815, 4294901760
        %v5817 = vsub.f32 %v5815, %v5816
        %v5818 = vand.u32 %v5817, 4294901760
        %5819 = vmatmul.mubr.f32.gmra.mrb[0].mxu0 %v5818
        %v5820 = vpop.f32.mrb[0].mxu0
        %v5821 = vadd.f32 0.0, %v5820
        %v5822 = vpop.f32.mrb[0].mxu0
        %v5823 = vadd.f32 0.0, %v5822
        %5824 = vmatprep.mubr.f32.mxu0 0.0
        %v5825 = vand.u32 %v5596, 4294901760
        %v5826 = vsub.f32 %v5596, %v5825
        %v5827 = vand.u32 %v5826, 4294901760
        %v5828 = vsub.f32 %v5826, %v5827
        %v5829 = vand.u32 %v5828, 4294901760
        %5830 = vmatmul.mubr.f32.gmra.mrb[0].mxu0 %v5829
        %v5831 = vpop.f32.mrb[0].mxu0
        %v5832 = vadd.f32 0.0, %v5831
        %v5833 = vpop.f32.mrb[0].mxu0
        %v5834 = vadd.f32 0.0, %v5833
        %5835 = vmatprep.mubr.f32.mxu0 0.0
        %v5836 = vand.u32 %v5599, 4294901760
        %v5837 = vsub.f32 %v5599, %v5836
        %v5838 = vand.u32 %v5837, 4294901760
        %v5839 = vsub.f32 %v5837, %v5838
        %v5840 = vand.u32 %v5839, 4294901760
        %5841 = vmatmul.mubr.f32.gmra.mrb[0].mxu0 %v5840
        %v5842 = vpop.f32.mrb[0].mxu0
        %v5843 = vadd.f32 0.0, %v5842
        %v5844 = vpop.f32.mrb[0].mxu0
        %v5845 = vadd.f32 0.0, %v5844
        %5846 = vmatprep.mubr.f32.mxu0 0.0
        %v5847 = vand.u32 %v5602, 4294901760
        %v5848 = vsub.f32 %v5602, %v5847
        %v5849 = vand.u32 %v5848, 4294901760
        %v5850 = vsub.f32 %v5848, %v5849
        %v5851 = vand.u32 %v5850, 4294901760
        %5852 = vmatmul.mubr.f32.gmra.mrb[0].mxu0 %v5851
        %v5853 = vpop.f32.mrb[0].mxu0
        %v5854 = vadd.f32 0.0, %v5853
        %v5855 = vpop.f32.mrb[0].mxu0
        %v5856 = vadd.f32 0.0, %v5855
        %5857 = vmatprep.mubr.f32.mxu0 0.0
        %v5858 = vand.u32 %v5605, 4294901760
        %v5859 = vsub.f32 %v5605, %v5858
        %v5860 = vand.u32 %v5859, 4294901760
        %v5861 = vsub.f32 %v5859, %v5860
        %v5862 = vand.u32 %v5861, 4294901760
        %5863 = vmatmul.mubr.f32.gmra.mrb[0].mxu0 %v5862
        %v5864 = vpop.f32.mrb[0].mxu0
        %v5865 = vadd.f32 0.0, %v5864
        %v5866 = vpop.f32.mrb[0].mxu0
        %v5867 = vadd.f32 0.0, %v5866
        %5868 = vdwg.mxu0
        %v5869 = vand.u32 %v5546, 4294901760
        %v5870 = vsub.f32 %v5546, %v5869
        %v5871 = vand.u32 %v5870, 4294901760
        %v5872 = vsub.f32 %v5870, %v5871
        %v5873 = vand.u32 %v5872, 4294901760
        %5874 = vmatprep.subr.mxu0 %v5873
        %v5875 = vand.u32 %v5545, 4294901760
        %v5876 = vsub.f32 %v5545, %v5875
        %v5877 = vand.u32 %v5876, 4294901760
        %v5878 = vsub.f32 %v5876, %v5877
        %v5879 = vand.u32 %v5878, 4294901760
        %5880 = vmatpush1.msra.mxu0 %v5879
        %v5881 = vand.u32 %v5548, 4294901760
        %v5882 = vsub.f32 %v5548, %v5881
        %v5883 = vand.u32 %v5882, 4294901760
        %v5884 = vsub.f32 %v5882, %v5883
        %v5885 = vand.u32 %v5884, 4294901760
        %5886 = vmatprep.subr.mxu0 %v5885
        %v5887 = vand.u32 %v5547, 4294901760
        %v5888 = vsub.f32 %v5547, %v5887
        %v5889 = vand.u32 %v5888, 4294901760
        %v5890 = vsub.f32 %v5888, %v5889
        %v5891 = vand.u32 %v5890, 4294901760
        %5892 = vmatpush1.msra.mxu0 %v5891
        %v5893 = vand.u32 %v5550, 4294901760
        %v5894 = vsub.f32 %v5550, %v5893
        %v5895 = vand.u32 %v5894, 4294901760
        %v5896 = vsub.f32 %v5894, %v5895
        %v5897 = vand.u32 %v5896, 4294901760
        %5898 = vmatprep.subr.mxu0 %v5897
        %v5899 = vand.u32 %v5549, 4294901760
        %v5900 = vsub.f32 %v5549, %v5899
        %v5901 = vand.u32 %v5900, 4294901760
        %v5902 = vsub.f32 %v5900, %v5901
        %v5903 = vand.u32 %v5902, 4294901760
        %5904 = vmatpush1.msra.mxu0 %v5903
        %v5905 = vand.u32 %v5552, 4294901760
        %v5906 = vsub.f32 %v5552, %v5905
        %v5907 = vand.u32 %v5906, 4294901760
        %v5908 = vsub.f32 %v5906, %v5907
        %v5909 = vand.u32 %v5908, 4294901760
        %5910 = vmatprep.subr.mxu0 %v5909
        %v5911 = vand.u32 %v5551, 4294901760
        %v5912 = vsub.f32 %v5551, %v5911
        %v5913 = vand.u32 %v5912, 4294901760
        %v5914 = vsub.f32 %v5912, %v5913
        %v5915 = vand.u32 %v5914, 4294901760
        %5916 = vmatpush1.msra.mxu0 %v5915
        %v5917 = vand.u32 %v5554, 4294901760
        %v5918 = vsub.f32 %v5554, %v5917
        %v5919 = vand.u32 %v5918, 4294901760
        %v5920 = vsub.f32 %v5918, %v5919
        %v5921 = vand.u32 %v5920, 4294901760
        %5922 = vmatprep.subr.mxu0 %v5921
        %v5923 = vand.u32 %v5553, 4294901760
        %v5924 = vsub.f32 %v5553, %v5923
        %v5925 = vand.u32 %v5924, 4294901760
        %v5926 = vsub.f32 %v5924, %v5925
        %v5927 = vand.u32 %v5926, 4294901760
        %5928 = vmatpush1.msra.mxu0 %v5927
        %v5929 = vand.u32 %v5556, 4294901760
        %v5930 = vsub.f32 %v5556, %v5929
        %v5931 = vand.u32 %v5930, 4294901760
        %v5932 = vsub.f32 %v5930, %v5931
        %v5933 = vand.u32 %v5932, 4294901760
        %5934 = vmatprep.subr.mxu0 %v5933
        %v5935 = vand.u32 %v5555, 4294901760
        %v5936 = vsub.f32 %v5555, %v5935
        %v5937 = vand.u32 %v5936, 4294901760
        %v5938 = vsub.f32 %v5936, %v5937
        %v5939 = vand.u32 %v5938, 4294901760
        %5940 = vmatpush1.msra.mxu0 %v5939
        %v5941 = vand.u32 %v5612, 4294901760
        %v5942 = vsub.f32 %v5612, %v5941
        %v5943 = vand.u32 %v5942, 4294901760
        %v5944 = vsub.f32 %v5942, %v5943
        %v5945 = vand.u32 %v5944, 4294901760
        %5946 = vmatprep.subr.mxu0 %v5945
        %v5947 = vand.u32 %v5609, 4294901760
        %v5948 = vsub.f32 %v5609, %v5947
        %v5949 = vand.u32 %v5948, 4294901760
        %v5950 = vsub.f32 %v5948, %v5949
        %v5951 = vand.u32 %v5950, 4294901760
        %5952 = vmatpush1.msra.mxu0 %v5951
        %5953 = vmatprep.subr.mxu0 0.0
        %5954 = vmatpush1.msra.mxu0 0.0
        %5955 = vmatprep.subr.mxu0 0.0
        %5956 = vmatpush1.msra.mxu0 0.0
        %5957 = vmatprep.subr.mxu0 0.0
        %5958 = vmatpush1.msra.mxu0 0.0
        %5959 = vmatprep.subr.mxu0 0.0
        %5960 = vmatpush1.msra.mxu0 0.0
        %5961 = vmatprep.subr.mxu0 0.0
        %5962 = vmatpush1.msra.mxu0 0.0
        %5963 = vmatprep.subr.mxu0 0.0
        %5964 = vmatpush1.msra.mxu0 0.0
        %5965 = vmatprep.subr.mxu0 0.0
        %5966 = vmatpush1.msra.mxu0 0.0
        %5967 = vmatprep.subr.mxu0 0.0
        %5968 = vmatpush1.msra.mxu0 0.0
        %5969 = vmatprep.subr.mxu0 0.0
        %5970 = vmatpush1.msra.mxu0 0.0
        %5971 = vmatprep.subr.mxu0 0.0
        %5972 = vmatpush1.msra.mxu0 0.0
        %5973 = vmatprep.subr.mxu0 0.0
        %5974 = vmatpush1.msra.mxu0 0.0
        %5975 = vmatprep.subr.mxu0 0.0
        %5976 = vmatpush1.msra.mxu0 0.0
        %5977 = vmatprep.subr.mxu0 0.0
        %5978 = vmatpush1.msra.mxu0 0.0
        %5979 = vmatprep.subr.mxu0 0.0
        %5980 = vmatpush1.msra.mxu0 0.0
        %5981 = vmatprep.subr.mxu0 0.0
        %5982 = vmatpush1.msra.mxu0 0.0
        %5983 = vmatprep.subr.mxu0 0.0
        %5984 = vmatpush1.msra.mxu0 0.0
        %5985 = vmatprep.subr.mxu0 0.0
        %5986 = vmatpush1.msra.mxu0 0.0
        %5987 = vmatprep.subr.mxu0 0.0
        %5988 = vmatpush1.msra.mxu0 0.0
        %5989 = vmatprep.subr.mxu0 0.0
        %5990 = vmatpush1.msra.mxu0 0.0
        %5991 = vmatprep.subr.mxu0 0.0
        %5992 = vmatpush1.msra.mxu0 0.0
        %5993 = vmatprep.subr.mxu0 0.0
        %5994 = vmatpush1.msra.mxu0 0.0
        %5995 = vmatprep.subr.mxu0 0.0
        %5996 = vmatpush1.msra.mxu0 0.0
        %5997 = vmatprep.subr.mxu0 0.0
        %5998 = vmatpush1.msra.mxu0 0.0
        %5999 = vmatprep.subr.mxu0 0.0
        %6000 = vmatpush1.msra.mxu0 0.0
        %6001 = vmatprep.subr.mxu0 0.0
        %6002 = vmatpush1.msra.mxu0 0.0
        %6003 = vmatprep.mubr.f32.mxu0 0.0
        %v6004 = vand.u32 %v5560, 4294901760
        %6005 = vmatmul.mubr.f32.gmra.mrb[0].mxu0 %v6004
        %v6006 = vpop.f32.mrb[0].mxu0
        %v6007 = vadd.f32 %v5700, %v6006
        %v6008 = vpop.f32.mrb[0].mxu0
        %v6009 = vadd.f32 %v5702, %v6008
        %6010 = vmatprep.mubr.f32.mxu0 0.0
        %v6011 = vand.u32 %v5563, 4294901760
        %6012 = vmatmul.mubr.f32.gmra.mrb[0].mxu0 %v6011
        %v6013 = vpop.f32.mrb[0].mxu0
        %v6014 = vadd.f32 %v5711, %v6013
        %v6015 = vpop.f32.mrb[0].mxu0
        %v6016 = vadd.f32 %v5713, %v6015
        %6017 = vmatprep.mubr.f32.mxu0 0.0
        %v6018 = vand.u32 %v5566, 4294901760
        %6019 = vmatmul.mubr.f32.gmra.mrb[0].mxu0 %v6018
        %v6020 = vpop.f32.mrb[0].mxu0
        %v6021 = vadd.f32 %v5722, %v6020
        %v6022 = vpop.f32.mrb[0].mxu0
        %v6023 = vadd.f32 %v5724, %v6022
        %6024 = vmatprep.mubr.f32.mxu0 0.0
        %v6025 = vand.u32 %v5569, 4294901760
        %6026 = vmatmul.mubr.f32.gmra.mrb[0].mxu0 %v6025
        %v6027 = vpop.f32.mrb[0].mxu0
        %v6028 = vadd.f32 %v5733, %v6027
        %v6029 = vpop.f32.mrb[0].mxu0
        %v6030 = vadd.f32 %v5735, %v6029
        %6031 = vmatprep.mubr.f32.mxu0 0.0
        %v6032 = vand.u32 %v5572, 4294901760
        %6033 = vmatmul.mubr.f32.gmra.mrb[0].mxu0 %v6032
        %v6034 = vpop.f32.mrb[0].mxu0
        %v6035 = vadd.f32 %v5744, %v6034
        %v6036 = vpop.f32.mrb[0].mxu0
        %v6037 = vadd.f32 %v5746, %v6036
        %6038 = vmatprep.mubr.f32.mxu0 0.0
        %v6039 = vand.u32 %v5575, 4294901760
        %6040 = vmatmul.mubr.f32.gmra.mrb[0].mxu0 %v6039
        %v6041 = vpop.f32.mrb[0].mxu0
        %v6042 = vadd.f32 %v5755, %v6041
        %v6043 = vpop.f32.mrb[0].mxu0
        %v6044 = vadd.f32 %v5757, %v6043
        %6045 = vmatprep.mubr.f32.mxu0 0.0
        %v6046 = vand.u32 %v5578, 4294901760
        %6047 = vmatmul.mubr.f32.gmra.mrb[0].mxu0 %v6046
        %v6048 = vpop.f32.mrb[0].mxu0
        %v6049 = vadd.f32 %v5766, %v6048
        %v6050 = vpop.f32.mrb[0].mxu0
        %v6051 = vadd.f32 %v5768, %v6050
        %6052 = vmatprep.mubr.f32.mxu0 0.0
        %v6053 = vand.u32 %v5581, 4294901760
        %6054 = vmatmul.mubr.f32.gmra.mrb[0].mxu0 %v6053
        %v6055 = vpop.f32.mrb[0].mxu0
        %v6056 = vadd.f32 %v5777, %v6055
        %v6057 = vpop.f32.mrb[0].mxu0
        %v6058 = vadd.f32 %v5779, %v6057
        %6059 = vmatprep.mubr.f32.mxu0 0.0
        %v6060 = vand.u32 %v5584, 4294901760
        %6061 = vmatmul.mubr.f32.gmra.mrb[0].mxu0 %v6060
        %v6062 = vpop.f32.mrb[0].mxu0
        %v6063 = vadd.f32 %v5788, %v6062
        %v6064 = vpop.f32.mrb[0].mxu0
        %v6065 = vadd.f32 %v5790, %v6064
        %6066 = vmatprep.mubr.f32.mxu0 0.0
        %v6067 = vand.u32 %v5587, 4294901760
        %6068 = vmatmul.mubr.f32.gmra.mrb[0].mxu0 %v6067
        %v6069 = vpop.f32.mrb[0].mxu0
        %v6070 = vadd.f32 %v5799, %v6069
        %v6071 = vpop.f32.mrb[0].mxu0
        %v6072 = vadd.f32 %v5801, %v6071
        %6073 = vmatprep.mubr.f32.mxu0 0.0
        %v6074 = vand.u32 %v5590, 4294901760
        %6075 = vmatmul.mubr.f32.gmra.mrb[0].mxu0 %v6074
        %v6076 = vpop.f32.mrb[0].mxu0
        %v6077 = vadd.f32 %v5810, %v6076
        %v6078 = vpop.f32.mrb[0].mxu0
        %v6079 = vadd.f32 %v5812, %v6078
        %6080 = vmatprep.mubr.f32.mxu0 0.0
        %v6081 = vand.u32 %v5593, 4294901760
        %6082 = vmatmul.mubr.f32.gmra.mrb[0].mxu0 %v6081
        %v6083 = vpop.f32.mrb[0].mxu0
        %v6084 = vadd.f32 %v5821, %v6083
        %v6085 = vpop.f32.mrb[0].mxu0
        %v6086 = vadd.f32 %v5823, %v6085
        %6087 = vmatprep.mubr.f32.mxu0 0.0
        %v6088 = vand.u32 %v5596, 4294901760
        %6089 = vmatmul.mubr.f32.gmra.mrb[0].mxu0 %v6088
        %v6090 = vpop.f32.mrb[0].mxu0
        %v6091 = vadd.f32 %v5832, %v6090
        %v6092 = vpop.f32.mrb[0].mxu0
        %v6093 = vadd.f32 %v5834, %v6092
        %6094 = vmatprep.mubr.f32.mxu0 0.0
        %v6095 = vand.u32 %v5599, 4294901760
        %6096 = vmatmul.mubr.f32.gmra.mrb[0].mxu0 %v6095
        %v6097 = vpop.f32.mrb[0].mxu0
        %v6098 = vadd.f32 %v5843, %v6097
        %v6099 = vpop.f32.mrb[0].mxu0
        %v6100 = vadd.f32 %v5845, %v6099
        %6101 = vmatprep.mubr.f32.mxu0 0.0
        %v6102 = vand.u32 %v5602, 4294901760
        %6103 = vmatmul.mubr.f32.gmra.mrb[0].mxu0 %v6102
        %v6104 = vpop.f32.mrb[0].mxu0
        %v6105 = vadd.f32 %v5854, %v6104
        %v6106 = vpop.f32.mrb[0].mxu0
        %v6107 = vadd.f32 %v5856, %v6106
        %6108 = vmatprep.mubr.f32.mxu0 0.0
        %v6109 = vand.u32 %v5605, 4294901760
        %6110 = vmatmul.mubr.f32.gmra.mrb[0].mxu0 %v6109
        %v6111 = vpop.f32.mrb[0].mxu0
        %v6112 = vadd.f32 %v5865, %v6111
        %v6113 = vpop.f32.mrb[0].mxu0
        %v6114 = vadd.f32 %v5867, %v6113
        %6115 = vdwg.mxu0
        %v6116 = vand.u32 %v5546, 4294901760
        %v6117 = vsub.f32 %v5546, %v6116
        %6118 = vmatprep.subr.mxu0 %v6117
        %v6119 = vand.u32 %v5545, 4294901760
        %v6120 = vsub.f32 %v5545, %v6119
        %6121 = vmatpush1.msra.mxu0 %v6120
        %v6122 = vand.u32 %v5548, 4294901760
        %v6123 = vsub.f32 %v5548, %v6122
        %6124 = vmatprep.subr.mxu0 %v6123
        %v6125 = vand.u32 %v5547, 4294901760
        %v6126 = vsub.f32 %v5547, %v6125
        %6127 = vmatpush1.msra.mxu0 %v6126
        %v6128 = vand.u32 %v5550, 4294901760
        %v6129 = vsub.f32 %v5550, %v6128
        %6130 = vmatprep.subr.mxu0 %v6129
        %v6131 = vand.u32 %v5549, 4294901760
        %v6132 = vsub.f32 %v5549, %v6131
        %6133 = vmatpush1.msra.mxu0 %v6132
        %v6134 = vand.u32 %v5552, 4294901760
        %v6135 = vsub.f32 %v5552, %v6134
        %6136 = vmatprep.subr.mxu0 %v6135
        %v6137 = vand.u32 %v5551, 4294901760
        %v6138 = vsub.f32 %v5551, %v6137
        %6139 = vmatpush1.msra.mxu0 %v6138
        %v6140 = vand.u32 %v5554, 4294901760
        %v6141 = vsub.f32 %v5554, %v6140
        %6142 = vmatprep.subr.mxu0 %v6141
        %v6143 = vand.u32 %v5553, 4294901760
        %v6144 = vsub.f32 %v5553, %v6143
        %6145 = vmatpush1.msra.mxu0 %v6144
        %v6146 = vand.u32 %v5556, 4294901760
        %v6147 = vsub.f32 %v5556, %v6146
        %6148 = vmatprep.subr.mxu0 %v6147
        %v6149 = vand.u32 %v5555, 4294901760
        %v6150 = vsub.f32 %v5555, %v6149
        %6151 = vmatpush1.msra.mxu0 %v6150
        %v6152 = vand.u32 %v5612, 4294901760
        %v6153 = vsub.f32 %v5612, %v6152
        %6154 = vmatprep.subr.mxu0 %v6153
        %v6155 = vand.u32 %v5609, 4294901760
        %v6156 = vsub.f32 %v5609, %v6155
        %6157 = vmatpush1.msra.mxu0 %v6156
        %6158 = vmatprep.subr.mxu0 0.0
        %6159 = vmatpush1.msra.mxu0 0.0
        %6160 = vmatprep.subr.mxu0 0.0
        %6161 = vmatpush1.msra.mxu0 0.0
        %6162 = vmatprep.subr.mxu0 0.0
        %6163 = vmatpush1.msra.mxu0 0.0
        %6164 = vmatprep.subr.mxu0 0.0
        %6165 = vmatpush1.msra.mxu0 0.0
        %6166 = vmatprep.subr.mxu0 0.0
        %6167 = vmatpush1.msra.mxu0 0.0
        %6168 = vmatprep.subr.mxu0 0.0
        %6169 = vmatpush1.msra.mxu0 0.0
        %6170 = vmatprep.subr.mxu0 0.0
        %6171 = vmatpush1.msra.mxu0 0.0
        %6172 = vmatprep.subr.mxu0 0.0
        %6173 = vmatpush1.msra.mxu0 0.0
        %6174 = vmatprep.subr.mxu0 0.0
        %6175 = vmatpush1.msra.mxu0 0.0
        %6176 = vmatprep.subr.mxu0 0.0
        %6177 = vmatpush1.msra.mxu0 0.0
        %6178 = vmatprep.subr.mxu0 0.0
        %6179 = vmatpush1.msra.mxu0 0.0
        %6180 = vmatprep.subr.mxu0 0.0
        %6181 = vmatpush1.msra.mxu0 0.0
        %6182 = vmatprep.subr.mxu0 0.0
        %6183 = vmatpush1.msra.mxu0 0.0
        %6184 = vmatprep.subr.mxu0 0.0
        %6185 = vmatpush1.msra.mxu0 0.0
        %6186 = vmatprep.subr.mxu0 0.0
        %6187 = vmatpush1.msra.mxu0 0.0
        %6188 = vmatprep.subr.mxu0 0.0
        %6189 = vmatpush1.msra.mxu0 0.0
        %6190 = vmatprep.subr.mxu0 0.0
        %6191 = vmatpush1.msra.mxu0 0.0
        %6192 = vmatprep.subr.mxu0 0.0
        %6193 = vmatpush1.msra.mxu0 0.0
        %6194 = vmatprep.subr.mxu0 0.0
        %6195 = vmatpush1.msra.mxu0 0.0
        %6196 = vmatprep.subr.mxu0 0.0
        %6197 = vmatpush1.msra.mxu0 0.0
        %6198 = vmatprep.subr.mxu0 0.0
        %6199 = vmatpush1.msra.mxu0 0.0
        %6200 = vmatprep.subr.mxu0 0.0
        %6201 = vmatpush1.msra.mxu0 0.0
        %6202 = vmatprep.subr.mxu0 0.0
        %6203 = vmatpush1.msra.mxu0 0.0
        %6204 = vmatprep.subr.mxu0 0.0
        %6205 = vmatpush1.msra.mxu0 0.0
        %6206 = vmatprep.subr.mxu0 0.0
        %6207 = vmatpush1.msra.mxu0 0.0
        %6208 = vmatprep.mubr.f32.mxu0 0.0
        %v6209 = vand.u32 %v5560, 4294901760
        %v6210 = vsub.f32 %v5560, %v6209
        %6211 = vmatmul.mubr.f32.gmra.mrb[0].mxu0 %v6210
        %v6212 = vpop.f32.mrb[0].mxu0
        %v6213 = vadd.f32 %v6007, %v6212
        %v6214 = vpop.f32.mrb[0].mxu0
        %v6215 = vadd.f32 %v6009, %v6214
        %6216 = vmatprep.mubr.f32.mxu0 0.0
        %v6217 = vand.u32 %v5563, 4294901760
        %v6218 = vsub.f32 %v5563, %v6217
        %6219 = vmatmul.mubr.f32.gmra.mrb[0].mxu0 %v6218
        %v6220 = vpop.f32.mrb[0].mxu0
        %v6221 = vadd.f32 %v6014, %v6220
        %v6222 = vpop.f32.mrb[0].mxu0
        %v6223 = vadd.f32 %v6016, %v6222
        %6224 = vmatprep.mubr.f32.mxu0 0.0
        %v6225 = vand.u32 %v5566, 4294901760
        %v6226 = vsub.f32 %v5566, %v6225
        %6227 = vmatmul.mubr.f32.gmra.mrb[0].mxu0 %v6226
        %v6228 = vpop.f32.mrb[0].mxu0
        %v6229 = vadd.f32 %v6021, %v6228
        %v6230 = vpop.f32.mrb[0].mxu0
        %v6231 = vadd.f32 %v6023, %v6230
        %6232 = vmatprep.mubr.f32.mxu0 0.0
        %v6233 = vand.u32 %v5569, 4294901760
        %v6234 = vsub.f32 %v5569, %v6233
        %6235 = vmatmul.mubr.f32.gmra.mrb[0].mxu0 %v6234
        %v6236 = vpop.f32.mrb[0].mxu0
        %v6237 = vadd.f32 %v6028, %v6236
        %v6238 = vpop.f32.mrb[0].mxu0
        %v6239 = vadd.f32 %v6030, %v6238
        %6240 = vmatprep.mubr.f32.mxu0 0.0
        %v6241 = vand.u32 %v5572, 4294901760
        %v6242 = vsub.f32 %v5572, %v6241
        %6243 = vmatmul.mubr.f32.gmra.mrb[0].mxu0 %v6242
        %v6244 = vpop.f32.mrb[0].mxu0
        %v6245 = vadd.f32 %v6035, %v6244
        %v6246 = vpop.f32.mrb[0].mxu0
        %v6247 = vadd.f32 %v6037, %v6246
        %6248 = vmatprep.mubr.f32.mxu0 0.0
        %v6249 = vand.u32 %v5575, 4294901760
        %v6250 = vsub.f32 %v5575, %v6249
        %6251 = vmatmul.mubr.f32.gmra.mrb[0].mxu0 %v6250
        %v6252 = vpop.f32.mrb[0].mxu0
        %v6253 = vadd.f32 %v6042, %v6252
        %v6254 = vpop.f32.mrb[0].mxu0
        %v6255 = vadd.f32 %v6044, %v6254
        %6256 = vmatprep.mubr.f32.mxu0 0.0
        %v6257 = vand.u32 %v5578, 4294901760
        %v6258 = vsub.f32 %v5578, %v6257
        %6259 = vmatmul.mubr.f32.gmra.mrb[0].mxu0 %v6258
        %v6260 = vpop.f32.mrb[0].mxu0
        %v6261 = vadd.f32 %v6049, %v6260
        %v6262 = vpop.f32.mrb[0].mxu0
        %v6263 = vadd.f32 %v6051, %v6262
        %6264 = vmatprep.mubr.f32.mxu0 0.0
        %v6265 = vand.u32 %v5581, 4294901760
        %v6266 = vsub.f32 %v5581, %v6265
        %6267 = vmatmul.mubr.f32.gmra.mrb[0].mxu0 %v6266
        %v6268 = vpop.f32.mrb[0].mxu0
        %v6269 = vadd.f32 %v6056, %v6268
        %v6270 = vpop.f32.mrb[0].mxu0
        %v6271 = vadd.f32 %v6058, %v6270
        %6272 = vmatprep.mubr.f32.mxu0 0.0
        %v6273 = vand.u32 %v5584, 4294901760
        %v6274 = vsub.f32 %v5584, %v6273
        %6275 = vmatmul.mubr.f32.gmra.mrb[0].mxu0 %v6274
        %v6276 = vpop.f32.mrb[0].mxu0
        %v6277 = vadd.f32 %v6063, %v6276
        %v6278 = vpop.f32.mrb[0].mxu0
        %v6279 = vadd.f32 %v6065, %v6278
        %6280 = vmatprep.mubr.f32.mxu0 0.0
        %v6281 = vand.u32 %v5587, 4294901760
        %v6282 = vsub.f32 %v5587, %v6281
        %6283 = vmatmul.mubr.f32.gmra.mrb[0].mxu0 %v6282
        %v6284 = vpop.f32.mrb[0].mxu0
        %v6285 = vadd.f32 %v6070, %v6284
        %v6286 = vpop.f32.mrb[0].mxu0
        %v6287 = vadd.f32 %v6072, %v6286
        %6288 = vmatprep.mubr.f32.mxu0 0.0
        %v6289 = vand.u32 %v5590, 4294901760
        %v6290 = vsub.f32 %v5590, %v6289
        %6291 = vmatmul.mubr.f32.gmra.mrb[0].mxu0 %v6290
        %v6292 = vpop.f32.mrb[0].mxu0
        %v6293 = vadd.f32 %v6077, %v6292
        %v6294 = vpop.f32.mrb[0].mxu0
        %v6295 = vadd.f32 %v6079, %v6294
        %6296 = vmatprep.mubr.f32.mxu0 0.0
        %v6297 = vand.u32 %v5593, 4294901760
        %v6298 = vsub.f32 %v5593, %v6297
        %6299 = vmatmul.mubr.f32.gmra.mrb[0].mxu0 %v6298
        %v6300 = vpop.f32.mrb[0].mxu0
        %v6301 = vadd.f32 %v6084, %v6300
        %v6302 = vpop.f32.mrb[0].mxu0
        %v6303 = vadd.f32 %v6086, %v6302
        %6304 = vmatprep.mubr.f32.mxu0 0.0
        %v6305 = vand.u32 %v5596, 4294901760
        %v6306 = vsub.f32 %v5596, %v6305
        %6307 = vmatmul.mubr.f32.gmra.mrb[0].mxu0 %v6306
        %v6308 = vpop.f32.mrb[0].mxu0
        %v6309 = vadd.f32 %v6091, %v6308
        %v6310 = vpop.f32.mrb[0].mxu0
        %v6311 = vadd.f32 %v6093, %v6310
        %6312 = vmatprep.mubr.f32.mxu0 0.0
        %v6313 = vand.u32 %v5599, 4294901760
        %v6314 = vsub.f32 %v5599, %v6313
        %6315 = vmatmul.mubr.f32.gmra.mrb[0].mxu0 %v6314
        %v6316 = vpop.f32.mrb[0].mxu0
        %v6317 = vadd.f32 %v6098, %v6316
        %v6318 = vpop.f32.mrb[0].mxu0
        %v6319 = vadd.f32 %v6100, %v6318
        %6320 = vmatprep.mubr.f32.mxu0 0.0
        %v6321 = vand.u32 %v5602, 4294901760
        %v6322 = vsub.f32 %v5602, %v6321
        %6323 = vmatmul.mubr.f32.gmra.mrb[0].mxu0 %v6322
        %v6324 = vpop.f32.mrb[0].mxu0
        %v6325 = vadd.f32 %v6105, %v6324
        %v6326 = vpop.f32.mrb[0].mxu0
        %v6327 = vadd.f32 %v6107, %v6326
        %6328 = vmatprep.mubr.f32.mxu0 0.0
        %v6329 = vand.u32 %v5605, 4294901760
        %v6330 = vsub.f32 %v5605, %v6329
        %6331 = vmatmul.mubr.f32.gmra.mrb[0].mxu0 %v6330
        %v6332 = vpop.f32.mrb[0].mxu0
        %v6333 = vadd.f32 %v6112, %v6332
        %v6334 = vpop.f32.mrb[0].mxu0
        %v6335 = vadd.f32 %v6114, %v6334
        %6336 = vdwg.mxu0
        %v6337 = vand.u32 %v5546, 4294901760
        %6338 = vmatprep.subr.mxu0 %v6337
        %v6339 = vand.u32 %v5545, 4294901760
        %6340 = vmatpush1.msra.mxu0 %v6339
        %v6341 = vand.u32 %v5548, 4294901760
        %6342 = vmatprep.subr.mxu0 %v6341
        %v6343 = vand.u32 %v5547, 4294901760
        %6344 = vmatpush1.msra.mxu0 %v6343
        %v6345 = vand.u32 %v5550, 4294901760
        %6346 = vmatprep.subr.mxu0 %v6345
        %v6347 = vand.u32 %v5549, 4294901760
        %6348 = vmatpush1.msra.mxu0 %v6347
        %v6349 = vand.u32 %v5552, 4294901760
        %6350 = vmatprep.subr.mxu0 %v6349
        %v6351 = vand.u32 %v5551, 4294901760
        %6352 = vmatpush1.msra.mxu0 %v6351
        %v6353 = vand.u32 %v5554, 4294901760
        %6354 = vmatprep.subr.mxu0 %v6353
        %v6355 = vand.u32 %v5553, 4294901760
        %6356 = vmatpush1.msra.mxu0 %v6355
        %v6357 = vand.u32 %v5556, 4294901760
        %6358 = vmatprep.subr.mxu0 %v6357
        %v6359 = vand.u32 %v5555, 4294901760
        %6360 = vmatpush1.msra.mxu0 %v6359
        %v6361 = vand.u32 %v5612, 4294901760
        %6362 = vmatprep.subr.mxu0 %v6361
        %v6363 = vand.u32 %v5609, 4294901760
        %6364 = vmatpush1.msra.mxu0 %v6363
        %6365 = vmatprep.subr.mxu0 0.0
        %6366 = vmatpush1.msra.mxu0 0.0
        %6367 = vmatprep.subr.mxu0 0.0
        %6368 = vmatpush1.msra.mxu0 0.0
        %6369 = vmatprep.subr.mxu0 0.0
        %6370 = vmatpush1.msra.mxu0 0.0
        %6371 = vmatprep.subr.mxu0 0.0
        %6372 = vmatpush1.msra.mxu0 0.0
        %6373 = vmatprep.subr.mxu0 0.0
        %6374 = vmatpush1.msra.mxu0 0.0
        %6375 = vmatprep.subr.mxu0 0.0
        %6376 = vmatpush1.msra.mxu0 0.0
        %6377 = vmatprep.subr.mxu0 0.0
        %6378 = vmatpush1.msra.mxu0 0.0
        %6379 = vmatprep.subr.mxu0 0.0
        %6380 = vmatpush1.msra.mxu0 0.0
        %6381 = vmatprep.subr.mxu0 0.0
        %6382 = vmatpush1.msra.mxu0 0.0
        %6383 = vmatprep.subr.mxu0 0.0
        %6384 = vmatpush1.msra.mxu0 0.0
        %6385 = vmatprep.subr.mxu0 0.0
        %6386 = vmatpush1.msra.mxu0 0.0
        %6387 = vmatprep.subr.mxu0 0.0
        %6388 = vmatpush1.msra.mxu0 0.0
        %6389 = vmatprep.subr.mxu0 0.0
        %6390 = vmatpush1.msra.mxu0 0.0
        %6391 = vmatprep.subr.mxu0 0.0
        %6392 = vmatpush1.msra.mxu0 0.0
        %6393 = vmatprep.subr.mxu0 0.0
        %6394 = vmatpush1.msra.mxu0 0.0
        %6395 = vmatprep.subr.mxu0 0.0
        %6396 = vmatpush1.msra.mxu0 0.0
        %6397 = vmatprep.subr.mxu0 0.0
        %6398 = vmatpush1.msra.mxu0 0.0
        %6399 = vmatprep.subr.mxu0 0.0
        %6400 = vmatpush1.msra.mxu0 0.0
        %6401 = vmatprep.subr.mxu0 0.0
        %6402 = vmatpush1.msra.mxu0 0.0
        %6403 = vmatprep.subr.mxu0 0.0
        %6404 = vmatpush1.msra.mxu0 0.0
        %6405 = vmatprep.subr.mxu0 0.0
        %6406 = vmatpush1.msra.mxu0 0.0
        %6407 = vmatprep.subr.mxu0 0.0
        %6408 = vmatpush1.msra.mxu0 0.0
        %6409 = vmatprep.subr.mxu0 0.0
        %6410 = vmatpush1.msra.mxu0 0.0
        %6411 = vmatprep.subr.mxu0 0.0
        %6412 = vmatpush1.msra.mxu0 0.0
        %6413 = vmatprep.subr.mxu0 0.0
        %6414 = vmatpush1.msra.mxu0 0.0
        %6415 = vmatprep.mubr.f32.mxu0 0.0
        %v6416 = vand.u32 %v5560, 4294901760
        %v6417 = vsub.f32 %v5560, %v6416
        %v6418 = vand.u32 %v6417, 4294901760
        %6419 = vmatmul.mubr.f32.gmra.mrb[0].mxu0 %v6418
        %v6420 = vpop.f32.mrb[0].mxu0
        %v6421 = vadd.f32 %v6213, %v6420
        %v6422 = vpop.f32.mrb[0].mxu0
        %v6423 = vadd.f32 %v6215, %v6422
        %6424 = vmatprep.mubr.f32.mxu0 0.0
        %v6425 = vand.u32 %v5563, 4294901760
        %v6426 = vsub.f32 %v5563, %v6425
        %v6427 = vand.u32 %v6426, 4294901760
        %6428 = vmatmul.mubr.f32.gmra.mrb[0].mxu0 %v6427
        %v6429 = vpop.f32.mrb[0].mxu0
        %v6430 = vadd.f32 %v6221, %v6429
        %v6431 = vpop.f32.mrb[0].mxu0
        %v6432 = vadd.f32 %v6223, %v6431
        %6433 = vmatprep.mubr.f32.mxu0 0.0
        %v6434 = vand.u32 %v5566, 4294901760
        %v6435 = vsub.f32 %v5566, %v6434
        %v6436 = vand.u32 %v6435, 4294901760
        %6437 = vmatmul.mubr.f32.gmra.mrb[0].mxu0 %v6436
        %v6438 = vpop.f32.mrb[0].mxu0
        %v6439 = vadd.f32 %v6229, %v6438
        %v6440 = vpop.f32.mrb[0].mxu0
        %v6441 = vadd.f32 %v6231, %v6440
        %6442 = vmatprep.mubr.f32.mxu0 0.0
        %v6443 = vand.u32 %v5569, 4294901760
        %v6444 = vsub.f32 %v5569, %v6443
        %v6445 = vand.u32 %v6444, 4294901760
        %6446 = vmatmul.mubr.f32.gmra.mrb[0].mxu0 %v6445
        %v6447 = vpop.f32.mrb[0].mxu0
        %v6448 = vadd.f32 %v6237, %v6447
        %v6449 = vpop.f32.mrb[0].mxu0
        %v6450 = vadd.f32 %v6239, %v6449
        %6451 = vmatprep.mubr.f32.mxu0 0.0
        %v6452 = vand.u32 %v5572, 4294901760
        %v6453 = vsub.f32 %v5572, %v6452
        %v6454 = vand.u32 %v6453, 4294901760
        %6455 = vmatmul.mubr.f32.gmra.mrb[0].mxu0 %v6454
        %v6456 = vpop.f32.mrb[0].mxu0
        %v6457 = vadd.f32 %v6245, %v6456
        %v6458 = vpop.f32.mrb[0].mxu0
        %v6459 = vadd.f32 %v6247, %v6458
        %6460 = vmatprep.mubr.f32.mxu0 0.0
        %v6461 = vand.u32 %v5575, 4294901760
        %v6462 = vsub.f32 %v5575, %v6461
        %v6463 = vand.u32 %v6462, 4294901760
        %6464 = vmatmul.mubr.f32.gmra.mrb[0].mxu0 %v6463
        %v6465 = vpop.f32.mrb[0].mxu0
        %v6466 = vadd.f32 %v6253, %v6465
        %v6467 = vpop.f32.mrb[0].mxu0
        %v6468 = vadd.f32 %v6255, %v6467
        %6469 = vmatprep.mubr.f32.mxu0 0.0
        %v6470 = vand.u32 %v5578, 4294901760
        %v6471 = vsub.f32 %v5578, %v6470
        %v6472 = vand.u32 %v6471, 4294901760
        %6473 = vmatmul.mubr.f32.gmra.mrb[0].mxu0 %v6472
        %v6474 = vpop.f32.mrb[0].mxu0
        %v6475 = vadd.f32 %v6261, %v6474
        %v6476 = vpop.f32.mrb[0].mxu0
        %v6477 = vadd.f32 %v6263, %v6476
        %6478 = vmatprep.mubr.f32.mxu0 0.0
        %v6479 = vand.u32 %v5581, 4294901760
        %v6480 = vsub.f32 %v5581, %v6479
        %v6481 = vand.u32 %v6480, 4294901760
        %6482 = vmatmul.mubr.f32.gmra.mrb[0].mxu0 %v6481
        %v6483 = vpop.f32.mrb[0].mxu0
        %v6484 = vadd.f32 %v6269, %v6483
        %v6485 = vpop.f32.mrb[0].mxu0
        %v6486 = vadd.f32 %v6271, %v6485
        %6487 = vmatprep.mubr.f32.mxu0 0.0
        %v6488 = vand.u32 %v5584, 4294901760
        %v6489 = vsub.f32 %v5584, %v6488
        %v6490 = vand.u32 %v6489, 4294901760
        %6491 = vmatmul.mubr.f32.gmra.mrb[0].mxu0 %v6490
        %v6492 = vpop.f32.mrb[0].mxu0
        %v6493 = vadd.f32 %v6277, %v6492
        %v6494 = vpop.f32.mrb[0].mxu0
        %v6495 = vadd.f32 %v6279, %v6494
        %6496 = vmatprep.mubr.f32.mxu0 0.0
        %v6497 = vand.u32 %v5587, 4294901760
        %v6498 = vsub.f32 %v5587, %v6497
        %v6499 = vand.u32 %v6498, 4294901760
        %6500 = vmatmul.mubr.f32.gmra.mrb[0].mxu0 %v6499
        %v6501 = vpop.f32.mrb[0].mxu0
        %v6502 = vadd.f32 %v6285, %v6501
        %v6503 = vpop.f32.mrb[0].mxu0
        %v6504 = vadd.f32 %v6287, %v6503
        %6505 = vmatprep.mubr.f32.mxu0 0.0
        %v6506 = vand.u32 %v5590, 4294901760
        %v6507 = vsub.f32 %v5590, %v6506
        %v6508 = vand.u32 %v6507, 4294901760
        %6509 = vmatmul.mubr.f32.gmra.mrb[0].mxu0 %v6508
        %v6510 = vpop.f32.mrb[0].mxu0
        %v6511 = vadd.f32 %v6293, %v6510
        %v6512 = vpop.f32.mrb[0].mxu0
        %v6513 = vadd.f32 %v6295, %v6512
        %6514 = vmatprep.mubr.f32.mxu0 0.0
        %v6515 = vand.u32 %v5593, 4294901760
        %v6516 = vsub.f32 %v5593, %v6515
        %v6517 = vand.u32 %v6516, 4294901760
        %6518 = vmatmul.mubr.f32.gmra.mrb[0].mxu0 %v6517
        %v6519 = vpop.f32.mrb[0].mxu0
        %v6520 = vadd.f32 %v6301, %v6519
        %v6521 = vpop.f32.mrb[0].mxu0
        %v6522 = vadd.f32 %v6303, %v6521
        %6523 = vmatprep.mubr.f32.mxu0 0.0
        %v6524 = vand.u32 %v5596, 4294901760
        %v6525 = vsub.f32 %v5596, %v6524
        %v6526 = vand.u32 %v6525, 4294901760
        %6527 = vmatmul.mubr.f32.gmra.mrb[0].mxu0 %v6526
        %v6528 = vpop.f32.mrb[0].mxu0
        %v6529 = vadd.f32 %v6309, %v6528
        %v6530 = vpop.f32.mrb[0].mxu0
        %v6531 = vadd.f32 %v6311, %v6530
        %6532 = vmatprep.mubr.f32.mxu0 0.0
        %v6533 = vand.u32 %v5599, 4294901760
        %v6534 = vsub.f32 %v5599, %v6533
        %v6535 = vand.u32 %v6534, 4294901760
        %6536 = vmatmul.mubr.f32.gmra.mrb[0].mxu0 %v6535
        %v6537 = vpop.f32.mrb[0].mxu0
        %v6538 = vadd.f32 %v6317, %v6537
        %v6539 = vpop.f32.mrb[0].mxu0
        %v6540 = vadd.f32 %v6319, %v6539
        %6541 = vmatprep.mubr.f32.mxu0 0.0
        %v6542 = vand.u32 %v5602, 4294901760
        %v6543 = vsub.f32 %v5602, %v6542
        %v6544 = vand.u32 %v6543, 4294901760
        %6545 = vmatmul.mubr.f32.gmra.mrb[0].mxu0 %v6544
        %v6546 = vpop.f32.mrb[0].mxu0
        %v6547 = vadd.f32 %v6325, %v6546
        %v6548 = vpop.f32.mrb[0].mxu0
        %v6549 = vadd.f32 %v6327, %v6548
        %6550 = vmatprep.mubr.f32.mxu0 0.0
        %v6551 = vand.u32 %v5605, 4294901760
        %v6552 = vsub.f32 %v5605, %v6551
        %v6553 = vand.u32 %v6552, 4294901760
        %6554 = vmatmul.mubr.f32.gmra.mrb[0].mxu0 %v6553
        %v6555 = vpop.f32.mrb[0].mxu0
        %v6556 = vadd.f32 %v6333, %v6555
        %v6557 = vpop.f32.mrb[0].mxu0
        %v6558 = vadd.f32 %v6335, %v6557
        %6559 = vdwg.mxu0
        %v6560 = vand.u32 %v5546, 4294901760
        %v6561 = vsub.f32 %v5546, %v6560
        %v6562 = vand.u32 %v6561, 4294901760
        %6563 = vmatprep.subr.mxu0 %v6562
        %v6564 = vand.u32 %v5545, 4294901760
        %v6565 = vsub.f32 %v5545, %v6564
        %v6566 = vand.u32 %v6565, 4294901760
        %6567 = vmatpush1.msra.mxu0 %v6566
        %v6568 = vand.u32 %v5548, 4294901760
        %v6569 = vsub.f32 %v5548, %v6568
        %v6570 = vand.u32 %v6569, 4294901760
        %6571 = vmatprep.subr.mxu0 %v6570
        %v6572 = vand.u32 %v5547, 4294901760
        %v6573 = vsub.f32 %v5547, %v6572
        %v6574 = vand.u32 %v6573, 4294901760
        %6575 = vmatpush1.msra.mxu0 %v6574
        %v6576 = vand.u32 %v5550, 4294901760
        %v6577 = vsub.f32 %v5550, %v6576
        %v6578 = vand.u32 %v6577, 4294901760
        %6579 = vmatprep.subr.mxu0 %v6578
        %v6580 = vand.u32 %v5549, 4294901760
        %v6581 = vsub.f32 %v5549, %v6580
        %v6582 = vand.u32 %v6581, 4294901760
        %6583 = vmatpush1.msra.mxu0 %v6582
        %v6584 = vand.u32 %v5552, 4294901760
        %v6585 = vsub.f32 %v5552, %v6584
        %v6586 = vand.u32 %v6585, 4294901760
        %6587 = vmatprep.subr.mxu0 %v6586
        %v6588 = vand.u32 %v5551, 4294901760
        %v6589 = vsub.f32 %v5551, %v6588
        %v6590 = vand.u32 %v6589, 4294901760
        %6591 = vmatpush1.msra.mxu0 %v6590
        %v6592 = vand.u32 %v5554, 4294901760
        %v6593 = vsub.f32 %v5554, %v6592
        %v6594 = vand.u32 %v6593, 4294901760
        %6595 = vmatprep.subr.mxu0 %v6594
        %v6596 = vand.u32 %v5553, 4294901760
        %v6597 = vsub.f32 %v5553, %v6596
        %v6598 = vand.u32 %v6597, 4294901760
        %6599 = vmatpush1.msra.mxu0 %v6598
        %v6600 = vand.u32 %v5556, 4294901760
        %v6601 = vsub.f32 %v5556, %v6600
        %v6602 = vand.u32 %v6601, 4294901760
        %6603 = vmatprep.subr.mxu0 %v6602
        %v6604 = vand.u32 %v5555, 4294901760
        %v6605 = vsub.f32 %v5555, %v6604
        %v6606 = vand.u32 %v6605, 4294901760
        %6607 = vmatpush1.msra.mxu0 %v6606
        %v6608 = vand.u32 %v5612, 4294901760
        %v6609 = vsub.f32 %v5612, %v6608
        %v6610 = vand.u32 %v6609, 4294901760
        %6611 = vmatprep.subr.mxu0 %v6610
        %v6612 = vand.u32 %v5609, 4294901760
        %v6613 = vsub.f32 %v5609, %v6612
        %v6614 = vand.u32 %v6613, 4294901760
        %6615 = vmatpush1.msra.mxu0 %v6614
        %6616 = vmatprep.subr.mxu0 0.0
        %6617 = vmatpush1.msra.mxu0 0.0
        %6618 = vmatprep.subr.mxu0 0.0
        %6619 = vmatpush1.msra.mxu0 0.0
        %6620 = vmatprep.subr.mxu0 0.0
        %6621 = vmatpush1.msra.mxu0 0.0
        %6622 = vmatprep.subr.mxu0 0.0
        %6623 = vmatpush1.msra.mxu0 0.0
        %6624 = vmatprep.subr.mxu0 0.0
        %6625 = vmatpush1.msra.mxu0 0.0
        %6626 = vmatprep.subr.mxu0 0.0
        %6627 = vmatpush1.msra.mxu0 0.0
        %6628 = vmatprep.subr.mxu0 0.0
        %6629 = vmatpush1.msra.mxu0 0.0
        %6630 = vmatprep.subr.mxu0 0.0
        %6631 = vmatpush1.msra.mxu0 0.0
        %6632 = vmatprep.subr.mxu0 0.0
        %6633 = vmatpush1.msra.mxu0 0.0
        %6634 = vmatprep.subr.mxu0 0.0
        %6635 = vmatpush1.msra.mxu0 0.0
        %6636 = vmatprep.subr.mxu0 0.0
        %6637 = vmatpush1.msra.mxu0 0.0
        %6638 = vmatprep.subr.mxu0 0.0
        %6639 = vmatpush1.msra.mxu0 0.0
        %6640 = vmatprep.subr.mxu0 0.0
        %6641 = vmatpush1.msra.mxu0 0.0
        %6642 = vmatprep.subr.mxu0 0.0
        %6643 = vmatpush1.msra.mxu0 0.0
        %6644 = vmatprep.subr.mxu0 0.0
        %6645 = vmatpush1.msra.mxu0 0.0
        %6646 = vmatprep.subr.mxu0 0.0
        %6647 = vmatpush1.msra.mxu0 0.0
        %6648 = vmatprep.subr.mxu0 0.0
        %6649 = vmatpush1.msra.mxu0 0.0
        %6650 = vmatprep.subr.mxu0 0.0
        %6651 = vmatpush1.msra.mxu0 0.0
        %6652 = vmatprep.subr.mxu0 0.0
        %6653 = vmatpush1.msra.mxu0 0.0
        %6654 = vmatprep.subr.mxu0 0.0
        %6655 = vmatpush1.msra.mxu0 0.0
        %6656 = vmatprep.subr.mxu0 0.0
        %6657 = vmatpush1.msra.mxu0 0.0
        %6658 = vmatprep.subr.mxu0 0.0
        %6659 = vmatpush1.msra.mxu0 0.0
        %6660 = vmatprep.subr.mxu0 0.0
        %6661 = vmatpush1.msra.mxu0 0.0
        %6662 = vmatprep.subr.mxu0 0.0
        %6663 = vmatpush1.msra.mxu0 0.0
        %6664 = vmatprep.subr.mxu0 0.0
        %6665 = vmatpush1.msra.mxu0 0.0
        %6666 = vmatprep.mubr.f32.mxu0 0.0
        %v6667 = vand.u32 %v5560, 4294901760
        %6668 = vmatmul.mubr.f32.gmra.mrb[0].mxu0 %v6667
        %v6669 = vpop.f32.mrb[0].mxu0
        %v6670 = vadd.f32 %v6421, %v6669
        %v6671 = vpop.f32.mrb[0].mxu0
        %v6672 = vadd.f32 %v6423, %v6671
        %6673 = vmatprep.mubr.f32.mxu0 0.0
        %v6674 = vand.u32 %v5563, 4294901760
        %6675 = vmatmul.mubr.f32.gmra.mrb[0].mxu0 %v6674
        %v6676 = vpop.f32.mrb[0].mxu0
        %v6677 = vadd.f32 %v6430, %v6676
        %v6678 = vpop.f32.mrb[0].mxu0
        %v6679 = vadd.f32 %v6432, %v6678
        %6680 = vmatprep.mubr.f32.mxu0 0.0
        %v6681 = vand.u32 %v5566, 4294901760
        %6682 = vmatmul.mubr.f32.gmra.mrb[0].mxu0 %v6681
        %v6683 = vpop.f32.mrb[0].mxu0
        %v6684 = vadd.f32 %v6439, %v6683
        %v6685 = vpop.f32.mrb[0].mxu0
        %v6686 = vadd.f32 %v6441, %v6685
        %6687 = vmatprep.mubr.f32.mxu0 0.0
        %v6688 = vand.u32 %v5569, 4294901760
        %6689 = vmatmul.mubr.f32.gmra.mrb[0].mxu0 %v6688
        %v6690 = vpop.f32.mrb[0].mxu0
        %v6691 = vadd.f32 %v6448, %v6690
        %v6692 = vpop.f32.mrb[0].mxu0
        %v6693 = vadd.f32 %v6450, %v6692
        %6694 = vmatprep.mubr.f32.mxu0 0.0
        %v6695 = vand.u32 %v5572, 4294901760
        %6696 = vmatmul.mubr.f32.gmra.mrb[0].mxu0 %v6695
        %v6697 = vpop.f32.mrb[0].mxu0
        %v6698 = vadd.f32 %v6457, %v6697
        %v6699 = vpop.f32.mrb[0].mxu0
        %v6700 = vadd.f32 %v6459, %v6699
        %6701 = vmatprep.mubr.f32.mxu0 0.0
        %v6702 = vand.u32 %v5575, 4294901760
        %6703 = vmatmul.mubr.f32.gmra.mrb[0].mxu0 %v6702
        %v6704 = vpop.f32.mrb[0].mxu0
        %v6705 = vadd.f32 %v6466, %v6704
        %v6706 = vpop.f32.mrb[0].mxu0
        %v6707 = vadd.f32 %v6468, %v6706
        %6708 = vmatprep.mubr.f32.mxu0 0.0
        %v6709 = vand.u32 %v5578, 4294901760
        %6710 = vmatmul.mubr.f32.gmra.mrb[0].mxu0 %v6709
        %v6711 = vpop.f32.mrb[0].mxu0
        %v6712 = vadd.f32 %v6475, %v6711
        %v6713 = vpop.f32.mrb[0].mxu0
        %v6714 = vadd.f32 %v6477, %v6713
        %6715 = vmatprep.mubr.f32.mxu0 0.0
        %v6716 = vand.u32 %v5581, 4294901760
        %6717 = vmatmul.mubr.f32.gmra.mrb[0].mxu0 %v6716
        %v6718 = vpop.f32.mrb[0].mxu0
        %v6719 = vadd.f32 %v6484, %v6718
        %v6720 = vpop.f32.mrb[0].mxu0
        %v6721 = vadd.f32 %v6486, %v6720
        %6722 = vmatprep.mubr.f32.mxu0 0.0
        %v6723 = vand.u32 %v5584, 4294901760
        %6724 = vmatmul.mubr.f32.gmra.mrb[0].mxu0 %v6723
        %v6725 = vpop.f32.mrb[0].mxu0
        %v6726 = vadd.f32 %v6493, %v6725
        %v6727 = vpop.f32.mrb[0].mxu0
        %v6728 = vadd.f32 %v6495, %v6727
        %6729 = vmatprep.mubr.f32.mxu0 0.0
        %v6730 = vand.u32 %v5587, 4294901760
        %6731 = vmatmul.mubr.f32.gmra.mrb[0].mxu0 %v6730
        %v6732 = vpop.f32.mrb[0].mxu0
        %v6733 = vadd.f32 %v6502, %v6732
        %v6734 = vpop.f32.mrb[0].mxu0
        %v6735 = vadd.f32 %v6504, %v6734
        %6736 = vmatprep.mubr.f32.mxu0 0.0
        %v6737 = vand.u32 %v5590, 4294901760
        %6738 = vmatmul.mubr.f32.gmra.mrb[0].mxu0 %v6737
        %v6739 = vpop.f32.mrb[0].mxu0
        %v6740 = vadd.f32 %v6511, %v6739
        %v6741 = vpop.f32.mrb[0].mxu0
        %v6742 = vadd.f32 %v6513, %v6741
        %6743 = vmatprep.mubr.f32.mxu0 0.0
        %v6744 = vand.u32 %v5593, 4294901760
        %6745 = vmatmul.mubr.f32.gmra.mrb[0].mxu0 %v6744
        %v6746 = vpop.f32.mrb[0].mxu0
        %v6747 = vadd.f32 %v6520, %v6746
        %v6748 = vpop.f32.mrb[0].mxu0
        %v6749 = vadd.f32 %v6522, %v6748
        %6750 = vmatprep.mubr.f32.mxu0 0.0
        %v6751 = vand.u32 %v5596, 4294901760
        %6752 = vmatmul.mubr.f32.gmra.mrb[0].mxu0 %v6751
        %v6753 = vpop.f32.mrb[0].mxu0
        %v6754 = vadd.f32 %v6529, %v6753
        %v6755 = vpop.f32.mrb[0].mxu0
        %v6756 = vadd.f32 %v6531, %v6755
        %6757 = vmatprep.mubr.f32.mxu0 0.0
        %v6758 = vand.u32 %v5599, 4294901760
        %6759 = vmatmul.mubr.f32.gmra.mrb[0].mxu0 %v6758
        %v6760 = vpop.f32.mrb[0].mxu0
        %v6761 = vadd.f32 %v6538, %v6760
        %v6762 = vpop.f32.mrb[0].mxu0
        %v6763 = vadd.f32 %v6540, %v6762
        %6764 = vmatprep.mubr.f32.mxu0 0.0
        %v6765 = vand.u32 %v5602, 4294901760
        %6766 = vmatmul.mubr.f32.gmra.mrb[0].mxu0 %v6765
        %v6767 = vpop.f32.mrb[0].mxu0
        %v6768 = vadd.f32 %v6547, %v6767
        %v6769 = vpop.f32.mrb[0].mxu0
        %v6770 = vadd.f32 %v6549, %v6769
        %6771 = vmatprep.mubr.f32.mxu0 0.0
        %v6772 = vand.u32 %v5605, 4294901760
        %6773 = vmatmul.mubr.f32.gmra.mrb[0].mxu0 %v6772
        %v6774 = vpop.f32.mrb[0].mxu0
        %v6775 = vadd.f32 %v6556, %v6774
        %v6776 = vpop.f32.mrb[0].mxu0
        %v6777 = vadd.f32 %v6558, %v6776
        %6778 = vdwg.mxu0
        %v6779 = vand.u32 %v5546, 4294901760
        %6780 = vmatprep.subr.mxu0 %v6779
        %v6781 = vand.u32 %v5545, 4294901760
        %6782 = vmatpush1.msra.mxu0 %v6781
        %v6783 = vand.u32 %v5548, 4294901760
        %6784 = vmatprep.subr.mxu0 %v6783
        %v6785 = vand.u32 %v5547, 4294901760
        %6786 = vmatpush1.msra.mxu0 %v6785
        %v6787 = vand.u32 %v5550, 4294901760
        %6788 = vmatprep.subr.mxu0 %v6787
        %v6789 = vand.u32 %v5549, 4294901760
        %6790 = vmatpush1.msra.mxu0 %v6789
        %v6791 = vand.u32 %v5552, 4294901760
        %6792 = vmatprep.subr.mxu0 %v6791
        %v6793 = vand.u32 %v5551, 4294901760
        %6794 = vmatpush1.msra.mxu0 %v6793
        %v6795 = vand.u32 %v5554, 4294901760
        %6796 = vmatprep.subr.mxu0 %v6795
        %v6797 = vand.u32 %v5553, 4294901760
        %6798 = vmatpush1.msra.mxu0 %v6797
        %v6799 = vand.u32 %v5556, 4294901760
        %6800 = vmatprep.subr.mxu0 %v6799
        %v6801 = vand.u32 %v5555, 4294901760
        %6802 = vmatpush1.msra.mxu0 %v6801
        %v6803 = vand.u32 %v5612, 4294901760
        %6804 = vmatprep.subr.mxu0 %v6803
        %v6805 = vand.u32 %v5609, 4294901760
        %6806 = vmatpush1.msra.mxu0 %v6805
        %6807 = vmatprep.subr.mxu0 0.0
        %6808 = vmatpush1.msra.mxu0 0.0
        %6809 = vmatprep.subr.mxu0 0.0
        %6810 = vmatpush1.msra.mxu0 0.0
        %6811 = vmatprep.subr.mxu0 0.0
        %6812 = vmatpush1.msra.mxu0 0.0
        %6813 = vmatprep.subr.mxu0 0.0
        %6814 = vmatpush1.msra.mxu0 0.0
        %6815 = vmatprep.subr.mxu0 0.0
        %6816 = vmatpush1.msra.mxu0 0.0
        %6817 = vmatprep.subr.mxu0 0.0
        %6818 = vmatpush1.msra.mxu0 0.0
        %6819 = vmatprep.subr.mxu0 0.0
        %6820 = vmatpush1.msra.mxu0 0.0
        %6821 = vmatprep.subr.mxu0 0.0
        %6822 = vmatpush1.msra.mxu0 0.0
        %6823 = vmatprep.subr.mxu0 0.0
        %6824 = vmatpush1.msra.mxu0 0.0
        %6825 = vmatprep.subr.mxu0 0.0
        %6826 = vmatpush1.msra.mxu0 0.0
        %6827 = vmatprep.subr.mxu0 0.0
        %6828 = vmatpush1.msra.mxu0 0.0
        %6829 = vmatprep.subr.mxu0 0.0
        %6830 = vmatpush1.msra.mxu0 0.0
        %6831 = vmatprep.subr.mxu0 0.0
        %6832 = vmatpush1.msra.mxu0 0.0
        %6833 = vmatprep.subr.mxu0 0.0
        %6834 = vmatpush1.msra.mxu0 0.0
        %6835 = vmatprep.subr.mxu0 0.0
        %6836 = vmatpush1.msra.mxu0 0.0
        %6837 = vmatprep.subr.mxu0 0.0
        %6838 = vmatpush1.msra.mxu0 0.0
        %6839 = vmatprep.subr.mxu0 0.0
        %6840 = vmatpush1.msra.mxu0 0.0
        %6841 = vmatprep.subr.mxu0 0.0
        %6842 = vmatpush1.msra.mxu0 0.0
        %6843 = vmatprep.subr.mxu0 0.0
        %6844 = vmatpush1.msra.mxu0 0.0
        %6845 = vmatprep.subr.mxu0 0.0
        %6846 = vmatpush1.msra.mxu0 0.0
        %6847 = vmatprep.subr.mxu0 0.0
        %6848 = vmatpush1.msra.mxu0 0.0
        %6849 = vmatprep.subr.mxu0 0.0
        %6850 = vmatpush1.msra.mxu0 0.0
        %6851 = vmatprep.subr.mxu0 0.0
        %6852 = vmatpush1.msra.mxu0 0.0
        %6853 = vmatprep.subr.mxu0 0.0
        %6854 = vmatpush1.msra.mxu0 0.0
        %6855 = vmatprep.subr.mxu0 0.0
        %6856 = vmatpush1.msra.mxu0 0.0
        %6857 = vmatprep.mubr.f32.mxu0 0.0
        %v6858 = vand.u32 %v5560, 4294901760
        %6859 = vmatmul.mubr.f32.gmra.mrb[0].mxu0 %v6858
        %v6860 = vpop.f32.mrb[0].mxu0
        %v6861 = vadd.f32 %v6670, %v6860
        %v6862 = vpop.f32.mrb[0].mxu0
        %v6863 = vadd.f32 %v6672, %v6862
        %6864 = vmatprep.mubr.f32.mxu0 0.0
        %v6865 = vand.u32 %v5563, 4294901760
        %6866 = vmatmul.mubr.f32.gmra.mrb[0].mxu0 %v6865
        %v6867 = vpop.f32.mrb[0].mxu0
        %v6868 = vadd.f32 %v6677, %v6867
        %v6869 = vpop.f32.mrb[0].mxu0
        %v6870 = vadd.f32 %v6679, %v6869
        %6871 = vmatprep.mubr.f32.mxu0 0.0
        %v6872 = vand.u32 %v5566, 4294901760
        %6873 = vmatmul.mubr.f32.gmra.mrb[0].mxu0 %v6872
        %v6874 = vpop.f32.mrb[0].mxu0
        %v6875 = vadd.f32 %v6684, %v6874
        %v6876 = vpop.f32.mrb[0].mxu0
        %v6877 = vadd.f32 %v6686, %v6876
        %6878 = vmatprep.mubr.f32.mxu0 0.0
        %v6879 = vand.u32 %v5569, 4294901760
        %6880 = vmatmul.mubr.f32.gmra.mrb[0].mxu0 %v6879
        %v6881 = vpop.f32.mrb[0].mxu0
        %v6882 = vadd.f32 %v6691, %v6881
        %v6883 = vpop.f32.mrb[0].mxu0
        %v6884 = vadd.f32 %v6693, %v6883
        %6885 = vmatprep.mubr.f32.mxu0 0.0
        %v6886 = vand.u32 %v5572, 4294901760
        %6887 = vmatmul.mubr.f32.gmra.mrb[0].mxu0 %v6886
        %v6888 = vpop.f32.mrb[0].mxu0
        %v6889 = vadd.f32 %v6698, %v6888
        %v6890 = vpop.f32.mrb[0].mxu0
        %v6891 = vadd.f32 %v6700, %v6890
        %6892 = vmatprep.mubr.f32.mxu0 0.0
        %v6893 = vand.u32 %v5575, 4294901760
        %6894 = vmatmul.mubr.f32.gmra.mrb[0].mxu0 %v6893
        %v6895 = vpop.f32.mrb[0].mxu0
        %v6896 = vadd.f32 %v6705, %v6895
        %v6897 = vpop.f32.mrb[0].mxu0
        %v6898 = vadd.f32 %v6707, %v6897
        %6899 = vmatprep.mubr.f32.mxu0 0.0
        %v6900 = vand.u32 %v5578, 4294901760
        %6901 = vmatmul.mubr.f32.gmra.mrb[0].mxu0 %v6900
        %v6902 = vpop.f32.mrb[0].mxu0
        %v6903 = vadd.f32 %v6712, %v6902
        %v6904 = vpop.f32.mrb[0].mxu0
        %v6905 = vadd.f32 %v6714, %v6904
        %6906 = vmatprep.mubr.f32.mxu0 0.0
        %v6907 = vand.u32 %v5581, 4294901760
        %6908 = vmatmul.mubr.f32.gmra.mrb[0].mxu0 %v6907
        %v6909 = vpop.f32.mrb[0].mxu0
        %v6910 = vadd.f32 %v6719, %v6909
        %v6911 = vpop.f32.mrb[0].mxu0
        %v6912 = vadd.f32 %v6721, %v6911
        %6913 = vmatprep.mubr.f32.mxu0 0.0
        %v6914 = vand.u32 %v5584, 4294901760
        %6915 = vmatmul.mubr.f32.gmra.mrb[0].mxu0 %v6914
        %v6916 = vpop.f32.mrb[0].mxu0
        %v6917 = vadd.f32 %v6726, %v6916
        %v6918 = vpop.f32.mrb[0].mxu0
        %v6919 = vadd.f32 %v6728, %v6918
        %6920 = vmatprep.mubr.f32.mxu0 0.0
        %v6921 = vand.u32 %v5587, 4294901760
        %6922 = vmatmul.mubr.f32.gmra.mrb[0].mxu0 %v6921
        %v6923 = vpop.f32.mrb[0].mxu0
        %v6924 = vadd.f32 %v6733, %v6923
        %v6925 = vpop.f32.mrb[0].mxu0
        %v6926 = vadd.f32 %v6735, %v6925
        %6927 = vmatprep.mubr.f32.mxu0 0.0
        %v6928 = vand.u32 %v5590, 4294901760
        %6929 = vmatmul.mubr.f32.gmra.mrb[0].mxu0 %v6928
        %v6930 = vpop.f32.mrb[0].mxu0
        %v6931 = vadd.f32 %v6740, %v6930
        %v6932 = vpop.f32.mrb[0].mxu0
        %v6933 = vadd.f32 %v6742, %v6932
        %6934 = vmatprep.mubr.f32.mxu0 0.0
        %v6935 = vand.u32 %v5593, 4294901760
        %6936 = vmatmul.mubr.f32.gmra.mrb[0].mxu0 %v6935
        %v6937 = vpop.f32.mrb[0].mxu0
        %v6938 = vadd.f32 %v6747, %v6937
        %v6939 = vpop.f32.mrb[0].mxu0
        %v6940 = vadd.f32 %v6749, %v6939
        %6941 = vmatprep.mubr.f32.mxu0 0.0
        %v6942 = vand.u32 %v5596, 4294901760
        %6943 = vmatmul.mubr.f32.gmra.mrb[0].mxu0 %v6942
        %v6944 = vpop.f32.mrb[0].mxu0
        %v6945 = vadd.f32 %v6754, %v6944
        %v6946 = vpop.f32.mrb[0].mxu0
        %v6947 = vadd.f32 %v6756, %v6946
        %6948 = vmatprep.mubr.f32.mxu0 0.0
        %v6949 = vand.u32 %v5599, 4294901760
        %6950 = vmatmul.mubr.f32.gmra.mrb[0].mxu0 %v6949
        %v6951 = vpop.f32.mrb[0].mxu0
        %v6952 = vadd.f32 %v6761, %v6951
        %v6953 = vpop.f32.mrb[0].mxu0
        %v6954 = vadd.f32 %v6763, %v6953
        %6955 = vmatprep.mubr.f32.mxu0 0.0
        %v6956 = vand.u32 %v5602, 4294901760
        %6957 = vmatmul.mubr.f32.gmra.mrb[0].mxu0 %v6956
        %v6958 = vpop.f32.mrb[0].mxu0
        %v6959 = vadd.f32 %v6768, %v6958
        %v6960 = vpop.f32.mrb[0].mxu0
        %v6961 = vadd.f32 %v6770, %v6960
        %6962 = vmatprep.mubr.f32.mxu0 0.0
        %v6963 = vand.u32 %v5605, 4294901760
        %6964 = vmatmul.mubr.f32.gmra.mrb[0].mxu0 %v6963
        %v6965 = vpop.f32.mrb[0].mxu0
        %v6966 = vadd.f32 %v6775, %v6965
        %v6967 = vpop.f32.mrb[0].mxu0
        %v6968 = vadd.f32 %v6777, %v6967
        %6969 = vdwg.mxu0
        %v6970 = vmul.f32 %v6863, %v5529
        %v6971 = vmul.f32 %v6870, %v5530
        %v6972 = vmul.f32 %v6877, %v5531
        %v6973 = vmul.f32 %v6884, %v5532
        %v6974 = vmul.f32 %v6891, %v5533
        %v6975 = vmul.f32 %v6898, %v5534
        %v6976 = vmul.f32 %v6905, %v5535
        %v6977 = vmul.f32 %v6912, %v5536
        %v6978 = vmul.f32 %v6919, %v5537
        %v6979 = vmul.f32 %v6926, %v5538
        %v6980 = vmul.f32 %v6933, %v5539
        %v6981 = vmul.f32 %v6940, %v5540
        %v6982 = vmul.f32 %v6947, %v5541
        %v6983 = vmul.f32 %v6954, %v5542
        %v6984 = vmul.f32 %v6961, %v5543
        %v6985 = vmul.f32 %v6968, %v5544
        %v6986 = vadd.f32 %v6861, %v6970
        %v6987 = vadd.f32 %v6868, %v6971
        %v6988 = vadd.f32 %v6875, %v6972
        %v6989 = vadd.f32 %v6882, %v6973
        %v6990 = vadd.f32 %v6889, %v6974
        %v6991 = vadd.f32 %v6896, %v6975
        %v6992 = vadd.f32 %v6903, %v6976
        %v6993 = vadd.f32 %v6910, %v6977
        %v6994 = vadd.f32 %v6917, %v6978
        %v6995 = vadd.f32 %v6924, %v6979
        %v6996 = vadd.f32 %v6931, %v6980
        %v6997 = vadd.f32 %v6938, %v6981
        %v6998 = vadd.f32 %v6945, %v6982
        %v6999 = vadd.f32 %v6952, %v6983
        %v7000 = vadd.f32 %v6959, %v6984
        %v7001 = vadd.f32 %v6966, %v6985
        %7002 = vst [vmem:[%s322] sm:$0xff] %v6986
        %7003 = vst [vmem:[%s322 + $0x8] sm:$0xff] %v6987
        %7004 = vst [vmem:[%s322 + $0x10] sm:$0xff] %v6988
        %7005 = vst [vmem:[%s322 + $0x18] sm:$0xff] %v6989
        %7006 = vst [vmem:[%s322 + $0x20] sm:$0xff] %v6990
        %7007 = vst [vmem:[%s322 + $0x28] sm:$0xff] %v6991
        %7008 = vst [vmem:[%s322 + $0x30] sm:$0xff] %v6992
        %7009 = vst [vmem:[%s322 + $0x38] sm:$0xff] %v6993
        %7010 = vst [vmem:[%s322 + $0x40] sm:$0xff] %v6994
        %7011 = vst [vmem:[%s322 + $0x48] sm:$0xff] %v6995
        %7012 = vst [vmem:[%s322 + $0x50] sm:$0xff] %v6996
        %7013 = vst [vmem:[%s322 + $0x58] sm:$0xff] %v6997
        %7014 = vst [vmem:[%s322 + $0x60] sm:$0xff] %v6998
        %7015 = vst [vmem:[%s322 + $0x68] sm:$0xff] %v6999
        %7016 = vst [vmem:[%s322 + $0x70] sm:$0xff] %v7000
        %7017 = vst [vmem:[%s322 + $0x78] sm:$0xff] %v7001
        %s7018 = smul.u32 16, %s20
        %p7019 = scmp.lt.s32.totalorder %s7018, 31
        %s7020 = scalar_select %p7019, %s7018, 31
        %s7021 = smul.addr %s7020, 8
        %s7022 = scalar_lea.vmem %s8, %s7021
        // Predicated region
        $region57: #{gen_mlp_forward.1} parent=51 // pred_check
          %p7023 = pneg %p211
        $region58: #{gen_mlp_forward.1} parent=51 // pred_check_branch
          %7025 = sbr.rel (%p7023) target = $region60
        $region59: #{gen_mlp_forward.1} parent=51 // pred_region
          %s7026 = smul.u32 16, %s20
        $region60: #{gen_mlp_forward.1} parent=51 // pred_fallthru
          _
      $region52: #{gen_mlp_forward.1} parent=5 // pred_fallthru
        _
      %p7027 = scmp.le.s32.totalorder 2, %s15
      // Predicated region
      $region61: #{gen_mlp_forward.1} parent=5 // pred_check
        %p7028 = pneg %p7027
      $region62: #{gen_mlp_forward.1} parent=5 // pred_check_branch
        %7030 = sbr.rel (%p7028) target = $region64
      $region63: #{gen_mlp_forward.1} parent=5 // pred_region
        %s7031 = ssub.s32 %s15, 2
        // Predicated region
        $region65: #{gen_mlp_forward.1} parent=63 // pred_check
          %p7032 = pneg %p217
        $region66: #{gen_mlp_forward.1} parent=63 // pred_check_branch
          %7034 = sbr.rel (%p7032) target = $region68
        $region67: #{gen_mlp_forward.1} parent=63 // pred_region
          %s7035 = smul.u32 16, %s21
          %p7036 = scmp.lt.s32.totalorder %s7035, 31
          %s7037 = scalar_select %p7036, %s7035, 31
          %s7038 = smul.addr %s7037, 8
          %s7039 = scalar_lea.vmem %s8, %s7038
        $region68: #{gen_mlp_forward.1} parent=63 // pred_fallthru
          _
      $region64: #{gen_mlp_forward.1} parent=5 // pred_fallthru
        _
    $region6: #{gen_mlp_forward.1} parent=1 // loop_footer
      %s19 = sadd.s32 1, %s15
    $region7: #{gen_mlp_forward.1} parent=1 // loop_footer_branch
      %14 = sbr.rel target = $region3
    $region8: #{gen_mlp_forward.1} parent=1 // loop_exit
      _
    %7040 = vsyncpa [#allocation3], 1
    %s7041 = scalar_lea.sflag [#allocation3], 1
    %7042 = vsyncpa %s7041, 1

</llo_original>
